<compile_context>
chip_gen: v7x
topology: tpu7x:2x2x1
jax: 0.10.0
libtpu: 0.0.40
codegen_flags: <defaults>
</compile_context>

<pallas_src>
import jax
import jax.numpy as jnp
from jax.experimental import pallas as pl
from jax.experimental.pallas import tpu as pltpu

EPS = 1e-5
_MB = 1024 * 1024


# ---------------------------------------------------------------------------
# In-kernel helpers
# ---------------------------------------------------------------------------

def _store_with_stats(y_f32, y_ref, s_ref):
    """Round conv output to bf16, store it, and emit (sum, sum_sq) partials."""
    yb = y_f32.astype(jnp.bfloat16)
    y_ref[...] = yb.reshape(y_ref.shape)
    yf = yb.astype(jnp.float32)                    # stats of the stored values
    s_ref[0, 0, 0:1, :] = jnp.sum(yf, axis=0, keepdims=True)
    s_ref[0, 0, 1:2, :] = jnp.sum(yf * yf, axis=0, keepdims=True)


def _bn_relu_in(v, aff_ref):
    """Apply precomputed BN affine (row 0 = scale, row 1 = shift) + ReLU in f32."""
    return jnp.maximum(v * aff_ref[0:1, :] + aff_ref[1:2, :], 0.0)


def _flat_shift(v, s):
    """u[p] = v[p + s] over the flattened row-major spatial axis, 0 outside."""
    if s == 0:
        return v
    m, c = v.shape
    pad = jnp.zeros((abs(s), c), v.dtype)
    if s > 0:
        return jnp.concatenate([v[s:, :], pad], axis=0)
    return jnp.concatenate([pad, v[:m + s, :]], axis=0)


# ---------------------------------------------------------------------------
# Kernels (one tile per grid step)
# ---------------------------------------------------------------------------

def conv1_kernel(x_ref, w_ref, y_ref, s_ref):
    tn, th, ww, cin = x_ref.shape
    m = tn * th * ww
    x2d = x_ref[...].reshape(m, cin)               # already bf16
    y = jnp.dot(x2d, w_ref[...], preferred_element_type=jnp.float32)
    _store_with_stats(y, y_ref, s_ref)


def conv1x1_bn_kernel(in_ref, aff_ref, w_ref, y_ref, s_ref):
    tn, th, ww, cin = in_ref.shape
    m = tn * th * ww
    v = _bn_relu_in(in_ref[...].reshape(m, cin).astype(jnp.float32), aff_ref)
    y = jnp.dot(v.astype(jnp.bfloat16), w_ref[...],
                preferred_element_type=jnp.float32)
    _store_with_stats(y, y_ref, s_ref)


def conv3x3_bn_kernel(in_ref, aff_ref, w_ref, y_ref, s_ref):
    tn, hh, ww, p = in_ref.shape
    m = tn * hh * ww
    v = _bn_relu_in(in_ref[...].reshape(m, p).astype(jnp.float32), aff_ref)
    v = v.astype(jnp.bfloat16)

    # Edge masks, computed ONCE as (m, 1) vectors (p-times cheaper than (m, p)):
    #   * flat sublane iota (known-supported pattern),
    #   * row masks are plain range compares on the flat index -> no division,
    #   * only the column masks need a single `% ww` (static constant).
    pos = jax.lax.broadcasted_iota(jnp.int32, (m, 1), 0)
    hw = hh * ww
    img_pos = pos % hw if tn > 1 else pos          # index within one image
    col = img_pos % ww
    not_top = img_pos >= ww                        # row >= 1
    not_bot = img_pos < (hh - 1) * ww              # row <  hh - 1
    not_left = col >= 1
    not_right = col < ww - 1
    row_mask = {-1: not_top, 0: None, 1: not_bot}
    col_mask = {-1: not_left, 0: None, 1: not_right}

    # 3x3 / stride 1 / pad 1 as ONE MXU matmul: (m, 9P) tap matrix via flat
    # shifts + precomputed edge masks (no padded VMEM scratch), K = 9P.
    taps = []
    for oy in (-1, 0, 1):
        for ox in (-1, 0, 1):
            t = _flat_shift(v, oy * ww + ox)
            rm, cm = row_mask[oy], col_mask[ox]
            if rm is None:
                mask = cm
            elif cm is None:
                mask = rm
            else:
                mask = jnp.logical_and(rm, cm)
            if mask is not None:
                t = jnp.where(mask, t, 0.0)        # (m,1) mask broadcasts on lanes
            taps.append(t)
    patches = jnp.concatenate(taps, axis=1)        # (m, 9P) bf16
    y = jnp.dot(patches, w_ref[...], preferred_element_type=jnp.float32)
    _store_with_stats(y, y_ref, s_ref)


def finalize_kernel(y3_ref, aff_ref, x_ref, o_ref):
    tn, th, ww, c = o_ref.shape
    m = tn * th * ww
    y = y3_ref[...].reshape(m, c).astype(jnp.float32)
    y = y * aff_ref[0:1, :] + aff_ref[1:2, :]                    # bn3 (no relu yet)
    res = x_ref[...].reshape(m, c).astype(jnp.float32)           # bf16 identity shortcut
    out = jnp.maximum(y + res, 0.0)
    o_ref[...] = out.reshape(o_ref.shape).astype(o_ref.dtype)


# ---------------------------------------------------------------------------
# Wrapper
# ---------------------------------------------------------------------------

def _spec_nh(block_shape):
    nd = len(block_shape)
    return pl.BlockSpec(block_shape, lambda i, j, nd=nd: (i, j) + (0,) * (nd - 2))


def _spec_n(block_shape):
    nd = len(block_shape)
    return pl.BlockSpec(block_shape, lambda i, nd=nd: (i,) + (0,) * (nd - 1))


def _full2(shape):
    nd = len(shape)
    return pl.BlockSpec(shape, lambda i, j, nd=nd: (0,) * nd)


def _full1(shape):
    nd = len(shape)
    return pl.BlockSpec(shape, lambda i, nd=nd: (0,) * nd)


def _vmem_limit_bytes():
    cap = 128 * _MB
    try:
        cap = int(pltpu.get_tpu_info().vmem_capacity_bytes)
    except Exception:
        pass
    # cap/2 leaves headroom for double-buffered I/O: ~32 MiB on v7x, ~64 MiB on v5e/v6e.
    return int(min(max(cap // 2, 32 * _MB), 96 * _MB))


def _default_tile_h(h):
    if h < 16:
        return h
    for cand in (h // 2, h // 4):
        if cand >= 1 and h % cand == 0:
            return cand
    return h


def _bn_affine(partial_stats, gamma, beta, count):
    """Fold per-tile (sum, sum_sq) partials into the BN (scale, shift) affine."""
    c = partial_stats.shape[-1]
    s = jnp.sum(partial_stats.reshape(-1, 2, c), axis=0)         # (2, C)
    mean = s[0] / count
    var = jnp.maximum(s[1] / count - mean * mean, 0.0)           # biased (BN train)
    scale = gamma.reshape(-1) * jax.lax.rsqrt(var + EPS)
    shift = beta.reshape(-1) - mean * scale
    return jnp.stack([scale, shift], axis=0).astype(jnp.float32)  # (2, C)


def bottleneck_forward_nhwc(x_nhwc, params, *, tile_n=1, tile_h=None,
                            out_dtype=jnp.float32):
    """Bottleneck forward (stride=1, downsample=None). x_nhwc: (N, H, W, Cin)."""
    x = x_nhwc.astype(jnp.bfloat16)                              # bf16 activation stream
    n, h, w, cin = x.shape
    p = params["w1"].shape[1]
    cout = params["w3"].shape[1]
    assert cin == cout, "identity shortcut requires inplanes == planes * 4"
    assert n % tile_n == 0
    g = n // tile_n
    if tile_h is None:
        tile_h = _default_tile_h(h)
    assert h % tile_h == 0
    hb = h // tile_h
    count = float(n * h * w)

    # bf16 weights for the MXU (accumulation stays f32).
    w1b = params["w1"].astype(jnp.bfloat16)                      # (Cin, P)
    w2b = params["w2"].reshape(9 * p, p).astype(jnp.bfloat16)    # (9P, P), HWIO flat
    w3b = params["w3"].astype(jnp.bfloat16)                      # (P, 4P)

    vmem_limit = _vmem_limit_bytes()
    cp2 = pltpu.CompilerParams(dimension_semantics=("parallel", "parallel"),
                               vmem_limit_bytes=vmem_limit)
    cp1 = pltpu.CompilerParams(dimension_semantics=("parallel",),
                               vmem_limit_bytes=vmem_limit)

    # ---- pass A: conv1 (1x1), batch x H-block grid ---------------------------
    y1, s1 = pl.pallas_call(
        conv1_kernel,
        out_shape=(jax.ShapeDtypeStruct((n, h, w, p), jnp.bfloat16),
                   jax.ShapeDtypeStruct((g, hb, 2, p), jnp.float32)),
        grid=(g, hb),
        in_specs=[_spec_nh((tile_n, tile_h, w, cin)), _full2((cin, p))],
        out_specs=(_spec_nh((tile_n, tile_h, w, p)),
                   pl.BlockSpec((1, 1, 2, p), lambda i, j: (i, j, 0, 0))),
        compiler_params=cp2,
    )(x, w1b)
    aff1 = _bn_affine(s1, params["g1"], params["b1"], count)

    # ---- pass B: bn1 + relu + conv2 (3x3 fused im2col), batch grid ------------
    y2, s2 = pl.pallas_call(
        conv3x3_bn_kernel,
        out_shape=(jax.ShapeDtypeStruct((n, h, w, p), jnp.bfloat16),
                   jax.ShapeDtypeStruct((g, 1, 2, p), jnp.float32)),
        grid=(g,),
        in_specs=[_spec_n((tile_n, h, w, p)), _full1((2, p)),
                  _full1((9 * p, p))],
        out_specs=(_spec_n((tile_n, h, w, p)),
                   pl.BlockSpec((1, 1, 2, p), lambda i: (i, 0, 0, 0))),
        compiler_params=cp1,
    )(y1, aff1, w2b)
    aff2 = _bn_affine(s2, params["g2"], params["b2"], count)

    # ---- pass C: bn2 + relu + conv3 (1x1), batch x H-block grid ---------------
    y3, s3 = pl.pallas_call(
        conv1x1_bn_kernel,
        out_shape=(jax.ShapeDtypeStruct((n, h, w, cout), jnp.bfloat16),
                   jax.ShapeDtypeStruct((g, hb, 2, cout), jnp.float32)),
        grid=(g, hb),
        in_specs=[_spec_nh((tile_n, tile_h, w, p)), _full2((2, p)),
                  _full2((p, cout))],
        out_specs=(_spec_nh((tile_n, tile_h, w, cout)),
                   pl.BlockSpec((1, 1, 2, cout), lambda i, j: (i, j, 0, 0))),
        compiler_params=cp2,
    )(y2, aff2, w3b)
    aff3 = _bn_affine(s3, params["g3"], params["b3"], count)

    # ---- pass D: bn3 + residual (bf16 x) + relu, batch x H-block grid ---------
    out = pl.pallas_call(
        finalize_kernel,
        out_shape=jax.ShapeDtypeStruct((n, h, w, cout), out_dtype),
        grid=(g, hb),
        in_specs=[_spec_nh((tile_n, tile_h, w, cout)), _full2((2, cout)),
                  _spec_nh((tile_n, tile_h, w, cout))],
        out_specs=_spec_nh((tile_n, tile_h, w, cout)),
        compiler_params=cp2,
    )(y3, aff3, x)

    return out


def bottleneck_forward(x_nchw, params, *, tile_n=1, tile_h=None):
    """PyTorch-interface wrapper: NCHW f32 in / NCHW f32 out."""
    x = jnp.transpose(x_nchw, (0, 2, 3, 1))                      # NHWC
    out = bottleneck_forward_nhwc(x, params, tile_n=tile_n, tile_h=tile_h,
                                  out_dtype=jnp.float32)
    return jnp.transpose(out, (0, 3, 1, 2))                      # back to NCHW


# ---------------------------------------------------------------------------
# Params / reference
# ---------------------------------------------------------------------------

def init_params(key, inplanes, planes):
    expansion = 4
    ks = jax.random.split(key, 9)
    # PyTorch conv weights are (out, in, kh, kw); convert to kernel layouts.
    w1_t = 0.2 * jax.random.normal(ks[0], (planes, inplanes, 1, 1), jnp.float32)
    w2_t = 0.2 * jax.random.normal(ks[1], (planes, planes, 3, 3), jnp.float32)
    w3_t = 0.2 * jax.random.normal(ks[2], (planes * expansion, planes, 1, 1),
                                   jnp.float32)
    g1 = 1.0 + 0.1 * jax.random.normal(ks[3], (1, planes), jnp.float32)
    b1 = 0.1 * jax.random.normal(ks[4], (1, planes), jnp.float32)
    g2 = 1.0 + 0.1 * jax.random.normal(ks[5], (1, planes), jnp.float32)
    b2 = 0.1 * jax.random.normal(ks[6], (1, planes), jnp.float32)
    g3 = 1.0 + 0.1 * jax.random.normal(ks[7], (1, planes * expansion), jnp.float32)
    b3 = 0.1 * jax.random.normal(ks[8], (1, planes * expansion), jnp.float32)
    return {
        "w1": w1_t[:, :, 0, 0].T,                    # (Cin, P)
        "w2": jnp.transpose(w2_t, (2, 3, 1, 0)),     # (3, 3, P, P)  HWIO
        "w3": w3_t[:, :, 0, 0].T,                    # (P, 4P)
        "g1": g1, "b1": b1, "g2": g2, "b2": b2, "g3": g3, "b3": b3,
    }


def ref_forward(x_nchw, params, *, matmul_dtype=jnp.float32):
    """Pure-JAX reference; matmul_dtype=bfloat16 mirrors the kernel's bf16 streams."""
    x = jnp.transpose(x_nchw, (0, 2, 3, 1)).astype(jnp.float32)
    dn = ("NHWC", "HWIO", "NHWC")

    def conv(v, wgt, padding):
        return jax.lax.conv_general_dilated(
            v.astype(matmul_dtype), wgt.astype(matmul_dtype), (1, 1), padding,
            dimension_numbers=dn, preferred_element_type=jnp.float32,
            precision=jax.lax.Precision.HIGHEST)

    def rnd(y):   # kernels store conv outputs as bf16
        if matmul_dtype == jnp.bfloat16:
            return y.astype(jnp.bfloat16).astype(jnp.float32)
        return y

    def bn(y, gam, bet):
        mean = jnp.mean(y, axis=(0, 1, 2), keepdims=True)
        var = jnp.mean(jnp.square(y - mean), axis=(0, 1, 2), keepdims=True)
        return (y - mean) * (gam.reshape(1, 1, 1, -1) * jax.lax.rsqrt(var + EPS)) \
            + bet.reshape(1, 1, 1, -1)

    # Kernel keeps the residual in bf16; mirror that in the bf16-matched ref.
    if matmul_dtype == jnp.bfloat16:
        res = x.astype(jnp.bfloat16).astype(jnp.float32)
    else:
        res = x

    w1 = params["w1"].reshape(1, 1, *params["w1"].shape)
    w3 = params["w3"].reshape(1, 1, *params["w3"].shape)
    y = rnd(conv(x, w1, "VALID"))
    y = jnp.maximum(bn(y, params["g1"], params["b1"]), 0.0)
    y = rnd(conv(y, params["w2"], "SAME"))
    y = jnp.maximum(bn(y, params["g2"], params["b2"]), 0.0)
    y = rnd(conv(y, w3, "VALID"))
    y = bn(y, params["g3"], params["b3"])
    y = jnp.maximum(y + res, 0.0)
    return jnp.transpose(y, (0, 3, 1, 2))


if __name__ == "__main__":
    key = jax.random.PRNGKey(0)
    kx, kp = jax.random.split(key)

    inplanes, planes = 16, 4          # inplanes == planes * expansion
    n, hgt, wid = 2, 16, 16
    x = jax.random.normal(kx, (n, inplanes, hgt, wid), jnp.float32)   # NCHW
    params = init_params(kp, inplanes, planes)

    fwd = jax.jit(bottleneck_forward)
    out = jax.block_until_ready(fwd(x, params))
    assert out.shape == (n, inplanes, hgt, wid), out.shape

    # Tight check against a reference that mirrors the kernel's bf16 streams.
    ref_b = ref_forward(x, params, matmul_dtype=jnp.bfloat16)
    err_b = float(jnp.max(jnp.abs(out - ref_b)))
    assert jnp.allclose(out, ref_b, atol=1e-2, rtol=1e-2), \
        f"bf16-matched reference max abs err {err_b}"

    # Sanity check against the full-f32 reference (bf16 matmul precision).
    ref_f = ref_forward(x, params, matmul_dtype=jnp.float32)
    rel_l2 = float(jnp.linalg.norm(out - ref_f) / jnp.linalg.norm(ref_f))
    assert rel_l2 < 2e-2, f"relative L2 vs f32 reference too large: {rel_l2}"

    print("KERNEL_OK")
</pallas_src>

<mosaic_0001>
module attributes {stable_mosaic.version = 11 : i64} {
  func.func @conv1_kernel(%arg0: i32, %arg1: i32, %arg2: memref<1x8x16x16xbf16, #tpu.memory_space<vmem>>, %arg3: memref<16x4xbf16, #tpu.memory_space<vmem>>, %arg4: memref<1x8x16x4xbf16, #tpu.memory_space<vmem>>, %arg5: memref<1x1x2x4xf32, #tpu.memory_space<vmem>>) attributes {dimension_semantics = [#tpu.dimension_semantics<parallel>, #tpu.dimension_semantics<parallel>], iteration_bounds = array<i64: 2, 2>, scalar_prefetch = 0 : i64, scratch_operands = 0 : i64, tpu.core_type = #tpu.core_type<tc>, window_params = [{transform_indices = @transform_0, window_bounds = array<i64: 1, 8, 16, 16>}, {pipeline_mode = #tpu.pipeline_mode<synchronous>, transform_indices = @transform_1, window_bounds = array<i64: 16, 4>}, {transform_indices = @transform_2, window_bounds = array<i64: 1, 8, 16, 4>}, {transform_indices = @transform_3, window_bounds = array<i64: 1, 1, 2, 4>}]} {
    %c0 = arith.constant 0 : index
    %c0_0 = arith.constant 0 : index
    %c0_1 = arith.constant 0 : index
    %c0_2 = arith.constant 0 : index
    %0 = vector.load %arg2[%c0, %c0_0, %c0_1, %c0_2] : memref<1x8x16x16xbf16, #tpu.memory_space<vmem>>, vector<1x8x16x16xbf16>
    %1 = vector.shape_cast %0 : vector<1x8x16x16xbf16> to vector<128x16xbf16>
    %c0_3 = arith.constant 0 : index
    %c0_4 = arith.constant 0 : index
    %2 = vector.load %arg3[%c0_3, %c0_4] : memref<16x4xbf16, #tpu.memory_space<vmem>>, vector<16x4xbf16>
    %cst = arith.constant dense<0.000000e+00> : vector<128x4xf32>
    %3 = tpu.matmul %1, %2, %cst {dimension_numbers = #tpu.dot_dimension_numbers<[1], [0], [0], [1], [0, 0, 1, 1], [], []>} : vector<128x16xbf16>, vector<16x4xbf16>, vector<128x4xf32> -> vector<128x4xf32>
    %4 = arith.truncf %3 : vector<128x4xf32> to vector<128x4xbf16>
    %5 = vector.shape_cast %4 : vector<128x4xbf16> to vector<1x8x16x4xbf16>
    %c0_5 = arith.constant 0 : index
    %c0_6 = arith.constant 0 : index
    %c0_7 = arith.constant 0 : index
    %c0_8 = arith.constant 0 : index
    %6 = vector.load %arg4[%c0_5, %c0_6, %c0_7, %c0_8] : memref<1x8x16x4xbf16, #tpu.memory_space<vmem>>, vector<1x8x16x4xbf16>
    tpu.vector_store %arg4[%c0_5, %c0_6, %c0_7, %c0_8], %5 {strides = array<i32>} : memref<1x8x16x4xbf16, #tpu.memory_space<vmem>>, vector<1x8x16x4xbf16>,
    %7 = arith.extf %4 : vector<128x4xbf16> to vector<128x4xf32>
    %cst_9 = arith.constant dense<0.000000e+00> : vector<4xf32>
    %8 = vector.multi_reduction <add>, %7, %cst_9 [0] : vector<128x4xf32> to vector<4xf32>
    %9 = vector.shape_cast %8 : vector<4xf32> to vector<1x4xf32>
    %c0_10 = arith.constant 0 : index
    %c0_11 = arith.constant 0 : index
    %c0_12 = arith.constant 0 : index
    %c0_13 = arith.constant 0 : index
    %10 = vector.load %arg5[%c0_10, %c0_11, %c0_12, %c0_13] : memref<1x1x2x4xf32, #tpu.memory_space<vmem>>, vector<1x1x1x4xf32>
    %11 = vector.shape_cast %10 : vector<1x1x1x4xf32> to vector<1x4xf32>
    %12 = vector.shape_cast %9 : vector<1x4xf32> to vector<1x1x1x4xf32>
    tpu.vector_store %arg5[%c0_10, %c0_11, %c0_12, %c0_13], %12 {strides = array<i32>} : memref<1x1x2x4xf32, #tpu.memory_space<vmem>>, vector<1x1x1x4xf32>,
    %13 = arith.mulf %7, %7 : vector<128x4xf32>
    %cst_14 = arith.constant dense<0.000000e+00> : vector<4xf32>
    %14 = vector.multi_reduction <add>, %13, %cst_14 [0] : vector<128x4xf32> to vector<4xf32>
    %15 = vector.shape_cast %14 : vector<4xf32> to vector<1x4xf32>
    %c0_15 = arith.constant 0 : index
    %c0_16 = arith.constant 0 : index
    %c1 = arith.constant 1 : index
    %c0_17 = arith.constant 0 : index
    %16 = vector.load %arg5[%c0_15, %c0_16, %c1, %c0_17] : memref<1x1x2x4xf32, #tpu.memory_space<vmem>>, vector<1x1x1x4xf32>
    %17 = vector.shape_cast %16 : vector<1x1x1x4xf32> to vector<1x4xf32>
    %18 = vector.shape_cast %15 : vector<1x4xf32> to vector<1x1x1x4xf32>
    tpu.vector_store %arg5[%c0_15, %c0_16, %c1, %c0_17], %18 {strides = array<i32>} : memref<1x1x2x4xf32, #tpu.memory_space<vmem>>, vector<1x1x1x4xf32>,
    return
  }
  func.func @transform_0(%arg0: i32, %arg1: i32) -> (i32, i32, i32, i32) {
    %c0_i32 = arith.constant 0 : i32
    %c0_i32_0 = arith.constant 0 : i32
    %c0_i32_1 = arith.constant 0 : i32
    return %arg0, %arg1, %c0_i32, %c0_i32_0 : i32, i32, i32, i32
  }
  func.func @transform_1(%arg0: i32, %arg1: i32) -> (i32, i32) {
    %c0_i32 = arith.constant 0 : i32
    %c0_i32_0 = arith.constant 0 : i32
    %c0_i32_1 = arith.constant 0 : i32
    return %c0_i32, %c0_i32_0 : i32, i32
  }
  func.func @transform_2(%arg0: i32, %arg1: i32) -> (i32, i32, i32, i32) {
    %c0_i32 = arith.constant 0 : i32
    %c0_i32_0 = arith.constant 0 : i32
    %c0_i32_1 = arith.constant 0 : i32
    return %arg0, %arg1, %c0_i32, %c0_i32_0 : i32, i32, i32, i32
  }
  func.func @transform_3(%arg0: i32, %arg1: i32) -> (i32, i32, i32, i32) {
    %c0_i32 = arith.constant 0 : i32
    %c0_i32_0 = arith.constant 0 : i32
    %c0_i32_1 = arith.constant 0 : i32
    return %arg0, %arg1, %c0_i32, %c0_i32_0 : i32, i32, i32, i32
  }
}

module attributes {stable_mosaic.version = 11 : i64} {
  func.func @conv3x3_bn_kernel(%arg0: i32, %arg1: memref<1x16x16x4xbf16, #tpu.memory_space<vmem>>, %arg2: memref<2x4xf32, #tpu.memory_space<vmem>>, %arg3: memref<36x4xbf16, #tpu.memory_space<vmem>>, %arg4: memref<1x16x16x4xbf16, #tpu.memory_space<vmem>>, %arg5: memref<1x1x2x4xf32, #tpu.memory_space<vmem>>) attributes {dimension_semantics = [#tpu.dimension_semantics<parallel>], iteration_bounds = array<i64: 2>, scalar_prefetch = 0 : i64, scratch_operands = 0 : i64, tpu.core_type = #tpu.core_type<tc>, window_params = [{transform_indices = @transform_0, window_bounds = array<i64: 1, 16, 16, 4>}, {pipeline_mode = #tpu.pipeline_mode<synchronous>, transform_indices = @transform_1, window_bounds = array<i64: 2, 4>}, {pipeline_mode = #tpu.pipeline_mode<synchronous>, transform_indices = @transform_2, window_bounds = array<i64: 36, 4>}, {transform_indices = @transform_3, window_bounds = array<i64: 1, 16, 16, 4>}, {transform_indices = @transform_4, window_bounds = array<i64: 1, 1, 2, 4>}]} {
    %c0 = arith.constant 0 : index
    %c0_0 = arith.constant 0 : index
    %c0_1 = arith.constant 0 : index
    %c0_2 = arith.constant 0 : index
    %0 = vector.load %arg1[%c0, %c0_0, %c0_1, %c0_2] : memref<1x16x16x4xbf16, #tpu.memory_space<vmem>>, vector<1x16x16x4xbf16>
    %1 = vector.shape_cast %0 : vector<1x16x16x4xbf16> to vector<256x4xbf16>
    %2 = arith.extf %1 : vector<256x4xbf16> to vector<256x4xf32>
    %c0_3 = arith.constant 0 : index
    %c0_4 = arith.constant 0 : index
    %3 = vector.load %arg2[%c0_3, %c0_4] : memref<2x4xf32, #tpu.memory_space<vmem>>, vector<1x4xf32>
    %4 = vector.broadcast %3 : vector<1x4xf32> to vector<256x4xf32>
    %5 = arith.mulf %2, %4 : vector<256x4xf32>
    %c1 = arith.constant 1 : index
    %c0_5 = arith.constant 0 : index
    %6 = vector.load %arg2[%c1, %c0_5] : memref<2x4xf32, #tpu.memory_space<vmem>>, vector<1x4xf32>
    %7 = vector.broadcast %6 : vector<1x4xf32> to vector<256x4xf32>
    %8 = arith.addf %5, %7 : vector<256x4xf32>
    %cst = arith.constant 0.000000e+00 : f32
    %9 = vector.broadcast %cst : f32 to vector<256x4xf32>
    %10 = arith.maximumf %8, %9 : vector<256x4xf32>
    %11 = arith.truncf %10 : vector<256x4xf32> to vector<256x4xbf16>
    %12 = tpu.iota {dimensions = array<i32: 0>} : vector<256x1xi32>
    %c16_i32 = arith.constant 16 : i32
    %c0_i32 = arith.constant 0 : i32
    %13 = arith.cmpi eq, %c16_i32, %c0_i32 : i32
    %c1_i32 = arith.constant 1 : i32
    %14 = arith.select %13, %c1_i32, %c16_i32 : i32
    %15 = vector.broadcast %14 : i32 to vector<256x1xi32>
    %16 = arith.remsi %12, %15 : vector<256x1xi32>
    %c0_i32_6 = arith.constant 0 : i32
    %17 = vector.broadcast %c0_i32_6 : i32 to vector<256x1xi32>
    %18 = arith.cmpi ne, %16, %17 : vector<256x1xi32>
    %c0_i32_7 = arith.constant 0 : i32
    %19 = vector.broadcast %c0_i32_7 : i32 to vector<256x1xi32>
    %20 = arith.cmpi slt, %16, %19 : vector<256x1xi32>
    %c0_i32_8 = arith.constant 0 : i32
    %21 = arith.cmpi slt, %14, %c0_i32_8 : i32
    %22 = vector.broadcast %21 : i1 to vector<256x1xi1>
    %23 = vector.broadcast %22 : vector<256x1xi1> to vector<256x1xi1>
    %24 = arith.xori %20, %23 : vector<256x1xi1>
    %25 = arith.andi %24, %18 : vector<256x1xi1>
    %26 = vector.broadcast %14 : i32 to vector<256x1xi32>
    %27 = arith.addi %16, %26 : vector<256x1xi32>
    %28 = arith.select %25, %27, %16 : vector<256x1xi1>, vector<256x1xi32>
    %c16_i32_9 = arith.constant 16 : i32
    %29 = vector.broadcast %c16_i32_9 : i32 to vector<256x1xi32>
    %30 = arith.cmpi sge, %12, %29 : vector<256x1xi32>
    %c240_i32 = arith.constant 240 : i32
    %31 = vector.broadcast %c240_i32 : i32 to vector<256x1xi32>
    %32 = arith.cmpi slt, %12, %31 : vector<256x1xi32>
    %c1_i32_10 = arith.constant 1 : i32
    %33 = vector.broadcast %c1_i32_10 : i32 to vector<256x1xi32>
    %34 = arith.cmpi sge, %28, %33 : vector<256x1xi32>
    %c15_i32 = arith.constant 15 : i32
    %35 = vector.broadcast %c15_i32 : i32 to vector<256x1xi32>
    %36 = arith.cmpi slt, %28, %35 : vector<256x1xi32>
    %cst_11 = arith.constant 0.000000e+00 : bf16
    %37 = vector.broadcast %cst_11 : bf16 to vector<17x4xbf16>
    %38 = vector.extract_strided_slice %11 {offsets = [0, 0], sizes = [239, 4], strides = [1, 1]} : vector<256x4xbf16> to vector<239x4xbf16>
    %39 = tpu.concatenate %37, %38 in 0 : vector<17x4xbf16>, vector<239x4xbf16> -> vector<256x4xbf16>
    %40 = arith.andi %30, %34 : vector<256x1xi1>
    %cst_12 = arith.constant 0.000000e+00 : f32
    %41 = arith.truncf %cst_12 : f32 to bf16
    %42 = vector.shape_cast %40 : vector<256x1xi1> to vector<256x1xi1>
    %43 = vector.broadcast %42 : vector<256x1xi1> to vector<256x4xi1>
    %44 = vector.broadcast %41 : bf16 to vector<256x4xbf16>
    %45 = arith.select %43, %39, %44 : vector<256x4xi1>, vector<256x4xbf16>
    %cst_13 = arith.constant 0.000000e+00 : bf16
    %46 = vector.broadcast %cst_13 : bf16 to vector<16x4xbf16>
    %47 = vector.extract_strided_slice %11 {offsets = [0, 0], sizes = [240, 4], strides = [1, 1]} : vector<256x4xbf16> to vector<240x4xbf16>
    %48 = tpu.concatenate %46, %47 in 0 : vector<16x4xbf16>, vector<240x4xbf16> -> vector<256x4xbf16>
    %cst_14 = arith.constant 0.000000e+00 : f32
    %49 = arith.truncf %cst_14 : f32 to bf16
    %50 = vector.shape_cast %30 : vector<256x1xi1> to vector<256x1xi1>
    %51 = vector.broadcast %50 : vector<256x1xi1> to vector<256x4xi1>
    %52 = vector.broadcast %49 : bf16 to vector<256x4xbf16>
    %53 = arith.select %51, %48, %52 : vector<256x4xi1>, vector<256x4xbf16>
    %cst_15 = arith.constant 0.000000e+00 : bf16
    %54 = vector.broadcast %cst_15 : bf16 to vector<15x4xbf16>
    %55 = vector.extract_strided_slice %11 {offsets = [0, 0], sizes = [241, 4], strides = [1, 1]} : vector<256x4xbf16> to vector<241x4xbf16>
    %56 = tpu.concatenate %54, %55 in 0 : vector<15x4xbf16>, vector<241x4xbf16> -> vector<256x4xbf16>
    %57 = arith.andi %30, %36 : vector<256x1xi1>
    %cst_16 = arith.constant 0.000000e+00 : f32
    %58 = arith.truncf %cst_16 : f32 to bf16
    %59 = vector.shape_cast %57 : vector<256x1xi1> to vector<256x1xi1>
    %60 = vector.broadcast %59 : vector<256x1xi1> to vector<256x4xi1>
    %61 = vector.broadcast %58 : bf16 to vector<256x4xbf16>
    %62 = arith.select %60, %56, %61 : vector<256x4xi1>, vector<256x4xbf16>
    %cst_17 = arith.constant 0.000000e+00 : bf16
    %63 = vector.broadcast %cst_17 : bf16 to vector<1x4xbf16>
    %64 = vector.extract_strided_slice %11 {offsets = [0, 0], sizes = [255, 4], strides = [1, 1]} : vector<256x4xbf16> to vector<255x4xbf16>
    %65 = tpu.concatenate %63, %64 in 0 : vector<1x4xbf16>, vector<255x4xbf16> -> vector<256x4xbf16>
    %cst_18 = arith.constant 0.000000e+00 : f32
    %66 = arith.truncf %cst_18 : f32 to bf16
    %67 = vector.shape_cast %34 : vector<256x1xi1> to vector<256x1xi1>
    %68 = vector.broadcast %67 : vector<256x1xi1> to vector<256x4xi1>
    %69 = vector.broadcast %66 : bf16 to vector<256x4xbf16>
    %70 = arith.select %68, %65, %69 : vector<256x4xi1>, vector<256x4xbf16>
    %cst_19 = arith.constant 0.000000e+00 : bf16
    %71 = vector.broadcast %cst_19 : bf16 to vector<1x4xbf16>
    %72 = vector.extract_strided_slice %11 {offsets = [1, 0], sizes = [255, 4], strides = [1, 1]} : vector<256x4xbf16> to vector<255x4xbf16>
    %73 = tpu.concatenate %72, %71 in 0 : vector<255x4xbf16>, vector<1x4xbf16> -> vector<256x4xbf16>
    %cst_20 = arith.constant 0.000000e+00 : f32
    %74 = arith.truncf %cst_20 : f32 to bf16
    %75 = vector.shape_cast %36 : vector<256x1xi1> to vector<256x1xi1>
    %76 = vector.broadcast %75 : vector<256x1xi1> to vector<256x4xi1>
    %77 = vector.broadcast %74 : bf16 to vector<256x4xbf16>
    %78 = arith.select %76, %73, %77 : vector<256x4xi1>, vector<256x4xbf16>
    %cst_21 = arith.constant 0.000000e+00 : bf16
    %79 = vector.broadcast %cst_21 : bf16 to vector<15x4xbf16>
    %80 = vector.extract_strided_slice %11 {offsets = [15, 0], sizes = [241, 4], strides = [1, 1]} : vector<256x4xbf16> to vector<241x4xbf16>
    %81 = tpu.concatenate %80, %79 in 0 : vector<241x4xbf16>, vector<15x4xbf16> -> vector<256x4xbf16>
    %82 = arith.andi %32, %34 : vector<256x1xi1>
    %cst_22 = arith.constant 0.000000e+00 : f32
    %83 = arith.truncf %cst_22 : f32 to bf16
    %84 = vector.shape_cast %82 : vector<256x1xi1> to vector<256x1xi1>
    %85 = vector.broadcast %84 : vector<256x1xi1> to vector<256x4xi1>
    %86 = vector.broadcast %83 : bf16 to vector<256x4xbf16>
    %87 = arith.select %85, %81, %86 : vector<256x4xi1>, vector<256x4xbf16>
    %cst_23 = arith.constant 0.000000e+00 : bf16
    %88 = vector.broadcast %cst_23 : bf16 to vector<16x4xbf16>
    %89 = vector.extract_strided_slice %11 {offsets = [16, 0], sizes = [240, 4], strides = [1, 1]} : vector<256x4xbf16> to vector<240x4xbf16>
    %90 = tpu.concatenate %89, %88 in 0 : vector<240x4xbf16>, vector<16x4xbf16> -> vector<256x4xbf16>
    %cst_24 = arith.constant 0.000000e+00 : f32
    %91 = arith.truncf %cst_24 : f32 to bf16
    %92 = vector.shape_cast %32 : vector<256x1xi1> to vector<256x1xi1>
    %93 = vector.broadcast %92 : vector<256x1xi1> to vector<256x4xi1>
    %94 = vector.broadcast %91 : bf16 to vector<256x4xbf16>
    %95 = arith.select %93, %90, %94 : vector<256x4xi1>, vector<256x4xbf16>
    %cst_25 = arith.constant 0.000000e+00 : bf16
    %96 = vector.broadcast %cst_25 : bf16 to vector<17x4xbf16>
    %97 = vector.extract_strided_slice %11 {offsets = [17, 0], sizes = [239, 4], strides = [1, 1]} : vector<256x4xbf16> to vector<239x4xbf16>
    %98 = tpu.concatenate %97, %96 in 0 : vector<239x4xbf16>, vector<17x4xbf16> -> vector<256x4xbf16>
    %99 = arith.andi %32, %36 : vector<256x1xi1>
    %cst_26 = arith.constant 0.000000e+00 : f32
    %100 = arith.truncf %cst_26 : f32 to bf16
    %101 = vector.shape_cast %99 : vector<256x1xi1> to vector<256x1xi1>
    %102 = vector.broadcast %101 : vector<256x1xi1> to vector<256x4xi1>
    %103 = vector.broadcast %100 : bf16 to vector<256x4xbf16>
    %104 = arith.select %102, %98, %103 : vector<256x4xi1>, vector<256x4xbf16>
    %105 = tpu.concatenate %45, %53, %62, %70, %11, %78, %87, %95, %104 in 1 : vector<256x4xbf16>, vector<256x4xbf16>, vector<256x4xbf16>, vector<256x4xbf16>, vector<256x4xbf16>, vector<256x4xbf16>, vector<256x4xbf16>, vector<256x4xbf16>, vector<256x4xbf16> -> vector<256x36xbf16>
    %c0_27 = arith.constant 0 : index
    %c0_28 = arith.constant 0 : index
    %106 = vector.load %arg3[%c0_27, %c0_28] : memref<36x4xbf16, #tpu.memory_space<vmem>>, vector<36x4xbf16>
    %cst_29 = arith.constant dense<0.000000e+00> : vector<256x4xf32>
    %107 = tpu.matmul %105, %106, %cst_29 {dimension_numbers = #tpu.dot_dimension_numbers<[1], [0], [0], [1], [0, 0, 1, 1], [], []>} : vector<256x36xbf16>, vector<36x4xbf16>, vector<256x4xf32> -> vector<256x4xf32>
    %108 = arith.truncf %107 : vector<256x4xf32> to vector<256x4xbf16>
    %109 = vector.shape_cast %108 : vector<256x4xbf16> to vector<1x16x16x4xbf16>
    %c0_30 = arith.constant 0 : index
    %c0_31 = arith.constant 0 : index
    %c0_32 = arith.constant 0 : index
    %c0_33 = arith.constant 0 : index
    %110 = vector.load %arg4[%c0_30, %c0_31, %c0_32, %c0_33] : memref<1x16x16x4xbf16, #tpu.memory_space<vmem>>, vector<1x16x16x4xbf16>
    tpu.vector_store %arg4[%c0_30, %c0_31, %c0_32, %c0_33], %109 {strides = array<i32>} : memref<1x16x16x4xbf16, #tpu.memory_space<vmem>>, vector<1x16x16x4xbf16>,
    %111 = arith.extf %108 : vector<256x4xbf16> to vector<256x4xf32>
    %cst_34 = arith.constant dense<0.000000e+00> : vector<4xf32>
    %112 = vector.multi_reduction <add>, %111, %cst_34 [0] : vector<256x4xf32> to vector<4xf32>
    %113 = vector.shape_cast %112 : vector<4xf32> to vector<1x4xf32>
    %c0_35 = arith.constant 0 : index
    %c0_36 = arith.constant 0 : index
    %c0_37 = arith.constant 0 : index
    %c0_38 = arith.constant 0 : index
    %114 = vector.load %arg5[%c0_35, %c0_36, %c0_37, %c0_38] : memref<1x1x2x4xf32, #tpu.memory_space<vmem>>, vector<1x1x1x4xf32>
    %115 = vector.shape_cast %114 : vector<1x1x1x4xf32> to vector<1x4xf32>
    %116 = vector.shape_cast %113 : vector<1x4xf32> to vector<1x1x1x4xf32>
    tpu.vector_store %arg5[%c0_35, %c0_36, %c0_37, %c0_38], %116 {strides = array<i32>} : memref<1x1x2x4xf32, #tpu.memory_space<vmem>>, vector<1x1x1x4xf32>,
    %117 = arith.mulf %111, %111 : vector<256x4xf32>
    %cst_39 = arith.constant dense<0.000000e+00> : vector<4xf32>
    %118 = vector.multi_reduction <add>, %117, %cst_39 [0] : vector<256x4xf32> to vector<4xf32>
    %119 = vector.shape_cast %118 : vector<4xf32> to vector<1x4xf32>
    %c0_40 = arith.constant 0 : index
    %c0_41 = arith.constant 0 : index
    %c1_42 = arith.constant 1 : index
    %c0_43 = arith.constant 0 : index
    %120 = vector.load %arg5[%c0_40, %c0_41, %c1_42, %c0_43] : memref<1x1x2x4xf32, #tpu.memory_space<vmem>>, vector<1x1x1x4xf32>
    %121 = vector.shape_cast %120 : vector<1x1x1x4xf32> to vector<1x4xf32>
    %122 = vector.shape_cast %119 : vector<1x4xf32> to vector<1x1x1x4xf32>
    tpu.vector_store %arg5[%c0_40, %c0_41, %c1_42, %c0_43], %122 {strides = array<i32>} : memref<1x1x2x4xf32, #tpu.memory_space<vmem>>, vector<1x1x1x4xf32>,
    return
  }
  func.func @transform_0(%arg0: i32) -> (i32, i32, i32, i32) {
    %c0_i32 = arith.constant 0 : i32
    %c0_i32_0 = arith.constant 0 : i32
    %c0_i32_1 = arith.constant 0 : i32
    %c0_i32_2 = arith.constant 0 : i32
    return %arg0, %c0_i32, %c0_i32_0, %c0_i32_1 : i32, i32, i32, i32
  }
  func.func @transform_1(%arg0: i32) -> (i32, i32) {
    %c0_i32 = arith.constant 0 : i32
    %c0_i32_0 = arith.constant 0 : i32
    %c0_i32_1 = arith.constant 0 : i32
    return %c0_i32, %c0_i32_0 : i32, i32
  }
  func.func @transform_2(%arg0: i32) -> (i32, i32) {
    %c0_i32 = arith.constant 0 : i32
    %c0_i32_0 = arith.constant 0 : i32
    %c0_i32_1 = arith.constant 0 : i32
    return %c0_i32, %c0_i32_0 : i32, i32
  }
  func.func @transform_3(%arg0: i32) -> (i32, i32, i32, i32) {
    %c0_i32 = arith.constant 0 : i32
    %c0_i32_0 = arith.constant 0 : i32
    %c0_i32_1 = arith.constant 0 : i32
    %c0_i32_2 = arith.constant 0 : i32
    return %arg0, %c0_i32, %c0_i32_0, %c0_i32_1 : i32, i32, i32, i32
  }
  func.func @transform_4(%arg0: i32) -> (i32, i32, i32, i32) {
    %c0_i32 = arith.constant 0 : i32
    %c0_i32_0 = arith.constant 0 : i32
    %c0_i32_1 = arith.constant 0 : i32
    %c0_i32_2 = arith.constant 0 : i32
    return %arg0, %c0_i32, %c0_i32_0, %c0_i32_1 : i32, i32, i32, i32
  }
}

module attributes {stable_mosaic.version = 11 : i64} {
  func.func @conv1x1_bn_kernel(%arg0: i32, %arg1: i32, %arg2: memref<1x8x16x4xbf16, #tpu.memory_space<vmem>>, %arg3: memref<2x4xf32, #tpu.memory_space<vmem>>, %arg4: memref<4x16xbf16, #tpu.memory_space<vmem>>, %arg5: memref<1x8x16x16xbf16, #tpu.memory_space<vmem>>, %arg6: memref<1x1x2x16xf32, #tpu.memory_space<vmem>>) attributes {dimension_semantics = [#tpu.dimension_semantics<parallel>, #tpu.dimension_semantics<parallel>], iteration_bounds = array<i64: 2, 2>, scalar_prefetch = 0 : i64, scratch_operands = 0 : i64, tpu.core_type = #tpu.core_type<tc>, window_params = [{transform_indices = @transform_0, window_bounds = array<i64: 1, 8, 16, 4>}, {pipeline_mode = #tpu.pipeline_mode<synchronous>, transform_indices = @transform_1, window_bounds = array<i64: 2, 4>}, {pipeline_mode = #tpu.pipeline_mode<synchronous>, transform_indices = @transform_2, window_bounds = array<i64: 4, 16>}, {transform_indices = @transform_3, window_bounds = array<i64: 1, 8, 16, 16>}, {transform_indices = @transform_4, window_bounds = array<i64: 1, 1, 2, 16>}]} {
    %c0 = arith.constant 0 : index
    %c0_0 = arith.constant 0 : index
    %c0_1 = arith.constant 0 : index
    %c0_2 = arith.constant 0 : index
    %0 = vector.load %arg2[%c0, %c0_0, %c0_1, %c0_2] : memref<1x8x16x4xbf16, #tpu.memory_space<vmem>>, vector<1x8x16x4xbf16>
    %1 = vector.shape_cast %0 : vector<1x8x16x4xbf16> to vector<128x4xbf16>
    %2 = arith.extf %1 : vector<128x4xbf16> to vector<128x4xf32>
    %c0_3 = arith.constant 0 : index
    %c0_4 = arith.constant 0 : index
    %3 = vector.load %arg3[%c0_3, %c0_4] : memref<2x4xf32, #tpu.memory_space<vmem>>, vector<1x4xf32>
    %4 = vector.broadcast %3 : vector<1x4xf32> to vector<128x4xf32>
    %5 = arith.mulf %2, %4 : vector<128x4xf32>
    %c1 = arith.constant 1 : index
    %c0_5 = arith.constant 0 : index
    %6 = vector.load %arg3[%c1, %c0_5] : memref<2x4xf32, #tpu.memory_space<vmem>>, vector<1x4xf32>
    %7 = vector.broadcast %6 : vector<1x4xf32> to vector<128x4xf32>
    %8 = arith.addf %5, %7 : vector<128x4xf32>
    %cst = arith.constant 0.000000e+00 : f32
    %9 = vector.broadcast %cst : f32 to vector<128x4xf32>
    %10 = arith.maximumf %8, %9 : vector<128x4xf32>
    %11 = arith.truncf %10 : vector<128x4xf32> to vector<128x4xbf16>
    %c0_6 = arith.constant 0 : index
    %c0_7 = arith.constant 0 : index
    %12 = vector.load %arg4[%c0_6, %c0_7] : memref<4x16xbf16, #tpu.memory_space<vmem>>, vector<4x16xbf16>
    %cst_8 = arith.constant dense<0.000000e+00> : vector<128x16xf32>
    %13 = tpu.matmul %11, %12, %cst_8 {dimension_numbers = #tpu.dot_dimension_numbers<[1], [0], [0], [1], [0, 0, 1, 1], [], []>} : vector<128x4xbf16>, vector<4x16xbf16>, vector<128x16xf32> -> vector<128x16xf32>
    %14 = arith.truncf %13 : vector<128x16xf32> to vector<128x16xbf16>
    %15 = vector.shape_cast %14 : vector<128x16xbf16> to vector<1x8x16x16xbf16>
    %c0_9 = arith.constant 0 : index
    %c0_10 = arith.constant 0 : index
    %c0_11 = arith.constant 0 : index
    %c0_12 = arith.constant 0 : index
    %16 = vector.load %arg5[%c0_9, %c0_10, %c0_11, %c0_12] : memref<1x8x16x16xbf16, #tpu.memory_space<vmem>>, vector<1x8x16x16xbf16>
    tpu.vector_store %arg5[%c0_9, %c0_10, %c0_11, %c0_12], %15 {strides = array<i32>} : memref<1x8x16x16xbf16, #tpu.memory_space<vmem>>, vector<1x8x16x16xbf16>,
    %17 = arith.extf %14 : vector<128x16xbf16> to vector<128x16xf32>
    %cst_13 = arith.constant dense<0.000000e+00> : vector<16xf32>
    %18 = vector.multi_reduction <add>, %17, %cst_13 [0] : vector<128x16xf32> to vector<16xf32>
    %19 = vector.shape_cast %18 : vector<16xf32> to vector<1x16xf32>
    %c0_14 = arith.constant 0 : index
    %c0_15 = arith.constant 0 : index
    %c0_16 = arith.constant 0 : index
    %c0_17 = arith.constant 0 : index
    %20 = vector.load %arg6[%c0_14, %c0_15, %c0_16, %c0_17] : memref<1x1x2x16xf32, #tpu.memory_space<vmem>>, vector<1x1x1x16xf32>
    %21 = vector.shape_cast %20 : vector<1x1x1x16xf32> to vector<1x16xf32>
    %22 = vector.shape_cast %19 : vector<1x16xf32> to vector<1x1x1x16xf32>
    tpu.vector_store %arg6[%c0_14, %c0_15, %c0_16, %c0_17], %22 {strides = array<i32>} : memref<1x1x2x16xf32, #tpu.memory_space<vmem>>, vector<1x1x1x16xf32>,
    %23 = arith.mulf %17, %17 : vector<128x16xf32>
    %cst_18 = arith.constant dense<0.000000e+00> : vector<16xf32>
    %24 = vector.multi_reduction <add>, %23, %cst_18 [0] : vector<128x16xf32> to vector<16xf32>
    %25 = vector.shape_cast %24 : vector<16xf32> to vector<1x16xf32>
    %c0_19 = arith.constant 0 : index
    %c0_20 = arith.constant 0 : index
    %c1_21 = arith.constant 1 : index
    %c0_22 = arith.constant 0 : index
    %26 = vector.load %arg6[%c0_19, %c0_20, %c1_21, %c0_22] : memref<1x1x2x16xf32, #tpu.memory_space<vmem>>, vector<1x1x1x16xf32>
    %27 = vector.shape_cast %26 : vector<1x1x1x16xf32> to vector<1x16xf32>
    %28 = vector.shape_cast %25 : vector<1x16xf32> to vector<1x1x1x16xf32>
    tpu.vector_store %arg6[%c0_19, %c0_20, %c1_21, %c0_22], %28 {strides = array<i32>} : memref<1x1x2x16xf32, #tpu.memory_space<vmem>>, vector<1x1x1x16xf32>,
    return
  }
  func.func @transform_0(%arg0: i32, %arg1: i32) -> (i32, i32, i32, i32) {
    %c0_i32 = arith.constant 0 : i32
    %c0_i32_0 = arith.constant 0 : i32
    %c0_i32_1 = arith.constant 0 : i32
    return %arg0, %arg1, %c0_i32, %c0_i32_0 : i32, i32, i32, i32
  }
  func.func @transform_1(%arg0: i32, %arg1: i32) -> (i32, i32) {
    %c0_i32 = arith.constant 0 : i32
    %c0_i32_0 = arith.constant 0 : i32
    %c0_i32_1 = arith.constant 0 : i32
    return %c0_i32, %c0_i32_0 : i32, i32
  }
  func.func @transform_2(%arg0: i32, %arg1: i32) -> (i32, i32) {
    %c0_i32 = arith.constant 0 : i32
    %c0_i32_0 = arith.constant 0 : i32
    %c0_i32_1 = arith.constant 0 : i32
    return %c0_i32, %c0_i32_0 : i32, i32
  }
  func.func @transform_3(%arg0: i32, %arg1: i32) -> (i32, i32, i32, i32) {
    %c0_i32 = arith.constant 0 : i32
    %c0_i32_0 = arith.constant 0 : i32
    %c0_i32_1 = arith.constant 0 : i32
    return %arg0, %arg1, %c0_i32, %c0_i32_0 : i32, i32, i32, i32
  }
  func.func @transform_4(%arg0: i32, %arg1: i32) -> (i32, i32, i32, i32) {
    %c0_i32 = arith.constant 0 : i32
    %c0_i32_0 = arith.constant 0 : i32
    %c0_i32_1 = arith.constant 0 : i32
    return %arg0, %arg1, %c0_i32, %c0_i32_0 : i32, i32, i32, i32
  }
}

module attributes {stable_mosaic.version = 11 : i64} {
  func.func @finalize_kernel(%arg0: i32, %arg1: i32, %arg2: memref<1x8x16x16xbf16, #tpu.memory_space<vmem>>, %arg3: memref<2x16xf32, #tpu.memory_space<vmem>>, %arg4: memref<1x8x16x16xbf16, #tpu.memory_space<vmem>>, %arg5: memref<1x8x16x16xf32, #tpu.memory_space<vmem>>) attributes {dimension_semantics = [#tpu.dimension_semantics<parallel>, #tpu.dimension_semantics<parallel>], iteration_bounds = array<i64: 2, 2>, scalar_prefetch = 0 : i64, scratch_operands = 0 : i64, tpu.core_type = #tpu.core_type<tc>, window_params = [{transform_indices = @transform_0, window_bounds = array<i64: 1, 8, 16, 16>}, {pipeline_mode = #tpu.pipeline_mode<synchronous>, transform_indices = @transform_1, window_bounds = array<i64: 2, 16>}, {transform_indices = @transform_2, window_bounds = array<i64: 1, 8, 16, 16>}, {transform_indices = @transform_3, window_bounds = array<i64: 1, 8, 16, 16>}]} {
    %c0 = arith.constant 0 : index
    %c0_0 = arith.constant 0 : index
    %c0_1 = arith.constant 0 : index
    %c0_2 = arith.constant 0 : index
    %0 = vector.load %arg2[%c0, %c0_0, %c0_1, %c0_2] : memref<1x8x16x16xbf16, #tpu.memory_space<vmem>>, vector<1x8x16x16xbf16>
    %1 = vector.shape_cast %0 : vector<1x8x16x16xbf16> to vector<128x16xbf16>
    %2 = arith.extf %1 : vector<128x16xbf16> to vector<128x16xf32>
    %c0_3 = arith.constant 0 : index
    %c0_4 = arith.constant 0 : index
    %3 = vector.load %arg3[%c0_3, %c0_4] : memref<2x16xf32, #tpu.memory_space<vmem>>, vector<1x16xf32>
    %4 = vector.broadcast %3 : vector<1x16xf32> to vector<128x16xf32>
    %5 = arith.mulf %2, %4 : vector<128x16xf32>
    %c1 = arith.constant 1 : index
    %c0_5 = arith.constant 0 : index
    %6 = vector.load %arg3[%c1, %c0_5] : memref<2x16xf32, #tpu.memory_space<vmem>>, vector<1x16xf32>
    %7 = vector.broadcast %6 : vector<1x16xf32> to vector<128x16xf32>
    %8 = arith.addf %5, %7 : vector<128x16xf32>
    %c0_6 = arith.constant 0 : index
    %c0_7 = arith.constant 0 : index
    %c0_8 = arith.constant 0 : index
    %c0_9 = arith.constant 0 : index
    %9 = vector.load %arg4[%c0_6, %c0_7, %c0_8, %c0_9] : memref<1x8x16x16xbf16, #tpu.memory_space<vmem>>, vector<1x8x16x16xbf16>
    %10 = vector.shape_cast %9 : vector<1x8x16x16xbf16> to vector<128x16xbf16>
    %11 = arith.extf %10 : vector<128x16xbf16> to vector<128x16xf32>
    %12 = arith.addf %8, %11 : vector<128x16xf32>
    %cst = arith.constant 0.000000e+00 : f32
    %13 = vector.broadcast %cst : f32 to vector<128x16xf32>
    %14 = arith.maximumf %12, %13 : vector<128x16xf32>
    %15 = vector.shape_cast %14 : vector<128x16xf32> to vector<1x8x16x16xf32>
    %c0_10 = arith.constant 0 : index
    %c0_11 = arith.constant 0 : index
    %c0_12 = arith.constant 0 : index
    %c0_13 = arith.constant 0 : index
    %16 = vector.load %arg5[%c0_10, %c0_11, %c0_12, %c0_13] : memref<1x8x16x16xf32, #tpu.memory_space<vmem>>, vector<1x8x16x16xf32>
    tpu.vector_store %arg5[%c0_10, %c0_11, %c0_12, %c0_13], %15 {strides = array<i32>} : memref<1x8x16x16xf32, #tpu.memory_space<vmem>>, vector<1x8x16x16xf32>,
    return
  }
  func.func @transform_0(%arg0: i32, %arg1: i32) -> (i32, i32, i32, i32) {
    %c0_i32 = arith.constant 0 : i32
    %c0_i32_0 = arith.constant 0 : i32
    %c0_i32_1 = arith.constant 0 : i32
    return %arg0, %arg1, %c0_i32, %c0_i32_0 : i32, i32, i32, i32
  }
  func.func @transform_1(%arg0: i32, %arg1: i32) -> (i32, i32) {
    %c0_i32 = arith.constant 0 : i32
    %c0_i32_0 = arith.constant 0 : i32
    %c0_i32_1 = arith.constant 0 : i32
    return %c0_i32, %c0_i32_0 : i32, i32
  }
  func.func @transform_2(%arg0: i32, %arg1: i32) -> (i32, i32, i32, i32) {
    %c0_i32 = arith.constant 0 : i32
    %c0_i32_0 = arith.constant 0 : i32
    %c0_i32_1 = arith.constant 0 : i32
    return %arg0, %arg1, %c0_i32, %c0_i32_0 : i32, i32, i32, i32
  }
  func.func @transform_3(%arg0: i32, %arg1: i32) -> (i32, i32, i32, i32) {
    %c0_i32 = arith.constant 0 : i32
    %c0_i32_0 = arith.constant 0 : i32
    %c0_i32_1 = arith.constant 0 : i32
    return %arg0, %arg1, %c0_i32, %c0_i32_0 : i32, i32, i32, i32
  }
}

</mosaic_0001>

<llo_original>
// kernel: bottleneck_forward.4
$region0: #{bottleneck_forward.4}
  #allocation0 [shape = 'u32[]', space=smem, size = 0x4, offset = 0x4, fixed_abs, tag = 'smem constant byte address 0x4 - core index']
  #allocation1 [shape = 'u32[144,128]{1,0:T(1,128)}', space=vmem, size = 0x12000, scoped, tag = 'internal scratch']
  %s0 = inlined_call_operand.hbm [shape: bf16[2,16,16,16], index: 0, kind: input, shape index: {}]
  %s1 = inlined_call_operand.hbm [shape: bf16[16,4], index: 1, kind: input, shape index: {}]
  %s2 = inlined_call_operand.hbm [shape: bf16[2,16,16,4], index: 2, kind: output, shape index: {0}]
  %s3 = inlined_call_operand.hbm [shape: f32[2,2,2,4], index: 3, kind: output, shape index: {1}]
  %4 = xla_tuple %s2, %s3
  %s5 = sld [smem:[#allocation0]]
  $region57: #{bottleneck_forward.4} parent=0
    _
  %s7 = ssub.s32 1, %s5
  %s8 = scalar_select 0, %s7, %s5
  $region1: #{bottleneck_forward.4} parent=0
    #allocation2 [shape = 'u8[65536]{0}', space=vmem, size = 0x10000, scoped, tag = 'input window, operand 0']
    #allocation3 [shape = 's32[2]{0}', space=sflag, size = 0x8, scoped, tag = 'scoped memory for bottleneck_forward.4']
    #allocation4 [shape = 's32[2]{0}', space=sflag, size = 0x8, scoped, tag = 'scoped memory for bottleneck_forward.4']
    #allocation5 [shape = 'u8[4096]{0}', space=vmem, size = 0x1000, scoped, tag = 'input window, operand 1, single buffered']
    #allocation6 [shape = 's32[1]{0}', space=sflag, size = 0x4, scoped, tag = 'scoped memory for bottleneck_forward.4']
    #allocation7 [shape = 'u8[65536]{0}', space=vmem, size = 0x10000, scoped, tag = 'output window, operand 0']
    #allocation8 [shape = 'u8[2048]{0}', space=vmem, size = 0x800, scoped, tag = 'output window, operand 1']
    #allocation9 [shape = 's32[2]{0}', space=sflag, size = 0x8, scoped, tag = 'scoped memory for bottleneck_forward.4']
    %9 = vsyncpa [#allocation3], 0
    %s10 = scalar_lea.sflag [#allocation3], 1
    %11 = vsyncpa %s10, 0
    %12 = vsyncpa [#allocation6], 0
    %13 = vsyncpa [#allocation4], 0
    %s14 = scalar_lea.sflag [#allocation4], 1
    %15 = vsyncpa %s14, 0
    %16 = vsyncpa [#allocation9], 0
    %s17 = scalar_lea.sflag [#allocation9], 1
    %18 = vsyncpa %s17, 0
    loop: start=0, step=1, limit=6
    $region2: #{bottleneck_forward.4} parent=1 // loop_pre_header
      _
    $region3: #{bottleneck_forward.4} parent=1 // loop_header
      %s20 = sphi 0, %s24
      %p21 = scmp.ge.s32.totalorder %s20, 6
      %s27 = sphi 0, %s39
      %s28 = sphi 0, %s35
      %s29 = sphi 0, %s27
      %s30 = sphi 0, %s28
      %s31 = sphi 0, %s29
      %s32 = sphi 0, %s30
      %s44 = sphi 0, %s46
      %s47 = sphi 0, %s44
      %s48 = sphi 0, %s47
      %s64 = sphi 0, %s48
      %s68 = sphi 0, %s68
      %s70 = sphi 0, %s68
      %s71 = sphi 0, %s70
      %s85 = sphi 0, %s71
      %s93 = sphi 0, %s95
      %s96 = sphi 0, %s93
      %s97 = sphi 0, %s96
      %s113 = sphi 0, %s97
      %s121 = sphi 0, %s123
      %s124 = sphi 0, %s121
      %s125 = sphi 0, %s124
      %s141 = sphi 0, %s125
    $region4: #{bottleneck_forward.4} parent=1 // loop_header_branch
      %23 = sbr.rel (%p21) target = $region8
    $region5: #{bottleneck_forward.4} parent=1 // loop_body
      %s25 = ssub.s32 %s20, 1
      %s26 = ssub.s32 %s20, 2
      %s33 = sadd.s32 1, %s28
      %p34 = scmp.ge.s32.totalorder %s33, 2
      %s35 = scalar_select %p34, 0, %s33
      %s36 = sadd.s32 1, %s27
      %s37 = scalar_select %p34, %s36, %s27
      %p38 = scmp.ge.s32.totalorder %s37, 2
      %s39 = scalar_select %p38, 0, %s37
      %s40 = ssub.s32 %s27, %s39
      %s41 = ssub.s32 %s28, %s35
      %s42 = sor.u32 %s40, %s41
      %p43 = scmp.eq.s32.totalorder %s42, 0
      %s45 = sadd.s32 %s44, 1
      %s46 = scalar_select %p43, %s44, %s45
      %p49 = pneg %p43
      %p50 = scmp.eq.s32.totalorder %s20, 3
      %p51 = por %p49, %p50
      %p52 = scmp.ne.s32.totalorder %s44, %s47
      %p53 = scmp.eq.s32.totalorder %s20, 0
      %p54 = por %p52, %p53
      %p55 = scmp.ne.s32.totalorder %s44, %s47
      %p56 = scmp.eq.s32.totalorder %s25, 3
      %p57 = por %p55, %p56
      %p58 = scmp.ne.s32.totalorder %s47, %s48
      %p59 = scmp.eq.s32.totalorder %s25, 0
      %p60 = por %p58, %p59
      %p61 = scmp.ne.s32.totalorder %s47, %s48
      %p62 = scmp.eq.s32.totalorder %s26, 3
      %p63 = por %p61, %p62
      %p65 = scmp.ne.s32.totalorder %s48, %s64
      %p66 = scmp.eq.s32.totalorder %s26, 0
      %p67 = por %p65, %p66
      %s69 = sadd.s32 %s68, 1
      %p72 = scmp.eq.s32.totalorder %s20, 3
      %p73 = scmp.ne.s32.totalorder %s68, %s70
      %p74 = scmp.eq.s32.totalorder %s20, 0
      %p75 = por %p73, %p74
      %p76 = scmp.ne.s32.totalorder %s68, %s70
      %p77 = scmp.eq.s32.totalorder %s25, 3
      %p78 = por %p76, %p77
      %p79 = scmp.ne.s32.totalorder %s70, %s71
      %p80 = scmp.eq.s32.totalorder %s25, 0
      %p81 = por %p79, %p80
      %p82 = scmp.ne.s32.totalorder %s70, %s71
      %p83 = scmp.eq.s32.totalorder %s26, 3
      %p84 = por %p82, %p83
      %p86 = scmp.ne.s32.totalorder %s71, %s85
      %p87 = scmp.eq.s32.totalorder %s26, 0
      %p88 = por %p86, %p87
      %s89 = ssub.s32 %s27, %s39
      %s90 = ssub.s32 %s28, %s35
      %s91 = sor.u32 %s89, %s90
      %p92 = scmp.eq.s32.totalorder %s91, 0
      %s94 = sadd.s32 %s93, 1
      %s95 = scalar_select %p92, %s93, %s94
      %p98 = pneg %p92
      %p99 = scmp.eq.s32.totalorder %s20, 3
      %p100 = por %p98, %p99
      %p101 = scmp.ne.s32.totalorder %s93, %s96
      %p102 = scmp.eq.s32.totalorder %s20, 0
      %p103 = por %p101, %p102
      %p104 = scmp.ne.s32.totalorder %s93, %s96
      %p105 = scmp.eq.s32.totalorder %s25, 3
      %p106 = por %p104, %p105
      %p107 = scmp.ne.s32.totalorder %s96, %s97
      %p108 = scmp.eq.s32.totalorder %s25, 0
      %p109 = por %p107, %p108
      %p110 = scmp.ne.s32.totalorder %s96, %s97
      %p111 = scmp.eq.s32.totalorder %s26, 3
      %p112 = por %p110, %p111
      %p114 = scmp.ne.s32.totalorder %s97, %s113
      %p115 = scmp.eq.s32.totalorder %s26, 0
      %p116 = por %p114, %p115
      %s117 = ssub.s32 %s27, %s39
      %s118 = ssub.s32 %s28, %s35
      %s119 = sor.u32 %s117, %s118
      %p120 = scmp.eq.s32.totalorder %s119, 0
      %s122 = sadd.s32 %s121, 1
      %s123 = scalar_select %p120, %s121, %s122
      %p126 = pneg %p120
      %p127 = scmp.eq.s32.totalorder %s20, 3
      %p128 = por %p126, %p127
      %p129 = scmp.ne.s32.totalorder %s121, %s124
      %p130 = scmp.eq.s32.totalorder %s20, 0
      %p131 = por %p129, %p130
      %p132 = scmp.ne.s32.totalorder %s121, %s124
      %p133 = scmp.eq.s32.totalorder %s25, 3
      %p134 = por %p132, %p133
      %p135 = scmp.ne.s32.totalorder %s124, %s125
      %p136 = scmp.eq.s32.totalorder %s25, 0
      %p137 = por %p135, %p136
      %p138 = scmp.ne.s32.totalorder %s124, %s125
      %p139 = scmp.eq.s32.totalorder %s26, 3
      %p140 = por %p138, %p139
      %p142 = scmp.ne.s32.totalorder %s125, %s141
      %p143 = scmp.eq.s32.totalorder %s26, 0
      %p144 = por %p142, %p143
      %p145 = scmp.le.s32.totalorder 1, %s20
      %p146 = scmp.lt.s32.totalorder %s20, 5
      %p147 = pnand %p145, %p146
      %p148 = pneg %p147
      // Predicated region
      $region9: #{bottleneck_forward.4} parent=5 // pred_check
        _
      $region10: #{bottleneck_forward.4} parent=5 // pred_check_branch
        %150 = sbr.rel (%p147) target = $region12
      $region11: #{bottleneck_forward.4} parent=5 // pred_region
        %s151 = ssub.s32 %s20, 1
        // Predicated region
        $region13: #{bottleneck_forward.4} parent=11 // pred_check
          %p152 = pneg %p81
        $region14: #{bottleneck_forward.4} parent=11 // pred_check_branch
          %154 = sbr.rel (%p152) target = $region16
        $region15: #{bottleneck_forward.4} parent=11 // pred_region
          %s156 = ssub.s32 128, 128
          %157 = vsyncadd [#allocation6], %s156
          %s158 = sshll.u32 [#allocation5], 4
          %s159 = int_to_ptr.vmem [resolvable:$true] %s158
          %164 = dma.hbm_to_vmem [thread:$0]  %s1, 128, %s159, [#allocation6], 64, 64, 4
        $region16: #{bottleneck_forward.4} parent=11 // pred_fallthru
          _
      $region12: #{bottleneck_forward.4} parent=5 // pred_fallthru
        _
      %p165 = scmp.lt.s32.totalorder %s20, 4
      // Predicated region
      $region17: #{bottleneck_forward.4} parent=5 // pred_check
        %p166 = pneg %p165
      $region18: #{bottleneck_forward.4} parent=5 // pred_check_branch
        %168 = sbr.rel (%p166) target = $region20
      $region19: #{bottleneck_forward.4} parent=5 // pred_region
        // Predicated region
        $region21: #{bottleneck_forward.4} parent=19 // pred_check
          %p169 = pneg %p54
        $region22: #{bottleneck_forward.4} parent=19 // pred_check_branch
          %171 = sbr.rel (%p169) target = $region24
        $region23: #{bottleneck_forward.4} parent=19 // pred_region
          %s172 = sand.u32 %s44, 1
          %s173 = scalar_lea.sflag [#allocation3], %s172
          %s174 = sand.u32 %s44, 1
          %s175 = smul.addr %s174, 64
          %s176 = scalar_lea.vmem [#allocation2], %s175
          %s177 = smul.u32 8, %s28
          %s179 = ssub.s32 1024, 1024
          %180 = vsyncadd %s173, %s179
          %s181 = smul.addr %s177, 2
          %s182 = smul.addr %s27, 32
          %s183 = sadd.s32 %s181, %s182
          %s184 = smul.addr %s183, 64
          %s185 = scalar_lea.hbm %s0, %s184
          %s186 = sshll.u32 %s176, 4
          %s187 = int_to_ptr.vmem [resolvable:$true] %s186
          %192 = dma.hbm_to_vmem [thread:$0]  %s185, 1024, %s187, %s173, 64, 64, 4
        $region24: #{bottleneck_forward.4} parent=19 // pred_fallthru
          _
      $region20: #{bottleneck_forward.4} parent=5 // pred_fallthru
        _
      %p193 = scmp.le.s32.totalorder 1, %s20
      %p194 = scmp.lt.s32.totalorder %s20, 5
      %p195 = pnand %p193, %p194
      %p196 = pneg %p195
      // Predicated region
      $region25: #{bottleneck_forward.4} parent=5 // pred_check
        _
      $region26: #{bottleneck_forward.4} parent=5 // pred_check_branch
        %198 = sbr.rel (%p195) target = $region28
      $region27: #{bottleneck_forward.4} parent=5 // pred_region
        %s199 = ssub.s32 %s20, 1
        %s200 = sand.u32 %s47, 1
        %s201 = scalar_lea.sflag [#allocation3], %s200
        %s202 = sand.u32 %s47, 1
        %s203 = smul.addr %s202, 64
        %s204 = scalar_lea.vmem [#allocation2], %s203
        // Predicated region
        $region29: #{bottleneck_forward.4} parent=27 // pred_check
          %p205 = pneg %p60
        $region30: #{bottleneck_forward.4} parent=27 // pred_check_branch
          %207 = sbr.rel (%p205) target = $region32
        $region31: #{bottleneck_forward.4} parent=27 // pred_region
          %208 = dma.done %s201, 1024
        $region32: #{bottleneck_forward.4} parent=27 // pred_fallthru
          _
        // Predicated region
        $region33: #{bottleneck_forward.4} parent=27 // pred_check
          %p209 = pneg %p81
        $region34: #{bottleneck_forward.4} parent=27 // pred_check_branch
          %211 = sbr.rel (%p209) target = $region36
        $region35: #{bottleneck_forward.4} parent=27 // pred_region
          %212 = dma.done [#allocation6], 128
        $region36: #{bottleneck_forward.4} parent=27 // pred_fallthru
          _
        %s213 = sand.u32 %s47, 1
        %s214 = scalar_lea.sflag [#allocation3], %s213
        %s215 = sand.u32 %s47, 1
        %s216 = smul.addr %s215, 64
        %s217 = scalar_lea.vmem [#allocation2], %s216
        %p218 = pneg %p60
        %p219 = pneg %p57
        %p220 = pneg %p81
        %p221 = pneg %p78
        %p222 = pneg %p109
        %p223 = pneg %p106
        %s224 = sand.u32 %s96, 1
        %s225 = scalar_lea.sflag [#allocation4], %s224
        %s226 = sand.u32 %s96, 1
        %s227 = smul.addr %s226, 64
        %s228 = scalar_lea.vmem [#allocation7], %s227
        %p229 = pneg %p137
        %p230 = pneg %p134
        %s231 = sand.u32 %s124, 1
        %s232 = scalar_lea.sflag [#allocation9], %s231
        %s233 = sand.u32 %s124, 1
        %s234 = smul.addr %s233, 2
        %s235 = scalar_lea.vmem [#allocation8], %s234
        %s236 = smul.u32 8, %s30
        %s237 = smul.u32 8, %s30
        %v239 = vld [vmem:[%s204] sm:$0xf]
        %v240 = vld [vmem:[%s204 + $0x4] sm:$0xf]
        %v241 = vld [vmem:[%s204 + $0x8] sm:$0xf]
        %v242 = vld [vmem:[%s204 + $0xc] sm:$0xf]
        %v243 = vld [vmem:[%s204 + $0x10] sm:$0xf]
        %v244 = vld [vmem:[%s204 + $0x14] sm:$0xf]
        %v245 = vld [vmem:[%s204 + $0x18] sm:$0xf]
        %v246 = vld [vmem:[%s204 + $0x1c] sm:$0xf]
        %v247 = vld [vmem:[%s204 + $0x20] sm:$0xf]
        %v248 = vld [vmem:[%s204 + $0x24] sm:$0xf]
        %v249 = vld [vmem:[%s204 + $0x28] sm:$0xf]
        %v250 = vld [vmem:[%s204 + $0x2c] sm:$0xf]
        %v251 = vld [vmem:[%s204 + $0x30] sm:$0xf]
        %v252 = vld [vmem:[%s204 + $0x34] sm:$0xf]
        %v253 = vld [vmem:[%s204 + $0x38] sm:$0xf]
        %v254 = vld [vmem:[%s204 + $0x3c] sm:$0xf]
        %v255 = vld [vmem:[#allocation5] sm:$0xf]
        %v256 = vld [vmem:[#allocation5 + $0x4] sm:$0xf]
        %v273 = vunpack.c.l.b16 %v239
        %v274 = vunpack.c.l.b16 %v240
        %v275 = vunpack.c.l.b16 %v241
        %v276 = vunpack.c.l.b16 %v242
        %v277 = vunpack.c.l.b16 %v243
        %v278 = vunpack.c.l.b16 %v244
        %v279 = vunpack.c.l.b16 %v245
        %v280 = vunpack.c.l.b16 %v246
        %v281 = vunpack.c.l.b16 %v247
        %v282 = vunpack.c.l.b16 %v248
        %v283 = vunpack.c.l.b16 %v249
        %v284 = vunpack.c.l.b16 %v250
        %v285 = vunpack.c.l.b16 %v251
        %v286 = vunpack.c.l.b16 %v252
        %v287 = vunpack.c.l.b16 %v253
        %v288 = vunpack.c.l.b16 %v254
        %v289 = vpack.c.b16 %v274, %v273
        %v290 = vpack.c.b16 %v276, %v275
        %v291 = vpack.c.b16 %v278, %v277
        %v292 = vpack.c.b16 %v280, %v279
        %v293 = vpack.c.b16 %v282, %v281
        %v294 = vpack.c.b16 %v284, %v283
        %v295 = vpack.c.b16 %v286, %v285
        %v296 = vpack.c.b16 %v288, %v287
        %v299 = vunpack.c.l.b16 %v255
        %v300 = vunpack.c.l.b16 %v256
        %v301 = vpack.c.b16 %v300, %v299
        %vm303 = vcmask 130048
        %v305 = vsel %vm303, %v289, 0
        %v308 = vsel %vm303, %v290, 0
        %v311 = vsel %vm303, %v291, 0
        %v314 = vsel %vm303, %v292, 0
        %v317 = vsel %vm303, %v293, 0
        %v320 = vsel %vm303, %v294, 0
        %v323 = vsel %vm303, %v295, 0
        %v326 = vsel %vm303, %v296, 0
        %328 = vmatprep.subr.bf16.mxu0 0
        %329 = vmatpush1.bf16.msra.mxu0 %v301
        %330 = vmatprep.subr.bf16.mxu0 0
        %331 = vmatpush1.bf16.msra.mxu0 0
        %332 = vmatprep.subr.bf16.mxu0 0
        %333 = vmatpush1.bf16.msra.mxu0 0
        %334 = vmatprep.subr.bf16.mxu0 0
        %335 = vmatpush1.bf16.msra.mxu0 0
        %336 = vmatprep.subr.bf16.mxu0 0
        %337 = vmatpush1.bf16.msra.mxu0 0
        %338 = vmatprep.subr.bf16.mxu0 0
        %339 = vmatpush1.bf16.msra.mxu0 0
        %340 = vmatprep.subr.bf16.mxu0 0
        %341 = vmatpush1.bf16.msra.mxu0 0
        %342 = vmatprep.subr.bf16.mxu0 0
        %343 = vmatpush1.bf16.msra.mxu0 0
        %344 = vmatprep.subr.bf16.mxu0 0
        %345 = vmatpush1.bf16.msra.mxu0 0
        %346 = vmatprep.subr.bf16.mxu0 0
        %347 = vmatpush1.bf16.msra.mxu0 0
        %348 = vmatprep.subr.bf16.mxu0 0
        %349 = vmatpush1.bf16.msra.mxu0 0
        %350 = vmatprep.subr.bf16.mxu0 0
        %351 = vmatpush1.bf16.msra.mxu0 0
        %352 = vmatprep.subr.bf16.mxu0 0
        %353 = vmatpush1.bf16.msra.mxu0 0
        %354 = vmatprep.subr.bf16.mxu0 0
        %355 = vmatpush1.bf16.msra.mxu0 0
        %356 = vmatprep.subr.bf16.mxu0 0
        %357 = vmatpush1.bf16.msra.mxu0 0
        %358 = vmatprep.subr.bf16.mxu0 0
        %359 = vmatpush1.bf16.msra.mxu0 0
        %360 = vmatprep.mubr.bf16.mxu0 0
        %361 = vmatmul.mubr.bf16.gmra.mrb[0].mxu0 %v305
        %v362 = vpop.f32.mrb[0].mxu0
        %v363 = vadd.f32 0.0, %v362
        %v364 = vpop.f32.mrb[0].mxu0
        %v365 = vpop.f32.mrb[0].mxu0
        %v366 = vadd.f32 0.0, %v365
        %v367 = vpop.f32.mrb[0].mxu0
        %368 = vmatprep.mubr.bf16.mxu0 0
        %369 = vmatmul.mubr.bf16.gmra.mrb[0].mxu0 %v308
        %v370 = vpop.f32.mrb[0].mxu0
        %v371 = vadd.f32 0.0, %v370
        %v372 = vpop.f32.mrb[0].mxu0
        %v373 = vpop.f32.mrb[0].mxu0
        %v374 = vadd.f32 0.0, %v373
        %v375 = vpop.f32.mrb[0].mxu0
        %376 = vmatprep.mubr.bf16.mxu0 0
        %377 = vmatmul.mubr.bf16.gmra.mrb[0].mxu0 %v311
        %v378 = vpop.f32.mrb[0].mxu0
        %v379 = vadd.f32 0.0, %v378
        %v380 = vpop.f32.mrb[0].mxu0
        %v381 = vpop.f32.mrb[0].mxu0
        %v382 = vadd.f32 0.0, %v381
        %v383 = vpop.f32.mrb[0].mxu0
        %384 = vmatprep.mubr.bf16.mxu0 0
        %385 = vmatmul.mubr.bf16.gmra.mrb[0].mxu0 %v314
        %v386 = vpop.f32.mrb[0].mxu0
        %v387 = vadd.f32 0.0, %v386
        %v388 = vpop.f32.mrb[0].mxu0
        %v389 = vpop.f32.mrb[0].mxu0
        %v390 = vadd.f32 0.0, %v389
        %v391 = vpop.f32.mrb[0].mxu0
        %392 = vmatprep.mubr.bf16.mxu0 0
        %393 = vmatmul.mubr.bf16.gmra.mrb[0].mxu0 %v317
        %v394 = vpop.f32.mrb[0].mxu0
        %v395 = vadd.f32 0.0, %v394
        %v396 = vpop.f32.mrb[0].mxu0
        %v397 = vpop.f32.mrb[0].mxu0
        %v398 = vadd.f32 0.0, %v397
        %v399 = vpop.f32.mrb[0].mxu0
        %400 = vmatprep.mubr.bf16.mxu0 0
        %401 = vmatmul.mubr.bf16.gmra.mrb[0].mxu0 %v320
        %v402 = vpop.f32.mrb[0].mxu0
        %v403 = vadd.f32 0.0, %v402
        %v404 = vpop.f32.mrb[0].mxu0
        %v405 = vpop.f32.mrb[0].mxu0
        %v406 = vadd.f32 0.0, %v405
        %v407 = vpop.f32.mrb[0].mxu0
        %408 = vmatprep.mubr.bf16.mxu0 0
        %409 = vmatmul.mubr.bf16.gmra.mrb[0].mxu0 %v323
        %v410 = vpop.f32.mrb[0].mxu0
        %v411 = vadd.f32 0.0, %v410
        %v412 = vpop.f32.mrb[0].mxu0
        %v413 = vpop.f32.mrb[0].mxu0
        %v414 = vadd.f32 0.0, %v413
        %v415 = vpop.f32.mrb[0].mxu0
        %416 = vmatprep.mubr.bf16.mxu0 0
        %417 = vmatmul.mubr.bf16.gmra.mrb[0].mxu0 %v326
        %v418 = vpop.f32.mrb[0].mxu0
        %v419 = vadd.f32 0.0, %v418
        %v420 = vpop.f32.mrb[0].mxu0
        %v421 = vpop.f32.mrb[0].mxu0
        %v422 = vadd.f32 0.0, %v421
        %v423 = vpop.f32.mrb[0].mxu0
        %424 = vdwg.mxu0
        %v425 = vpack.c.bf16 %v366, %v363
        %v426 = vpack.c.bf16 %v374, %v371
        %v427 = vpack.c.bf16 %v382, %v379
        %v428 = vpack.c.bf16 %v390, %v387
        %v429 = vpack.c.bf16 %v398, %v395
        %v430 = vpack.c.bf16 %v406, %v403
        %v431 = vpack.c.bf16 %v414, %v411
        %v432 = vpack.c.bf16 %v422, %v419
        %v441 = vunpack.c.l.b16 %v425
        %v442 = vunpack.c.h.b16 %v425
        %v443 = vunpack.c.l.b16 %v426
        %v444 = vunpack.c.h.b16 %v426
        %v445 = vunpack.c.l.b16 %v427
        %v446 = vunpack.c.h.b16 %v427
        %v447 = vunpack.c.l.b16 %v428
        %v448 = vunpack.c.h.b16 %v428
        %v449 = vunpack.c.l.b16 %v429
        %v450 = vunpack.c.h.b16 %v429
        %v451 = vunpack.c.l.b16 %v430
        %v452 = vunpack.c.h.b16 %v430
        %v453 = vunpack.c.l.b16 %v431
        %v454 = vunpack.c.h.b16 %v431
        %v455 = vunpack.c.l.b16 %v432
        %v456 = vunpack.c.h.b16 %v432
        %v457 = vpack.c.b16 %v441, %v441
        %v458 = vpack.c.b16 %v442, %v442
        %v459 = vpack.c.b16 %v443, %v443
        %v460 = vpack.c.b16 %v444, %v444
        %v461 = vpack.c.b16 %v445, %v445
        %v462 = vpack.c.b16 %v446, %v446
        %v463 = vpack.c.b16 %v447, %v447
        %v464 = vpack.c.b16 %v448, %v448
        %v465 = vpack.c.b16 %v449, %v449
        %v466 = vpack.c.b16 %v450, %v450
        %v467 = vpack.c.b16 %v451, %v451
        %v468 = vpack.c.b16 %v452, %v452
        %v469 = vpack.c.b16 %v453, %v453
        %v470 = vpack.c.b16 %v454, %v454
        %v471 = vpack.c.b16 %v455, %v455
        %v472 = vpack.c.b16 %v456, %v456
        %vm489 = vcmask 27648
        %490 = vst.msk [vmem:[%s228] sm:$0xf] %vm489, %v457
        %491 = vst.msk [vmem:[%s228 + $0x4] sm:$0xf] %vm489, %v458
        %492 = vst.msk [vmem:[%s228 + $0x8] sm:$0xf] %vm489, %v459
        %493 = vst.msk [vmem:[%s228 + $0xc] sm:$0xf] %vm489, %v460
        %494 = vst.msk [vmem:[%s228 + $0x10] sm:$0xf] %vm489, %v461
        %495 = vst.msk [vmem:[%s228 + $0x14] sm:$0xf] %vm489, %v462
        %496 = vst.msk [vmem:[%s228 + $0x18] sm:$0xf] %vm489, %v463
        %497 = vst.msk [vmem:[%s228 + $0x1c] sm:$0xf] %vm489, %v464
        %498 = vst.msk [vmem:[%s228 + $0x20] sm:$0xf] %vm489, %v465
        %499 = vst.msk [vmem:[%s228 + $0x24] sm:$0xf] %vm489, %v466
        %500 = vst.msk [vmem:[%s228 + $0x28] sm:$0xf] %vm489, %v467
        %501 = vst.msk [vmem:[%s228 + $0x2c] sm:$0xf] %vm489, %v468
        %502 = vst.msk [vmem:[%s228 + $0x30] sm:$0xf] %vm489, %v469
        %503 = vst.msk [vmem:[%s228 + $0x34] sm:$0xf] %vm489, %v470
        %504 = vst.msk [vmem:[%s228 + $0x38] sm:$0xf] %vm489, %v471
        %505 = vst.msk [vmem:[%s228 + $0x3c] sm:$0xf] %vm489, %v472
        %v506 = vunpack.c.l.bf16 %v425
        %v507 = vunpack.c.h.bf16 %v425
        %v508 = vunpack.c.l.bf16 %v426
        %v509 = vunpack.c.h.bf16 %v426
        %v510 = vunpack.c.l.bf16 %v427
        %v511 = vunpack.c.h.bf16 %v427
        %v512 = vunpack.c.l.bf16 %v428
        %v513 = vunpack.c.h.bf16 %v428
        %v514 = vunpack.c.l.bf16 %v429
        %v515 = vunpack.c.h.bf16 %v429
        %v516 = vunpack.c.l.bf16 %v430
        %v517 = vunpack.c.h.bf16 %v430
        %v518 = vunpack.c.l.bf16 %v431
        %v519 = vunpack.c.h.bf16 %v431
        %v520 = vunpack.c.l.bf16 %v432
        %v521 = vunpack.c.h.bf16 %v432
        %vm522 = vcmask 31744
        %v523 = vsel %vm522, %v506, 0.0
        %v524 = vsel %vm522, %v507, 0.0
        %v525 = vadd.f32 %v523, %v524
        %v526 = vsel %vm522, %v508, 0.0
        %v527 = vadd.f32 %v525, %v526
        %v528 = vsel %vm522, %v509, 0.0
        %v529 = vadd.f32 %v527, %v528
        %v530 = vsel %vm522, %v510, 0.0
        %v531 = vadd.f32 %v529, %v530
        %v532 = vsel %vm522, %v511, 0.0
        %v533 = vadd.f32 %v531, %v532
        %v534 = vsel %vm522, %v512, 0.0
        %v535 = vadd.f32 %v533, %v534
        %v536 = vsel %vm522, %v513, 0.0
        %v537 = vadd.f32 %v535, %v536
        %v538 = vsel %vm522, %v514, 0.0
        %v539 = vadd.f32 %v537, %v538
        %v540 = vsel %vm522, %v515, 0.0
        %v541 = vadd.f32 %v539, %v540
        %v542 = vsel %vm522, %v516, 0.0
        %v543 = vadd.f32 %v541, %v542
        %v544 = vsel %vm522, %v517, 0.0
        %v545 = vadd.f32 %v543, %v544
        %v546 = vsel %vm522, %v518, 0.0
        %v547 = vadd.f32 %v545, %v546
        %v548 = vsel %vm522, %v519, 0.0
        %v549 = vadd.f32 %v547, %v548
        %v550 = vsel %vm522, %v520, 0.0
        %v551 = vadd.f32 %v549, %v550
        %v552 = vsel %vm522, %v521, 0.0
        %v553 = vadd.f32 %v551, %v552
        %v554 = vrot.slane %v553, 4
        %v555 = vadd.f32 %v553, %v554
        %v556 = vrot.slane %v555, 2
        %v557 = vadd.f32 %v555, %v556
        %v558 = vrot.slane %v557, 1
        %v559 = vadd.f32 %v557, %v558
        %vm560 = vcmask 24576
        %561 = vst.msk [vmem:[%s235] sm:$0x1] %vm560, %v559
        %v562 = vmul.f32 %v506, %v506
        %v563 = vmul.f32 %v507, %v507
        %v564 = vmul.f32 %v508, %v508
        %v565 = vmul.f32 %v509, %v509
        %v566 = vmul.f32 %v510, %v510
        %v567 = vmul.f32 %v511, %v511
        %v568 = vmul.f32 %v512, %v512
        %v569 = vmul.f32 %v513, %v513
        %v570 = vmul.f32 %v514, %v514
        %v571 = vmul.f32 %v515, %v515
        %v572 = vmul.f32 %v516, %v516
        %v573 = vmul.f32 %v517, %v517
        %v574 = vmul.f32 %v518, %v518
        %v575 = vmul.f32 %v519, %v519
        %v576 = vmul.f32 %v520, %v520
        %v577 = vmul.f32 %v521, %v521
        %v578 = vsel %vm522, %v562, 0.0
        %v579 = vsel %vm522, %v563, 0.0
        %v580 = vadd.f32 %v578, %v579
        %v581 = vsel %vm522, %v564, 0.0
        %v582 = vadd.f32 %v580, %v581
        %v583 = vsel %vm522, %v565, 0.0
        %v584 = vadd.f32 %v582, %v583
        %v585 = vsel %vm522, %v566, 0.0
        %v586 = vadd.f32 %v584, %v585
        %v587 = vsel %vm522, %v567, 0.0
        %v588 = vadd.f32 %v586, %v587
        %v589 = vsel %vm522, %v568, 0.0
        %v590 = vadd.f32 %v588, %v589
        %v591 = vsel %vm522, %v569, 0.0
        %v592 = vadd.f32 %v590, %v591
        %v593 = vsel %vm522, %v570, 0.0
        %v594 = vadd.f32 %v592, %v593
        %v595 = vsel %vm522, %v571, 0.0
        %v596 = vadd.f32 %v594, %v595
        %v597 = vsel %vm522, %v572, 0.0
        %v598 = vadd.f32 %v596, %v597
        %v599 = vsel %vm522, %v573, 0.0
        %v600 = vadd.f32 %v598, %v599
        %v601 = vsel %vm522, %v574, 0.0
        %v602 = vadd.f32 %v600, %v601
        %v603 = vsel %vm522, %v575, 0.0
        %v604 = vadd.f32 %v602, %v603
        %v605 = vsel %vm522, %v576, 0.0
        %v606 = vadd.f32 %v604, %v605
        %v607 = vsel %vm522, %v577, 0.0
        %v608 = vadd.f32 %v606, %v607
        %v609 = vrot.slane %v608, 4
        %v610 = vadd.f32 %v608, %v609
        %v611 = vrot.slane %v610, 2
        %v612 = vadd.f32 %v610, %v611
        %v613 = vrot.slane %v612, 1
        %v614 = vadd.f32 %v612, %v613
        %615 = vst.msk [vmem:[%s235 + $0x1] sm:$0x1] %vm560, %v614
        %s616 = sand.u32 %s96, 1
        %s617 = scalar_lea.sflag [#allocation4], %s616
        %s618 = sand.u32 %s96, 1
        %s619 = smul.addr %s618, 64
        %s620 = scalar_lea.vmem [#allocation7], %s619
        %s621 = sand.u32 %s124, 1
        %s622 = scalar_lea.sflag [#allocation9], %s621
        %s623 = sand.u32 %s124, 1
        %s624 = smul.addr %s623, 2
        %s625 = scalar_lea.vmem [#allocation8], %s624
        // Predicated region
        $region37: #{bottleneck_forward.4} parent=27 // pred_check
          %p626 = pneg %p106
        $region38: #{bottleneck_forward.4} parent=27 // pred_check_branch
          %628 = sbr.rel (%p626) target = $region40
        $region39: #{bottleneck_forward.4} parent=27 // pred_region
          %s629 = smul.u32 8, %s30
          %s631 = ssub.s32 1024, 1024
          %632 = vsyncadd %s617, %s631
          %s633 = smul.addr %s629, 2
          %s634 = smul.addr %s29, 32
          %s635 = sadd.s32 %s633, %s634
          %s636 = smul.addr %s635, 64
          %s637 = scalar_lea.hbm %s2, %s636
          %s638 = sshll.u32 %s620, 4
          %s639 = int_to_ptr.vmem [resolvable:$true] %s638
          %644 = dma.vmem_to_hbm [thread:$0]  %s639, 1024, %s637, %s617, 64, 64, 4
        $region40: #{bottleneck_forward.4} parent=27 // pred_fallthru
          _
        // Predicated region
        $region41: #{bottleneck_forward.4} parent=27 // pred_check
          %p645 = pneg %p134
        $region42: #{bottleneck_forward.4} parent=27 // pred_check_branch
          %647 = sbr.rel (%p645) target = $region44
        $region43: #{bottleneck_forward.4} parent=27 // pred_region
          %s649 = ssub.s32 32, 32
          %650 = vsyncadd %s622, %s649
          %s651 = smul.addr %s29, 2
          %s652 = sadd.s32 %s30, %s651
          %s653 = smul.addr %s652, 32
          %s654 = scalar_lea.hbm %s3, %s653
          %s656 = sshll.u32 %s625, 4
          %s657 = int_to_ptr.vmem [resolvable:$true] %s656
          %659 = dma.vmem_to_hbm [thread:$0]  %s657, 32, %s654, %s622
        $region44: #{bottleneck_forward.4} parent=27 // pred_fallthru
          _
      $region28: #{bottleneck_forward.4} parent=5 // pred_fallthru
        _
      %p660 = scmp.le.s32.totalorder 2, %s20
      // Predicated region
      $region45: #{bottleneck_forward.4} parent=5 // pred_check
        %p661 = pneg %p660
      $region46: #{bottleneck_forward.4} parent=5 // pred_check_branch
        %663 = sbr.rel (%p661) target = $region48
      $region47: #{bottleneck_forward.4} parent=5 // pred_region
        %s664 = ssub.s32 %s20, 2
        // Predicated region
        $region49: #{bottleneck_forward.4} parent=47 // pred_check
          %p665 = pneg %p112
        $region50: #{bottleneck_forward.4} parent=47 // pred_check_branch
          %667 = sbr.rel (%p665) target = $region52
        $region51: #{bottleneck_forward.4} parent=47 // pred_region
          %s668 = sand.u32 %s97, 1
          %s669 = scalar_lea.sflag [#allocation4], %s668
          %s670 = sand.u32 %s97, 1
          %s671 = smul.addr %s670, 64
          %s672 = scalar_lea.vmem [#allocation7], %s671
          %673 = dma.done %s669, 1024
        $region52: #{bottleneck_forward.4} parent=47 // pred_fallthru
          _
        // Predicated region
        $region53: #{bottleneck_forward.4} parent=47 // pred_check
          %p674 = pneg %p140
        $region54: #{bottleneck_forward.4} parent=47 // pred_check_branch
          %676 = sbr.rel (%p674) target = $region56
        $region55: #{bottleneck_forward.4} parent=47 // pred_region
          %s677 = sand.u32 %s125, 1
          %s678 = scalar_lea.sflag [#allocation9], %s677
          %s679 = sand.u32 %s125, 1
          %s680 = smul.addr %s679, 2
          %s681 = scalar_lea.vmem [#allocation8], %s680
          %682 = dma.done %s678, 32
        $region56: #{bottleneck_forward.4} parent=47 // pred_fallthru
          _
      $region48: #{bottleneck_forward.4} parent=5 // pred_fallthru
        _
    $region6: #{bottleneck_forward.4} parent=1 // loop_footer
      %s24 = sadd.s32 1, %s20
    $region7: #{bottleneck_forward.4} parent=1 // loop_footer_branch
      %19 = sbr.rel target = $region3
    $region8: #{bottleneck_forward.4} parent=1 // loop_exit
      _
    %683 = vsyncpa [#allocation3], 1
    %s684 = scalar_lea.sflag [#allocation3], 1
    %685 = vsyncpa %s684, 1
    %686 = vsyncpa [#allocation6], 1
    %687 = vsyncpa [#allocation4], 1
    %s688 = scalar_lea.sflag [#allocation4], 1
    %689 = vsyncpa %s688, 1
    %690 = vsyncpa [#allocation9], 1
    %s691 = scalar_lea.sflag [#allocation9], 1
    %692 = vsyncpa %s691, 1

// kernel: bottleneck_forward.6
$region0: #{bottleneck_forward.6}
  #allocation0 [shape = 'u32[]', space=smem, size = 0x4, offset = 0x4, fixed_abs, tag = 'smem constant byte address 0x4 - core index']
  #allocation1 [shape = 'u32[144,128]{1,0:T(1,128)}', space=vmem, size = 0x12000, scoped, tag = 'internal scratch']
  %s0 = inlined_call_operand.hbm [shape: bf16[2,16,16,4], index: 0, kind: input, shape index: {}]
  %s1 = inlined_call_operand.hbm [shape: f32[2,4], index: 1, kind: input, shape index: {}]
  %s2 = inlined_call_operand.hbm [shape: bf16[4,16], index: 2, kind: input, shape index: {}]
  %s3 = inlined_call_operand.hbm [shape: bf16[2,16,16,16], index: 3, kind: output, shape index: {0}]
  %s4 = inlined_call_operand.hbm [shape: f32[2,2,2,16], index: 4, kind: output, shape index: {1}]
  %5 = xla_tuple %s3, %s4
  %s6 = sld [smem:[#allocation0]]
  $region65: #{bottleneck_forward.6} parent=0
    _
  %s8 = ssub.s32 1, %s6
  %s9 = scalar_select 0, %s8, %s6
  $region1: #{bottleneck_forward.6} parent=0
    #allocation2 [shape = 'u8[65536]{0}', space=vmem, size = 0x10000, scoped, tag = 'input window, operand 0']
    #allocation3 [shape = 's32[2]{0}', space=sflag, size = 0x8, scoped, tag = 'scoped memory for bottleneck_forward.6']
    #allocation4 [shape = 's32[2]{0}', space=sflag, size = 0x8, scoped, tag = 'scoped memory for bottleneck_forward.6']
    #allocation5 [shape = 'u8[1024]{0}', space=vmem, size = 0x400, scoped, tag = 'input window, operand 1, single buffered']
    #allocation6 [shape = 's32[1]{0}', space=sflag, size = 0x4, scoped, tag = 'scoped memory for bottleneck_forward.6']
    #allocation7 [shape = 'u8[1024]{0}', space=vmem, size = 0x400, scoped, tag = 'input window, operand 2, single buffered']
    #allocation8 [shape = 'u8[65536]{0}', space=vmem, size = 0x10000, scoped, tag = 'output window, operand 0']
    #allocation9 [shape = 'u8[2048]{0}', space=vmem, size = 0x800, scoped, tag = 'output window, operand 1']
    #allocation10 [shape = 's32[2]{0}', space=sflag, size = 0x8, scoped, tag = 'scoped memory for bottleneck_forward.6']
    %10 = vsyncpa [#allocation3], 0
    %s11 = scalar_lea.sflag [#allocation3], 1
    %12 = vsyncpa %s11, 0
    %13 = vsyncpa [#allocation6], 0
    %14 = vsyncpa [#allocation4], 0
    %s15 = scalar_lea.sflag [#allocation4], 1
    %16 = vsyncpa %s15, 0
    %17 = vsyncpa [#allocation10], 0
    %s18 = scalar_lea.sflag [#allocation10], 1
    %19 = vsyncpa %s18, 0
    loop: start=0, step=1, limit=6
    $region2: #{bottleneck_forward.6} parent=1 // loop_pre_header
      _
    $region3: #{bottleneck_forward.6} parent=1 // loop_header
      %s21 = sphi 0, %s25
      %p22 = scmp.ge.s32.totalorder %s21, 6
      %s28 = sphi 0, %s40
      %s29 = sphi 0, %s36
      %s30 = sphi 0, %s28
      %s31 = sphi 0, %s29
      %s32 = sphi 0, %s30
      %s33 = sphi 0, %s31
      %s45 = sphi 0, %s47
      %s48 = sphi 0, %s45
      %s49 = sphi 0, %s48
      %s65 = sphi 0, %s49
      %s69 = sphi 0, %s69
      %s71 = sphi 0, %s69
      %s72 = sphi 0, %s71
      %s86 = sphi 0, %s72
      %s90 = sphi 0, %s90
      %s92 = sphi 0, %s90
      %s93 = sphi 0, %s92
      %s107 = sphi 0, %s93
      %s115 = sphi 0, %s117
      %s118 = sphi 0, %s115
      %s119 = sphi 0, %s118
      %s135 = sphi 0, %s119
      %s143 = sphi 0, %s145
      %s146 = sphi 0, %s143
      %s147 = sphi 0, %s146
      %s163 = sphi 0, %s147
    $region4: #{bottleneck_forward.6} parent=1 // loop_header_branch
      %24 = sbr.rel (%p22) target = $region8
    $region5: #{bottleneck_forward.6} parent=1 // loop_body
      %s26 = ssub.s32 %s21, 1
      %s27 = ssub.s32 %s21, 2
      %s34 = sadd.s32 1, %s29
      %p35 = scmp.ge.s32.totalorder %s34, 2
      %s36 = scalar_select %p35, 0, %s34
      %s37 = sadd.s32 1, %s28
      %s38 = scalar_select %p35, %s37, %s28
      %p39 = scmp.ge.s32.totalorder %s38, 2
      %s40 = scalar_select %p39, 0, %s38
      %s41 = ssub.s32 %s28, %s40
      %s42 = ssub.s32 %s29, %s36
      %s43 = sor.u32 %s41, %s42
      %p44 = scmp.eq.s32.totalorder %s43, 0
      %s46 = sadd.s32 %s45, 1
      %s47 = scalar_select %p44, %s45, %s46
      %p50 = pneg %p44
      %p51 = scmp.eq.s32.totalorder %s21, 3
      %p52 = por %p50, %p51
      %p53 = scmp.ne.s32.totalorder %s45, %s48
      %p54 = scmp.eq.s32.totalorder %s21, 0
      %p55 = por %p53, %p54
      %p56 = scmp.ne.s32.totalorder %s45, %s48
      %p57 = scmp.eq.s32.totalorder %s26, 3
      %p58 = por %p56, %p57
      %p59 = scmp.ne.s32.totalorder %s48, %s49
      %p60 = scmp.eq.s32.totalorder %s26, 0
      %p61 = por %p59, %p60
      %p62 = scmp.ne.s32.totalorder %s48, %s49
      %p63 = scmp.eq.s32.totalorder %s27, 3
      %p64 = por %p62, %p63
      %p66 = scmp.ne.s32.totalorder %s49, %s65
      %p67 = scmp.eq.s32.totalorder %s27, 0
      %p68 = por %p66, %p67
      %s70 = sadd.s32 %s69, 1
      %p73 = scmp.eq.s32.totalorder %s21, 3
      %p74 = scmp.ne.s32.totalorder %s69, %s71
      %p75 = scmp.eq.s32.totalorder %s21, 0
      %p76 = por %p74, %p75
      %p77 = scmp.ne.s32.totalorder %s69, %s71
      %p78 = scmp.eq.s32.totalorder %s26, 3
      %p79 = por %p77, %p78
      %p80 = scmp.ne.s32.totalorder %s71, %s72
      %p81 = scmp.eq.s32.totalorder %s26, 0
      %p82 = por %p80, %p81
      %p83 = scmp.ne.s32.totalorder %s71, %s72
      %p84 = scmp.eq.s32.totalorder %s27, 3
      %p85 = por %p83, %p84
      %p87 = scmp.ne.s32.totalorder %s72, %s86
      %p88 = scmp.eq.s32.totalorder %s27, 0
      %p89 = por %p87, %p88
      %s91 = sadd.s32 %s90, 1
      %p94 = scmp.eq.s32.totalorder %s21, 3
      %p95 = scmp.ne.s32.totalorder %s90, %s92
      %p96 = scmp.eq.s32.totalorder %s21, 0
      %p97 = por %p95, %p96
      %p98 = scmp.ne.s32.totalorder %s90, %s92
      %p99 = scmp.eq.s32.totalorder %s26, 3
      %p100 = por %p98, %p99
      %p101 = scmp.ne.s32.totalorder %s92, %s93
      %p102 = scmp.eq.s32.totalorder %s26, 0
      %p103 = por %p101, %p102
      %p104 = scmp.ne.s32.totalorder %s92, %s93
      %p105 = scmp.eq.s32.totalorder %s27, 3
      %p106 = por %p104, %p105
      %p108 = scmp.ne.s32.totalorder %s93, %s107
      %p109 = scmp.eq.s32.totalorder %s27, 0
      %p110 = por %p108, %p109
      %s111 = ssub.s32 %s28, %s40
      %s112 = ssub.s32 %s29, %s36
      %s113 = sor.u32 %s111, %s112
      %p114 = scmp.eq.s32.totalorder %s113, 0
      %s116 = sadd.s32 %s115, 1
      %s117 = scalar_select %p114, %s115, %s116
      %p120 = pneg %p114
      %p121 = scmp.eq.s32.totalorder %s21, 3
      %p122 = por %p120, %p121
      %p123 = scmp.ne.s32.totalorder %s115, %s118
      %p124 = scmp.eq.s32.totalorder %s21, 0
      %p125 = por %p123, %p124
      %p126 = scmp.ne.s32.totalorder %s115, %s118
      %p127 = scmp.eq.s32.totalorder %s26, 3
      %p128 = por %p126, %p127
      %p129 = scmp.ne.s32.totalorder %s118, %s119
      %p130 = scmp.eq.s32.totalorder %s26, 0
      %p131 = por %p129, %p130
      %p132 = scmp.ne.s32.totalorder %s118, %s119
      %p133 = scmp.eq.s32.totalorder %s27, 3
      %p134 = por %p132, %p133
      %p136 = scmp.ne.s32.totalorder %s119, %s135
      %p137 = scmp.eq.s32.totalorder %s27, 0
      %p138 = por %p136, %p137
      %s139 = ssub.s32 %s28, %s40
      %s140 = ssub.s32 %s29, %s36
      %s141 = sor.u32 %s139, %s140
      %p142 = scmp.eq.s32.totalorder %s141, 0
      %s144 = sadd.s32 %s143, 1
      %s145 = scalar_select %p142, %s143, %s144
      %p148 = pneg %p142
      %p149 = scmp.eq.s32.totalorder %s21, 3
      %p150 = por %p148, %p149
      %p151 = scmp.ne.s32.totalorder %s143, %s146
      %p152 = scmp.eq.s32.totalorder %s21, 0
      %p153 = por %p151, %p152
      %p154 = scmp.ne.s32.totalorder %s143, %s146
      %p155 = scmp.eq.s32.totalorder %s26, 3
      %p156 = por %p154, %p155
      %p157 = scmp.ne.s32.totalorder %s146, %s147
      %p158 = scmp.eq.s32.totalorder %s26, 0
      %p159 = por %p157, %p158
      %p160 = scmp.ne.s32.totalorder %s146, %s147
      %p161 = scmp.eq.s32.totalorder %s27, 3
      %p162 = por %p160, %p161
      %p164 = scmp.ne.s32.totalorder %s147, %s163
      %p165 = scmp.eq.s32.totalorder %s27, 0
      %p166 = por %p164, %p165
      %p167 = scmp.le.s32.totalorder 1, %s21
      %p168 = scmp.lt.s32.totalorder %s21, 5
      %p169 = pnand %p167, %p168
      %p170 = pneg %p169
      // Predicated region
      $region9: #{bottleneck_forward.6} parent=5 // pred_check
        _
      $region10: #{bottleneck_forward.6} parent=5 // pred_check_branch
        %172 = sbr.rel (%p169) target = $region12
      $region11: #{bottleneck_forward.6} parent=5 // pred_region
        %s173 = ssub.s32 %s21, 1
        // Predicated region
        $region13: #{bottleneck_forward.6} parent=11 // pred_check
          %p174 = pneg %p82
        $region14: #{bottleneck_forward.6} parent=11 // pred_check_branch
          %176 = sbr.rel (%p174) target = $region16
        $region15: #{bottleneck_forward.6} parent=11 // pred_region
          %s178 = ssub.s32 32, 32
          %179 = vsyncadd [#allocation6], %s178
          %s181 = sshll.u32 [#allocation5], 4
          %s182 = int_to_ptr.vmem [resolvable:$true] %s181
          %184 = dma.hbm_to_vmem [thread:$0]  %s1, 32, %s182, [#allocation6]
        $region16: #{bottleneck_forward.6} parent=11 // pred_fallthru
          _
        // Predicated region
        $region17: #{bottleneck_forward.6} parent=11 // pred_check
          %p185 = pneg %p103
        $region18: #{bottleneck_forward.6} parent=11 // pred_check_branch
          %187 = sbr.rel (%p185) target = $region20
        $region19: #{bottleneck_forward.6} parent=11 // pred_region
          %s189 = ssub.s32 32, 32
          %190 = vsyncadd [#allocation6], %s189
          %s192 = sshll.u32 [#allocation7], 4
          %s193 = int_to_ptr.vmem [resolvable:$true] %s192
          %195 = dma.hbm_to_vmem [thread:$0]  %s2, 32, %s193, [#allocation6]
        $region20: #{bottleneck_forward.6} parent=11 // pred_fallthru
          _
      $region12: #{bottleneck_forward.6} parent=5 // pred_fallthru
        _
      %p196 = scmp.lt.s32.totalorder %s21, 4
      // Predicated region
      $region21: #{bottleneck_forward.6} parent=5 // pred_check
        %p197 = pneg %p196
      $region22: #{bottleneck_forward.6} parent=5 // pred_check_branch
        %199 = sbr.rel (%p197) target = $region24
      $region23: #{bottleneck_forward.6} parent=5 // pred_region
        // Predicated region
        $region25: #{bottleneck_forward.6} parent=23 // pred_check
          %p200 = pneg %p55
        $region26: #{bottleneck_forward.6} parent=23 // pred_check_branch
          %202 = sbr.rel (%p200) target = $region28
        $region27: #{bottleneck_forward.6} parent=23 // pred_region
          %s203 = sand.u32 %s45, 1
          %s204 = scalar_lea.sflag [#allocation3], %s203
          %s205 = sand.u32 %s45, 1
          %s206 = smul.addr %s205, 64
          %s207 = scalar_lea.vmem [#allocation2], %s206
          %s208 = smul.u32 8, %s29
          %s210 = ssub.s32 1024, 1024
          %211 = vsyncadd %s204, %s210
          %s212 = smul.addr %s208, 2
          %s213 = smul.addr %s28, 32
          %s214 = sadd.s32 %s212, %s213
          %s215 = smul.addr %s214, 64
          %s216 = scalar_lea.hbm %s0, %s215
          %s217 = sshll.u32 %s207, 4
          %s218 = int_to_ptr.vmem [resolvable:$true] %s217
          %223 = dma.hbm_to_vmem [thread:$0]  %s216, 1024, %s218, %s204, 64, 64, 4
        $region28: #{bottleneck_forward.6} parent=23 // pred_fallthru
          _
      $region24: #{bottleneck_forward.6} parent=5 // pred_fallthru
        _
      %p224 = scmp.le.s32.totalorder 1, %s21
      %p225 = scmp.lt.s32.totalorder %s21, 5
      %p226 = pnand %p224, %p225
      %p227 = pneg %p226
      // Predicated region
      $region29: #{bottleneck_forward.6} parent=5 // pred_check
        _
      $region30: #{bottleneck_forward.6} parent=5 // pred_check_branch
        %229 = sbr.rel (%p226) target = $region32
      $region31: #{bottleneck_forward.6} parent=5 // pred_region
        %s230 = ssub.s32 %s21, 1
        %s231 = sand.u32 %s48, 1
        %s232 = scalar_lea.sflag [#allocation3], %s231
        %s233 = sand.u32 %s48, 1
        %s234 = smul.addr %s233, 64
        %s235 = scalar_lea.vmem [#allocation2], %s234
        // Predicated region
        $region33: #{bottleneck_forward.6} parent=31 // pred_check
          %p236 = pneg %p61
        $region34: #{bottleneck_forward.6} parent=31 // pred_check_branch
          %238 = sbr.rel (%p236) target = $region36
        $region35: #{bottleneck_forward.6} parent=31 // pred_region
          %239 = dma.done %s232, 1024
        $region36: #{bottleneck_forward.6} parent=31 // pred_fallthru
          _
        // Predicated region
        $region37: #{bottleneck_forward.6} parent=31 // pred_check
          %p240 = pneg %p82
        $region38: #{bottleneck_forward.6} parent=31 // pred_check_branch
          %242 = sbr.rel (%p240) target = $region40
        $region39: #{bottleneck_forward.6} parent=31 // pred_region
          %243 = dma.done [#allocation6], 32
        $region40: #{bottleneck_forward.6} parent=31 // pred_fallthru
          _
        // Predicated region
        $region41: #{bottleneck_forward.6} parent=31 // pred_check
          %p244 = pneg %p103
        $region42: #{bottleneck_forward.6} parent=31 // pred_check_branch
          %246 = sbr.rel (%p244) target = $region44
        $region43: #{bottleneck_forward.6} parent=31 // pred_region
          %247 = dma.done [#allocation6], 32
        $region44: #{bottleneck_forward.6} parent=31 // pred_fallthru
          _
        %s248 = sand.u32 %s48, 1
        %s249 = scalar_lea.sflag [#allocation3], %s248
        %s250 = sand.u32 %s48, 1
        %s251 = smul.addr %s250, 64
        %s252 = scalar_lea.vmem [#allocation2], %s251
        %p253 = pneg %p61
        %p254 = pneg %p58
        %p255 = pneg %p82
        %p256 = pneg %p79
        %p257 = pneg %p103
        %p258 = pneg %p100
        %p259 = pneg %p131
        %p260 = pneg %p128
        %s261 = sand.u32 %s118, 1
        %s262 = scalar_lea.sflag [#allocation4], %s261
        %s263 = sand.u32 %s118, 1
        %s264 = smul.addr %s263, 64
        %s265 = scalar_lea.vmem [#allocation8], %s264
        %p266 = pneg %p159
        %p267 = pneg %p156
        %s268 = sand.u32 %s146, 1
        %s269 = scalar_lea.sflag [#allocation10], %s268
        %s270 = sand.u32 %s146, 1
        %s271 = smul.addr %s270, 2
        %s272 = scalar_lea.vmem [#allocation9], %s271
        %s273 = smul.u32 8, %s31
        %s274 = smul.u32 8, %s31
        %v276 = vld [vmem:[%s235] sm:$0xf]
        %v277 = vld [vmem:[%s235 + $0x4] sm:$0xf]
        %v278 = vld [vmem:[%s235 + $0x8] sm:$0xf]
        %v279 = vld [vmem:[%s235 + $0xc] sm:$0xf]
        %v280 = vld [vmem:[%s235 + $0x10] sm:$0xf]
        %v281 = vld [vmem:[%s235 + $0x14] sm:$0xf]
        %v282 = vld [vmem:[%s235 + $0x18] sm:$0xf]
        %v283 = vld [vmem:[%s235 + $0x1c] sm:$0xf]
        %v284 = vld [vmem:[%s235 + $0x20] sm:$0xf]
        %v285 = vld [vmem:[%s235 + $0x24] sm:$0xf]
        %v286 = vld [vmem:[%s235 + $0x28] sm:$0xf]
        %v287 = vld [vmem:[%s235 + $0x2c] sm:$0xf]
        %v288 = vld [vmem:[%s235 + $0x30] sm:$0xf]
        %v289 = vld [vmem:[%s235 + $0x34] sm:$0xf]
        %v290 = vld [vmem:[%s235 + $0x38] sm:$0xf]
        %v291 = vld [vmem:[%s235 + $0x3c] sm:$0xf]
        %v292 = vunpack.c.l.bf16 %v276
        %v293 = vunpack.c.l.bf16 %v277
        %v294 = vunpack.c.l.bf16 %v278
        %v295 = vunpack.c.l.bf16 %v279
        %v296 = vunpack.c.l.bf16 %v280
        %v297 = vunpack.c.l.bf16 %v281
        %v298 = vunpack.c.l.bf16 %v282
        %v299 = vunpack.c.l.bf16 %v283
        %v300 = vunpack.c.l.bf16 %v284
        %v301 = vunpack.c.l.bf16 %v285
        %v302 = vunpack.c.l.bf16 %v286
        %v303 = vunpack.c.l.bf16 %v287
        %v304 = vunpack.c.l.bf16 %v288
        %v305 = vunpack.c.l.bf16 %v289
        %v306 = vunpack.c.l.bf16 %v290
        %v307 = vunpack.c.l.bf16 %v291
        %v308 = vld [vmem:[#allocation5] sm:$0x1]
        %v309 = vlaneseq
        %v310 = vshrl.u32 %v309, 7
        %v311 = vsub.s32 0, %v310
        %v312 = vrot.slane %v308, %v311
        %v313 = vmul.f32 %v292, %v312
        %v314 = vmul.f32 %v293, %v312
        %v315 = vmul.f32 %v294, %v312
        %v316 = vmul.f32 %v295, %v312
        %v317 = vmul.f32 %v296, %v312
        %v318 = vmul.f32 %v297, %v312
        %v319 = vmul.f32 %v298, %v312
        %v320 = vmul.f32 %v299, %v312
        %v321 = vmul.f32 %v300, %v312
        %v322 = vmul.f32 %v301, %v312
        %v323 = vmul.f32 %v302, %v312
        %v324 = vmul.f32 %v303, %v312
        %v325 = vmul.f32 %v304, %v312
        %v326 = vmul.f32 %v305, %v312
        %v327 = vmul.f32 %v306, %v312
        %v328 = vmul.f32 %v307, %v312
        %v329 = vld [vmem:[#allocation5 + $0x1] sm:$0x1]
        %v330 = vlaneseq
        %v331 = vshrl.u32 %v330, 7
        %v332 = vsub.s32 0, %v331
        %v333 = vrot.slane %v329, %v332
        %v334 = vadd.f32 %v313, %v333
        %v335 = vadd.f32 %v314, %v333
        %v336 = vadd.f32 %v315, %v333
        %v337 = vadd.f32 %v316, %v333
        %v338 = vadd.f32 %v317, %v333
        %v339 = vadd.f32 %v318, %v333
        %v340 = vadd.f32 %v319, %v333
        %v341 = vadd.f32 %v320, %v333
        %v342 = vadd.f32 %v321, %v333
        %v343 = vadd.f32 %v322, %v333
        %v344 = vadd.f32 %v323, %v333
        %v345 = vadd.f32 %v324, %v333
        %v346 = vadd.f32 %v325, %v333
        %v347 = vadd.f32 %v326, %v333
        %v348 = vadd.f32 %v327, %v333
        %v349 = vadd.f32 %v328, %v333
        %v350 = vmax.f32 %v334, 0.0
        %v351 = vmax.f32 %v335, 0.0
        %v352 = vmax.f32 %v336, 0.0
        %v353 = vmax.f32 %v337, 0.0
        %v354 = vmax.f32 %v338, 0.0
        %v355 = vmax.f32 %v339, 0.0
        %v356 = vmax.f32 %v340, 0.0
        %v357 = vmax.f32 %v341, 0.0
        %v358 = vmax.f32 %v342, 0.0
        %v359 = vmax.f32 %v343, 0.0
        %v360 = vmax.f32 %v344, 0.0
        %v361 = vmax.f32 %v345, 0.0
        %v362 = vmax.f32 %v346, 0.0
        %v363 = vmax.f32 %v347, 0.0
        %v364 = vmax.f32 %v348, 0.0
        %v365 = vmax.f32 %v349, 0.0
        %v366 = vpack.c.bf16 %v351, %v350
        %v367 = vpack.c.bf16 %v353, %v352
        %v368 = vpack.c.bf16 %v355, %v354
        %v369 = vpack.c.bf16 %v357, %v356
        %v370 = vpack.c.bf16 %v359, %v358
        %v371 = vpack.c.bf16 %v361, %v360
        %v372 = vpack.c.bf16 %v363, %v362
        %v373 = vpack.c.bf16 %v365, %v364
        %v374 = vld [vmem:[#allocation7] sm:$0x3]
        %vm375 = vcmask 31744
        %v377 = vsel %vm375, %v366, 0
        %v380 = vsel %vm375, %v367, 0
        %v383 = vsel %vm375, %v368, 0
        %v386 = vsel %vm375, %v369, 0
        %v389 = vsel %vm375, %v370, 0
        %v392 = vsel %vm375, %v371, 0
        %v395 = vsel %vm375, %v372, 0
        %v398 = vsel %vm375, %v373, 0
        %vm400 = vcmask 1041408
        %v402 = vsel %vm400, %v374, 0
        %404 = vmatprep.subr.bf16.mxu0 0
        %405 = vmatpush1.bf16.msra.mxu0 %v402
        %406 = vmatprep.subr.bf16.mxu0 0
        %407 = vmatpush1.bf16.msra.mxu0 0
        %408 = vmatprep.subr.bf16.mxu0 0
        %409 = vmatpush1.bf16.msra.mxu0 0
        %410 = vmatprep.subr.bf16.mxu0 0
        %411 = vmatpush1.bf16.msra.mxu0 0
        %412 = vmatprep.subr.bf16.mxu0 0
        %413 = vmatpush1.bf16.msra.mxu0 0
        %414 = vmatprep.subr.bf16.mxu0 0
        %415 = vmatpush1.bf16.msra.mxu0 0
        %416 = vmatprep.subr.bf16.mxu0 0
        %417 = vmatpush1.bf16.msra.mxu0 0
        %418 = vmatprep.subr.bf16.mxu0 0
        %419 = vmatpush1.bf16.msra.mxu0 0
        %420 = vmatprep.subr.bf16.mxu0 0
        %421 = vmatpush1.bf16.msra.mxu0 0
        %422 = vmatprep.subr.bf16.mxu0 0
        %423 = vmatpush1.bf16.msra.mxu0 0
        %424 = vmatprep.subr.bf16.mxu0 0
        %425 = vmatpush1.bf16.msra.mxu0 0
        %426 = vmatprep.subr.bf16.mxu0 0
        %427 = vmatpush1.bf16.msra.mxu0 0
        %428 = vmatprep.subr.bf16.mxu0 0
        %429 = vmatpush1.bf16.msra.mxu0 0
        %430 = vmatprep.subr.bf16.mxu0 0
        %431 = vmatpush1.bf16.msra.mxu0 0
        %432 = vmatprep.subr.bf16.mxu0 0
        %433 = vmatpush1.bf16.msra.mxu0 0
        %434 = vmatprep.subr.bf16.mxu0 0
        %435 = vmatpush1.bf16.msra.mxu0 0
        %436 = vmatprep.mubr.bf16.mxu0 0
        %437 = vmatmul.mubr.bf16.gmra.mrb[0].mxu0 %v377
        %v438 = vpop.f32.mrb[0].mxu0
        %v439 = vadd.f32 0.0, %v438
        %v440 = vpop.f32.mrb[0].mxu0
        %v441 = vpop.f32.mrb[0].mxu0
        %v442 = vadd.f32 0.0, %v441
        %v443 = vpop.f32.mrb[0].mxu0
        %444 = vmatprep.mubr.bf16.mxu0 0
        %445 = vmatmul.mubr.bf16.gmra.mrb[0].mxu0 %v380
        %v446 = vpop.f32.mrb[0].mxu0
        %v447 = vadd.f32 0.0, %v446
        %v448 = vpop.f32.mrb[0].mxu0
        %v449 = vpop.f32.mrb[0].mxu0
        %v450 = vadd.f32 0.0, %v449
        %v451 = vpop.f32.mrb[0].mxu0
        %452 = vmatprep.mubr.bf16.mxu0 0
        %453 = vmatmul.mubr.bf16.gmra.mrb[0].mxu0 %v383
        %v454 = vpop.f32.mrb[0].mxu0
        %v455 = vadd.f32 0.0, %v454
        %v456 = vpop.f32.mrb[0].mxu0
        %v457 = vpop.f32.mrb[0].mxu0
        %v458 = vadd.f32 0.0, %v457
        %v459 = vpop.f32.mrb[0].mxu0
        %460 = vmatprep.mubr.bf16.mxu0 0
        %461 = vmatmul.mubr.bf16.gmra.mrb[0].mxu0 %v386
        %v462 = vpop.f32.mrb[0].mxu0
        %v463 = vadd.f32 0.0, %v462
        %v464 = vpop.f32.mrb[0].mxu0
        %v465 = vpop.f32.mrb[0].mxu0
        %v466 = vadd.f32 0.0, %v465
        %v467 = vpop.f32.mrb[0].mxu0
        %468 = vmatprep.mubr.bf16.mxu0 0
        %469 = vmatmul.mubr.bf16.gmra.mrb[0].mxu0 %v389
        %v470 = vpop.f32.mrb[0].mxu0
        %v471 = vadd.f32 0.0, %v470
        %v472 = vpop.f32.mrb[0].mxu0
        %v473 = vpop.f32.mrb[0].mxu0
        %v474 = vadd.f32 0.0, %v473
        %v475 = vpop.f32.mrb[0].mxu0
        %476 = vmatprep.mubr.bf16.mxu0 0
        %477 = vmatmul.mubr.bf16.gmra.mrb[0].mxu0 %v392
        %v478 = vpop.f32.mrb[0].mxu0
        %v479 = vadd.f32 0.0, %v478
        %v480 = vpop.f32.mrb[0].mxu0
        %v481 = vpop.f32.mrb[0].mxu0
        %v482 = vadd.f32 0.0, %v481
        %v483 = vpop.f32.mrb[0].mxu0
        %484 = vmatprep.mubr.bf16.mxu0 0
        %485 = vmatmul.mubr.bf16.gmra.mrb[0].mxu0 %v395
        %v486 = vpop.f32.mrb[0].mxu0
        %v487 = vadd.f32 0.0, %v486
        %v488 = vpop.f32.mrb[0].mxu0
        %v489 = vpop.f32.mrb[0].mxu0
        %v490 = vadd.f32 0.0, %v489
        %v491 = vpop.f32.mrb[0].mxu0
        %492 = vmatprep.mubr.bf16.mxu0 0
        %493 = vmatmul.mubr.bf16.gmra.mrb[0].mxu0 %v398
        %v494 = vpop.f32.mrb[0].mxu0
        %v495 = vadd.f32 0.0, %v494
        %v496 = vpop.f32.mrb[0].mxu0
        %v497 = vpop.f32.mrb[0].mxu0
        %v498 = vadd.f32 0.0, %v497
        %v499 = vpop.f32.mrb[0].mxu0
        %500 = vdwg.mxu0
        %v501 = vpack.c.bf16 %v442, %v439
        %v502 = vpack.c.bf16 %v450, %v447
        %v503 = vpack.c.bf16 %v458, %v455
        %v504 = vpack.c.bf16 %v466, %v463
        %v505 = vpack.c.bf16 %v474, %v471
        %v506 = vpack.c.bf16 %v482, %v479
        %v507 = vpack.c.bf16 %v490, %v487
        %v508 = vpack.c.bf16 %v498, %v495
        %v517 = vunpack.c.l.b16 %v501
        %v518 = vunpack.c.h.b16 %v501
        %v519 = vunpack.c.l.b16 %v502
        %v520 = vunpack.c.h.b16 %v502
        %v521 = vunpack.c.l.b16 %v503
        %v522 = vunpack.c.h.b16 %v503
        %v523 = vunpack.c.l.b16 %v504
        %v524 = vunpack.c.h.b16 %v504
        %v525 = vunpack.c.l.b16 %v505
        %v526 = vunpack.c.h.b16 %v505
        %v527 = vunpack.c.l.b16 %v506
        %v528 = vunpack.c.h.b16 %v506
        %v529 = vunpack.c.l.b16 %v507
        %v530 = vunpack.c.h.b16 %v507
        %v531 = vunpack.c.l.b16 %v508
        %v532 = vunpack.c.h.b16 %v508
        %v533 = vpack.c.b16 %v517, %v517
        %v534 = vpack.c.b16 %v518, %v518
        %v535 = vpack.c.b16 %v519, %v519
        %v536 = vpack.c.b16 %v520, %v520
        %v537 = vpack.c.b16 %v521, %v521
        %v538 = vpack.c.b16 %v522, %v522
        %v539 = vpack.c.b16 %v523, %v523
        %v540 = vpack.c.b16 %v524, %v524
        %v541 = vpack.c.b16 %v525, %v525
        %v542 = vpack.c.b16 %v526, %v526
        %v543 = vpack.c.b16 %v527, %v527
        %v544 = vpack.c.b16 %v528, %v528
        %v545 = vpack.c.b16 %v529, %v529
        %v546 = vpack.c.b16 %v530, %v530
        %v547 = vpack.c.b16 %v531, %v531
        %v548 = vpack.c.b16 %v532, %v532
        %vm565 = vcmask 125952
        %566 = vst.msk [vmem:[%s265] sm:$0xf] %vm565, %v533
        %567 = vst.msk [vmem:[%s265 + $0x4] sm:$0xf] %vm565, %v534
        %568 = vst.msk [vmem:[%s265 + $0x8] sm:$0xf] %vm565, %v535
        %569 = vst.msk [vmem:[%s265 + $0xc] sm:$0xf] %vm565, %v536
        %570 = vst.msk [vmem:[%s265 + $0x10] sm:$0xf] %vm565, %v537
        %571 = vst.msk [vmem:[%s265 + $0x14] sm:$0xf] %vm565, %v538
        %572 = vst.msk [vmem:[%s265 + $0x18] sm:$0xf] %vm565, %v539
        %573 = vst.msk [vmem:[%s265 + $0x1c] sm:$0xf] %vm565, %v540
        %574 = vst.msk [vmem:[%s265 + $0x20] sm:$0xf] %vm565, %v541
        %575 = vst.msk [vmem:[%s265 + $0x24] sm:$0xf] %vm565, %v542
        %576 = vst.msk [vmem:[%s265 + $0x28] sm:$0xf] %vm565, %v543
        %577 = vst.msk [vmem:[%s265 + $0x2c] sm:$0xf] %vm565, %v544
        %578 = vst.msk [vmem:[%s265 + $0x30] sm:$0xf] %vm565, %v545
        %579 = vst.msk [vmem:[%s265 + $0x34] sm:$0xf] %vm565, %v546
        %580 = vst.msk [vmem:[%s265 + $0x38] sm:$0xf] %vm565, %v547
        %581 = vst.msk [vmem:[%s265 + $0x3c] sm:$0xf] %vm565, %v548
        %v582 = vunpack.c.l.bf16 %v501
        %v583 = vunpack.c.h.bf16 %v501
        %v584 = vunpack.c.l.bf16 %v502
        %v585 = vunpack.c.h.bf16 %v502
        %v586 = vunpack.c.l.bf16 %v503
        %v587 = vunpack.c.h.bf16 %v503
        %v588 = vunpack.c.l.bf16 %v504
        %v589 = vunpack.c.h.bf16 %v504
        %v590 = vunpack.c.l.bf16 %v505
        %v591 = vunpack.c.h.bf16 %v505
        %v592 = vunpack.c.l.bf16 %v506
        %v593 = vunpack.c.h.bf16 %v506
        %v594 = vunpack.c.l.bf16 %v507
        %v595 = vunpack.c.h.bf16 %v507
        %v596 = vunpack.c.l.bf16 %v508
        %v597 = vunpack.c.h.bf16 %v508
        %vm598 = vcmask 130048
        %v599 = vsel %vm598, %v582, 0.0
        %v600 = vsel %vm598, %v583, 0.0
        %v601 = vadd.f32 %v599, %v600
        %v602 = vsel %vm598, %v584, 0.0
        %v603 = vadd.f32 %v601, %v602
        %v604 = vsel %vm598, %v585, 0.0
        %v605 = vadd.f32 %v603, %v604
        %v606 = vsel %vm598, %v586, 0.0
        %v607 = vadd.f32 %v605, %v606
        %v608 = vsel %vm598, %v587, 0.0
        %v609 = vadd.f32 %v607, %v608
        %v610 = vsel %vm598, %v588, 0.0
        %v611 = vadd.f32 %v609, %v610
        %v612 = vsel %vm598, %v589, 0.0
        %v613 = vadd.f32 %v611, %v612
        %v614 = vsel %vm598, %v590, 0.0
        %v615 = vadd.f32 %v613, %v614
        %v616 = vsel %vm598, %v591, 0.0
        %v617 = vadd.f32 %v615, %v616
        %v618 = vsel %vm598, %v592, 0.0
        %v619 = vadd.f32 %v617, %v618
        %v620 = vsel %vm598, %v593, 0.0
        %v621 = vadd.f32 %v619, %v620
        %v622 = vsel %vm598, %v594, 0.0
        %v623 = vadd.f32 %v621, %v622
        %v624 = vsel %vm598, %v595, 0.0
        %v625 = vadd.f32 %v623, %v624
        %v626 = vsel %vm598, %v596, 0.0
        %v627 = vadd.f32 %v625, %v626
        %v628 = vsel %vm598, %v597, 0.0
        %v629 = vadd.f32 %v627, %v628
        %v630 = vrot.slane %v629, 4
        %v631 = vadd.f32 %v629, %v630
        %v632 = vrot.slane %v631, 2
        %v633 = vadd.f32 %v631, %v632
        %v634 = vrot.slane %v633, 1
        %v635 = vadd.f32 %v633, %v634
        %vm636 = vcmask 122880
        %637 = vst.msk [vmem:[%s272] sm:$0x1] %vm636, %v635
        %v638 = vmul.f32 %v582, %v582
        %v639 = vmul.f32 %v583, %v583
        %v640 = vmul.f32 %v584, %v584
        %v641 = vmul.f32 %v585, %v585
        %v642 = vmul.f32 %v586, %v586
        %v643 = vmul.f32 %v587, %v587
        %v644 = vmul.f32 %v588, %v588
        %v645 = vmul.f32 %v589, %v589
        %v646 = vmul.f32 %v590, %v590
        %v647 = vmul.f32 %v591, %v591
        %v648 = vmul.f32 %v592, %v592
        %v649 = vmul.f32 %v593, %v593
        %v650 = vmul.f32 %v594, %v594
        %v651 = vmul.f32 %v595, %v595
        %v652 = vmul.f32 %v596, %v596
        %v653 = vmul.f32 %v597, %v597
        %v654 = vsel %vm598, %v638, 0.0
        %v655 = vsel %vm598, %v639, 0.0
        %v656 = vadd.f32 %v654, %v655
        %v657 = vsel %vm598, %v640, 0.0
        %v658 = vadd.f32 %v656, %v657
        %v659 = vsel %vm598, %v641, 0.0
        %v660 = vadd.f32 %v658, %v659
        %v661 = vsel %vm598, %v642, 0.0
        %v662 = vadd.f32 %v660, %v661
        %v663 = vsel %vm598, %v643, 0.0
        %v664 = vadd.f32 %v662, %v663
        %v665 = vsel %vm598, %v644, 0.0
        %v666 = vadd.f32 %v664, %v665
        %v667 = vsel %vm598, %v645, 0.0
        %v668 = vadd.f32 %v666, %v667
        %v669 = vsel %vm598, %v646, 0.0
        %v670 = vadd.f32 %v668, %v669
        %v671 = vsel %vm598, %v647, 0.0
        %v672 = vadd.f32 %v670, %v671
        %v673 = vsel %vm598, %v648, 0.0
        %v674 = vadd.f32 %v672, %v673
        %v675 = vsel %vm598, %v649, 0.0
        %v676 = vadd.f32 %v674, %v675
        %v677 = vsel %vm598, %v650, 0.0
        %v678 = vadd.f32 %v676, %v677
        %v679 = vsel %vm598, %v651, 0.0
        %v680 = vadd.f32 %v678, %v679
        %v681 = vsel %vm598, %v652, 0.0
        %v682 = vadd.f32 %v680, %v681
        %v683 = vsel %vm598, %v653, 0.0
        %v684 = vadd.f32 %v682, %v683
        %v685 = vrot.slane %v684, 4
        %v686 = vadd.f32 %v684, %v685
        %v687 = vrot.slane %v686, 2
        %v688 = vadd.f32 %v686, %v687
        %v689 = vrot.slane %v688, 1
        %v690 = vadd.f32 %v688, %v689
        %691 = vst.msk [vmem:[%s272 + $0x1] sm:$0x1] %vm636, %v690
        %s692 = sand.u32 %s118, 1
        %s693 = scalar_lea.sflag [#allocation4], %s692
        %s694 = sand.u32 %s118, 1
        %s695 = smul.addr %s694, 64
        %s696 = scalar_lea.vmem [#allocation8], %s695
        %s697 = sand.u32 %s146, 1
        %s698 = scalar_lea.sflag [#allocation10], %s697
        %s699 = sand.u32 %s146, 1
        %s700 = smul.addr %s699, 2
        %s701 = scalar_lea.vmem [#allocation9], %s700
        // Predicated region
        $region45: #{bottleneck_forward.6} parent=31 // pred_check
          %p702 = pneg %p128
        $region46: #{bottleneck_forward.6} parent=31 // pred_check_branch
          %704 = sbr.rel (%p702) target = $region48
        $region47: #{bottleneck_forward.6} parent=31 // pred_region
          %s705 = smul.u32 8, %s31
          %s707 = ssub.s32 1024, 1024
          %708 = vsyncadd %s693, %s707
          %s709 = smul.addr %s705, 2
          %s710 = smul.addr %s30, 32
          %s711 = sadd.s32 %s709, %s710
          %s712 = smul.addr %s711, 64
          %s713 = scalar_lea.hbm %s3, %s712
          %s714 = sshll.u32 %s696, 4
          %s715 = int_to_ptr.vmem [resolvable:$true] %s714
          %720 = dma.vmem_to_hbm [thread:$0]  %s715, 1024, %s713, %s693, 64, 64, 4
        $region48: #{bottleneck_forward.6} parent=31 // pred_fallthru
          _
        // Predicated region
        $region49: #{bottleneck_forward.6} parent=31 // pred_check
          %p721 = pneg %p156
        $region50: #{bottleneck_forward.6} parent=31 // pred_check_branch
          %723 = sbr.rel (%p721) target = $region52
        $region51: #{bottleneck_forward.6} parent=31 // pred_region
          %s725 = ssub.s32 32, 32
          %726 = vsyncadd %s698, %s725
          %s727 = smul.addr %s30, 2
          %s728 = sadd.s32 %s31, %s727
          %s729 = smul.addr %s728, 32
          %s730 = scalar_lea.hbm %s4, %s729
          %s732 = sshll.u32 %s701, 4
          %s733 = int_to_ptr.vmem [resolvable:$true] %s732
          %735 = dma.vmem_to_hbm [thread:$0]  %s733, 32, %s730, %s698
        $region52: #{bottleneck_forward.6} parent=31 // pred_fallthru
          _
      $region32: #{bottleneck_forward.6} parent=5 // pred_fallthru
        _
      %p736 = scmp.le.s32.totalorder 2, %s21
      // Predicated region
      $region53: #{bottleneck_forward.6} parent=5 // pred_check
        %p737 = pneg %p736
      $region54: #{bottleneck_forward.6} parent=5 // pred_check_branch
        %739 = sbr.rel (%p737) target = $region56
      $region55: #{bottleneck_forward.6} parent=5 // pred_region
        %s740 = ssub.s32 %s21, 2
        // Predicated region
        $region57: #{bottleneck_forward.6} parent=55 // pred_check
          %p741 = pneg %p134
        $region58: #{bottleneck_forward.6} parent=55 // pred_check_branch
          %743 = sbr.rel (%p741) target = $region60
        $region59: #{bottleneck_forward.6} parent=55 // pred_region
          %s744 = sand.u32 %s119, 1
          %s745 = scalar_lea.sflag [#allocation4], %s744
          %s746 = sand.u32 %s119, 1
          %s747 = smul.addr %s746, 64
          %s748 = scalar_lea.vmem [#allocation8], %s747
          %749 = dma.done %s745, 1024
        $region60: #{bottleneck_forward.6} parent=55 // pred_fallthru
          _
        // Predicated region
        $region61: #{bottleneck_forward.6} parent=55 // pred_check
          %p750 = pneg %p162
        $region62: #{bottleneck_forward.6} parent=55 // pred_check_branch
          %752 = sbr.rel (%p750) target = $region64
        $region63: #{bottleneck_forward.6} parent=55 // pred_region
          %s753 = sand.u32 %s147, 1
          %s754 = scalar_lea.sflag [#allocation10], %s753
          %s755 = sand.u32 %s147, 1
          %s756 = smul.addr %s755, 2
          %s757 = scalar_lea.vmem [#allocation9], %s756
          %758 = dma.done %s754, 32
        $region64: #{bottleneck_forward.6} parent=55 // pred_fallthru
          _
      $region56: #{bottleneck_forward.6} parent=5 // pred_fallthru
        _
    $region6: #{bottleneck_forward.6} parent=1 // loop_footer
      %s25 = sadd.s32 1, %s21
    $region7: #{bottleneck_forward.6} parent=1 // loop_footer_branch
      %20 = sbr.rel target = $region3
    $region8: #{bottleneck_forward.6} parent=1 // loop_exit
      _
    %759 = vsyncpa [#allocation3], 1
    %s760 = scalar_lea.sflag [#allocation3], 1
    %761 = vsyncpa %s760, 1
    %762 = vsyncpa [#allocation6], 1
    %763 = vsyncpa [#allocation4], 1
    %s764 = scalar_lea.sflag [#allocation4], 1
    %765 = vsyncpa %s764, 1
    %766 = vsyncpa [#allocation10], 1
    %s767 = scalar_lea.sflag [#allocation10], 1
    %768 = vsyncpa %s767, 1

// kernel: bottleneck_forward.7
$region0: #{bottleneck_forward.7}
  #allocation0 [shape = 'u32[]', space=smem, size = 0x4, offset = 0x4, fixed_abs, tag = 'smem constant byte address 0x4 - core index']
  #allocation1 [shape = 'u32[144,128]{1,0:T(1,128)}', space=vmem, size = 0x12000, scoped, tag = 'internal scratch']
  %s0 = inlined_call_operand.hbm [shape: bf16[2,16,16,16], index: 0, kind: input, shape index: {}]
  %s1 = inlined_call_operand.hbm [shape: f32[2,16], index: 1, kind: input, shape index: {}]
  %s2 = inlined_call_operand.hbm [shape: bf16[2,16,16,16], index: 2, kind: input, shape index: {}]
  %s3 = inlined_call_operand.hbm [shape: f32[2,16,16,16], index: 3, kind: output, shape index: {}]
  %s4 = sld [smem:[#allocation0]]
  $region57: #{bottleneck_forward.7} parent=0
    _
  %s6 = ssub.s32 1, %s4
  %s7 = scalar_select 0, %s6, %s4
  $region1: #{bottleneck_forward.7} parent=0
    #allocation2 [shape = 'u8[65536]{0}', space=vmem, size = 0x10000, scoped, tag = 'input window, operand 0']
    #allocation3 [shape = 's32[2]{0}', space=sflag, size = 0x8, scoped, tag = 'scoped memory for bottleneck_forward.7']
    #allocation4 [shape = 's32[2]{0}', space=sflag, size = 0x8, scoped, tag = 'scoped memory for bottleneck_forward.7']
    #allocation5 [shape = 'u8[1024]{0}', space=vmem, size = 0x400, scoped, tag = 'input window, operand 1, single buffered']
    #allocation6 [shape = 's32[1]{0}', space=sflag, size = 0x4, scoped, tag = 'scoped memory for bottleneck_forward.7']
    #allocation7 [shape = 'u8[65536]{0}', space=vmem, size = 0x10000, scoped, tag = 'input window, operand 2']
    #allocation8 [shape = 'u8[131072]{0}', space=vmem, size = 0x20000, scoped, tag = 'output window, operand 0']
    %8 = vsyncpa [#allocation3], 0
    %s9 = scalar_lea.sflag [#allocation3], 1
    %10 = vsyncpa %s9, 0
    %11 = vsyncpa [#allocation6], 0
    %12 = vsyncpa [#allocation4], 0
    %s13 = scalar_lea.sflag [#allocation4], 1
    %14 = vsyncpa %s13, 0
    loop: start=0, step=1, limit=6
    $region2: #{bottleneck_forward.7} parent=1 // loop_pre_header
      _
    $region3: #{bottleneck_forward.7} parent=1 // loop_header
      %s16 = sphi 0, %s20
      %p17 = scmp.ge.s32.totalorder %s16, 6
      %s23 = sphi 0, %s35
      %s24 = sphi 0, %s31
      %s25 = sphi 0, %s23
      %s26 = sphi 0, %s24
      %s27 = sphi 0, %s25
      %s28 = sphi 0, %s26
      %s40 = sphi 0, %s42
      %s43 = sphi 0, %s40
      %s44 = sphi 0, %s43
      %s60 = sphi 0, %s44
      %s64 = sphi 0, %s64
      %s66 = sphi 0, %s64
      %s67 = sphi 0, %s66
      %s81 = sphi 0, %s67
      %s89 = sphi 0, %s91
      %s92 = sphi 0, %s89
      %s93 = sphi 0, %s92
      %s109 = sphi 0, %s93
      %s117 = sphi 0, %s119
      %s120 = sphi 0, %s117
      %s121 = sphi 0, %s120
      %s137 = sphi 0, %s121
    $region4: #{bottleneck_forward.7} parent=1 // loop_header_branch
      %19 = sbr.rel (%p17) target = $region8
    $region5: #{bottleneck_forward.7} parent=1 // loop_body
      %s21 = ssub.s32 %s16, 1
      %s22 = ssub.s32 %s16, 2
      %s29 = sadd.s32 1, %s24
      %p30 = scmp.ge.s32.totalorder %s29, 2
      %s31 = scalar_select %p30, 0, %s29
      %s32 = sadd.s32 1, %s23
      %s33 = scalar_select %p30, %s32, %s23
      %p34 = scmp.ge.s32.totalorder %s33, 2
      %s35 = scalar_select %p34, 0, %s33
      %s36 = ssub.s32 %s23, %s35
      %s37 = ssub.s32 %s24, %s31
      %s38 = sor.u32 %s36, %s37
      %p39 = scmp.eq.s32.totalorder %s38, 0
      %s41 = sadd.s32 %s40, 1
      %s42 = scalar_select %p39, %s40, %s41
      %p45 = pneg %p39
      %p46 = scmp.eq.s32.totalorder %s16, 3
      %p47 = por %p45, %p46
      %p48 = scmp.ne.s32.totalorder %s40, %s43
      %p49 = scmp.eq.s32.totalorder %s16, 0
      %p50 = por %p48, %p49
      %p51 = scmp.ne.s32.totalorder %s40, %s43
      %p52 = scmp.eq.s32.totalorder %s21, 3
      %p53 = por %p51, %p52
      %p54 = scmp.ne.s32.totalorder %s43, %s44
      %p55 = scmp.eq.s32.totalorder %s21, 0
      %p56 = por %p54, %p55
      %p57 = scmp.ne.s32.totalorder %s43, %s44
      %p58 = scmp.eq.s32.totalorder %s22, 3
      %p59 = por %p57, %p58
      %p61 = scmp.ne.s32.totalorder %s44, %s60
      %p62 = scmp.eq.s32.totalorder %s22, 0
      %p63 = por %p61, %p62
      %s65 = sadd.s32 %s64, 1
      %p68 = scmp.eq.s32.totalorder %s16, 3
      %p69 = scmp.ne.s32.totalorder %s64, %s66
      %p70 = scmp.eq.s32.totalorder %s16, 0
      %p71 = por %p69, %p70
      %p72 = scmp.ne.s32.totalorder %s64, %s66
      %p73 = scmp.eq.s32.totalorder %s21, 3
      %p74 = por %p72, %p73
      %p75 = scmp.ne.s32.totalorder %s66, %s67
      %p76 = scmp.eq.s32.totalorder %s21, 0
      %p77 = por %p75, %p76
      %p78 = scmp.ne.s32.totalorder %s66, %s67
      %p79 = scmp.eq.s32.totalorder %s22, 3
      %p80 = por %p78, %p79
      %p82 = scmp.ne.s32.totalorder %s67, %s81
      %p83 = scmp.eq.s32.totalorder %s22, 0
      %p84 = por %p82, %p83
      %s85 = ssub.s32 %s23, %s35
      %s86 = ssub.s32 %s24, %s31
      %s87 = sor.u32 %s85, %s86
      %p88 = scmp.eq.s32.totalorder %s87, 0
      %s90 = sadd.s32 %s89, 1
      %s91 = scalar_select %p88, %s89, %s90
      %p94 = pneg %p88
      %p95 = scmp.eq.s32.totalorder %s16, 3
      %p96 = por %p94, %p95
      %p97 = scmp.ne.s32.totalorder %s89, %s92
      %p98 = scmp.eq.s32.totalorder %s16, 0
      %p99 = por %p97, %p98
      %p100 = scmp.ne.s32.totalorder %s89, %s92
      %p101 = scmp.eq.s32.totalorder %s21, 3
      %p102 = por %p100, %p101
      %p103 = scmp.ne.s32.totalorder %s92, %s93
      %p104 = scmp.eq.s32.totalorder %s21, 0
      %p105 = por %p103, %p104
      %p106 = scmp.ne.s32.totalorder %s92, %s93
      %p107 = scmp.eq.s32.totalorder %s22, 3
      %p108 = por %p106, %p107
      %p110 = scmp.ne.s32.totalorder %s93, %s109
      %p111 = scmp.eq.s32.totalorder %s22, 0
      %p112 = por %p110, %p111
      %s113 = ssub.s32 %s23, %s35
      %s114 = ssub.s32 %s24, %s31
      %s115 = sor.u32 %s113, %s114
      %p116 = scmp.eq.s32.totalorder %s115, 0
      %s118 = sadd.s32 %s117, 1
      %s119 = scalar_select %p116, %s117, %s118
      %p122 = pneg %p116
      %p123 = scmp.eq.s32.totalorder %s16, 3
      %p124 = por %p122, %p123
      %p125 = scmp.ne.s32.totalorder %s117, %s120
      %p126 = scmp.eq.s32.totalorder %s16, 0
      %p127 = por %p125, %p126
      %p128 = scmp.ne.s32.totalorder %s117, %s120
      %p129 = scmp.eq.s32.totalorder %s21, 3
      %p130 = por %p128, %p129
      %p131 = scmp.ne.s32.totalorder %s120, %s121
      %p132 = scmp.eq.s32.totalorder %s21, 0
      %p133 = por %p131, %p132
      %p134 = scmp.ne.s32.totalorder %s120, %s121
      %p135 = scmp.eq.s32.totalorder %s22, 3
      %p136 = por %p134, %p135
      %p138 = scmp.ne.s32.totalorder %s121, %s137
      %p139 = scmp.eq.s32.totalorder %s22, 0
      %p140 = por %p138, %p139
      %p141 = scmp.le.s32.totalorder 1, %s16
      %p142 = scmp.lt.s32.totalorder %s16, 5
      %p143 = pnand %p141, %p142
      %p144 = pneg %p143
      // Predicated region
      $region9: #{bottleneck_forward.7} parent=5 // pred_check
        _
      $region10: #{bottleneck_forward.7} parent=5 // pred_check_branch
        %146 = sbr.rel (%p143) target = $region12
      $region11: #{bottleneck_forward.7} parent=5 // pred_region
        %s147 = ssub.s32 %s16, 1
        // Predicated region
        $region13: #{bottleneck_forward.7} parent=11 // pred_check
          %p148 = pneg %p77
        $region14: #{bottleneck_forward.7} parent=11 // pred_check_branch
          %150 = sbr.rel (%p148) target = $region16
        $region15: #{bottleneck_forward.7} parent=11 // pred_region
          %s152 = ssub.s32 32, 32
          %153 = vsyncadd [#allocation6], %s152
          %s155 = sshll.u32 [#allocation5], 4
          %s156 = int_to_ptr.vmem [resolvable:$true] %s155
          %158 = dma.hbm_to_vmem [thread:$0]  %s1, 32, %s156, [#allocation6]
        $region16: #{bottleneck_forward.7} parent=11 // pred_fallthru
          _
      $region12: #{bottleneck_forward.7} parent=5 // pred_fallthru
        _
      %p159 = scmp.lt.s32.totalorder %s16, 4
      // Predicated region
      $region17: #{bottleneck_forward.7} parent=5 // pred_check
        %p160 = pneg %p159
      $region18: #{bottleneck_forward.7} parent=5 // pred_check_branch
        %162 = sbr.rel (%p160) target = $region20
      $region19: #{bottleneck_forward.7} parent=5 // pred_region
        // Predicated region
        $region21: #{bottleneck_forward.7} parent=19 // pred_check
          %p163 = pneg %p50
        $region22: #{bottleneck_forward.7} parent=19 // pred_check_branch
          %165 = sbr.rel (%p163) target = $region24
        $region23: #{bottleneck_forward.7} parent=19 // pred_region
          %s166 = sand.u32 %s16, 1
          %s167 = scalar_lea.sflag [#allocation3], %s166
          %s168 = sand.u32 %s40, 1
          %s169 = smul.addr %s168, 64
          %s170 = scalar_lea.vmem [#allocation2], %s169
          %s171 = smul.u32 8, %s24
          %s173 = ssub.s32 1024, 1024
          %174 = vsyncadd %s167, %s173
          %s175 = smul.addr %s171, 2
          %s176 = smul.addr %s23, 32
          %s177 = sadd.s32 %s175, %s176
          %s178 = smul.addr %s177, 64
          %s179 = scalar_lea.hbm %s0, %s178
          %s180 = sshll.u32 %s170, 4
          %s181 = int_to_ptr.vmem [resolvable:$true] %s180
          %186 = dma.hbm_to_vmem [thread:$0]  %s179, 1024, %s181, %s167, 64, 64, 4
        $region24: #{bottleneck_forward.7} parent=19 // pred_fallthru
          _
        // Predicated region
        $region25: #{bottleneck_forward.7} parent=19 // pred_check
          %p187 = pneg %p99
        $region26: #{bottleneck_forward.7} parent=19 // pred_check_branch
          %189 = sbr.rel (%p187) target = $region28
        $region27: #{bottleneck_forward.7} parent=19 // pred_region
          %s190 = sand.u32 %s16, 1
          %s191 = scalar_lea.sflag [#allocation3], %s190
          %s192 = sand.u32 %s89, 1
          %s193 = smul.addr %s192, 64
          %s194 = scalar_lea.vmem [#allocation7], %s193
          %s195 = smul.u32 8, %s24
          %s197 = ssub.s32 1024, 1024
          %198 = vsyncadd %s191, %s197
          %s199 = smul.addr %s195, 2
          %s200 = smul.addr %s23, 32
          %s201 = sadd.s32 %s199, %s200
          %s202 = smul.addr %s201, 64
          %s203 = scalar_lea.hbm %s2, %s202
          %s204 = sshll.u32 %s194, 4
          %s205 = int_to_ptr.vmem [resolvable:$true] %s204
          %210 = dma.hbm_to_vmem [thread:$0]  %s203, 1024, %s205, %s191, 64, 64, 4
        $region28: #{bottleneck_forward.7} parent=19 // pred_fallthru
          _
      $region20: #{bottleneck_forward.7} parent=5 // pred_fallthru
        _
      %p211 = scmp.le.s32.totalorder 1, %s16
      %p212 = scmp.lt.s32.totalorder %s16, 5
      %p213 = pnand %p211, %p212
      %p214 = pneg %p213
      // Predicated region
      $region29: #{bottleneck_forward.7} parent=5 // pred_check
        _
      $region30: #{bottleneck_forward.7} parent=5 // pred_check_branch
        %216 = sbr.rel (%p213) target = $region32
      $region31: #{bottleneck_forward.7} parent=5 // pred_region
        %s217 = ssub.s32 %s16, 1
        %s218 = sand.u32 %s21, 1
        %s219 = scalar_lea.sflag [#allocation3], %s218
        %s220 = sand.u32 %s43, 1
        %s221 = smul.addr %s220, 64
        %s222 = scalar_lea.vmem [#allocation2], %s221
        // Predicated region
        $region33: #{bottleneck_forward.7} parent=31 // pred_check
          %p223 = pneg %p56
        $region34: #{bottleneck_forward.7} parent=31 // pred_check_branch
          %225 = sbr.rel (%p223) target = $region36
        $region35: #{bottleneck_forward.7} parent=31 // pred_region
          %226 = dma.done %s219, 1024
        $region36: #{bottleneck_forward.7} parent=31 // pred_fallthru
          _
        // Predicated region
        $region37: #{bottleneck_forward.7} parent=31 // pred_check
          %p227 = pneg %p77
        $region38: #{bottleneck_forward.7} parent=31 // pred_check_branch
          %229 = sbr.rel (%p227) target = $region40
        $region39: #{bottleneck_forward.7} parent=31 // pred_region
          %230 = dma.done [#allocation6], 32
        $region40: #{bottleneck_forward.7} parent=31 // pred_fallthru
          _
        %s231 = sand.u32 %s21, 1
        %s232 = scalar_lea.sflag [#allocation3], %s231
        %s233 = sand.u32 %s92, 1
        %s234 = smul.addr %s233, 64
        %s235 = scalar_lea.vmem [#allocation7], %s234
        // Predicated region
        $region41: #{bottleneck_forward.7} parent=31 // pred_check
          %p236 = pneg %p105
        $region42: #{bottleneck_forward.7} parent=31 // pred_check_branch
          %238 = sbr.rel (%p236) target = $region44
        $region43: #{bottleneck_forward.7} parent=31 // pred_region
          %239 = dma.done %s232, 1024
        $region44: #{bottleneck_forward.7} parent=31 // pred_fallthru
          _
        %s240 = sand.u32 %s21, 1
        %s241 = scalar_lea.sflag [#allocation3], %s240
        %s242 = sand.u32 %s43, 1
        %s243 = smul.addr %s242, 64
        %s244 = scalar_lea.vmem [#allocation2], %s243
        %p245 = pneg %p56
        %p246 = pneg %p53
        %p247 = pneg %p77
        %p248 = pneg %p74
        %s249 = sand.u32 %s21, 1
        %s250 = scalar_lea.sflag [#allocation3], %s249
        %s251 = sand.u32 %s92, 1
        %s252 = smul.addr %s251, 64
        %s253 = scalar_lea.vmem [#allocation7], %s252
        %p254 = pneg %p105
        %p255 = pneg %p102
        %p256 = pneg %p133
        %p257 = pneg %p130
        %s258 = sand.u32 %s120, 1
        %s259 = scalar_lea.sflag [#allocation4], %s258
        %s260 = sand.u32 %s120, 1
        %s261 = smul.addr %s260, 128
        %s262 = scalar_lea.vmem [#allocation8], %s261
        %s263 = smul.u32 8, %s26
        %s264 = smul.u32 8, %s26
        %s265 = smul.u32 8, %s26
        %v266 = vld [vmem:[%s222] sm:$0xf]
        %v267 = vld [vmem:[%s222 + $0x4] sm:$0xf]
        %v268 = vld [vmem:[%s222 + $0x8] sm:$0xf]
        %v269 = vld [vmem:[%s222 + $0xc] sm:$0xf]
        %v270 = vld [vmem:[%s222 + $0x10] sm:$0xf]
        %v271 = vld [vmem:[%s222 + $0x14] sm:$0xf]
        %v272 = vld [vmem:[%s222 + $0x18] sm:$0xf]
        %v273 = vld [vmem:[%s222 + $0x1c] sm:$0xf]
        %v274 = vld [vmem:[%s222 + $0x20] sm:$0xf]
        %v275 = vld [vmem:[%s222 + $0x24] sm:$0xf]
        %v276 = vld [vmem:[%s222 + $0x28] sm:$0xf]
        %v277 = vld [vmem:[%s222 + $0x2c] sm:$0xf]
        %v278 = vld [vmem:[%s222 + $0x30] sm:$0xf]
        %v279 = vld [vmem:[%s222 + $0x34] sm:$0xf]
        %v280 = vld [vmem:[%s222 + $0x38] sm:$0xf]
        %v281 = vld [vmem:[%s222 + $0x3c] sm:$0xf]
        %v282 = vunpack.c.l.bf16 %v266
        %v283 = vunpack.c.l.bf16 %v267
        %v284 = vunpack.c.l.bf16 %v268
        %v285 = vunpack.c.l.bf16 %v269
        %v286 = vunpack.c.l.bf16 %v270
        %v287 = vunpack.c.l.bf16 %v271
        %v288 = vunpack.c.l.bf16 %v272
        %v289 = vunpack.c.l.bf16 %v273
        %v290 = vunpack.c.l.bf16 %v274
        %v291 = vunpack.c.l.bf16 %v275
        %v292 = vunpack.c.l.bf16 %v276
        %v293 = vunpack.c.l.bf16 %v277
        %v294 = vunpack.c.l.bf16 %v278
        %v295 = vunpack.c.l.bf16 %v279
        %v296 = vunpack.c.l.bf16 %v280
        %v297 = vunpack.c.l.bf16 %v281
        %v298 = vld [vmem:[#allocation5] sm:$0x1]
        %v299 = vlaneseq
        %v300 = vshrl.u32 %v299, 7
        %v301 = vsub.s32 0, %v300
        %v302 = vrot.slane %v298, %v301
        %v303 = vmul.f32 %v282, %v302
        %v304 = vmul.f32 %v283, %v302
        %v305 = vmul.f32 %v284, %v302
        %v306 = vmul.f32 %v285, %v302
        %v307 = vmul.f32 %v286, %v302
        %v308 = vmul.f32 %v287, %v302
        %v309 = vmul.f32 %v288, %v302
        %v310 = vmul.f32 %v289, %v302
        %v311 = vmul.f32 %v290, %v302
        %v312 = vmul.f32 %v291, %v302
        %v313 = vmul.f32 %v292, %v302
        %v314 = vmul.f32 %v293, %v302
        %v315 = vmul.f32 %v294, %v302
        %v316 = vmul.f32 %v295, %v302
        %v317 = vmul.f32 %v296, %v302
        %v318 = vmul.f32 %v297, %v302
        %v319 = vld [vmem:[#allocation5 + $0x1] sm:$0x1]
        %v320 = vlaneseq
        %v321 = vshrl.u32 %v320, 7
        %v322 = vsub.s32 0, %v321
        %v323 = vrot.slane %v319, %v322
        %v324 = vadd.f32 %v303, %v323
        %v325 = vadd.f32 %v304, %v323
        %v326 = vadd.f32 %v305, %v323
        %v327 = vadd.f32 %v306, %v323
        %v328 = vadd.f32 %v307, %v323
        %v329 = vadd.f32 %v308, %v323
        %v330 = vadd.f32 %v309, %v323
        %v331 = vadd.f32 %v310, %v323
        %v332 = vadd.f32 %v311, %v323
        %v333 = vadd.f32 %v312, %v323
        %v334 = vadd.f32 %v313, %v323
        %v335 = vadd.f32 %v314, %v323
        %v336 = vadd.f32 %v315, %v323
        %v337 = vadd.f32 %v316, %v323
        %v338 = vadd.f32 %v317, %v323
        %v339 = vadd.f32 %v318, %v323
        %v340 = vld [vmem:[%s235] sm:$0xf]
        %v341 = vld [vmem:[%s235 + $0x4] sm:$0xf]
        %v342 = vld [vmem:[%s235 + $0x8] sm:$0xf]
        %v343 = vld [vmem:[%s235 + $0xc] sm:$0xf]
        %v344 = vld [vmem:[%s235 + $0x10] sm:$0xf]
        %v345 = vld [vmem:[%s235 + $0x14] sm:$0xf]
        %v346 = vld [vmem:[%s235 + $0x18] sm:$0xf]
        %v347 = vld [vmem:[%s235 + $0x1c] sm:$0xf]
        %v348 = vld [vmem:[%s235 + $0x20] sm:$0xf]
        %v349 = vld [vmem:[%s235 + $0x24] sm:$0xf]
        %v350 = vld [vmem:[%s235 + $0x28] sm:$0xf]
        %v351 = vld [vmem:[%s235 + $0x2c] sm:$0xf]
        %v352 = vld [vmem:[%s235 + $0x30] sm:$0xf]
        %v353 = vld [vmem:[%s235 + $0x34] sm:$0xf]
        %v354 = vld [vmem:[%s235 + $0x38] sm:$0xf]
        %v355 = vld [vmem:[%s235 + $0x3c] sm:$0xf]
        %v356 = vunpack.c.l.bf16 %v340
        %v357 = vunpack.c.l.bf16 %v341
        %v358 = vunpack.c.l.bf16 %v342
        %v359 = vunpack.c.l.bf16 %v343
        %v360 = vunpack.c.l.bf16 %v344
        %v361 = vunpack.c.l.bf16 %v345
        %v362 = vunpack.c.l.bf16 %v346
        %v363 = vunpack.c.l.bf16 %v347
        %v364 = vunpack.c.l.bf16 %v348
        %v365 = vunpack.c.l.bf16 %v349
        %v366 = vunpack.c.l.bf16 %v350
        %v367 = vunpack.c.l.bf16 %v351
        %v368 = vunpack.c.l.bf16 %v352
        %v369 = vunpack.c.l.bf16 %v353
        %v370 = vunpack.c.l.bf16 %v354
        %v371 = vunpack.c.l.bf16 %v355
        %v372 = vadd.f32 %v324, %v356
        %v373 = vadd.f32 %v325, %v357
        %v374 = vadd.f32 %v326, %v358
        %v375 = vadd.f32 %v327, %v359
        %v376 = vadd.f32 %v328, %v360
        %v377 = vadd.f32 %v329, %v361
        %v378 = vadd.f32 %v330, %v362
        %v379 = vadd.f32 %v331, %v363
        %v380 = vadd.f32 %v332, %v364
        %v381 = vadd.f32 %v333, %v365
        %v382 = vadd.f32 %v334, %v366
        %v383 = vadd.f32 %v335, %v367
        %v384 = vadd.f32 %v336, %v368
        %v385 = vadd.f32 %v337, %v369
        %v386 = vadd.f32 %v338, %v370
        %v387 = vadd.f32 %v339, %v371
        %v388 = vmax.f32 %v372, 0.0
        %v389 = vmax.f32 %v373, 0.0
        %v390 = vmax.f32 %v374, 0.0
        %v391 = vmax.f32 %v375, 0.0
        %v392 = vmax.f32 %v376, 0.0
        %v393 = vmax.f32 %v377, 0.0
        %v394 = vmax.f32 %v378, 0.0
        %v395 = vmax.f32 %v379, 0.0
        %v396 = vmax.f32 %v380, 0.0
        %v397 = vmax.f32 %v381, 0.0
        %v398 = vmax.f32 %v382, 0.0
        %v399 = vmax.f32 %v383, 0.0
        %v400 = vmax.f32 %v384, 0.0
        %v401 = vmax.f32 %v385, 0.0
        %v402 = vmax.f32 %v386, 0.0
        %v403 = vmax.f32 %v387, 0.0
        %vm404 = vcmask 130048
        %405 = vst.msk [vmem:[%s262] sm:$0xff] %vm404, %v388
        %406 = vst.msk [vmem:[%s262 + $0x8] sm:$0xff] %vm404, %v389
        %407 = vst.msk [vmem:[%s262 + $0x10] sm:$0xff] %vm404, %v390
        %408 = vst.msk [vmem:[%s262 + $0x18] sm:$0xff] %vm404, %v391
        %409 = vst.msk [vmem:[%s262 + $0x20] sm:$0xff] %vm404, %v392
        %410 = vst.msk [vmem:[%s262 + $0x28] sm:$0xff] %vm404, %v393
        %411 = vst.msk [vmem:[%s262 + $0x30] sm:$0xff] %vm404, %v394
        %412 = vst.msk [vmem:[%s262 + $0x38] sm:$0xff] %vm404, %v395
        %413 = vst.msk [vmem:[%s262 + $0x40] sm:$0xff] %vm404, %v396
        %414 = vst.msk [vmem:[%s262 + $0x48] sm:$0xff] %vm404, %v397
        %415 = vst.msk [vmem:[%s262 + $0x50] sm:$0xff] %vm404, %v398
        %416 = vst.msk [vmem:[%s262 + $0x58] sm:$0xff] %vm404, %v399
        %417 = vst.msk [vmem:[%s262 + $0x60] sm:$0xff] %vm404, %v400
        %418 = vst.msk [vmem:[%s262 + $0x68] sm:$0xff] %vm404, %v401
        %419 = vst.msk [vmem:[%s262 + $0x70] sm:$0xff] %vm404, %v402
        %420 = vst.msk [vmem:[%s262 + $0x78] sm:$0xff] %vm404, %v403
        %s421 = sand.u32 %s120, 1
        %s422 = scalar_lea.sflag [#allocation4], %s421
        %s423 = sand.u32 %s120, 1
        %s424 = smul.addr %s423, 128
        %s425 = scalar_lea.vmem [#allocation8], %s424
        // Predicated region
        $region45: #{bottleneck_forward.7} parent=31 // pred_check
          %p426 = pneg %p130
        $region46: #{bottleneck_forward.7} parent=31 // pred_check_branch
          %428 = sbr.rel (%p426) target = $region48
        $region47: #{bottleneck_forward.7} parent=31 // pred_region
          %s429 = smul.u32 8, %s26
          %s431 = ssub.s32 2048, 2048
          %432 = vsyncadd %s422, %s431
          %s433 = smul.addr %s429, 2
          %s434 = smul.addr %s25, 32
          %s435 = sadd.s32 %s433, %s434
          %s436 = smul.addr %s435, 128
          %s437 = scalar_lea.hbm %s3, %s436
          %s438 = sshll.u32 %s425, 4
          %s439 = int_to_ptr.vmem [resolvable:$true] %s438
          %444 = dma.vmem_to_hbm [thread:$0]  %s439, 2048, %s437, %s422, 128, 128, 8
        $region48: #{bottleneck_forward.7} parent=31 // pred_fallthru
          _
      $region32: #{bottleneck_forward.7} parent=5 // pred_fallthru
        _
      %p445 = scmp.le.s32.totalorder 2, %s16
      // Predicated region
      $region49: #{bottleneck_forward.7} parent=5 // pred_check
        %p446 = pneg %p445
      $region50: #{bottleneck_forward.7} parent=5 // pred_check_branch
        %448 = sbr.rel (%p446) target = $region52
      $region51: #{bottleneck_forward.7} parent=5 // pred_region
        %s449 = ssub.s32 %s16, 2
        // Predicated region
        $region53: #{bottleneck_forward.7} parent=51 // pred_check
          %p450 = pneg %p136
        $region54: #{bottleneck_forward.7} parent=51 // pred_check_branch
          %452 = sbr.rel (%p450) target = $region56
        $region55: #{bottleneck_forward.7} parent=51 // pred_region
          %s453 = sand.u32 %s121, 1
          %s454 = scalar_lea.sflag [#allocation4], %s453
          %s455 = sand.u32 %s121, 1
          %s456 = smul.addr %s455, 128
          %s457 = scalar_lea.vmem [#allocation8], %s456
          %458 = dma.done %s454, 2048
        $region56: #{bottleneck_forward.7} parent=51 // pred_fallthru
          _
      $region52: #{bottleneck_forward.7} parent=5 // pred_fallthru
        _
    $region6: #{bottleneck_forward.7} parent=1 // loop_footer
      %s20 = sadd.s32 1, %s16
    $region7: #{bottleneck_forward.7} parent=1 // loop_footer_branch
      %15 = sbr.rel target = $region3
    $region8: #{bottleneck_forward.7} parent=1 // loop_exit
      _
    %459 = vsyncpa [#allocation3], 1
    %s460 = scalar_lea.sflag [#allocation3], 1
    %461 = vsyncpa %s460, 1
    %462 = vsyncpa [#allocation6], 1
    %463 = vsyncpa [#allocation4], 1
    %s464 = scalar_lea.sflag [#allocation4], 1
    %465 = vsyncpa %s464, 1

// kernel: bottleneck_forward.5
$region0: #{bottleneck_forward.5}
  #allocation0 [shape = 'u32[]', space=smem, size = 0x4, offset = 0x4, fixed_abs, tag = 'smem constant byte address 0x4 - core index']
  #allocation1 [shape = 'u32[144,128]{1,0:T(1,128)}', space=vmem, size = 0x12000, scoped, tag = 'internal scratch']
  %s0 = inlined_call_operand.hbm [shape: bf16[2,16,16,4], index: 0, kind: input, shape index: {}]
  %s1 = inlined_call_operand.hbm [shape: f32[2,4], index: 1, kind: input, shape index: {}]
  %s2 = inlined_call_operand.hbm [shape: bf16[36,4], index: 2, kind: input, shape index: {}]
  %s3 = inlined_call_operand.hbm [shape: bf16[2,16,16,4], index: 3, kind: output, shape index: {0}]
  %s4 = inlined_call_operand.hbm [shape: f32[2,1,2,4], index: 4, kind: output, shape index: {1}]
  %5 = xla_tuple %s3, %s4
  %s6 = sld [smem:[#allocation0]]
  $region65: #{bottleneck_forward.5} parent=0
    _
  %s8 = ssub.s32 1, %s6
  %s9 = scalar_select 0, %s8, %s6
  $region1: #{bottleneck_forward.5} parent=0
    #allocation2 [shape = 'u8[131072]{0}', space=vmem, size = 0x20000, scoped, tag = 'input window, operand 0']
    #allocation3 [shape = 's32[2]{0}', space=sflag, size = 0x8, scoped, tag = 'scoped memory for bottleneck_forward.5']
    #allocation4 [shape = 's32[2]{0}', space=sflag, size = 0x8, scoped, tag = 'scoped memory for bottleneck_forward.5']
    #allocation5 [shape = 'u8[1024]{0}', space=vmem, size = 0x400, scoped, tag = 'input window, operand 1, single buffered']
    #allocation6 [shape = 's32[1]{0}', space=sflag, size = 0x4, scoped, tag = 'scoped memory for bottleneck_forward.5']
    #allocation7 [shape = 'u8[10240]{0}', space=vmem, size = 0x2800, scoped, tag = 'input window, operand 2, single buffered']
    #allocation8 [shape = 'u8[131072]{0}', space=vmem, size = 0x20000, scoped, tag = 'output window, operand 0']
    #allocation9 [shape = 'u8[2048]{0}', space=vmem, size = 0x800, scoped, tag = 'output window, operand 1']
    #allocation10 [shape = 's32[2]{0}', space=sflag, size = 0x8, scoped, tag = 'scoped memory for bottleneck_forward.5']
    %10 = vsyncpa [#allocation3], 0
    %s11 = scalar_lea.sflag [#allocation3], 1
    %12 = vsyncpa %s11, 0
    %13 = vsyncpa [#allocation6], 0
    %14 = vsyncpa [#allocation4], 0
    %s15 = scalar_lea.sflag [#allocation4], 1
    %16 = vsyncpa %s15, 0
    %17 = vsyncpa [#allocation10], 0
    %s18 = scalar_lea.sflag [#allocation10], 1
    %19 = vsyncpa %s18, 0
    loop: start=0, step=1, limit=4
    $region2: #{bottleneck_forward.5} parent=1 // loop_pre_header
      _
    $region3: #{bottleneck_forward.5} parent=1 // loop_header
      %s21 = sphi 0, %s25
      %p22 = scmp.ge.s32.totalorder %s21, 4
      %s31 = sphi 0, %s33
      %s34 = sphi 0, %s31
      %s35 = sphi 0, %s34
      %s51 = sphi 0, %s35
      %s55 = sphi 0, %s55
      %s57 = sphi 0, %s55
      %s58 = sphi 0, %s57
      %s72 = sphi 0, %s58
      %s76 = sphi 0, %s76
      %s78 = sphi 0, %s76
      %s79 = sphi 0, %s78
      %s93 = sphi 0, %s79
      %s99 = sphi 0, %s101
      %s102 = sphi 0, %s99
      %s103 = sphi 0, %s102
      %s119 = sphi 0, %s103
      %s125 = sphi 0, %s127
      %s128 = sphi 0, %s125
      %s129 = sphi 0, %s128
      %s145 = sphi 0, %s129
    $region4: #{bottleneck_forward.5} parent=1 // loop_header_branch
      %24 = sbr.rel (%p22) target = $region8
    $region5: #{bottleneck_forward.5} parent=1 // loop_body
      %s26 = ssub.s32 %s21, 1
      %s27 = ssub.s32 %s21, 2
      %s28 = sadd.s32 %s21, 1
      %s29 = ssub.s32 %s21, %s28
      %p30 = scmp.eq.s32.totalorder %s29, 0
      %s32 = sadd.s32 %s31, 1
      %s33 = scalar_select %p30, %s31, %s32
      %p36 = pneg %p30
      %p37 = scmp.eq.s32.totalorder %s21, 1
      %p38 = por %p36, %p37
      %p39 = scmp.ne.s32.totalorder %s31, %s34
      %p40 = scmp.eq.s32.totalorder %s21, 0
      %p41 = por %p39, %p40
      %p42 = scmp.ne.s32.totalorder %s31, %s34
      %p43 = scmp.eq.s32.totalorder %s26, 1
      %p44 = por %p42, %p43
      %p45 = scmp.ne.s32.totalorder %s34, %s35
      %p46 = scmp.eq.s32.totalorder %s26, 0
      %p47 = por %p45, %p46
      %p48 = scmp.ne.s32.totalorder %s34, %s35
      %p49 = scmp.eq.s32.totalorder %s27, 1
      %p50 = por %p48, %p49
      %p52 = scmp.ne.s32.totalorder %s35, %s51
      %p53 = scmp.eq.s32.totalorder %s27, 0
      %p54 = por %p52, %p53
      %s56 = sadd.s32 %s55, 1
      %p59 = scmp.eq.s32.totalorder %s21, 1
      %p60 = scmp.ne.s32.totalorder %s55, %s57
      %p61 = scmp.eq.s32.totalorder %s21, 0
      %p62 = por %p60, %p61
      %p63 = scmp.ne.s32.totalorder %s55, %s57
      %p64 = scmp.eq.s32.totalorder %s26, 1
      %p65 = por %p63, %p64
      %p66 = scmp.ne.s32.totalorder %s57, %s58
      %p67 = scmp.eq.s32.totalorder %s26, 0
      %p68 = por %p66, %p67
      %p69 = scmp.ne.s32.totalorder %s57, %s58
      %p70 = scmp.eq.s32.totalorder %s27, 1
      %p71 = por %p69, %p70
      %p73 = scmp.ne.s32.totalorder %s58, %s72
      %p74 = scmp.eq.s32.totalorder %s27, 0
      %p75 = por %p73, %p74
      %s77 = sadd.s32 %s76, 1
      %p80 = scmp.eq.s32.totalorder %s21, 1
      %p81 = scmp.ne.s32.totalorder %s76, %s78
      %p82 = scmp.eq.s32.totalorder %s21, 0
      %p83 = por %p81, %p82
      %p84 = scmp.ne.s32.totalorder %s76, %s78
      %p85 = scmp.eq.s32.totalorder %s26, 1
      %p86 = por %p84, %p85
      %p87 = scmp.ne.s32.totalorder %s78, %s79
      %p88 = scmp.eq.s32.totalorder %s26, 0
      %p89 = por %p87, %p88
      %p90 = scmp.ne.s32.totalorder %s78, %s79
      %p91 = scmp.eq.s32.totalorder %s27, 1
      %p92 = por %p90, %p91
      %p94 = scmp.ne.s32.totalorder %s79, %s93
      %p95 = scmp.eq.s32.totalorder %s27, 0
      %p96 = por %p94, %p95
      %s97 = ssub.s32 %s21, %s28
      %p98 = scmp.eq.s32.totalorder %s97, 0
      %s100 = sadd.s32 %s99, 1
      %s101 = scalar_select %p98, %s99, %s100
      %p104 = pneg %p98
      %p105 = scmp.eq.s32.totalorder %s21, 1
      %p106 = por %p104, %p105
      %p107 = scmp.ne.s32.totalorder %s99, %s102
      %p108 = scmp.eq.s32.totalorder %s21, 0
      %p109 = por %p107, %p108
      %p110 = scmp.ne.s32.totalorder %s99, %s102
      %p111 = scmp.eq.s32.totalorder %s26, 1
      %p112 = por %p110, %p111
      %p113 = scmp.ne.s32.totalorder %s102, %s103
      %p114 = scmp.eq.s32.totalorder %s26, 0
      %p115 = por %p113, %p114
      %p116 = scmp.ne.s32.totalorder %s102, %s103
      %p117 = scmp.eq.s32.totalorder %s27, 1
      %p118 = por %p116, %p117
      %p120 = scmp.ne.s32.totalorder %s103, %s119
      %p121 = scmp.eq.s32.totalorder %s27, 0
      %p122 = por %p120, %p121
      %s123 = ssub.s32 %s21, %s28
      %p124 = scmp.eq.s32.totalorder %s123, 0
      %s126 = sadd.s32 %s125, 1
      %s127 = scalar_select %p124, %s125, %s126
      %p130 = pneg %p124
      %p131 = scmp.eq.s32.totalorder %s21, 1
      %p132 = por %p130, %p131
      %p133 = scmp.ne.s32.totalorder %s125, %s128
      %p134 = scmp.eq.s32.totalorder %s21, 0
      %p135 = por %p133, %p134
      %p136 = scmp.ne.s32.totalorder %s125, %s128
      %p137 = scmp.eq.s32.totalorder %s26, 1
      %p138 = por %p136, %p137
      %p139 = scmp.ne.s32.totalorder %s128, %s129
      %p140 = scmp.eq.s32.totalorder %s26, 0
      %p141 = por %p139, %p140
      %p142 = scmp.ne.s32.totalorder %s128, %s129
      %p143 = scmp.eq.s32.totalorder %s27, 1
      %p144 = por %p142, %p143
      %p146 = scmp.ne.s32.totalorder %s129, %s145
      %p147 = scmp.eq.s32.totalorder %s27, 0
      %p148 = por %p146, %p147
      %p149 = scmp.le.s32.totalorder 1, %s21
      %p150 = scmp.lt.s32.totalorder %s21, 3
      %p151 = pnand %p149, %p150
      %p152 = pneg %p151
      // Predicated region
      $region9: #{bottleneck_forward.5} parent=5 // pred_check
        _
      $region10: #{bottleneck_forward.5} parent=5 // pred_check_branch
        %154 = sbr.rel (%p151) target = $region12
      $region11: #{bottleneck_forward.5} parent=5 // pred_region
        %s155 = ssub.s32 %s21, 1
        // Predicated region
        $region13: #{bottleneck_forward.5} parent=11 // pred_check
          %p156 = pneg %p68
        $region14: #{bottleneck_forward.5} parent=11 // pred_check_branch
          %158 = sbr.rel (%p156) target = $region16
        $region15: #{bottleneck_forward.5} parent=11 // pred_region
          %s160 = ssub.s32 32, 32
          %161 = vsyncadd [#allocation6], %s160
          %s163 = sshll.u32 [#allocation5], 4
          %s164 = int_to_ptr.vmem [resolvable:$true] %s163
          %166 = dma.hbm_to_vmem [thread:$0]  %s1, 32, %s164, [#allocation6]
        $region16: #{bottleneck_forward.5} parent=11 // pred_fallthru
          _
        // Predicated region
        $region17: #{bottleneck_forward.5} parent=11 // pred_check
          %p167 = pneg %p89
        $region18: #{bottleneck_forward.5} parent=11 // pred_check_branch
          %169 = sbr.rel (%p167) target = $region20
        $region19: #{bottleneck_forward.5} parent=11 // pred_region
          %s171 = ssub.s32 320, 320
          %172 = vsyncadd [#allocation6], %s171
          %s173 = sshll.u32 [#allocation7], 4
          %s174 = int_to_ptr.vmem [resolvable:$true] %s173
          %179 = dma.hbm_to_vmem [thread:$0]  %s2, 320, %s174, [#allocation6], 64, 64, 4
        $region20: #{bottleneck_forward.5} parent=11 // pred_fallthru
          _
      $region12: #{bottleneck_forward.5} parent=5 // pred_fallthru
        _
      %p180 = scmp.lt.s32.totalorder %s21, 2
      // Predicated region
      $region21: #{bottleneck_forward.5} parent=5 // pred_check
        %p181 = pneg %p180
      $region22: #{bottleneck_forward.5} parent=5 // pred_check_branch
        %183 = sbr.rel (%p181) target = $region24
      $region23: #{bottleneck_forward.5} parent=5 // pred_region
        // Predicated region
        $region25: #{bottleneck_forward.5} parent=23 // pred_check
          %p184 = pneg %p41
        $region26: #{bottleneck_forward.5} parent=23 // pred_check_branch
          %186 = sbr.rel (%p184) target = $region28
        $region27: #{bottleneck_forward.5} parent=23 // pred_region
          %s187 = sand.u32 %s31, 1
          %s188 = scalar_lea.sflag [#allocation3], %s187
          %s189 = sand.u32 %s31, 1
          %s190 = smul.addr %s189, 128
          %s191 = scalar_lea.vmem [#allocation2], %s190
          %s193 = ssub.s32 2048, 2048
          %194 = vsyncadd %s188, %s193
          %s195 = smul.addr %s21, 32
          %s196 = smul.addr %s195, 64
          %s197 = scalar_lea.hbm %s0, %s196
          %s198 = sshll.u32 %s191, 4
          %s199 = int_to_ptr.vmem [resolvable:$true] %s198
          %204 = dma.hbm_to_vmem [thread:$0]  %s197, 2048, %s199, %s188, 64, 64, 4
        $region28: #{bottleneck_forward.5} parent=23 // pred_fallthru
          _
      $region24: #{bottleneck_forward.5} parent=5 // pred_fallthru
        _
      %p205 = scmp.le.s32.totalorder 1, %s21
      %p206 = scmp.lt.s32.totalorder %s21, 3
      %p207 = pnand %p205, %p206
      %p208 = pneg %p207
      // Predicated region
      $region29: #{bottleneck_forward.5} parent=5 // pred_check
        _
      $region30: #{bottleneck_forward.5} parent=5 // pred_check_branch
        %210 = sbr.rel (%p207) target = $region32
      $region31: #{bottleneck_forward.5} parent=5 // pred_region
        %s211 = ssub.s32 %s21, 1
        %s212 = sand.u32 %s34, 1
        %s213 = scalar_lea.sflag [#allocation3], %s212
        %s214 = sand.u32 %s34, 1
        %s215 = smul.addr %s214, 128
        %s216 = scalar_lea.vmem [#allocation2], %s215
        // Predicated region
        $region33: #{bottleneck_forward.5} parent=31 // pred_check
          %p217 = pneg %p47
        $region34: #{bottleneck_forward.5} parent=31 // pred_check_branch
          %219 = sbr.rel (%p217) target = $region36
        $region35: #{bottleneck_forward.5} parent=31 // pred_region
          %220 = dma.done %s213, 2048
        $region36: #{bottleneck_forward.5} parent=31 // pred_fallthru
          _
        // Predicated region
        $region37: #{bottleneck_forward.5} parent=31 // pred_check
          %p221 = pneg %p68
        $region38: #{bottleneck_forward.5} parent=31 // pred_check_branch
          %223 = sbr.rel (%p221) target = $region40
        $region39: #{bottleneck_forward.5} parent=31 // pred_region
          %224 = dma.done [#allocation6], 32
        $region40: #{bottleneck_forward.5} parent=31 // pred_fallthru
          _
        // Predicated region
        $region41: #{bottleneck_forward.5} parent=31 // pred_check
          %p225 = pneg %p89
        $region42: #{bottleneck_forward.5} parent=31 // pred_check_branch
          %227 = sbr.rel (%p225) target = $region44
        $region43: #{bottleneck_forward.5} parent=31 // pred_region
          %228 = dma.done [#allocation6], 320
        $region44: #{bottleneck_forward.5} parent=31 // pred_fallthru
          _
        %s229 = sand.u32 %s34, 1
        %s230 = scalar_lea.sflag [#allocation3], %s229
        %s231 = sand.u32 %s34, 1
        %s232 = smul.addr %s231, 128
        %s233 = scalar_lea.vmem [#allocation2], %s232
        %p234 = pneg %p47
        %p235 = pneg %p44
        %p236 = pneg %p68
        %p237 = pneg %p65
        %p238 = pneg %p89
        %p239 = pneg %p86
        %p240 = pneg %p115
        %p241 = pneg %p112
        %s242 = sand.u32 %s102, 1
        %s243 = scalar_lea.sflag [#allocation4], %s242
        %s244 = sand.u32 %s102, 1
        %s245 = smul.addr %s244, 128
        %s246 = scalar_lea.vmem [#allocation8], %s245
        %p247 = pneg %p141
        %p248 = pneg %p138
        %s249 = sand.u32 %s128, 1
        %s250 = scalar_lea.sflag [#allocation10], %s249
        %s251 = sand.u32 %s128, 1
        %s252 = smul.addr %s251, 2
        %s253 = scalar_lea.vmem [#allocation9], %s252
        %v257 = vld [vmem:[%s216] sm:$0xf]
        %v258 = vld [vmem:[%s216 + $0x4] sm:$0xf]
        %v259 = vld [vmem:[%s216 + $0x8] sm:$0xf]
        %v260 = vld [vmem:[%s216 + $0xc] sm:$0xf]
        %v261 = vld [vmem:[%s216 + $0x10] sm:$0xf]
        %v262 = vld [vmem:[%s216 + $0x14] sm:$0xf]
        %v263 = vld [vmem:[%s216 + $0x18] sm:$0xf]
        %v264 = vld [vmem:[%s216 + $0x1c] sm:$0xf]
        %v265 = vld [vmem:[%s216 + $0x20] sm:$0xf]
        %v266 = vld [vmem:[%s216 + $0x24] sm:$0xf]
        %v267 = vld [vmem:[%s216 + $0x28] sm:$0xf]
        %v268 = vld [vmem:[%s216 + $0x2c] sm:$0xf]
        %v269 = vld [vmem:[%s216 + $0x30] sm:$0xf]
        %v270 = vld [vmem:[%s216 + $0x34] sm:$0xf]
        %v271 = vld [vmem:[%s216 + $0x38] sm:$0xf]
        %v272 = vld [vmem:[%s216 + $0x3c] sm:$0xf]
        %v273 = vld [vmem:[%s216 + $0x40] sm:$0xf]
        %v274 = vld [vmem:[%s216 + $0x44] sm:$0xf]
        %v275 = vld [vmem:[%s216 + $0x48] sm:$0xf]
        %v276 = vld [vmem:[%s216 + $0x4c] sm:$0xf]
        %v277 = vld [vmem:[%s216 + $0x50] sm:$0xf]
        %v278 = vld [vmem:[%s216 + $0x54] sm:$0xf]
        %v279 = vld [vmem:[%s216 + $0x58] sm:$0xf]
        %v280 = vld [vmem:[%s216 + $0x5c] sm:$0xf]
        %v281 = vld [vmem:[%s216 + $0x60] sm:$0xf]
        %v282 = vld [vmem:[%s216 + $0x64] sm:$0xf]
        %v283 = vld [vmem:[%s216 + $0x68] sm:$0xf]
        %v284 = vld [vmem:[%s216 + $0x6c] sm:$0xf]
        %v285 = vld [vmem:[%s216 + $0x70] sm:$0xf]
        %v286 = vld [vmem:[%s216 + $0x74] sm:$0xf]
        %v287 = vld [vmem:[%s216 + $0x78] sm:$0xf]
        %v288 = vld [vmem:[%s216 + $0x7c] sm:$0xf]
        %v289 = vunpack.c.l.bf16 %v257
        %v290 = vunpack.c.l.bf16 %v258
        %v291 = vunpack.c.l.bf16 %v259
        %v292 = vunpack.c.l.bf16 %v260
        %v293 = vunpack.c.l.bf16 %v261
        %v294 = vunpack.c.l.bf16 %v262
        %v295 = vunpack.c.l.bf16 %v263
        %v296 = vunpack.c.l.bf16 %v264
        %v297 = vunpack.c.l.bf16 %v265
        %v298 = vunpack.c.l.bf16 %v266
        %v299 = vunpack.c.l.bf16 %v267
        %v300 = vunpack.c.l.bf16 %v268
        %v301 = vunpack.c.l.bf16 %v269
        %v302 = vunpack.c.l.bf16 %v270
        %v303 = vunpack.c.l.bf16 %v271
        %v304 = vunpack.c.l.bf16 %v272
        %v305 = vunpack.c.l.bf16 %v273
        %v306 = vunpack.c.l.bf16 %v274
        %v307 = vunpack.c.l.bf16 %v275
        %v308 = vunpack.c.l.bf16 %v276
        %v309 = vunpack.c.l.bf16 %v277
        %v310 = vunpack.c.l.bf16 %v278
        %v311 = vunpack.c.l.bf16 %v279
        %v312 = vunpack.c.l.bf16 %v280
        %v313 = vunpack.c.l.bf16 %v281
        %v314 = vunpack.c.l.bf16 %v282
        %v315 = vunpack.c.l.bf16 %v283
        %v316 = vunpack.c.l.bf16 %v284
        %v317 = vunpack.c.l.bf16 %v285
        %v318 = vunpack.c.l.bf16 %v286
        %v319 = vunpack.c.l.bf16 %v287
        %v320 = vunpack.c.l.bf16 %v288
        %v321 = vld [vmem:[#allocation5] sm:$0x1]
        %v322 = vlaneseq
        %v323 = vshrl.u32 %v322, 7
        %v324 = vsub.s32 0, %v323
        %v325 = vrot.slane %v321, %v324
        %v326 = vmul.f32 %v289, %v325
        %v327 = vmul.f32 %v290, %v325
        %v328 = vmul.f32 %v291, %v325
        %v329 = vmul.f32 %v292, %v325
        %v330 = vmul.f32 %v293, %v325
        %v331 = vmul.f32 %v294, %v325
        %v332 = vmul.f32 %v295, %v325
        %v333 = vmul.f32 %v296, %v325
        %v334 = vmul.f32 %v297, %v325
        %v335 = vmul.f32 %v298, %v325
        %v336 = vmul.f32 %v299, %v325
        %v337 = vmul.f32 %v300, %v325
        %v338 = vmul.f32 %v301, %v325
        %v339 = vmul.f32 %v302, %v325
        %v340 = vmul.f32 %v303, %v325
        %v341 = vmul.f32 %v304, %v325
        %v342 = vmul.f32 %v305, %v325
        %v343 = vmul.f32 %v306, %v325
        %v344 = vmul.f32 %v307, %v325
        %v345 = vmul.f32 %v308, %v325
        %v346 = vmul.f32 %v309, %v325
        %v347 = vmul.f32 %v310, %v325
        %v348 = vmul.f32 %v311, %v325
        %v349 = vmul.f32 %v312, %v325
        %v350 = vmul.f32 %v313, %v325
        %v351 = vmul.f32 %v314, %v325
        %v352 = vmul.f32 %v315, %v325
        %v353 = vmul.f32 %v316, %v325
        %v354 = vmul.f32 %v317, %v325
        %v355 = vmul.f32 %v318, %v325
        %v356 = vmul.f32 %v319, %v325
        %v357 = vmul.f32 %v320, %v325
        %v358 = vld [vmem:[#allocation5 + $0x1] sm:$0x1]
        %v359 = vlaneseq
        %v360 = vshrl.u32 %v359, 7
        %v361 = vsub.s32 0, %v360
        %v362 = vrot.slane %v358, %v361
        %v363 = vadd.f32 %v326, %v362
        %v364 = vadd.f32 %v327, %v362
        %v365 = vadd.f32 %v328, %v362
        %v366 = vadd.f32 %v329, %v362
        %v367 = vadd.f32 %v330, %v362
        %v368 = vadd.f32 %v331, %v362
        %v369 = vadd.f32 %v332, %v362
        %v370 = vadd.f32 %v333, %v362
        %v371 = vadd.f32 %v334, %v362
        %v372 = vadd.f32 %v335, %v362
        %v373 = vadd.f32 %v336, %v362
        %v374 = vadd.f32 %v337, %v362
        %v375 = vadd.f32 %v338, %v362
        %v376 = vadd.f32 %v339, %v362
        %v377 = vadd.f32 %v340, %v362
        %v378 = vadd.f32 %v341, %v362
        %v379 = vadd.f32 %v342, %v362
        %v380 = vadd.f32 %v343, %v362
        %v381 = vadd.f32 %v344, %v362
        %v382 = vadd.f32 %v345, %v362
        %v383 = vadd.f32 %v346, %v362
        %v384 = vadd.f32 %v347, %v362
        %v385 = vadd.f32 %v348, %v362
        %v386 = vadd.f32 %v349, %v362
        %v387 = vadd.f32 %v350, %v362
        %v388 = vadd.f32 %v351, %v362
        %v389 = vadd.f32 %v352, %v362
        %v390 = vadd.f32 %v353, %v362
        %v391 = vadd.f32 %v354, %v362
        %v392 = vadd.f32 %v355, %v362
        %v393 = vadd.f32 %v356, %v362
        %v394 = vadd.f32 %v357, %v362
        %v395 = vmax.f32 %v363, 0.0
        %v396 = vmax.f32 %v364, 0.0
        %v397 = vmax.f32 %v365, 0.0
        %v398 = vmax.f32 %v366, 0.0
        %v399 = vmax.f32 %v367, 0.0
        %v400 = vmax.f32 %v368, 0.0
        %v401 = vmax.f32 %v369, 0.0
        %v402 = vmax.f32 %v370, 0.0
        %v403 = vmax.f32 %v371, 0.0
        %v404 = vmax.f32 %v372, 0.0
        %v405 = vmax.f32 %v373, 0.0
        %v406 = vmax.f32 %v374, 0.0
        %v407 = vmax.f32 %v375, 0.0
        %v408 = vmax.f32 %v376, 0.0
        %v409 = vmax.f32 %v377, 0.0
        %v410 = vmax.f32 %v378, 0.0
        %v411 = vmax.f32 %v379, 0.0
        %v412 = vmax.f32 %v380, 0.0
        %v413 = vmax.f32 %v381, 0.0
        %v414 = vmax.f32 %v382, 0.0
        %v415 = vmax.f32 %v383, 0.0
        %v416 = vmax.f32 %v384, 0.0
        %v417 = vmax.f32 %v385, 0.0
        %v418 = vmax.f32 %v386, 0.0
        %v419 = vmax.f32 %v387, 0.0
        %v420 = vmax.f32 %v388, 0.0
        %v421 = vmax.f32 %v389, 0.0
        %v422 = vmax.f32 %v390, 0.0
        %v423 = vmax.f32 %v391, 0.0
        %v424 = vmax.f32 %v392, 0.0
        %v425 = vmax.f32 %v393, 0.0
        %v426 = vmax.f32 %v394, 0.0
        %v427 = vpack.c.bf16 %v396, %v395
        %v428 = vpack.c.bf16 %v398, %v397
        %v429 = vpack.c.bf16 %v400, %v399
        %v430 = vpack.c.bf16 %v402, %v401
        %v431 = vpack.c.bf16 %v404, %v403
        %v432 = vpack.c.bf16 %v406, %v405
        %v433 = vpack.c.bf16 %v408, %v407
        %v434 = vpack.c.bf16 %v410, %v409
        %v435 = vpack.c.bf16 %v412, %v411
        %v436 = vpack.c.bf16 %v414, %v413
        %v437 = vpack.c.bf16 %v416, %v415
        %v438 = vpack.c.bf16 %v418, %v417
        %v439 = vpack.c.bf16 %v420, %v419
        %v440 = vpack.c.bf16 %v422, %v421
        %v441 = vpack.c.bf16 %v424, %v423
        %v442 = vpack.c.bf16 %v426, %v425
        %v443 = vlaneseq
        %v444 = vshrl.u32 %v443, 7
        %v445 = vadd.s32 %v444, 8
        %v446 = vadd.s32 %v444, 16
        %v447 = vadd.s32 %v444, 24
        %v448 = vadd.s32 %v444, 32
        %v449 = vadd.s32 %v444, 40
        %v450 = vadd.s32 %v444, 48
        %v451 = vadd.s32 %v444, 56
        %v452 = vadd.s32 %v444, 64
        %v453 = vadd.s32 %v444, 72
        %v454 = vadd.s32 %v444, 80
        %v455 = vadd.s32 %v444, 88
        %v456 = vadd.s32 %v444, 96
        %v457 = vadd.s32 %v444, 104
        %v458 = vadd.s32 %v444, 112
        %v459 = vadd.s32 %v444, 120
        %v460 = vadd.s32 %v444, 128
        %v461 = vadd.s32 %v444, 136
        %v462 = vadd.s32 %v444, 144
        %v463 = vadd.s32 %v444, 152
        %v464 = vadd.s32 %v444, 160
        %v465 = vadd.s32 %v444, 168
        %v466 = vadd.s32 %v444, 176
        %v467 = vadd.s32 %v444, 184
        %v468 = vadd.s32 %v444, 192
        %v469 = vadd.s32 %v444, 200
        %v470 = vadd.s32 %v444, 208
        %v471 = vadd.s32 %v444, 216
        %v472 = vadd.s32 %v444, 224
        %v473 = vadd.s32 %v444, 232
        %v474 = vadd.s32 %v444, 240
        %v475 = vadd.s32 %v444, 248
        %vm476 = vcmp.lt.s32.totalorder %v444, 0
        %v477 = vsub.s32 0, %v444
        %v478 = vsel %vm476, %v477, %v444
        %v479 = vshrl.u32 %v478, 4
        %v480 = vand.u32 %v478, 15
        %v481 = vsub.s32 0, %v480
        %v482 = vsel %vm476, %v481, %v480
        %vm483 = vcmp.lt.s32.totalorder %v445, 0
        %v484 = vsub.s32 0, %v445
        %v485 = vsel %vm483, %v484, %v445
        %v486 = vshrl.u32 %v485, 4
        %v487 = vand.u32 %v485, 15
        %v488 = vsub.s32 0, %v487
        %v489 = vsel %vm483, %v488, %v487
        %vm490 = vcmp.lt.s32.totalorder %v446, 0
        %v491 = vsub.s32 0, %v446
        %v492 = vsel %vm490, %v491, %v446
        %v493 = vshrl.u32 %v492, 4
        %v494 = vand.u32 %v492, 15
        %v495 = vsub.s32 0, %v494
        %v496 = vsel %vm490, %v495, %v494
        %vm497 = vcmp.lt.s32.totalorder %v447, 0
        %v498 = vsub.s32 0, %v447
        %v499 = vsel %vm497, %v498, %v447
        %v500 = vshrl.u32 %v499, 4
        %v501 = vand.u32 %v499, 15
        %v502 = vsub.s32 0, %v501
        %v503 = vsel %vm497, %v502, %v501
        %vm504 = vcmp.lt.s32.totalorder %v448, 0
        %v505 = vsub.s32 0, %v448
        %v506 = vsel %vm504, %v505, %v448
        %v507 = vshrl.u32 %v506, 4
        %v508 = vand.u32 %v506, 15
        %v509 = vsub.s32 0, %v508
        %v510 = vsel %vm504, %v509, %v508
        %vm511 = vcmp.lt.s32.totalorder %v449, 0
        %v512 = vsub.s32 0, %v449
        %v513 = vsel %vm511, %v512, %v449
        %v514 = vshrl.u32 %v513, 4
        %v515 = vand.u32 %v513, 15
        %v516 = vsub.s32 0, %v515
        %v517 = vsel %vm511, %v516, %v515
        %vm518 = vcmp.lt.s32.totalorder %v450, 0
        %v519 = vsub.s32 0, %v450
        %v520 = vsel %vm518, %v519, %v450
        %v521 = vshrl.u32 %v520, 4
        %v522 = vand.u32 %v520, 15
        %v523 = vsub.s32 0, %v522
        %v524 = vsel %vm518, %v523, %v522
        %vm525 = vcmp.lt.s32.totalorder %v451, 0
        %v526 = vsub.s32 0, %v451
        %v527 = vsel %vm525, %v526, %v451
        %v528 = vshrl.u32 %v527, 4
        %v529 = vand.u32 %v527, 15
        %v530 = vsub.s32 0, %v529
        %v531 = vsel %vm525, %v530, %v529
        %vm532 = vcmp.lt.s32.totalorder %v452, 0
        %v533 = vsub.s32 0, %v452
        %v534 = vsel %vm532, %v533, %v452
        %v535 = vshrl.u32 %v534, 4
        %v536 = vand.u32 %v534, 15
        %v537 = vsub.s32 0, %v536
        %v538 = vsel %vm532, %v537, %v536
        %vm539 = vcmp.lt.s32.totalorder %v453, 0
        %v540 = vsub.s32 0, %v453
        %v541 = vsel %vm539, %v540, %v453
        %v542 = vshrl.u32 %v541, 4
        %v543 = vand.u32 %v541, 15
        %v544 = vsub.s32 0, %v543
        %v545 = vsel %vm539, %v544, %v543
        %vm546 = vcmp.lt.s32.totalorder %v454, 0
        %v547 = vsub.s32 0, %v454
        %v548 = vsel %vm546, %v547, %v454
        %v549 = vshrl.u32 %v548, 4
        %v550 = vand.u32 %v548, 15
        %v551 = vsub.s32 0, %v550
        %v552 = vsel %vm546, %v551, %v550
        %vm553 = vcmp.lt.s32.totalorder %v455, 0
        %v554 = vsub.s32 0, %v455
        %v555 = vsel %vm553, %v554, %v455
        %v556 = vshrl.u32 %v555, 4
        %v557 = vand.u32 %v555, 15
        %v558 = vsub.s32 0, %v557
        %v559 = vsel %vm553, %v558, %v557
        %vm560 = vcmp.lt.s32.totalorder %v456, 0
        %v561 = vsub.s32 0, %v456
        %v562 = vsel %vm560, %v561, %v456
        %v563 = vshrl.u32 %v562, 4
        %v564 = vand.u32 %v562, 15
        %v565 = vsub.s32 0, %v564
        %v566 = vsel %vm560, %v565, %v564
        %vm567 = vcmp.lt.s32.totalorder %v457, 0
        %v568 = vsub.s32 0, %v457
        %v569 = vsel %vm567, %v568, %v457
        %v570 = vshrl.u32 %v569, 4
        %v571 = vand.u32 %v569, 15
        %v572 = vsub.s32 0, %v571
        %v573 = vsel %vm567, %v572, %v571
        %vm574 = vcmp.lt.s32.totalorder %v458, 0
        %v575 = vsub.s32 0, %v458
        %v576 = vsel %vm574, %v575, %v458
        %v577 = vshrl.u32 %v576, 4
        %v578 = vand.u32 %v576, 15
        %v579 = vsub.s32 0, %v578
        %v580 = vsel %vm574, %v579, %v578
        %vm581 = vcmp.lt.s32.totalorder %v459, 0
        %v582 = vsub.s32 0, %v459
        %v583 = vsel %vm581, %v582, %v459
        %v584 = vshrl.u32 %v583, 4
        %v585 = vand.u32 %v583, 15
        %v586 = vsub.s32 0, %v585
        %v587 = vsel %vm581, %v586, %v585
        %vm588 = vcmp.lt.s32.totalorder %v460, 0
        %v589 = vsub.s32 0, %v460
        %v590 = vsel %vm588, %v589, %v460
        %v591 = vshrl.u32 %v590, 4
        %v592 = vand.u32 %v590, 15
        %v593 = vsub.s32 0, %v592
        %v594 = vsel %vm588, %v593, %v592
        %vm595 = vcmp.lt.s32.totalorder %v461, 0
        %v596 = vsub.s32 0, %v461
        %v597 = vsel %vm595, %v596, %v461
        %v598 = vshrl.u32 %v597, 4
        %v599 = vand.u32 %v597, 15
        %v600 = vsub.s32 0, %v599
        %v601 = vsel %vm595, %v600, %v599
        %vm602 = vcmp.lt.s32.totalorder %v462, 0
        %v603 = vsub.s32 0, %v462
        %v604 = vsel %vm602, %v603, %v462
        %v605 = vshrl.u32 %v604, 4
        %v606 = vand.u32 %v604, 15
        %v607 = vsub.s32 0, %v606
        %v608 = vsel %vm602, %v607, %v606
        %vm609 = vcmp.lt.s32.totalorder %v463, 0
        %v610 = vsub.s32 0, %v463
        %v611 = vsel %vm609, %v610, %v463
        %v612 = vshrl.u32 %v611, 4
        %v613 = vand.u32 %v611, 15
        %v614 = vsub.s32 0, %v613
        %v615 = vsel %vm609, %v614, %v613
        %vm616 = vcmp.lt.s32.totalorder %v464, 0
        %v617 = vsub.s32 0, %v464
        %v618 = vsel %vm616, %v617, %v464
        %v619 = vshrl.u32 %v618, 4
        %v620 = vand.u32 %v618, 15
        %v621 = vsub.s32 0, %v620
        %v622 = vsel %vm616, %v621, %v620
        %vm623 = vcmp.lt.s32.totalorder %v465, 0
        %v624 = vsub.s32 0, %v465
        %v625 = vsel %vm623, %v624, %v465
        %v626 = vshrl.u32 %v625, 4
        %v627 = vand.u32 %v625, 15
        %v628 = vsub.s32 0, %v627
        %v629 = vsel %vm623, %v628, %v627
        %vm630 = vcmp.lt.s32.totalorder %v466, 0
        %v631 = vsub.s32 0, %v466
        %v632 = vsel %vm630, %v631, %v466
        %v633 = vshrl.u32 %v632, 4
        %v634 = vand.u32 %v632, 15
        %v635 = vsub.s32 0, %v634
        %v636 = vsel %vm630, %v635, %v634
        %vm637 = vcmp.lt.s32.totalorder %v467, 0
        %v638 = vsub.s32 0, %v467
        %v639 = vsel %vm637, %v638, %v467
        %v640 = vshrl.u32 %v639, 4
        %v641 = vand.u32 %v639, 15
        %v642 = vsub.s32 0, %v641
        %v643 = vsel %vm637, %v642, %v641
        %vm644 = vcmp.lt.s32.totalorder %v468, 0
        %v645 = vsub.s32 0, %v468
        %v646 = vsel %vm644, %v645, %v468
        %v647 = vshrl.u32 %v646, 4
        %v648 = vand.u32 %v646, 15
        %v649 = vsub.s32 0, %v648
        %v650 = vsel %vm644, %v649, %v648
        %vm651 = vcmp.lt.s32.totalorder %v469, 0
        %v652 = vsub.s32 0, %v469
        %v653 = vsel %vm651, %v652, %v469
        %v654 = vshrl.u32 %v653, 4
        %v655 = vand.u32 %v653, 15
        %v656 = vsub.s32 0, %v655
        %v657 = vsel %vm651, %v656, %v655
        %vm658 = vcmp.lt.s32.totalorder %v470, 0
        %v659 = vsub.s32 0, %v470
        %v660 = vsel %vm658, %v659, %v470
        %v661 = vshrl.u32 %v660, 4
        %v662 = vand.u32 %v660, 15
        %v663 = vsub.s32 0, %v662
        %v664 = vsel %vm658, %v663, %v662
        %vm665 = vcmp.lt.s32.totalorder %v471, 0
        %v666 = vsub.s32 0, %v471
        %v667 = vsel %vm665, %v666, %v471
        %v668 = vshrl.u32 %v667, 4
        %v669 = vand.u32 %v667, 15
        %v670 = vsub.s32 0, %v669
        %v671 = vsel %vm665, %v670, %v669
        %vm672 = vcmp.lt.s32.totalorder %v472, 0
        %v673 = vsub.s32 0, %v472
        %v674 = vsel %vm672, %v673, %v472
        %v675 = vshrl.u32 %v674, 4
        %v676 = vand.u32 %v674, 15
        %v677 = vsub.s32 0, %v676
        %v678 = vsel %vm672, %v677, %v676
        %vm679 = vcmp.lt.s32.totalorder %v473, 0
        %v680 = vsub.s32 0, %v473
        %v681 = vsel %vm679, %v680, %v473
        %v682 = vshrl.u32 %v681, 4
        %v683 = vand.u32 %v681, 15
        %v684 = vsub.s32 0, %v683
        %v685 = vsel %vm679, %v684, %v683
        %vm686 = vcmp.lt.s32.totalorder %v474, 0
        %v687 = vsub.s32 0, %v474
        %v688 = vsel %vm686, %v687, %v474
        %v689 = vshrl.u32 %v688, 4
        %v690 = vand.u32 %v688, 15
        %v691 = vsub.s32 0, %v690
        %v692 = vsel %vm686, %v691, %v690
        %vm693 = vcmp.lt.s32.totalorder %v475, 0
        %v694 = vsub.s32 0, %v475
        %v695 = vsel %vm693, %v694, %v475
        %v696 = vshrl.u32 %v695, 4
        %v697 = vand.u32 %v695, 15
        %v698 = vsub.s32 0, %v697
        %v699 = vsel %vm693, %v698, %v697
        %vm700 = vcmp.ne.s32.totalorder %v482, 0
        %vm701 = vcmp.ne.s32.totalorder %v489, 0
        %vm702 = vcmp.ne.s32.totalorder %v496, 0
        %vm703 = vcmp.ne.s32.totalorder %v503, 0
        %vm704 = vcmp.ne.s32.totalorder %v510, 0
        %vm705 = vcmp.ne.s32.totalorder %v517, 0
        %vm706 = vcmp.ne.s32.totalorder %v524, 0
        %vm707 = vcmp.ne.s32.totalorder %v531, 0
        %vm708 = vcmp.ne.s32.totalorder %v538, 0
        %vm709 = vcmp.ne.s32.totalorder %v545, 0
        %vm710 = vcmp.ne.s32.totalorder %v552, 0
        %vm711 = vcmp.ne.s32.totalorder %v559, 0
        %vm712 = vcmp.ne.s32.totalorder %v566, 0
        %vm713 = vcmp.ne.s32.totalorder %v573, 0
        %vm714 = vcmp.ne.s32.totalorder %v580, 0
        %vm715 = vcmp.ne.s32.totalorder %v587, 0
        %vm716 = vcmp.ne.s32.totalorder %v594, 0
        %vm717 = vcmp.ne.s32.totalorder %v601, 0
        %vm718 = vcmp.ne.s32.totalorder %v608, 0
        %vm719 = vcmp.ne.s32.totalorder %v615, 0
        %vm720 = vcmp.ne.s32.totalorder %v622, 0
        %vm721 = vcmp.ne.s32.totalorder %v629, 0
        %vm722 = vcmp.ne.s32.totalorder %v636, 0
        %vm723 = vcmp.ne.s32.totalorder %v643, 0
        %vm724 = vcmp.ne.s32.totalorder %v650, 0
        %vm725 = vcmp.ne.s32.totalorder %v657, 0
        %vm726 = vcmp.ne.s32.totalorder %v664, 0
        %vm727 = vcmp.ne.s32.totalorder %v671, 0
        %vm728 = vcmp.ne.s32.totalorder %v678, 0
        %vm729 = vcmp.ne.s32.totalorder %v685, 0
        %vm730 = vcmp.ne.s32.totalorder %v692, 0
        %vm731 = vcmp.ne.s32.totalorder %v699, 0
        %vm732 = vcmp.lt.s32.totalorder %v482, 0
        %vm733 = vcmp.lt.s32.totalorder %v489, 0
        %vm734 = vcmp.lt.s32.totalorder %v496, 0
        %vm735 = vcmp.lt.s32.totalorder %v503, 0
        %vm736 = vcmp.lt.s32.totalorder %v510, 0
        %vm737 = vcmp.lt.s32.totalorder %v517, 0
        %vm738 = vcmp.lt.s32.totalorder %v524, 0
        %vm739 = vcmp.lt.s32.totalorder %v531, 0
        %vm740 = vcmp.lt.s32.totalorder %v538, 0
        %vm741 = vcmp.lt.s32.totalorder %v545, 0
        %vm742 = vcmp.lt.s32.totalorder %v552, 0
        %vm743 = vcmp.lt.s32.totalorder %v559, 0
        %vm744 = vcmp.lt.s32.totalorder %v566, 0
        %vm745 = vcmp.lt.s32.totalorder %v573, 0
        %vm746 = vcmp.lt.s32.totalorder %v580, 0
        %vm747 = vcmp.lt.s32.totalorder %v587, 0
        %vm748 = vcmp.lt.s32.totalorder %v594, 0
        %vm749 = vcmp.lt.s32.totalorder %v601, 0
        %vm750 = vcmp.lt.s32.totalorder %v608, 0
        %vm751 = vcmp.lt.s32.totalorder %v615, 0
        %vm752 = vcmp.lt.s32.totalorder %v622, 0
        %vm753 = vcmp.lt.s32.totalorder %v629, 0
        %vm754 = vcmp.lt.s32.totalorder %v636, 0
        %vm755 = vcmp.lt.s32.totalorder %v643, 0
        %vm756 = vcmp.lt.s32.totalorder %v650, 0
        %vm757 = vcmp.lt.s32.totalorder %v657, 0
        %vm758 = vcmp.lt.s32.totalorder %v664, 0
        %vm759 = vcmp.lt.s32.totalorder %v671, 0
        %vm760 = vcmp.lt.s32.totalorder %v678, 0
        %vm761 = vcmp.lt.s32.totalorder %v685, 0
        %vm762 = vcmp.lt.s32.totalorder %v692, 0
        %vm763 = vcmp.lt.s32.totalorder %v699, 0
        %vm764 = vmand %vm732, %vm700
        %vm765 = vmand %vm733, %vm701
        %vm766 = vmand %vm734, %vm702
        %vm767 = vmand %vm735, %vm703
        %vm768 = vmand %vm736, %vm704
        %vm769 = vmand %vm737, %vm705
        %vm770 = vmand %vm738, %vm706
        %vm771 = vmand %vm739, %vm707
        %vm772 = vmand %vm740, %vm708
        %vm773 = vmand %vm741, %vm709
        %vm774 = vmand %vm742, %vm710
        %vm775 = vmand %vm743, %vm711
        %vm776 = vmand %vm744, %vm712
        %vm777 = vmand %vm745, %vm713
        %vm778 = vmand %vm746, %vm714
        %vm779 = vmand %vm747, %vm715
        %vm780 = vmand %vm748, %vm716
        %vm781 = vmand %vm749, %vm717
        %vm782 = vmand %vm750, %vm718
        %vm783 = vmand %vm751, %vm719
        %vm784 = vmand %vm752, %vm720
        %vm785 = vmand %vm753, %vm721
        %vm786 = vmand %vm754, %vm722
        %vm787 = vmand %vm755, %vm723
        %vm788 = vmand %vm756, %vm724
        %vm789 = vmand %vm757, %vm725
        %vm790 = vmand %vm758, %vm726
        %vm791 = vmand %vm759, %vm727
        %vm792 = vmand %vm760, %vm728
        %vm793 = vmand %vm761, %vm729
        %vm794 = vmand %vm762, %vm730
        %vm795 = vmand %vm763, %vm731
        %v796 = vadd.s32 %v482, 16
        %v797 = vadd.s32 %v489, 16
        %v798 = vadd.s32 %v496, 16
        %v799 = vadd.s32 %v503, 16
        %v800 = vadd.s32 %v510, 16
        %v801 = vadd.s32 %v517, 16
        %v802 = vadd.s32 %v524, 16
        %v803 = vadd.s32 %v531, 16
        %v804 = vadd.s32 %v538, 16
        %v805 = vadd.s32 %v545, 16
        %v806 = vadd.s32 %v552, 16
        %v807 = vadd.s32 %v559, 16
        %v808 = vadd.s32 %v566, 16
        %v809 = vadd.s32 %v573, 16
        %v810 = vadd.s32 %v580, 16
        %v811 = vadd.s32 %v587, 16
        %v812 = vadd.s32 %v594, 16
        %v813 = vadd.s32 %v601, 16
        %v814 = vadd.s32 %v608, 16
        %v815 = vadd.s32 %v615, 16
        %v816 = vadd.s32 %v622, 16
        %v817 = vadd.s32 %v629, 16
        %v818 = vadd.s32 %v636, 16
        %v819 = vadd.s32 %v643, 16
        %v820 = vadd.s32 %v650, 16
        %v821 = vadd.s32 %v657, 16
        %v822 = vadd.s32 %v664, 16
        %v823 = vadd.s32 %v671, 16
        %v824 = vadd.s32 %v678, 16
        %v825 = vadd.s32 %v685, 16
        %v826 = vadd.s32 %v692, 16
        %v827 = vadd.s32 %v699, 16
        %v828 = vsel %vm764, %v796, %v482
        %v829 = vsel %vm765, %v797, %v489
        %v830 = vsel %vm766, %v798, %v496
        %v831 = vsel %vm767, %v799, %v503
        %v832 = vsel %vm768, %v800, %v510
        %v833 = vsel %vm769, %v801, %v517
        %v834 = vsel %vm770, %v802, %v524
        %v835 = vsel %vm771, %v803, %v531
        %v836 = vsel %vm772, %v804, %v538
        %v837 = vsel %vm773, %v805, %v545
        %v838 = vsel %vm774, %v806, %v552
        %v839 = vsel %vm775, %v807, %v559
        %v840 = vsel %vm776, %v808, %v566
        %v841 = vsel %vm777, %v809, %v573
        %v842 = vsel %vm778, %v810, %v580
        %v843 = vsel %vm779, %v811, %v587
        %v844 = vsel %vm780, %v812, %v594
        %v845 = vsel %vm781, %v813, %v601
        %v846 = vsel %vm782, %v814, %v608
        %v847 = vsel %vm783, %v815, %v615
        %v848 = vsel %vm784, %v816, %v622
        %v849 = vsel %vm785, %v817, %v629
        %v850 = vsel %vm786, %v818, %v636
        %v851 = vsel %vm787, %v819, %v643
        %v852 = vsel %vm788, %v820, %v650
        %v853 = vsel %vm789, %v821, %v657
        %v854 = vsel %vm790, %v822, %v664
        %v855 = vsel %vm791, %v823, %v671
        %v856 = vsel %vm792, %v824, %v678
        %v857 = vsel %vm793, %v825, %v685
        %v858 = vsel %vm794, %v826, %v692
        %v859 = vsel %vm795, %v827, %v699
        %vm860 = vcmp.ge.s32.totalorder %v444, 16
        %vm861 = vcmp.ge.s32.totalorder %v445, 16
        %vm862 = vcmp.ge.s32.totalorder %v446, 16
        %vm863 = vcmp.ge.s32.totalorder %v447, 16
        %vm864 = vcmp.ge.s32.totalorder %v448, 16
        %vm865 = vcmp.ge.s32.totalorder %v449, 16
        %vm866 = vcmp.ge.s32.totalorder %v450, 16
        %vm867 = vcmp.ge.s32.totalorder %v451, 16
        %vm868 = vcmp.ge.s32.totalorder %v452, 16
        %vm869 = vcmp.ge.s32.totalorder %v453, 16
        %vm870 = vcmp.ge.s32.totalorder %v454, 16
        %vm871 = vcmp.ge.s32.totalorder %v455, 16
        %vm872 = vcmp.ge.s32.totalorder %v456, 16
        %vm873 = vcmp.ge.s32.totalorder %v457, 16
        %vm874 = vcmp.ge.s32.totalorder %v458, 16
        %vm875 = vcmp.ge.s32.totalorder %v459, 16
        %vm876 = vcmp.ge.s32.totalorder %v460, 16
        %vm877 = vcmp.ge.s32.totalorder %v461, 16
        %vm878 = vcmp.ge.s32.totalorder %v462, 16
        %vm879 = vcmp.ge.s32.totalorder %v463, 16
        %vm880 = vcmp.ge.s32.totalorder %v464, 16
        %vm881 = vcmp.ge.s32.totalorder %v465, 16
        %vm882 = vcmp.ge.s32.totalorder %v466, 16
        %vm883 = vcmp.ge.s32.totalorder %v467, 16
        %vm884 = vcmp.ge.s32.totalorder %v468, 16
        %vm885 = vcmp.ge.s32.totalorder %v469, 16
        %vm886 = vcmp.ge.s32.totalorder %v470, 16
        %vm887 = vcmp.ge.s32.totalorder %v471, 16
        %vm888 = vcmp.ge.s32.totalorder %v472, 16
        %vm889 = vcmp.ge.s32.totalorder %v473, 16
        %vm890 = vcmp.ge.s32.totalorder %v474, 16
        %vm891 = vcmp.ge.s32.totalorder %v475, 16
        %vm892 = vcmp.lt.s32.totalorder %v444, 240
        %vm893 = vcmp.lt.s32.totalorder %v445, 240
        %vm894 = vcmp.lt.s32.totalorder %v446, 240
        %vm895 = vcmp.lt.s32.totalorder %v447, 240
        %vm896 = vcmp.lt.s32.totalorder %v448, 240
        %vm897 = vcmp.lt.s32.totalorder %v449, 240
        %vm898 = vcmp.lt.s32.totalorder %v450, 240
        %vm899 = vcmp.lt.s32.totalorder %v451, 240
        %vm900 = vcmp.lt.s32.totalorder %v452, 240
        %vm901 = vcmp.lt.s32.totalorder %v453, 240
        %vm902 = vcmp.lt.s32.totalorder %v454, 240
        %vm903 = vcmp.lt.s32.totalorder %v455, 240
        %vm904 = vcmp.lt.s32.totalorder %v456, 240
        %vm905 = vcmp.lt.s32.totalorder %v457, 240
        %vm906 = vcmp.lt.s32.totalorder %v458, 240
        %vm907 = vcmp.lt.s32.totalorder %v459, 240
        %vm908 = vcmp.lt.s32.totalorder %v460, 240
        %vm909 = vcmp.lt.s32.totalorder %v461, 240
        %vm910 = vcmp.lt.s32.totalorder %v462, 240
        %vm911 = vcmp.lt.s32.totalorder %v463, 240
        %vm912 = vcmp.lt.s32.totalorder %v464, 240
        %vm913 = vcmp.lt.s32.totalorder %v465, 240
        %vm914 = vcmp.lt.s32.totalorder %v466, 240
        %vm915 = vcmp.lt.s32.totalorder %v467, 240
        %vm916 = vcmp.lt.s32.totalorder %v468, 240
        %vm917 = vcmp.lt.s32.totalorder %v469, 240
        %vm918 = vcmp.lt.s32.totalorder %v470, 240
        %vm919 = vcmp.lt.s32.totalorder %v471, 240
        %vm920 = vcmp.lt.s32.totalorder %v472, 240
        %vm921 = vcmp.lt.s32.totalorder %v473, 240
        %vm922 = vcmp.lt.s32.totalorder %v474, 240
        %vm923 = vcmp.lt.s32.totalorder %v475, 240
        %vm924 = vcmp.ge.s32.totalorder %v828, 1
        %vm925 = vcmp.ge.s32.totalorder %v829, 1
        %vm926 = vcmp.ge.s32.totalorder %v830, 1
        %vm927 = vcmp.ge.s32.totalorder %v831, 1
        %vm928 = vcmp.ge.s32.totalorder %v832, 1
        %vm929 = vcmp.ge.s32.totalorder %v833, 1
        %vm930 = vcmp.ge.s32.totalorder %v834, 1
        %vm931 = vcmp.ge.s32.totalorder %v835, 1
        %vm932 = vcmp.ge.s32.totalorder %v836, 1
        %vm933 = vcmp.ge.s32.totalorder %v837, 1
        %vm934 = vcmp.ge.s32.totalorder %v838, 1
        %vm935 = vcmp.ge.s32.totalorder %v839, 1
        %vm936 = vcmp.ge.s32.totalorder %v840, 1
        %vm937 = vcmp.ge.s32.totalorder %v841, 1
        %vm938 = vcmp.ge.s32.totalorder %v842, 1
        %vm939 = vcmp.ge.s32.totalorder %v843, 1
        %vm940 = vcmp.ge.s32.totalorder %v844, 1
        %vm941 = vcmp.ge.s32.totalorder %v845, 1
        %vm942 = vcmp.ge.s32.totalorder %v846, 1
        %vm943 = vcmp.ge.s32.totalorder %v847, 1
        %vm944 = vcmp.ge.s32.totalorder %v848, 1
        %vm945 = vcmp.ge.s32.totalorder %v849, 1
        %vm946 = vcmp.ge.s32.totalorder %v850, 1
        %vm947 = vcmp.ge.s32.totalorder %v851, 1
        %vm948 = vcmp.ge.s32.totalorder %v852, 1
        %vm949 = vcmp.ge.s32.totalorder %v853, 1
        %vm950 = vcmp.ge.s32.totalorder %v854, 1
        %vm951 = vcmp.ge.s32.totalorder %v855, 1
        %vm952 = vcmp.ge.s32.totalorder %v856, 1
        %vm953 = vcmp.ge.s32.totalorder %v857, 1
        %vm954 = vcmp.ge.s32.totalorder %v858, 1
        %vm955 = vcmp.ge.s32.totalorder %v859, 1
        %vm956 = vcmp.lt.s32.totalorder %v828, 15
        %vm957 = vcmp.lt.s32.totalorder %v829, 15
        %vm958 = vcmp.lt.s32.totalorder %v830, 15
        %vm959 = vcmp.lt.s32.totalorder %v831, 15
        %vm960 = vcmp.lt.s32.totalorder %v832, 15
        %vm961 = vcmp.lt.s32.totalorder %v833, 15
        %vm962 = vcmp.lt.s32.totalorder %v834, 15
        %vm963 = vcmp.lt.s32.totalorder %v835, 15
        %vm964 = vcmp.lt.s32.totalorder %v836, 15
        %vm965 = vcmp.lt.s32.totalorder %v837, 15
        %vm966 = vcmp.lt.s32.totalorder %v838, 15
        %vm967 = vcmp.lt.s32.totalorder %v839, 15
        %vm968 = vcmp.lt.s32.totalorder %v840, 15
        %vm969 = vcmp.lt.s32.totalorder %v841, 15
        %vm970 = vcmp.lt.s32.totalorder %v842, 15
        %vm971 = vcmp.lt.s32.totalorder %v843, 15
        %vm972 = vcmp.lt.s32.totalorder %v844, 15
        %vm973 = vcmp.lt.s32.totalorder %v845, 15
        %vm974 = vcmp.lt.s32.totalorder %v846, 15
        %vm975 = vcmp.lt.s32.totalorder %v847, 15
        %vm976 = vcmp.lt.s32.totalorder %v848, 15
        %vm977 = vcmp.lt.s32.totalorder %v849, 15
        %vm978 = vcmp.lt.s32.totalorder %v850, 15
        %vm979 = vcmp.lt.s32.totalorder %v851, 15
        %vm980 = vcmp.lt.s32.totalorder %v852, 15
        %vm981 = vcmp.lt.s32.totalorder %v853, 15
        %vm982 = vcmp.lt.s32.totalorder %v854, 15
        %vm983 = vcmp.lt.s32.totalorder %v855, 15
        %vm984 = vcmp.lt.s32.totalorder %v856, 15
        %vm985 = vcmp.lt.s32.totalorder %v857, 15
        %vm986 = vcmp.lt.s32.totalorder %v858, 15
        %vm987 = vcmp.lt.s32.totalorder %v859, 15
        %vm988 = vsmask.f32 256
        %v990 = vshrl.u32 %v427, 16
        %v992 = vrot.slane %v990, 7
        %v993 = vshll.u32 %v427, 16
        %v995 = vor.u32 %v992, %v993
        %v997 = vshrl.u32 %v428, 16
        %v999 = vrot.slane %v997, 7
        %v1000 = vshll.u32 %v428, 16
        %v1002 = vor.u32 %v999, %v1000
        %v1003 = vsel %vm988, %v992, %v1002
        %v1005 = vshrl.u32 %v429, 16
        %v1007 = vrot.slane %v1005, 7
        %v1008 = vshll.u32 %v429, 16
        %v1010 = vor.u32 %v1007, %v1008
        %v1011 = vsel %vm988, %v999, %v1010
        %v1013 = vshrl.u32 %v430, 16
        %v1015 = vrot.slane %v1013, 7
        %v1016 = vshll.u32 %v430, 16
        %v1018 = vor.u32 %v1015, %v1016
        %v1019 = vsel %vm988, %v1007, %v1018
        %v1021 = vshrl.u32 %v431, 16
        %v1023 = vrot.slane %v1021, 7
        %v1024 = vshll.u32 %v431, 16
        %v1026 = vor.u32 %v1023, %v1024
        %v1027 = vsel %vm988, %v1015, %v1026
        %v1029 = vshrl.u32 %v432, 16
        %v1031 = vrot.slane %v1029, 7
        %v1032 = vshll.u32 %v432, 16
        %v1034 = vor.u32 %v1031, %v1032
        %v1035 = vsel %vm988, %v1023, %v1034
        %v1037 = vshrl.u32 %v433, 16
        %v1039 = vrot.slane %v1037, 7
        %v1040 = vshll.u32 %v433, 16
        %v1042 = vor.u32 %v1039, %v1040
        %v1043 = vsel %vm988, %v1031, %v1042
        %v1045 = vshrl.u32 %v434, 16
        %v1047 = vrot.slane %v1045, 7
        %v1048 = vshll.u32 %v434, 16
        %v1050 = vor.u32 %v1047, %v1048
        %v1051 = vsel %vm988, %v1039, %v1050
        %v1053 = vshrl.u32 %v435, 16
        %v1055 = vrot.slane %v1053, 7
        %v1056 = vshll.u32 %v435, 16
        %v1058 = vor.u32 %v1055, %v1056
        %v1059 = vsel %vm988, %v1047, %v1058
        %v1061 = vshrl.u32 %v436, 16
        %v1063 = vrot.slane %v1061, 7
        %v1064 = vshll.u32 %v436, 16
        %v1066 = vor.u32 %v1063, %v1064
        %v1067 = vsel %vm988, %v1055, %v1066
        %v1069 = vshrl.u32 %v437, 16
        %v1071 = vrot.slane %v1069, 7
        %v1072 = vshll.u32 %v437, 16
        %v1074 = vor.u32 %v1071, %v1072
        %v1075 = vsel %vm988, %v1063, %v1074
        %v1077 = vshrl.u32 %v438, 16
        %v1079 = vrot.slane %v1077, 7
        %v1080 = vshll.u32 %v438, 16
        %v1082 = vor.u32 %v1079, %v1080
        %v1083 = vsel %vm988, %v1071, %v1082
        %v1085 = vshrl.u32 %v439, 16
        %v1087 = vrot.slane %v1085, 7
        %v1088 = vshll.u32 %v439, 16
        %v1090 = vor.u32 %v1087, %v1088
        %v1091 = vsel %vm988, %v1079, %v1090
        %v1093 = vshrl.u32 %v440, 16
        %v1095 = vrot.slane %v1093, 7
        %v1096 = vshll.u32 %v440, 16
        %v1098 = vor.u32 %v1095, %v1096
        %v1099 = vsel %vm988, %v1087, %v1098
        %v1101 = vshrl.u32 %v441, 16
        %v1103 = vrot.slane %v1101, 7
        %v1104 = vshll.u32 %v441, 16
        %v1106 = vor.u32 %v1103, %v1104
        %v1107 = vsel %vm988, %v1095, %v1106
        %vm1123 = vcmask 1040384
        %vm1124 = vmand %vm1123, %vm988
        %v1125 = vsel %vm1124, 0, %v995
        %vm1126 = vmand %vm862, %vm926
        %vm1127 = vmand %vm863, %vm927
        %vm1128 = vmand %vm864, %vm928
        %vm1129 = vmand %vm865, %vm929
        %vm1130 = vmand %vm866, %vm930
        %vm1131 = vmand %vm867, %vm931
        %vm1132 = vmand %vm868, %vm932
        %vm1133 = vmand %vm869, %vm933
        %vm1134 = vmand %vm870, %vm934
        %vm1135 = vmand %vm871, %vm935
        %vm1136 = vmand %vm872, %vm936
        %vm1137 = vmand %vm873, %vm937
        %vm1138 = vmand %vm874, %vm938
        %vm1139 = vmand %vm875, %vm939
        %vm1140 = vmand %vm876, %vm940
        %vm1141 = vmand %vm877, %vm941
        %vm1142 = vmand %vm878, %vm942
        %vm1143 = vmand %vm879, %vm943
        %vm1144 = vmand %vm880, %vm944
        %vm1145 = vmand %vm881, %vm945
        %vm1146 = vmand %vm882, %vm946
        %vm1147 = vmand %vm883, %vm947
        %vm1148 = vmand %vm884, %vm948
        %vm1149 = vmand %vm885, %vm949
        %vm1150 = vmand %vm886, %vm950
        %vm1151 = vmand %vm887, %vm951
        %vm1152 = vmand %vm888, %vm952
        %vm1153 = vmand %vm889, %vm953
        %vm1154 = vmand %vm890, %vm954
        %vm1155 = vmand %vm891, %vm955
        %v1156 = vsel %vm1126, 1, 0
        %v1157 = vsel %vm1127, 1, 0
        %v1158 = vsel %vm1128, 1, 0
        %v1159 = vsel %vm1129, 1, 0
        %v1160 = vsel %vm1130, 1, 0
        %v1161 = vsel %vm1131, 1, 0
        %v1162 = vsel %vm1132, 1, 0
        %v1163 = vsel %vm1133, 1, 0
        %v1164 = vsel %vm1134, 1, 0
        %v1165 = vsel %vm1135, 1, 0
        %v1166 = vsel %vm1136, 1, 0
        %v1167 = vsel %vm1137, 1, 0
        %v1168 = vsel %vm1138, 1, 0
        %v1169 = vsel %vm1139, 1, 0
        %v1170 = vsel %vm1140, 1, 0
        %v1171 = vsel %vm1141, 1, 0
        %v1172 = vsel %vm1142, 1, 0
        %v1173 = vsel %vm1143, 1, 0
        %v1174 = vsel %vm1144, 1, 0
        %v1175 = vsel %vm1145, 1, 0
        %v1176 = vsel %vm1146, 1, 0
        %v1177 = vsel %vm1147, 1, 0
        %v1178 = vsel %vm1148, 1, 0
        %v1179 = vsel %vm1149, 1, 0
        %v1180 = vsel %vm1150, 1, 0
        %v1181 = vsel %vm1151, 1, 0
        %v1182 = vsel %vm1152, 1, 0
        %v1183 = vsel %vm1153, 1, 0
        %v1184 = vsel %vm1154, 1, 0
        %v1185 = vsel %vm1155, 1, 0
        %vm1186 = vcmp.eq.s32.totalorder %v1156, 1
        %vm1187 = vcmp.eq.s32.totalorder %v1157, 1
        %vm1188 = vcmp.eq.s32.totalorder %v1158, 1
        %vm1189 = vcmp.eq.s32.totalorder %v1159, 1
        %vm1190 = vcmp.eq.s32.totalorder %v1160, 1
        %vm1191 = vcmp.eq.s32.totalorder %v1161, 1
        %vm1192 = vcmp.eq.s32.totalorder %v1162, 1
        %vm1193 = vcmp.eq.s32.totalorder %v1163, 1
        %vm1194 = vcmp.eq.s32.totalorder %v1164, 1
        %vm1195 = vcmp.eq.s32.totalorder %v1165, 1
        %vm1196 = vcmp.eq.s32.totalorder %v1166, 1
        %vm1197 = vcmp.eq.s32.totalorder %v1167, 1
        %vm1198 = vcmp.eq.s32.totalorder %v1168, 1
        %vm1199 = vcmp.eq.s32.totalorder %v1169, 1
        %vm1200 = vcmp.eq.s32.totalorder %v1170, 1
        %vm1201 = vcmp.eq.s32.totalorder %v1171, 1
        %vm1202 = vcmp.eq.s32.totalorder %v1172, 1
        %vm1203 = vcmp.eq.s32.totalorder %v1173, 1
        %vm1204 = vcmp.eq.s32.totalorder %v1174, 1
        %vm1205 = vcmp.eq.s32.totalorder %v1175, 1
        %vm1206 = vcmp.eq.s32.totalorder %v1176, 1
        %vm1207 = vcmp.eq.s32.totalorder %v1177, 1
        %vm1208 = vcmp.eq.s32.totalorder %v1178, 1
        %vm1209 = vcmp.eq.s32.totalorder %v1179, 1
        %vm1210 = vcmp.eq.s32.totalorder %v1180, 1
        %vm1211 = vcmp.eq.s32.totalorder %v1181, 1
        %vm1212 = vcmp.eq.s32.totalorder %v1182, 1
        %vm1213 = vcmp.eq.s32.totalorder %v1183, 1
        %vm1214 = vcmp.eq.s32.totalorder %v1184, 1
        %vm1215 = vcmp.eq.s32.totalorder %v1185, 1
        %vm1216 = vmpackc.low %vm1186, %vm1186
        %vm1217 = vmpackc.low %vm1187, %vm1187
        %vm1218 = vmpackc.low %vm1188, %vm1188
        %vm1219 = vmpackc.low %vm1189, %vm1189
        %vm1220 = vmpackc.low %vm1190, %vm1190
        %vm1221 = vmpackc.low %vm1191, %vm1191
        %vm1222 = vmpackc.low %vm1192, %vm1192
        %vm1223 = vmpackc.low %vm1193, %vm1193
        %vm1224 = vmpackc.low %vm1194, %vm1194
        %vm1225 = vmpackc.low %vm1195, %vm1195
        %vm1226 = vmpackc.low %vm1196, %vm1196
        %vm1227 = vmpackc.low %vm1197, %vm1197
        %vm1228 = vmpackc.low %vm1198, %vm1198
        %vm1229 = vmpackc.low %vm1199, %vm1199
        %vm1230 = vmpackc.low %vm1200, %vm1200
        %vm1231 = vmpackc.low %vm1201, %vm1201
        %vm1232 = vmpackc.low %vm1202, %vm1202
        %vm1233 = vmpackc.low %vm1203, %vm1203
        %vm1234 = vmpackc.low %vm1204, %vm1204
        %vm1235 = vmpackc.low %vm1205, %vm1205
        %vm1236 = vmpackc.low %vm1206, %vm1206
        %vm1237 = vmpackc.low %vm1207, %vm1207
        %vm1238 = vmpackc.low %vm1208, %vm1208
        %vm1239 = vmpackc.low %vm1209, %vm1209
        %vm1240 = vmpackc.low %vm1210, %vm1210
        %vm1241 = vmpackc.low %vm1211, %vm1211
        %vm1242 = vmpackc.low %vm1212, %vm1212
        %vm1243 = vmpackc.low %vm1213, %vm1213
        %vm1244 = vmpackc.low %vm1214, %vm1214
        %vm1245 = vmpackc.low %vm1215, %vm1215
        %v1246 = vsel %vm1216, 65537, 0
        %v1247 = vsel %vm1217, 65537, 0
        %v1248 = vsel %vm1218, 65537, 0
        %v1249 = vsel %vm1219, 65537, 0
        %v1250 = vsel %vm1220, 65537, 0
        %v1251 = vsel %vm1221, 65537, 0
        %v1252 = vsel %vm1222, 65537, 0
        %v1253 = vsel %vm1223, 65537, 0
        %v1254 = vsel %vm1224, 65537, 0
        %v1255 = vsel %vm1225, 65537, 0
        %v1256 = vsel %vm1226, 65537, 0
        %v1257 = vsel %vm1227, 65537, 0
        %v1258 = vsel %vm1228, 65537, 0
        %v1259 = vsel %vm1229, 65537, 0
        %v1260 = vsel %vm1230, 65537, 0
        %v1261 = vsel %vm1231, 65537, 0
        %v1262 = vsel %vm1232, 65537, 0
        %v1263 = vsel %vm1233, 65537, 0
        %v1264 = vsel %vm1234, 65537, 0
        %v1265 = vsel %vm1235, 65537, 0
        %v1266 = vsel %vm1236, 65537, 0
        %v1267 = vsel %vm1237, 65537, 0
        %v1268 = vsel %vm1238, 65537, 0
        %v1269 = vsel %vm1239, 65537, 0
        %v1270 = vsel %vm1240, 65537, 0
        %v1271 = vsel %vm1241, 65537, 0
        %v1272 = vsel %vm1242, 65537, 0
        %v1273 = vsel %vm1243, 65537, 0
        %v1274 = vsel %vm1244, 65537, 0
        %v1275 = vsel %vm1245, 65537, 0
        %v1276 = vunpack.c.l.b16 %v1246
        %v1277 = vunpack.c.l.b16 %v1247
        %v1278 = vunpack.c.l.b16 %v1248
        %v1279 = vunpack.c.l.b16 %v1249
        %v1280 = vunpack.c.l.b16 %v1250
        %v1281 = vunpack.c.l.b16 %v1251
        %v1282 = vunpack.c.l.b16 %v1252
        %v1283 = vunpack.c.l.b16 %v1253
        %v1284 = vunpack.c.l.b16 %v1254
        %v1285 = vunpack.c.l.b16 %v1255
        %v1286 = vunpack.c.l.b16 %v1256
        %v1287 = vunpack.c.l.b16 %v1257
        %v1288 = vunpack.c.l.b16 %v1258
        %v1289 = vunpack.c.l.b16 %v1259
        %v1290 = vunpack.c.l.b16 %v1260
        %v1291 = vunpack.c.l.b16 %v1261
        %v1292 = vunpack.c.l.b16 %v1262
        %v1293 = vunpack.c.l.b16 %v1263
        %v1294 = vunpack.c.l.b16 %v1264
        %v1295 = vunpack.c.l.b16 %v1265
        %v1296 = vunpack.c.l.b16 %v1266
        %v1297 = vunpack.c.l.b16 %v1267
        %v1298 = vunpack.c.l.b16 %v1268
        %v1299 = vunpack.c.l.b16 %v1269
        %v1300 = vunpack.c.l.b16 %v1270
        %v1301 = vunpack.c.l.b16 %v1271
        %v1302 = vunpack.c.l.b16 %v1272
        %v1303 = vunpack.c.l.b16 %v1273
        %v1304 = vunpack.c.l.b16 %v1274
        %v1305 = vunpack.c.l.b16 %v1275
        %v1306 = vpack.c.b16 %v1277, %v1276
        %v1307 = vpack.c.b16 %v1279, %v1278
        %v1308 = vpack.c.b16 %v1281, %v1280
        %v1309 = vpack.c.b16 %v1283, %v1282
        %v1310 = vpack.c.b16 %v1285, %v1284
        %v1311 = vpack.c.b16 %v1287, %v1286
        %v1312 = vpack.c.b16 %v1289, %v1288
        %v1313 = vpack.c.b16 %v1291, %v1290
        %v1314 = vpack.c.b16 %v1293, %v1292
        %v1315 = vpack.c.b16 %v1295, %v1294
        %v1316 = vpack.c.b16 %v1297, %v1296
        %v1317 = vpack.c.b16 %v1299, %v1298
        %v1318 = vpack.c.b16 %v1301, %v1300
        %v1319 = vpack.c.b16 %v1303, %v1302
        %v1320 = vpack.c.b16 %v1305, %v1304
        %vm1321 = vcmp.ne.s16.totalorder %v1306, 0
        %vm1322 = vcmp.ne.s16.totalorder %v1307, 0
        %vm1323 = vcmp.ne.s16.totalorder %v1308, 0
        %vm1324 = vcmp.ne.s16.totalorder %v1309, 0
        %vm1325 = vcmp.ne.s16.totalorder %v1310, 0
        %vm1326 = vcmp.ne.s16.totalorder %v1311, 0
        %vm1327 = vcmp.ne.s16.totalorder %v1312, 0
        %vm1328 = vcmp.ne.s16.totalorder %v1313, 0
        %vm1329 = vcmp.ne.s16.totalorder %v1314, 0
        %vm1330 = vcmp.ne.s16.totalorder %v1315, 0
        %vm1331 = vcmp.ne.s16.totalorder %v1316, 0
        %vm1332 = vcmp.ne.s16.totalorder %v1317, 0
        %vm1333 = vcmp.ne.s16.totalorder %v1318, 0
        %vm1334 = vcmp.ne.s16.totalorder %v1319, 0
        %vm1335 = vcmp.ne.s16.totalorder %v1320, 0
        %v1336 = vsel %vm1321, %v1125, 0
        %v1337 = vsel %vm1322, %v1003, 0
        %v1338 = vsel %vm1323, %v1011, 0
        %v1339 = vsel %vm1324, %v1019, 0
        %v1340 = vsel %vm1325, %v1027, 0
        %v1341 = vsel %vm1326, %v1035, 0
        %v1342 = vsel %vm1327, %v1043, 0
        %v1343 = vsel %vm1328, %v1051, 0
        %v1344 = vsel %vm1329, %v1059, 0
        %v1345 = vsel %vm1330, %v1067, 0
        %v1346 = vsel %vm1331, %v1075, 0
        %v1347 = vsel %vm1332, %v1083, 0
        %v1348 = vsel %vm1333, %v1091, 0
        %v1349 = vsel %vm1334, %v1099, 0
        %v1350 = vsel %vm1335, %v1107, 0
        %v1351 = vsel %vm862, 1, 0
        %v1352 = vsel %vm863, 1, 0
        %v1353 = vsel %vm864, 1, 0
        %v1354 = vsel %vm865, 1, 0
        %v1355 = vsel %vm866, 1, 0
        %v1356 = vsel %vm867, 1, 0
        %v1357 = vsel %vm868, 1, 0
        %v1358 = vsel %vm869, 1, 0
        %v1359 = vsel %vm870, 1, 0
        %v1360 = vsel %vm871, 1, 0
        %v1361 = vsel %vm872, 1, 0
        %v1362 = vsel %vm873, 1, 0
        %v1363 = vsel %vm874, 1, 0
        %v1364 = vsel %vm875, 1, 0
        %v1365 = vsel %vm876, 1, 0
        %v1366 = vsel %vm877, 1, 0
        %v1367 = vsel %vm878, 1, 0
        %v1368 = vsel %vm879, 1, 0
        %v1369 = vsel %vm880, 1, 0
        %v1370 = vsel %vm881, 1, 0
        %v1371 = vsel %vm882, 1, 0
        %v1372 = vsel %vm883, 1, 0
        %v1373 = vsel %vm884, 1, 0
        %v1374 = vsel %vm885, 1, 0
        %v1375 = vsel %vm886, 1, 0
        %v1376 = vsel %vm887, 1, 0
        %v1377 = vsel %vm888, 1, 0
        %v1378 = vsel %vm889, 1, 0
        %v1379 = vsel %vm890, 1, 0
        %v1380 = vsel %vm891, 1, 0
        %vm1381 = vcmp.eq.s32.totalorder %v1351, 1
        %vm1382 = vcmp.eq.s32.totalorder %v1352, 1
        %vm1383 = vcmp.eq.s32.totalorder %v1353, 1
        %vm1384 = vcmp.eq.s32.totalorder %v1354, 1
        %vm1385 = vcmp.eq.s32.totalorder %v1355, 1
        %vm1386 = vcmp.eq.s32.totalorder %v1356, 1
        %vm1387 = vcmp.eq.s32.totalorder %v1357, 1
        %vm1388 = vcmp.eq.s32.totalorder %v1358, 1
        %vm1389 = vcmp.eq.s32.totalorder %v1359, 1
        %vm1390 = vcmp.eq.s32.totalorder %v1360, 1
        %vm1391 = vcmp.eq.s32.totalorder %v1361, 1
        %vm1392 = vcmp.eq.s32.totalorder %v1362, 1
        %vm1393 = vcmp.eq.s32.totalorder %v1363, 1
        %vm1394 = vcmp.eq.s32.totalorder %v1364, 1
        %vm1395 = vcmp.eq.s32.totalorder %v1365, 1
        %vm1396 = vcmp.eq.s32.totalorder %v1366, 1
        %vm1397 = vcmp.eq.s32.totalorder %v1367, 1
        %vm1398 = vcmp.eq.s32.totalorder %v1368, 1
        %vm1399 = vcmp.eq.s32.totalorder %v1369, 1
        %vm1400 = vcmp.eq.s32.totalorder %v1370, 1
        %vm1401 = vcmp.eq.s32.totalorder %v1371, 1
        %vm1402 = vcmp.eq.s32.totalorder %v1372, 1
        %vm1403 = vcmp.eq.s32.totalorder %v1373, 1
        %vm1404 = vcmp.eq.s32.totalorder %v1374, 1
        %vm1405 = vcmp.eq.s32.totalorder %v1375, 1
        %vm1406 = vcmp.eq.s32.totalorder %v1376, 1
        %vm1407 = vcmp.eq.s32.totalorder %v1377, 1
        %vm1408 = vcmp.eq.s32.totalorder %v1378, 1
        %vm1409 = vcmp.eq.s32.totalorder %v1379, 1
        %vm1410 = vcmp.eq.s32.totalorder %v1380, 1
        %vm1411 = vmpackc.low %vm1381, %vm1381
        %vm1412 = vmpackc.low %vm1382, %vm1382
        %vm1413 = vmpackc.low %vm1383, %vm1383
        %vm1414 = vmpackc.low %vm1384, %vm1384
        %vm1415 = vmpackc.low %vm1385, %vm1385
        %vm1416 = vmpackc.low %vm1386, %vm1386
        %vm1417 = vmpackc.low %vm1387, %vm1387
        %vm1418 = vmpackc.low %vm1388, %vm1388
        %vm1419 = vmpackc.low %vm1389, %vm1389
        %vm1420 = vmpackc.low %vm1390, %vm1390
        %vm1421 = vmpackc.low %vm1391, %vm1391
        %vm1422 = vmpackc.low %vm1392, %vm1392
        %vm1423 = vmpackc.low %vm1393, %vm1393
        %vm1424 = vmpackc.low %vm1394, %vm1394
        %vm1425 = vmpackc.low %vm1395, %vm1395
        %vm1426 = vmpackc.low %vm1396, %vm1396
        %vm1427 = vmpackc.low %vm1397, %vm1397
        %vm1428 = vmpackc.low %vm1398, %vm1398
        %vm1429 = vmpackc.low %vm1399, %vm1399
        %vm1430 = vmpackc.low %vm1400, %vm1400
        %vm1431 = vmpackc.low %vm1401, %vm1401
        %vm1432 = vmpackc.low %vm1402, %vm1402
        %vm1433 = vmpackc.low %vm1403, %vm1403
        %vm1434 = vmpackc.low %vm1404, %vm1404
        %vm1435 = vmpackc.low %vm1405, %vm1405
        %vm1436 = vmpackc.low %vm1406, %vm1406
        %vm1437 = vmpackc.low %vm1407, %vm1407
        %vm1438 = vmpackc.low %vm1408, %vm1408
        %vm1439 = vmpackc.low %vm1409, %vm1409
        %vm1440 = vmpackc.low %vm1410, %vm1410
        %v1441 = vsel %vm1411, 65537, 0
        %v1442 = vsel %vm1412, 65537, 0
        %v1443 = vsel %vm1413, 65537, 0
        %v1444 = vsel %vm1414, 65537, 0
        %v1445 = vsel %vm1415, 65537, 0
        %v1446 = vsel %vm1416, 65537, 0
        %v1447 = vsel %vm1417, 65537, 0
        %v1448 = vsel %vm1418, 65537, 0
        %v1449 = vsel %vm1419, 65537, 0
        %v1450 = vsel %vm1420, 65537, 0
        %v1451 = vsel %vm1421, 65537, 0
        %v1452 = vsel %vm1422, 65537, 0
        %v1453 = vsel %vm1423, 65537, 0
        %v1454 = vsel %vm1424, 65537, 0
        %v1455 = vsel %vm1425, 65537, 0
        %v1456 = vsel %vm1426, 65537, 0
        %v1457 = vsel %vm1427, 65537, 0
        %v1458 = vsel %vm1428, 65537, 0
        %v1459 = vsel %vm1429, 65537, 0
        %v1460 = vsel %vm1430, 65537, 0
        %v1461 = vsel %vm1431, 65537, 0
        %v1462 = vsel %vm1432, 65537, 0
        %v1463 = vsel %vm1433, 65537, 0
        %v1464 = vsel %vm1434, 65537, 0
        %v1465 = vsel %vm1435, 65537, 0
        %v1466 = vsel %vm1436, 65537, 0
        %v1467 = vsel %vm1437, 65537, 0
        %v1468 = vsel %vm1438, 65537, 0
        %v1469 = vsel %vm1439, 65537, 0
        %v1470 = vsel %vm1440, 65537, 0
        %v1471 = vunpack.c.l.b16 %v1441
        %v1472 = vunpack.c.l.b16 %v1442
        %v1473 = vunpack.c.l.b16 %v1443
        %v1474 = vunpack.c.l.b16 %v1444
        %v1475 = vunpack.c.l.b16 %v1445
        %v1476 = vunpack.c.l.b16 %v1446
        %v1477 = vunpack.c.l.b16 %v1447
        %v1478 = vunpack.c.l.b16 %v1448
        %v1479 = vunpack.c.l.b16 %v1449
        %v1480 = vunpack.c.l.b16 %v1450
        %v1481 = vunpack.c.l.b16 %v1451
        %v1482 = vunpack.c.l.b16 %v1452
        %v1483 = vunpack.c.l.b16 %v1453
        %v1484 = vunpack.c.l.b16 %v1454
        %v1485 = vunpack.c.l.b16 %v1455
        %v1486 = vunpack.c.l.b16 %v1456
        %v1487 = vunpack.c.l.b16 %v1457
        %v1488 = vunpack.c.l.b16 %v1458
        %v1489 = vunpack.c.l.b16 %v1459
        %v1490 = vunpack.c.l.b16 %v1460
        %v1491 = vunpack.c.l.b16 %v1461
        %v1492 = vunpack.c.l.b16 %v1462
        %v1493 = vunpack.c.l.b16 %v1463
        %v1494 = vunpack.c.l.b16 %v1464
        %v1495 = vunpack.c.l.b16 %v1465
        %v1496 = vunpack.c.l.b16 %v1466
        %v1497 = vunpack.c.l.b16 %v1467
        %v1498 = vunpack.c.l.b16 %v1468
        %v1499 = vunpack.c.l.b16 %v1469
        %v1500 = vunpack.c.l.b16 %v1470
        %v1501 = vpack.c.b16 %v1472, %v1471
        %v1502 = vpack.c.b16 %v1474, %v1473
        %v1503 = vpack.c.b16 %v1476, %v1475
        %v1504 = vpack.c.b16 %v1478, %v1477
        %v1505 = vpack.c.b16 %v1480, %v1479
        %v1506 = vpack.c.b16 %v1482, %v1481
        %v1507 = vpack.c.b16 %v1484, %v1483
        %v1508 = vpack.c.b16 %v1486, %v1485
        %v1509 = vpack.c.b16 %v1488, %v1487
        %v1510 = vpack.c.b16 %v1490, %v1489
        %v1511 = vpack.c.b16 %v1492, %v1491
        %v1512 = vpack.c.b16 %v1494, %v1493
        %v1513 = vpack.c.b16 %v1496, %v1495
        %v1514 = vpack.c.b16 %v1498, %v1497
        %v1515 = vpack.c.b16 %v1500, %v1499
        %vm1516 = vcmp.ne.s16.totalorder %v1501, 0
        %vm1517 = vcmp.ne.s16.totalorder %v1502, 0
        %vm1518 = vcmp.ne.s16.totalorder %v1503, 0
        %vm1519 = vcmp.ne.s16.totalorder %v1504, 0
        %vm1520 = vcmp.ne.s16.totalorder %v1505, 0
        %vm1521 = vcmp.ne.s16.totalorder %v1506, 0
        %vm1522 = vcmp.ne.s16.totalorder %v1507, 0
        %vm1523 = vcmp.ne.s16.totalorder %v1508, 0
        %vm1524 = vcmp.ne.s16.totalorder %v1509, 0
        %vm1525 = vcmp.ne.s16.totalorder %v1510, 0
        %vm1526 = vcmp.ne.s16.totalorder %v1511, 0
        %vm1527 = vcmp.ne.s16.totalorder %v1512, 0
        %vm1528 = vcmp.ne.s16.totalorder %v1513, 0
        %vm1529 = vcmp.ne.s16.totalorder %v1514, 0
        %vm1530 = vcmp.ne.s16.totalorder %v1515, 0
        %v1531 = vsel %vm1516, %v427, 0
        %v1532 = vsel %vm1517, %v428, 0
        %v1533 = vsel %vm1518, %v429, 0
        %v1534 = vsel %vm1519, %v430, 0
        %v1535 = vsel %vm1520, %v431, 0
        %v1536 = vsel %vm1521, %v432, 0
        %v1537 = vsel %vm1522, %v433, 0
        %v1538 = vsel %vm1523, %v434, 0
        %v1539 = vsel %vm1524, %v435, 0
        %v1540 = vsel %vm1525, %v436, 0
        %v1541 = vsel %vm1526, %v437, 0
        %v1542 = vsel %vm1527, %v438, 0
        %v1543 = vsel %vm1528, %v439, 0
        %v1544 = vsel %vm1529, %v440, 0
        %v1545 = vsel %vm1530, %v441, 0
        %vm1546 = vsmask.f32 7424
        %v1547 = vrot.slane %v993, 1
        %v1548 = vor.u32 %v990, %v1547
        %v1549 = vrot.slane %v1000, 1
        %v1550 = vsel %vm1546, %v1548, %v1549
        %v1551 = vor.u32 %v997, %v1549
        %v1552 = vrot.slane %v1008, 1
        %v1553 = vsel %vm1546, %v1551, %v1552
        %v1554 = vor.u32 %v1005, %v1552
        %v1555 = vrot.slane %v1016, 1
        %v1556 = vsel %vm1546, %v1554, %v1555
        %v1557 = vor.u32 %v1013, %v1555
        %v1558 = vrot.slane %v1024, 1
        %v1559 = vsel %vm1546, %v1557, %v1558
        %v1560 = vor.u32 %v1021, %v1558
        %v1561 = vrot.slane %v1032, 1
        %v1562 = vsel %vm1546, %v1560, %v1561
        %v1563 = vor.u32 %v1029, %v1561
        %v1564 = vrot.slane %v1040, 1
        %v1565 = vsel %vm1546, %v1563, %v1564
        %v1566 = vor.u32 %v1037, %v1564
        %v1567 = vrot.slane %v1048, 1
        %v1568 = vsel %vm1546, %v1566, %v1567
        %v1569 = vor.u32 %v1045, %v1567
        %v1570 = vrot.slane %v1056, 1
        %v1571 = vsel %vm1546, %v1569, %v1570
        %v1572 = vor.u32 %v1053, %v1570
        %v1573 = vrot.slane %v1064, 1
        %v1574 = vsel %vm1546, %v1572, %v1573
        %v1575 = vor.u32 %v1061, %v1573
        %v1576 = vrot.slane %v1072, 1
        %v1577 = vsel %vm1546, %v1575, %v1576
        %v1578 = vor.u32 %v1069, %v1576
        %v1579 = vrot.slane %v1080, 1
        %v1580 = vsel %vm1546, %v1578, %v1579
        %v1581 = vor.u32 %v1077, %v1579
        %v1582 = vrot.slane %v1088, 1
        %v1583 = vsel %vm1546, %v1581, %v1582
        %v1584 = vor.u32 %v1085, %v1582
        %v1585 = vrot.slane %v1096, 1
        %v1586 = vsel %vm1546, %v1584, %v1585
        %v1587 = vor.u32 %v1093, %v1585
        %v1588 = vrot.slane %v1104, 1
        %v1589 = vsel %vm1546, %v1587, %v1588
        %v1590 = vor.u32 %v1101, %v1588
        %v1592 = vshll.u32 %v442, 16
        %v1594 = vrot.slane %v1592, 1
        %v1595 = vsel %vm1546, %v1590, %v1594
        %vm1612 = vcmask 1047552
        %vm1613 = vmand %vm1612, %vm1546
        %v1614 = vsel %vm1613, 0, %v1547
        %vm1615 = vmand %vm860, %vm956
        %vm1616 = vmand %vm861, %vm957
        %vm1617 = vmand %vm862, %vm958
        %vm1618 = vmand %vm863, %vm959
        %vm1619 = vmand %vm864, %vm960
        %vm1620 = vmand %vm865, %vm961
        %vm1621 = vmand %vm866, %vm962
        %vm1622 = vmand %vm867, %vm963
        %vm1623 = vmand %vm868, %vm964
        %vm1624 = vmand %vm869, %vm965
        %vm1625 = vmand %vm870, %vm966
        %vm1626 = vmand %vm871, %vm967
        %vm1627 = vmand %vm872, %vm968
        %vm1628 = vmand %vm873, %vm969
        %vm1629 = vmand %vm874, %vm970
        %vm1630 = vmand %vm875, %vm971
        %vm1631 = vmand %vm876, %vm972
        %vm1632 = vmand %vm877, %vm973
        %vm1633 = vmand %vm878, %vm974
        %vm1634 = vmand %vm879, %vm975
        %vm1635 = vmand %vm880, %vm976
        %vm1636 = vmand %vm881, %vm977
        %vm1637 = vmand %vm882, %vm978
        %vm1638 = vmand %vm883, %vm979
        %vm1639 = vmand %vm884, %vm980
        %vm1640 = vmand %vm885, %vm981
        %vm1641 = vmand %vm886, %vm982
        %vm1642 = vmand %vm887, %vm983
        %vm1643 = vmand %vm888, %vm984
        %vm1644 = vmand %vm889, %vm985
        %vm1645 = vmand %vm890, %vm986
        %vm1646 = vmand %vm891, %vm987
        %v1647 = vsel %vm1615, 1, 0
        %v1648 = vsel %vm1616, 1, 0
        %v1649 = vsel %vm1617, 1, 0
        %v1650 = vsel %vm1618, 1, 0
        %v1651 = vsel %vm1619, 1, 0
        %v1652 = vsel %vm1620, 1, 0
        %v1653 = vsel %vm1621, 1, 0
        %v1654 = vsel %vm1622, 1, 0
        %v1655 = vsel %vm1623, 1, 0
        %v1656 = vsel %vm1624, 1, 0
        %v1657 = vsel %vm1625, 1, 0
        %v1658 = vsel %vm1626, 1, 0
        %v1659 = vsel %vm1627, 1, 0
        %v1660 = vsel %vm1628, 1, 0
        %v1661 = vsel %vm1629, 1, 0
        %v1662 = vsel %vm1630, 1, 0
        %v1663 = vsel %vm1631, 1, 0
        %v1664 = vsel %vm1632, 1, 0
        %v1665 = vsel %vm1633, 1, 0
        %v1666 = vsel %vm1634, 1, 0
        %v1667 = vsel %vm1635, 1, 0
        %v1668 = vsel %vm1636, 1, 0
        %v1669 = vsel %vm1637, 1, 0
        %v1670 = vsel %vm1638, 1, 0
        %v1671 = vsel %vm1639, 1, 0
        %v1672 = vsel %vm1640, 1, 0
        %v1673 = vsel %vm1641, 1, 0
        %v1674 = vsel %vm1642, 1, 0
        %v1675 = vsel %vm1643, 1, 0
        %v1676 = vsel %vm1644, 1, 0
        %v1677 = vsel %vm1645, 1, 0
        %v1678 = vsel %vm1646, 1, 0
        %vm1679 = vcmp.eq.s32.totalorder %v1647, 1
        %vm1680 = vcmp.eq.s32.totalorder %v1648, 1
        %vm1681 = vcmp.eq.s32.totalorder %v1649, 1
        %vm1682 = vcmp.eq.s32.totalorder %v1650, 1
        %vm1683 = vcmp.eq.s32.totalorder %v1651, 1
        %vm1684 = vcmp.eq.s32.totalorder %v1652, 1
        %vm1685 = vcmp.eq.s32.totalorder %v1653, 1
        %vm1686 = vcmp.eq.s32.totalorder %v1654, 1
        %vm1687 = vcmp.eq.s32.totalorder %v1655, 1
        %vm1688 = vcmp.eq.s32.totalorder %v1656, 1
        %vm1689 = vcmp.eq.s32.totalorder %v1657, 1
        %vm1690 = vcmp.eq.s32.totalorder %v1658, 1
        %vm1691 = vcmp.eq.s32.totalorder %v1659, 1
        %vm1692 = vcmp.eq.s32.totalorder %v1660, 1
        %vm1693 = vcmp.eq.s32.totalorder %v1661, 1
        %vm1694 = vcmp.eq.s32.totalorder %v1662, 1
        %vm1695 = vcmp.eq.s32.totalorder %v1663, 1
        %vm1696 = vcmp.eq.s32.totalorder %v1664, 1
        %vm1697 = vcmp.eq.s32.totalorder %v1665, 1
        %vm1698 = vcmp.eq.s32.totalorder %v1666, 1
        %vm1699 = vcmp.eq.s32.totalorder %v1667, 1
        %vm1700 = vcmp.eq.s32.totalorder %v1668, 1
        %vm1701 = vcmp.eq.s32.totalorder %v1669, 1
        %vm1702 = vcmp.eq.s32.totalorder %v1670, 1
        %vm1703 = vcmp.eq.s32.totalorder %v1671, 1
        %vm1704 = vcmp.eq.s32.totalorder %v1672, 1
        %vm1705 = vcmp.eq.s32.totalorder %v1673, 1
        %vm1706 = vcmp.eq.s32.totalorder %v1674, 1
        %vm1707 = vcmp.eq.s32.totalorder %v1675, 1
        %vm1708 = vcmp.eq.s32.totalorder %v1676, 1
        %vm1709 = vcmp.eq.s32.totalorder %v1677, 1
        %vm1710 = vcmp.eq.s32.totalorder %v1678, 1
        %vm1711 = vmpackc.low %vm1679, %vm1679
        %vm1712 = vmpackc.low %vm1680, %vm1680
        %vm1713 = vmpackc.low %vm1681, %vm1681
        %vm1714 = vmpackc.low %vm1682, %vm1682
        %vm1715 = vmpackc.low %vm1683, %vm1683
        %vm1716 = vmpackc.low %vm1684, %vm1684
        %vm1717 = vmpackc.low %vm1685, %vm1685
        %vm1718 = vmpackc.low %vm1686, %vm1686
        %vm1719 = vmpackc.low %vm1687, %vm1687
        %vm1720 = vmpackc.low %vm1688, %vm1688
        %vm1721 = vmpackc.low %vm1689, %vm1689
        %vm1722 = vmpackc.low %vm1690, %vm1690
        %vm1723 = vmpackc.low %vm1691, %vm1691
        %vm1724 = vmpackc.low %vm1692, %vm1692
        %vm1725 = vmpackc.low %vm1693, %vm1693
        %vm1726 = vmpackc.low %vm1694, %vm1694
        %vm1727 = vmpackc.low %vm1695, %vm1695
        %vm1728 = vmpackc.low %vm1696, %vm1696
        %vm1729 = vmpackc.low %vm1697, %vm1697
        %vm1730 = vmpackc.low %vm1698, %vm1698
        %vm1731 = vmpackc.low %vm1699, %vm1699
        %vm1732 = vmpackc.low %vm1700, %vm1700
        %vm1733 = vmpackc.low %vm1701, %vm1701
        %vm1734 = vmpackc.low %vm1702, %vm1702
        %vm1735 = vmpackc.low %vm1703, %vm1703
        %vm1736 = vmpackc.low %vm1704, %vm1704
        %vm1737 = vmpackc.low %vm1705, %vm1705
        %vm1738 = vmpackc.low %vm1706, %vm1706
        %vm1739 = vmpackc.low %vm1707, %vm1707
        %vm1740 = vmpackc.low %vm1708, %vm1708
        %vm1741 = vmpackc.low %vm1709, %vm1709
        %vm1742 = vmpackc.low %vm1710, %vm1710
        %v1743 = vsel %vm1711, 65537, 0
        %v1744 = vsel %vm1712, 65537, 0
        %v1745 = vsel %vm1713, 65537, 0
        %v1746 = vsel %vm1714, 65537, 0
        %v1747 = vsel %vm1715, 65537, 0
        %v1748 = vsel %vm1716, 65537, 0
        %v1749 = vsel %vm1717, 65537, 0
        %v1750 = vsel %vm1718, 65537, 0
        %v1751 = vsel %vm1719, 65537, 0
        %v1752 = vsel %vm1720, 65537, 0
        %v1753 = vsel %vm1721, 65537, 0
        %v1754 = vsel %vm1722, 65537, 0
        %v1755 = vsel %vm1723, 65537, 0
        %v1756 = vsel %vm1724, 65537, 0
        %v1757 = vsel %vm1725, 65537, 0
        %v1758 = vsel %vm1726, 65537, 0
        %v1759 = vsel %vm1727, 65537, 0
        %v1760 = vsel %vm1728, 65537, 0
        %v1761 = vsel %vm1729, 65537, 0
        %v1762 = vsel %vm1730, 65537, 0
        %v1763 = vsel %vm1731, 65537, 0
        %v1764 = vsel %vm1732, 65537, 0
        %v1765 = vsel %vm1733, 65537, 0
        %v1766 = vsel %vm1734, 65537, 0
        %v1767 = vsel %vm1735, 65537, 0
        %v1768 = vsel %vm1736, 65537, 0
        %v1769 = vsel %vm1737, 65537, 0
        %v1770 = vsel %vm1738, 65537, 0
        %v1771 = vsel %vm1739, 65537, 0
        %v1772 = vsel %vm1740, 65537, 0
        %v1773 = vsel %vm1741, 65537, 0
        %v1774 = vsel %vm1742, 65537, 0
        %v1775 = vunpack.c.l.b16 %v1743
        %v1776 = vunpack.c.l.b16 %v1744
        %v1777 = vunpack.c.l.b16 %v1745
        %v1778 = vunpack.c.l.b16 %v1746
        %v1779 = vunpack.c.l.b16 %v1747
        %v1780 = vunpack.c.l.b16 %v1748
        %v1781 = vunpack.c.l.b16 %v1749
        %v1782 = vunpack.c.l.b16 %v1750
        %v1783 = vunpack.c.l.b16 %v1751
        %v1784 = vunpack.c.l.b16 %v1752
        %v1785 = vunpack.c.l.b16 %v1753
        %v1786 = vunpack.c.l.b16 %v1754
        %v1787 = vunpack.c.l.b16 %v1755
        %v1788 = vunpack.c.l.b16 %v1756
        %v1789 = vunpack.c.l.b16 %v1757
        %v1790 = vunpack.c.l.b16 %v1758
        %v1791 = vunpack.c.l.b16 %v1759
        %v1792 = vunpack.c.l.b16 %v1760
        %v1793 = vunpack.c.l.b16 %v1761
        %v1794 = vunpack.c.l.b16 %v1762
        %v1795 = vunpack.c.l.b16 %v1763
        %v1796 = vunpack.c.l.b16 %v1764
        %v1797 = vunpack.c.l.b16 %v1765
        %v1798 = vunpack.c.l.b16 %v1766
        %v1799 = vunpack.c.l.b16 %v1767
        %v1800 = vunpack.c.l.b16 %v1768
        %v1801 = vunpack.c.l.b16 %v1769
        %v1802 = vunpack.c.l.b16 %v1770
        %v1803 = vunpack.c.l.b16 %v1771
        %v1804 = vunpack.c.l.b16 %v1772
        %v1805 = vunpack.c.l.b16 %v1773
        %v1806 = vunpack.c.l.b16 %v1774
        %v1807 = vpack.c.b16 %v1776, %v1775
        %v1808 = vpack.c.b16 %v1778, %v1777
        %v1809 = vpack.c.b16 %v1780, %v1779
        %v1810 = vpack.c.b16 %v1782, %v1781
        %v1811 = vpack.c.b16 %v1784, %v1783
        %v1812 = vpack.c.b16 %v1786, %v1785
        %v1813 = vpack.c.b16 %v1788, %v1787
        %v1814 = vpack.c.b16 %v1790, %v1789
        %v1815 = vpack.c.b16 %v1792, %v1791
        %v1816 = vpack.c.b16 %v1794, %v1793
        %v1817 = vpack.c.b16 %v1796, %v1795
        %v1818 = vpack.c.b16 %v1798, %v1797
        %v1819 = vpack.c.b16 %v1800, %v1799
        %v1820 = vpack.c.b16 %v1802, %v1801
        %v1821 = vpack.c.b16 %v1804, %v1803
        %v1822 = vpack.c.b16 %v1806, %v1805
        %vm1823 = vcmp.ne.s16.totalorder %v1807, 0
        %vm1824 = vcmp.ne.s16.totalorder %v1808, 0
        %vm1825 = vcmp.ne.s16.totalorder %v1809, 0
        %vm1826 = vcmp.ne.s16.totalorder %v1810, 0
        %vm1827 = vcmp.ne.s16.totalorder %v1811, 0
        %vm1828 = vcmp.ne.s16.totalorder %v1812, 0
        %vm1829 = vcmp.ne.s16.totalorder %v1813, 0
        %vm1830 = vcmp.ne.s16.totalorder %v1814, 0
        %vm1831 = vcmp.ne.s16.totalorder %v1815, 0
        %vm1832 = vcmp.ne.s16.totalorder %v1816, 0
        %vm1833 = vcmp.ne.s16.totalorder %v1817, 0
        %vm1834 = vcmp.ne.s16.totalorder %v1818, 0
        %vm1835 = vcmp.ne.s16.totalorder %v1819, 0
        %vm1836 = vcmp.ne.s16.totalorder %v1820, 0
        %vm1837 = vcmp.ne.s16.totalorder %v1821, 0
        %vm1838 = vcmp.ne.s16.totalorder %v1822, 0
        %v1839 = vsel %vm1823, %v1614, 0
        %v1840 = vsel %vm1824, %v1550, 0
        %v1841 = vsel %vm1825, %v1553, 0
        %v1842 = vsel %vm1826, %v1556, 0
        %v1843 = vsel %vm1827, %v1559, 0
        %v1844 = vsel %vm1828, %v1562, 0
        %v1845 = vsel %vm1829, %v1565, 0
        %v1846 = vsel %vm1830, %v1568, 0
        %v1847 = vsel %vm1831, %v1571, 0
        %v1848 = vsel %vm1832, %v1574, 0
        %v1849 = vsel %vm1833, %v1577, 0
        %v1850 = vsel %vm1834, %v1580, 0
        %v1851 = vsel %vm1835, %v1583, 0
        %v1852 = vsel %vm1836, %v1586, 0
        %v1853 = vsel %vm1837, %v1589, 0
        %v1854 = vsel %vm1838, %v1595, 0
        %v1855 = vshrl.u32 %v442, 16
        %v1857 = vrot.slane %v1855, 7
        %v1858 = vor.u32 %v1857, %v1592
        %v1859 = vsel %vm988, %v1103, %v1858
        %v1861 = vsel %vm924, 1, 0
        %v1862 = vsel %vm925, 1, 0
        %v1863 = vsel %vm926, 1, 0
        %v1864 = vsel %vm927, 1, 0
        %v1865 = vsel %vm928, 1, 0
        %v1866 = vsel %vm929, 1, 0
        %v1867 = vsel %vm930, 1, 0
        %v1868 = vsel %vm931, 1, 0
        %v1869 = vsel %vm932, 1, 0
        %v1870 = vsel %vm933, 1, 0
        %v1871 = vsel %vm934, 1, 0
        %v1872 = vsel %vm935, 1, 0
        %v1873 = vsel %vm936, 1, 0
        %v1874 = vsel %vm937, 1, 0
        %v1875 = vsel %vm938, 1, 0
        %v1876 = vsel %vm939, 1, 0
        %v1877 = vsel %vm940, 1, 0
        %v1878 = vsel %vm941, 1, 0
        %v1879 = vsel %vm942, 1, 0
        %v1880 = vsel %vm943, 1, 0
        %v1881 = vsel %vm944, 1, 0
        %v1882 = vsel %vm945, 1, 0
        %v1883 = vsel %vm946, 1, 0
        %v1884 = vsel %vm947, 1, 0
        %v1885 = vsel %vm948, 1, 0
        %v1886 = vsel %vm949, 1, 0
        %v1887 = vsel %vm950, 1, 0
        %v1888 = vsel %vm951, 1, 0
        %v1889 = vsel %vm952, 1, 0
        %v1890 = vsel %vm953, 1, 0
        %v1891 = vsel %vm954, 1, 0
        %v1892 = vsel %vm955, 1, 0
        %vm1893 = vcmp.eq.s32.totalorder %v1861, 1
        %vm1894 = vcmp.eq.s32.totalorder %v1862, 1
        %vm1895 = vcmp.eq.s32.totalorder %v1863, 1
        %vm1896 = vcmp.eq.s32.totalorder %v1864, 1
        %vm1897 = vcmp.eq.s32.totalorder %v1865, 1
        %vm1898 = vcmp.eq.s32.totalorder %v1866, 1
        %vm1899 = vcmp.eq.s32.totalorder %v1867, 1
        %vm1900 = vcmp.eq.s32.totalorder %v1868, 1
        %vm1901 = vcmp.eq.s32.totalorder %v1869, 1
        %vm1902 = vcmp.eq.s32.totalorder %v1870, 1
        %vm1903 = vcmp.eq.s32.totalorder %v1871, 1
        %vm1904 = vcmp.eq.s32.totalorder %v1872, 1
        %vm1905 = vcmp.eq.s32.totalorder %v1873, 1
        %vm1906 = vcmp.eq.s32.totalorder %v1874, 1
        %vm1907 = vcmp.eq.s32.totalorder %v1875, 1
        %vm1908 = vcmp.eq.s32.totalorder %v1876, 1
        %vm1909 = vcmp.eq.s32.totalorder %v1877, 1
        %vm1910 = vcmp.eq.s32.totalorder %v1878, 1
        %vm1911 = vcmp.eq.s32.totalorder %v1879, 1
        %vm1912 = vcmp.eq.s32.totalorder %v1880, 1
        %vm1913 = vcmp.eq.s32.totalorder %v1881, 1
        %vm1914 = vcmp.eq.s32.totalorder %v1882, 1
        %vm1915 = vcmp.eq.s32.totalorder %v1883, 1
        %vm1916 = vcmp.eq.s32.totalorder %v1884, 1
        %vm1917 = vcmp.eq.s32.totalorder %v1885, 1
        %vm1918 = vcmp.eq.s32.totalorder %v1886, 1
        %vm1919 = vcmp.eq.s32.totalorder %v1887, 1
        %vm1920 = vcmp.eq.s32.totalorder %v1888, 1
        %vm1921 = vcmp.eq.s32.totalorder %v1889, 1
        %vm1922 = vcmp.eq.s32.totalorder %v1890, 1
        %vm1923 = vcmp.eq.s32.totalorder %v1891, 1
        %vm1924 = vcmp.eq.s32.totalorder %v1892, 1
        %vm1925 = vmpackc.low %vm1893, %vm1893
        %vm1926 = vmpackc.low %vm1894, %vm1894
        %vm1927 = vmpackc.low %vm1895, %vm1895
        %vm1928 = vmpackc.low %vm1896, %vm1896
        %vm1929 = vmpackc.low %vm1897, %vm1897
        %vm1930 = vmpackc.low %vm1898, %vm1898
        %vm1931 = vmpackc.low %vm1899, %vm1899
        %vm1932 = vmpackc.low %vm1900, %vm1900
        %vm1933 = vmpackc.low %vm1901, %vm1901
        %vm1934 = vmpackc.low %vm1902, %vm1902
        %vm1935 = vmpackc.low %vm1903, %vm1903
        %vm1936 = vmpackc.low %vm1904, %vm1904
        %vm1937 = vmpackc.low %vm1905, %vm1905
        %vm1938 = vmpackc.low %vm1906, %vm1906
        %vm1939 = vmpackc.low %vm1907, %vm1907
        %vm1940 = vmpackc.low %vm1908, %vm1908
        %vm1941 = vmpackc.low %vm1909, %vm1909
        %vm1942 = vmpackc.low %vm1910, %vm1910
        %vm1943 = vmpackc.low %vm1911, %vm1911
        %vm1944 = vmpackc.low %vm1912, %vm1912
        %vm1945 = vmpackc.low %vm1913, %vm1913
        %vm1946 = vmpackc.low %vm1914, %vm1914
        %vm1947 = vmpackc.low %vm1915, %vm1915
        %vm1948 = vmpackc.low %vm1916, %vm1916
        %vm1949 = vmpackc.low %vm1917, %vm1917
        %vm1950 = vmpackc.low %vm1918, %vm1918
        %vm1951 = vmpackc.low %vm1919, %vm1919
        %vm1952 = vmpackc.low %vm1920, %vm1920
        %vm1953 = vmpackc.low %vm1921, %vm1921
        %vm1954 = vmpackc.low %vm1922, %vm1922
        %vm1955 = vmpackc.low %vm1923, %vm1923
        %vm1956 = vmpackc.low %vm1924, %vm1924
        %v1957 = vsel %vm1925, 65537, 0
        %v1958 = vsel %vm1926, 65537, 0
        %v1959 = vsel %vm1927, 65537, 0
        %v1960 = vsel %vm1928, 65537, 0
        %v1961 = vsel %vm1929, 65537, 0
        %v1962 = vsel %vm1930, 65537, 0
        %v1963 = vsel %vm1931, 65537, 0
        %v1964 = vsel %vm1932, 65537, 0
        %v1965 = vsel %vm1933, 65537, 0
        %v1966 = vsel %vm1934, 65537, 0
        %v1967 = vsel %vm1935, 65537, 0
        %v1968 = vsel %vm1936, 65537, 0
        %v1969 = vsel %vm1937, 65537, 0
        %v1970 = vsel %vm1938, 65537, 0
        %v1971 = vsel %vm1939, 65537, 0
        %v1972 = vsel %vm1940, 65537, 0
        %v1973 = vsel %vm1941, 65537, 0
        %v1974 = vsel %vm1942, 65537, 0
        %v1975 = vsel %vm1943, 65537, 0
        %v1976 = vsel %vm1944, 65537, 0
        %v1977 = vsel %vm1945, 65537, 0
        %v1978 = vsel %vm1946, 65537, 0
        %v1979 = vsel %vm1947, 65537, 0
        %v1980 = vsel %vm1948, 65537, 0
        %v1981 = vsel %vm1949, 65537, 0
        %v1982 = vsel %vm1950, 65537, 0
        %v1983 = vsel %vm1951, 65537, 0
        %v1984 = vsel %vm1952, 65537, 0
        %v1985 = vsel %vm1953, 65537, 0
        %v1986 = vsel %vm1954, 65537, 0
        %v1987 = vsel %vm1955, 65537, 0
        %v1988 = vsel %vm1956, 65537, 0
        %v1989 = vunpack.c.l.b16 %v1957
        %v1990 = vunpack.c.l.b16 %v1958
        %v1991 = vunpack.c.l.b16 %v1959
        %v1992 = vunpack.c.l.b16 %v1960
        %v1993 = vunpack.c.l.b16 %v1961
        %v1994 = vunpack.c.l.b16 %v1962
        %v1995 = vunpack.c.l.b16 %v1963
        %v1996 = vunpack.c.l.b16 %v1964
        %v1997 = vunpack.c.l.b16 %v1965
        %v1998 = vunpack.c.l.b16 %v1966
        %v1999 = vunpack.c.l.b16 %v1967
        %v2000 = vunpack.c.l.b16 %v1968
        %v2001 = vunpack.c.l.b16 %v1969
        %v2002 = vunpack.c.l.b16 %v1970
        %v2003 = vunpack.c.l.b16 %v1971
        %v2004 = vunpack.c.l.b16 %v1972
        %v2005 = vunpack.c.l.b16 %v1973
        %v2006 = vunpack.c.l.b16 %v1974
        %v2007 = vunpack.c.l.b16 %v1975
        %v2008 = vunpack.c.l.b16 %v1976
        %v2009 = vunpack.c.l.b16 %v1977
        %v2010 = vunpack.c.l.b16 %v1978
        %v2011 = vunpack.c.l.b16 %v1979
        %v2012 = vunpack.c.l.b16 %v1980
        %v2013 = vunpack.c.l.b16 %v1981
        %v2014 = vunpack.c.l.b16 %v1982
        %v2015 = vunpack.c.l.b16 %v1983
        %v2016 = vunpack.c.l.b16 %v1984
        %v2017 = vunpack.c.l.b16 %v1985
        %v2018 = vunpack.c.l.b16 %v1986
        %v2019 = vunpack.c.l.b16 %v1987
        %v2020 = vunpack.c.l.b16 %v1988
        %v2021 = vpack.c.b16 %v1990, %v1989
        %v2022 = vpack.c.b16 %v1992, %v1991
        %v2023 = vpack.c.b16 %v1994, %v1993
        %v2024 = vpack.c.b16 %v1996, %v1995
        %v2025 = vpack.c.b16 %v1998, %v1997
        %v2026 = vpack.c.b16 %v2000, %v1999
        %v2027 = vpack.c.b16 %v2002, %v2001
        %v2028 = vpack.c.b16 %v2004, %v2003
        %v2029 = vpack.c.b16 %v2006, %v2005
        %v2030 = vpack.c.b16 %v2008, %v2007
        %v2031 = vpack.c.b16 %v2010, %v2009
        %v2032 = vpack.c.b16 %v2012, %v2011
        %v2033 = vpack.c.b16 %v2014, %v2013
        %v2034 = vpack.c.b16 %v2016, %v2015
        %v2035 = vpack.c.b16 %v2018, %v2017
        %v2036 = vpack.c.b16 %v2020, %v2019
        %vm2037 = vcmp.ne.s16.totalorder %v2021, 0
        %vm2038 = vcmp.ne.s16.totalorder %v2022, 0
        %vm2039 = vcmp.ne.s16.totalorder %v2023, 0
        %vm2040 = vcmp.ne.s16.totalorder %v2024, 0
        %vm2041 = vcmp.ne.s16.totalorder %v2025, 0
        %vm2042 = vcmp.ne.s16.totalorder %v2026, 0
        %vm2043 = vcmp.ne.s16.totalorder %v2027, 0
        %vm2044 = vcmp.ne.s16.totalorder %v2028, 0
        %vm2045 = vcmp.ne.s16.totalorder %v2029, 0
        %vm2046 = vcmp.ne.s16.totalorder %v2030, 0
        %vm2047 = vcmp.ne.s16.totalorder %v2031, 0
        %vm2048 = vcmp.ne.s16.totalorder %v2032, 0
        %vm2049 = vcmp.ne.s16.totalorder %v2033, 0
        %vm2050 = vcmp.ne.s16.totalorder %v2034, 0
        %vm2051 = vcmp.ne.s16.totalorder %v2035, 0
        %vm2052 = vcmp.ne.s16.totalorder %v2036, 0
        %v2053 = vsel %vm2037, %v1125, 0
        %v2054 = vsel %vm2038, %v1003, 0
        %v2055 = vsel %vm2039, %v1011, 0
        %v2056 = vsel %vm2040, %v1019, 0
        %v2057 = vsel %vm2041, %v1027, 0
        %v2058 = vsel %vm2042, %v1035, 0
        %v2059 = vsel %vm2043, %v1043, 0
        %v2060 = vsel %vm2044, %v1051, 0
        %v2061 = vsel %vm2045, %v1059, 0
        %v2062 = vsel %vm2046, %v1067, 0
        %v2063 = vsel %vm2047, %v1075, 0
        %v2064 = vsel %vm2048, %v1083, 0
        %v2065 = vsel %vm2049, %v1091, 0
        %v2066 = vsel %vm2050, %v1099, 0
        %v2067 = vsel %vm2051, %v1107, 0
        %v2068 = vsel %vm2052, %v1859, 0
        %v2069 = vor.u32 %v1855, %v1594
        %v2071 = vsel %vm1613, %v2069, 0
        %v2072 = vsel %vm956, 1, 0
        %v2073 = vsel %vm957, 1, 0
        %v2074 = vsel %vm958, 1, 0
        %v2075 = vsel %vm959, 1, 0
        %v2076 = vsel %vm960, 1, 0
        %v2077 = vsel %vm961, 1, 0
        %v2078 = vsel %vm962, 1, 0
        %v2079 = vsel %vm963, 1, 0
        %v2080 = vsel %vm964, 1, 0
        %v2081 = vsel %vm965, 1, 0
        %v2082 = vsel %vm966, 1, 0
        %v2083 = vsel %vm967, 1, 0
        %v2084 = vsel %vm968, 1, 0
        %v2085 = vsel %vm969, 1, 0
        %v2086 = vsel %vm970, 1, 0
        %v2087 = vsel %vm971, 1, 0
        %v2088 = vsel %vm972, 1, 0
        %v2089 = vsel %vm973, 1, 0
        %v2090 = vsel %vm974, 1, 0
        %v2091 = vsel %vm975, 1, 0
        %v2092 = vsel %vm976, 1, 0
        %v2093 = vsel %vm977, 1, 0
        %v2094 = vsel %vm978, 1, 0
        %v2095 = vsel %vm979, 1, 0
        %v2096 = vsel %vm980, 1, 0
        %v2097 = vsel %vm981, 1, 0
        %v2098 = vsel %vm982, 1, 0
        %v2099 = vsel %vm983, 1, 0
        %v2100 = vsel %vm984, 1, 0
        %v2101 = vsel %vm985, 1, 0
        %v2102 = vsel %vm986, 1, 0
        %v2103 = vsel %vm987, 1, 0
        %vm2104 = vcmp.eq.s32.totalorder %v2072, 1
        %vm2105 = vcmp.eq.s32.totalorder %v2073, 1
        %vm2106 = vcmp.eq.s32.totalorder %v2074, 1
        %vm2107 = vcmp.eq.s32.totalorder %v2075, 1
        %vm2108 = vcmp.eq.s32.totalorder %v2076, 1
        %vm2109 = vcmp.eq.s32.totalorder %v2077, 1
        %vm2110 = vcmp.eq.s32.totalorder %v2078, 1
        %vm2111 = vcmp.eq.s32.totalorder %v2079, 1
        %vm2112 = vcmp.eq.s32.totalorder %v2080, 1
        %vm2113 = vcmp.eq.s32.totalorder %v2081, 1
        %vm2114 = vcmp.eq.s32.totalorder %v2082, 1
        %vm2115 = vcmp.eq.s32.totalorder %v2083, 1
        %vm2116 = vcmp.eq.s32.totalorder %v2084, 1
        %vm2117 = vcmp.eq.s32.totalorder %v2085, 1
        %vm2118 = vcmp.eq.s32.totalorder %v2086, 1
        %vm2119 = vcmp.eq.s32.totalorder %v2087, 1
        %vm2120 = vcmp.eq.s32.totalorder %v2088, 1
        %vm2121 = vcmp.eq.s32.totalorder %v2089, 1
        %vm2122 = vcmp.eq.s32.totalorder %v2090, 1
        %vm2123 = vcmp.eq.s32.totalorder %v2091, 1
        %vm2124 = vcmp.eq.s32.totalorder %v2092, 1
        %vm2125 = vcmp.eq.s32.totalorder %v2093, 1
        %vm2126 = vcmp.eq.s32.totalorder %v2094, 1
        %vm2127 = vcmp.eq.s32.totalorder %v2095, 1
        %vm2128 = vcmp.eq.s32.totalorder %v2096, 1
        %vm2129 = vcmp.eq.s32.totalorder %v2097, 1
        %vm2130 = vcmp.eq.s32.totalorder %v2098, 1
        %vm2131 = vcmp.eq.s32.totalorder %v2099, 1
        %vm2132 = vcmp.eq.s32.totalorder %v2100, 1
        %vm2133 = vcmp.eq.s32.totalorder %v2101, 1
        %vm2134 = vcmp.eq.s32.totalorder %v2102, 1
        %vm2135 = vcmp.eq.s32.totalorder %v2103, 1
        %vm2136 = vmpackc.low %vm2104, %vm2104
        %vm2137 = vmpackc.low %vm2105, %vm2105
        %vm2138 = vmpackc.low %vm2106, %vm2106
        %vm2139 = vmpackc.low %vm2107, %vm2107
        %vm2140 = vmpackc.low %vm2108, %vm2108
        %vm2141 = vmpackc.low %vm2109, %vm2109
        %vm2142 = vmpackc.low %vm2110, %vm2110
        %vm2143 = vmpackc.low %vm2111, %vm2111
        %vm2144 = vmpackc.low %vm2112, %vm2112
        %vm2145 = vmpackc.low %vm2113, %vm2113
        %vm2146 = vmpackc.low %vm2114, %vm2114
        %vm2147 = vmpackc.low %vm2115, %vm2115
        %vm2148 = vmpackc.low %vm2116, %vm2116
        %vm2149 = vmpackc.low %vm2117, %vm2117
        %vm2150 = vmpackc.low %vm2118, %vm2118
        %vm2151 = vmpackc.low %vm2119, %vm2119
        %vm2152 = vmpackc.low %vm2120, %vm2120
        %vm2153 = vmpackc.low %vm2121, %vm2121
        %vm2154 = vmpackc.low %vm2122, %vm2122
        %vm2155 = vmpackc.low %vm2123, %vm2123
        %vm2156 = vmpackc.low %vm2124, %vm2124
        %vm2157 = vmpackc.low %vm2125, %vm2125
        %vm2158 = vmpackc.low %vm2126, %vm2126
        %vm2159 = vmpackc.low %vm2127, %vm2127
        %vm2160 = vmpackc.low %vm2128, %vm2128
        %vm2161 = vmpackc.low %vm2129, %vm2129
        %vm2162 = vmpackc.low %vm2130, %vm2130
        %vm2163 = vmpackc.low %vm2131, %vm2131
        %vm2164 = vmpackc.low %vm2132, %vm2132
        %vm2165 = vmpackc.low %vm2133, %vm2133
        %vm2166 = vmpackc.low %vm2134, %vm2134
        %vm2167 = vmpackc.low %vm2135, %vm2135
        %v2168 = vsel %vm2136, 65537, 0
        %v2169 = vsel %vm2137, 65537, 0
        %v2170 = vsel %vm2138, 65537, 0
        %v2171 = vsel %vm2139, 65537, 0
        %v2172 = vsel %vm2140, 65537, 0
        %v2173 = vsel %vm2141, 65537, 0
        %v2174 = vsel %vm2142, 65537, 0
        %v2175 = vsel %vm2143, 65537, 0
        %v2176 = vsel %vm2144, 65537, 0
        %v2177 = vsel %vm2145, 65537, 0
        %v2178 = vsel %vm2146, 65537, 0
        %v2179 = vsel %vm2147, 65537, 0
        %v2180 = vsel %vm2148, 65537, 0
        %v2181 = vsel %vm2149, 65537, 0
        %v2182 = vsel %vm2150, 65537, 0
        %v2183 = vsel %vm2151, 65537, 0
        %v2184 = vsel %vm2152, 65537, 0
        %v2185 = vsel %vm2153, 65537, 0
        %v2186 = vsel %vm2154, 65537, 0
        %v2187 = vsel %vm2155, 65537, 0
        %v2188 = vsel %vm2156, 65537, 0
        %v2189 = vsel %vm2157, 65537, 0
        %v2190 = vsel %vm2158, 65537, 0
        %v2191 = vsel %vm2159, 65537, 0
        %v2192 = vsel %vm2160, 65537, 0
        %v2193 = vsel %vm2161, 65537, 0
        %v2194 = vsel %vm2162, 65537, 0
        %v2195 = vsel %vm2163, 65537, 0
        %v2196 = vsel %vm2164, 65537, 0
        %v2197 = vsel %vm2165, 65537, 0
        %v2198 = vsel %vm2166, 65537, 0
        %v2199 = vsel %vm2167, 65537, 0
        %v2200 = vunpack.c.l.b16 %v2168
        %v2201 = vunpack.c.l.b16 %v2169
        %v2202 = vunpack.c.l.b16 %v2170
        %v2203 = vunpack.c.l.b16 %v2171
        %v2204 = vunpack.c.l.b16 %v2172
        %v2205 = vunpack.c.l.b16 %v2173
        %v2206 = vunpack.c.l.b16 %v2174
        %v2207 = vunpack.c.l.b16 %v2175
        %v2208 = vunpack.c.l.b16 %v2176
        %v2209 = vunpack.c.l.b16 %v2177
        %v2210 = vunpack.c.l.b16 %v2178
        %v2211 = vunpack.c.l.b16 %v2179
        %v2212 = vunpack.c.l.b16 %v2180
        %v2213 = vunpack.c.l.b16 %v2181
        %v2214 = vunpack.c.l.b16 %v2182
        %v2215 = vunpack.c.l.b16 %v2183
        %v2216 = vunpack.c.l.b16 %v2184
        %v2217 = vunpack.c.l.b16 %v2185
        %v2218 = vunpack.c.l.b16 %v2186
        %v2219 = vunpack.c.l.b16 %v2187
        %v2220 = vunpack.c.l.b16 %v2188
        %v2221 = vunpack.c.l.b16 %v2189
        %v2222 = vunpack.c.l.b16 %v2190
        %v2223 = vunpack.c.l.b16 %v2191
        %v2224 = vunpack.c.l.b16 %v2192
        %v2225 = vunpack.c.l.b16 %v2193
        %v2226 = vunpack.c.l.b16 %v2194
        %v2227 = vunpack.c.l.b16 %v2195
        %v2228 = vunpack.c.l.b16 %v2196
        %v2229 = vunpack.c.l.b16 %v2197
        %v2230 = vunpack.c.l.b16 %v2198
        %v2231 = vunpack.c.l.b16 %v2199
        %v2232 = vpack.c.b16 %v2201, %v2200
        %v2233 = vpack.c.b16 %v2203, %v2202
        %v2234 = vpack.c.b16 %v2205, %v2204
        %v2235 = vpack.c.b16 %v2207, %v2206
        %v2236 = vpack.c.b16 %v2209, %v2208
        %v2237 = vpack.c.b16 %v2211, %v2210
        %v2238 = vpack.c.b16 %v2213, %v2212
        %v2239 = vpack.c.b16 %v2215, %v2214
        %v2240 = vpack.c.b16 %v2217, %v2216
        %v2241 = vpack.c.b16 %v2219, %v2218
        %v2242 = vpack.c.b16 %v2221, %v2220
        %v2243 = vpack.c.b16 %v2223, %v2222
        %v2244 = vpack.c.b16 %v2225, %v2224
        %v2245 = vpack.c.b16 %v2227, %v2226
        %v2246 = vpack.c.b16 %v2229, %v2228
        %v2247 = vpack.c.b16 %v2231, %v2230
        %vm2248 = vcmp.ne.s16.totalorder %v2232, 0
        %vm2249 = vcmp.ne.s16.totalorder %v2233, 0
        %vm2250 = vcmp.ne.s16.totalorder %v2234, 0
        %vm2251 = vcmp.ne.s16.totalorder %v2235, 0
        %vm2252 = vcmp.ne.s16.totalorder %v2236, 0
        %vm2253 = vcmp.ne.s16.totalorder %v2237, 0
        %vm2254 = vcmp.ne.s16.totalorder %v2238, 0
        %vm2255 = vcmp.ne.s16.totalorder %v2239, 0
        %vm2256 = vcmp.ne.s16.totalorder %v2240, 0
        %vm2257 = vcmp.ne.s16.totalorder %v2241, 0
        %vm2258 = vcmp.ne.s16.totalorder %v2242, 0
        %vm2259 = vcmp.ne.s16.totalorder %v2243, 0
        %vm2260 = vcmp.ne.s16.totalorder %v2244, 0
        %vm2261 = vcmp.ne.s16.totalorder %v2245, 0
        %vm2262 = vcmp.ne.s16.totalorder %v2246, 0
        %vm2263 = vcmp.ne.s16.totalorder %v2247, 0
        %v2264 = vsel %vm2248, %v1550, 0
        %v2265 = vsel %vm2249, %v1553, 0
        %v2266 = vsel %vm2250, %v1556, 0
        %v2267 = vsel %vm2251, %v1559, 0
        %v2268 = vsel %vm2252, %v1562, 0
        %v2269 = vsel %vm2253, %v1565, 0
        %v2270 = vsel %vm2254, %v1568, 0
        %v2271 = vsel %vm2255, %v1571, 0
        %v2272 = vsel %vm2256, %v1574, 0
        %v2273 = vsel %vm2257, %v1577, 0
        %v2274 = vsel %vm2258, %v1580, 0
        %v2275 = vsel %vm2259, %v1583, 0
        %v2276 = vsel %vm2260, %v1586, 0
        %v2277 = vsel %vm2261, %v1589, 0
        %v2278 = vsel %vm2262, %v1595, 0
        %v2279 = vsel %vm2263, %v2071, 0
        %v2281 = vsel %vm1124, %v1857, 0
        %vm2282 = vmand %vm892, %vm924
        %vm2283 = vmand %vm893, %vm925
        %vm2284 = vmand %vm894, %vm926
        %vm2285 = vmand %vm895, %vm927
        %vm2286 = vmand %vm896, %vm928
        %vm2287 = vmand %vm897, %vm929
        %vm2288 = vmand %vm898, %vm930
        %vm2289 = vmand %vm899, %vm931
        %vm2290 = vmand %vm900, %vm932
        %vm2291 = vmand %vm901, %vm933
        %vm2292 = vmand %vm902, %vm934
        %vm2293 = vmand %vm903, %vm935
        %vm2294 = vmand %vm904, %vm936
        %vm2295 = vmand %vm905, %vm937
        %vm2296 = vmand %vm906, %vm938
        %vm2297 = vmand %vm907, %vm939
        %vm2298 = vmand %vm908, %vm940
        %vm2299 = vmand %vm909, %vm941
        %vm2300 = vmand %vm910, %vm942
        %vm2301 = vmand %vm911, %vm943
        %vm2302 = vmand %vm912, %vm944
        %vm2303 = vmand %vm913, %vm945
        %vm2304 = vmand %vm914, %vm946
        %vm2305 = vmand %vm915, %vm947
        %vm2306 = vmand %vm916, %vm948
        %vm2307 = vmand %vm917, %vm949
        %vm2308 = vmand %vm918, %vm950
        %vm2309 = vmand %vm919, %vm951
        %vm2310 = vmand %vm920, %vm952
        %vm2311 = vmand %vm921, %vm953
        %vm2312 = vmand %vm922, %vm954
        %vm2313 = vmand %vm923, %vm955
        %v2314 = vsel %vm2282, 1, 0
        %v2315 = vsel %vm2283, 1, 0
        %v2316 = vsel %vm2284, 1, 0
        %v2317 = vsel %vm2285, 1, 0
        %v2318 = vsel %vm2286, 1, 0
        %v2319 = vsel %vm2287, 1, 0
        %v2320 = vsel %vm2288, 1, 0
        %v2321 = vsel %vm2289, 1, 0
        %v2322 = vsel %vm2290, 1, 0
        %v2323 = vsel %vm2291, 1, 0
        %v2324 = vsel %vm2292, 1, 0
        %v2325 = vsel %vm2293, 1, 0
        %v2326 = vsel %vm2294, 1, 0
        %v2327 = vsel %vm2295, 1, 0
        %v2328 = vsel %vm2296, 1, 0
        %v2329 = vsel %vm2297, 1, 0
        %v2330 = vsel %vm2298, 1, 0
        %v2331 = vsel %vm2299, 1, 0
        %v2332 = vsel %vm2300, 1, 0
        %v2333 = vsel %vm2301, 1, 0
        %v2334 = vsel %vm2302, 1, 0
        %v2335 = vsel %vm2303, 1, 0
        %v2336 = vsel %vm2304, 1, 0
        %v2337 = vsel %vm2305, 1, 0
        %v2338 = vsel %vm2306, 1, 0
        %v2339 = vsel %vm2307, 1, 0
        %v2340 = vsel %vm2308, 1, 0
        %v2341 = vsel %vm2309, 1, 0
        %v2342 = vsel %vm2310, 1, 0
        %v2343 = vsel %vm2311, 1, 0
        %v2344 = vsel %vm2312, 1, 0
        %v2345 = vsel %vm2313, 1, 0
        %vm2346 = vcmp.eq.s32.totalorder %v2314, 1
        %vm2347 = vcmp.eq.s32.totalorder %v2315, 1
        %vm2348 = vcmp.eq.s32.totalorder %v2316, 1
        %vm2349 = vcmp.eq.s32.totalorder %v2317, 1
        %vm2350 = vcmp.eq.s32.totalorder %v2318, 1
        %vm2351 = vcmp.eq.s32.totalorder %v2319, 1
        %vm2352 = vcmp.eq.s32.totalorder %v2320, 1
        %vm2353 = vcmp.eq.s32.totalorder %v2321, 1
        %vm2354 = vcmp.eq.s32.totalorder %v2322, 1
        %vm2355 = vcmp.eq.s32.totalorder %v2323, 1
        %vm2356 = vcmp.eq.s32.totalorder %v2324, 1
        %vm2357 = vcmp.eq.s32.totalorder %v2325, 1
        %vm2358 = vcmp.eq.s32.totalorder %v2326, 1
        %vm2359 = vcmp.eq.s32.totalorder %v2327, 1
        %vm2360 = vcmp.eq.s32.totalorder %v2328, 1
        %vm2361 = vcmp.eq.s32.totalorder %v2329, 1
        %vm2362 = vcmp.eq.s32.totalorder %v2330, 1
        %vm2363 = vcmp.eq.s32.totalorder %v2331, 1
        %vm2364 = vcmp.eq.s32.totalorder %v2332, 1
        %vm2365 = vcmp.eq.s32.totalorder %v2333, 1
        %vm2366 = vcmp.eq.s32.totalorder %v2334, 1
        %vm2367 = vcmp.eq.s32.totalorder %v2335, 1
        %vm2368 = vcmp.eq.s32.totalorder %v2336, 1
        %vm2369 = vcmp.eq.s32.totalorder %v2337, 1
        %vm2370 = vcmp.eq.s32.totalorder %v2338, 1
        %vm2371 = vcmp.eq.s32.totalorder %v2339, 1
        %vm2372 = vcmp.eq.s32.totalorder %v2340, 1
        %vm2373 = vcmp.eq.s32.totalorder %v2341, 1
        %vm2374 = vcmp.eq.s32.totalorder %v2342, 1
        %vm2375 = vcmp.eq.s32.totalorder %v2343, 1
        %vm2376 = vcmp.eq.s32.totalorder %v2344, 1
        %vm2377 = vcmp.eq.s32.totalorder %v2345, 1
        %vm2378 = vmpackc.low %vm2346, %vm2346
        %vm2379 = vmpackc.low %vm2347, %vm2347
        %vm2380 = vmpackc.low %vm2348, %vm2348
        %vm2381 = vmpackc.low %vm2349, %vm2349
        %vm2382 = vmpackc.low %vm2350, %vm2350
        %vm2383 = vmpackc.low %vm2351, %vm2351
        %vm2384 = vmpackc.low %vm2352, %vm2352
        %vm2385 = vmpackc.low %vm2353, %vm2353
        %vm2386 = vmpackc.low %vm2354, %vm2354
        %vm2387 = vmpackc.low %vm2355, %vm2355
        %vm2388 = vmpackc.low %vm2356, %vm2356
        %vm2389 = vmpackc.low %vm2357, %vm2357
        %vm2390 = vmpackc.low %vm2358, %vm2358
        %vm2391 = vmpackc.low %vm2359, %vm2359
        %vm2392 = vmpackc.low %vm2360, %vm2360
        %vm2393 = vmpackc.low %vm2361, %vm2361
        %vm2394 = vmpackc.low %vm2362, %vm2362
        %vm2395 = vmpackc.low %vm2363, %vm2363
        %vm2396 = vmpackc.low %vm2364, %vm2364
        %vm2397 = vmpackc.low %vm2365, %vm2365
        %vm2398 = vmpackc.low %vm2366, %vm2366
        %vm2399 = vmpackc.low %vm2367, %vm2367
        %vm2400 = vmpackc.low %vm2368, %vm2368
        %vm2401 = vmpackc.low %vm2369, %vm2369
        %vm2402 = vmpackc.low %vm2370, %vm2370
        %vm2403 = vmpackc.low %vm2371, %vm2371
        %vm2404 = vmpackc.low %vm2372, %vm2372
        %vm2405 = vmpackc.low %vm2373, %vm2373
        %vm2406 = vmpackc.low %vm2374, %vm2374
        %vm2407 = vmpackc.low %vm2375, %vm2375
        %vm2408 = vmpackc.low %vm2376, %vm2376
        %vm2409 = vmpackc.low %vm2377, %vm2377
        %v2410 = vsel %vm2378, 65537, 0
        %v2411 = vsel %vm2379, 65537, 0
        %v2412 = vsel %vm2380, 65537, 0
        %v2413 = vsel %vm2381, 65537, 0
        %v2414 = vsel %vm2382, 65537, 0
        %v2415 = vsel %vm2383, 65537, 0
        %v2416 = vsel %vm2384, 65537, 0
        %v2417 = vsel %vm2385, 65537, 0
        %v2418 = vsel %vm2386, 65537, 0
        %v2419 = vsel %vm2387, 65537, 0
        %v2420 = vsel %vm2388, 65537, 0
        %v2421 = vsel %vm2389, 65537, 0
        %v2422 = vsel %vm2390, 65537, 0
        %v2423 = vsel %vm2391, 65537, 0
        %v2424 = vsel %vm2392, 65537, 0
        %v2425 = vsel %vm2393, 65537, 0
        %v2426 = vsel %vm2394, 65537, 0
        %v2427 = vsel %vm2395, 65537, 0
        %v2428 = vsel %vm2396, 65537, 0
        %v2429 = vsel %vm2397, 65537, 0
        %v2430 = vsel %vm2398, 65537, 0
        %v2431 = vsel %vm2399, 65537, 0
        %v2432 = vsel %vm2400, 65537, 0
        %v2433 = vsel %vm2401, 65537, 0
        %v2434 = vsel %vm2402, 65537, 0
        %v2435 = vsel %vm2403, 65537, 0
        %v2436 = vsel %vm2404, 65537, 0
        %v2437 = vsel %vm2405, 65537, 0
        %v2438 = vsel %vm2406, 65537, 0
        %v2439 = vsel %vm2407, 65537, 0
        %v2440 = vsel %vm2408, 65537, 0
        %v2441 = vsel %vm2409, 65537, 0
        %v2442 = vunpack.c.l.b16 %v2410
        %v2443 = vunpack.c.l.b16 %v2411
        %v2444 = vunpack.c.l.b16 %v2412
        %v2445 = vunpack.c.l.b16 %v2413
        %v2446 = vunpack.c.l.b16 %v2414
        %v2447 = vunpack.c.l.b16 %v2415
        %v2448 = vunpack.c.l.b16 %v2416
        %v2449 = vunpack.c.l.b16 %v2417
        %v2450 = vunpack.c.l.b16 %v2418
        %v2451 = vunpack.c.l.b16 %v2419
        %v2452 = vunpack.c.l.b16 %v2420
        %v2453 = vunpack.c.l.b16 %v2421
        %v2454 = vunpack.c.l.b16 %v2422
        %v2455 = vunpack.c.l.b16 %v2423
        %v2456 = vunpack.c.l.b16 %v2424
        %v2457 = vunpack.c.l.b16 %v2425
        %v2458 = vunpack.c.l.b16 %v2426
        %v2459 = vunpack.c.l.b16 %v2427
        %v2460 = vunpack.c.l.b16 %v2428
        %v2461 = vunpack.c.l.b16 %v2429
        %v2462 = vunpack.c.l.b16 %v2430
        %v2463 = vunpack.c.l.b16 %v2431
        %v2464 = vunpack.c.l.b16 %v2432
        %v2465 = vunpack.c.l.b16 %v2433
        %v2466 = vunpack.c.l.b16 %v2434
        %v2467 = vunpack.c.l.b16 %v2435
        %v2468 = vunpack.c.l.b16 %v2436
        %v2469 = vunpack.c.l.b16 %v2437
        %v2470 = vunpack.c.l.b16 %v2438
        %v2471 = vunpack.c.l.b16 %v2439
        %v2472 = vunpack.c.l.b16 %v2440
        %v2473 = vunpack.c.l.b16 %v2441
        %v2474 = vpack.c.b16 %v2443, %v2442
        %v2475 = vpack.c.b16 %v2445, %v2444
        %v2476 = vpack.c.b16 %v2447, %v2446
        %v2477 = vpack.c.b16 %v2449, %v2448
        %v2478 = vpack.c.b16 %v2451, %v2450
        %v2479 = vpack.c.b16 %v2453, %v2452
        %v2480 = vpack.c.b16 %v2455, %v2454
        %v2481 = vpack.c.b16 %v2457, %v2456
        %v2482 = vpack.c.b16 %v2459, %v2458
        %v2483 = vpack.c.b16 %v2461, %v2460
        %v2484 = vpack.c.b16 %v2463, %v2462
        %v2485 = vpack.c.b16 %v2465, %v2464
        %v2486 = vpack.c.b16 %v2467, %v2466
        %v2487 = vpack.c.b16 %v2469, %v2468
        %v2488 = vpack.c.b16 %v2471, %v2470
        %v2489 = vpack.c.b16 %v2473, %v2472
        %vm2490 = vcmp.ne.s16.totalorder %v2474, 0
        %vm2491 = vcmp.ne.s16.totalorder %v2475, 0
        %vm2492 = vcmp.ne.s16.totalorder %v2476, 0
        %vm2493 = vcmp.ne.s16.totalorder %v2477, 0
        %vm2494 = vcmp.ne.s16.totalorder %v2478, 0
        %vm2495 = vcmp.ne.s16.totalorder %v2479, 0
        %vm2496 = vcmp.ne.s16.totalorder %v2480, 0
        %vm2497 = vcmp.ne.s16.totalorder %v2481, 0
        %vm2498 = vcmp.ne.s16.totalorder %v2482, 0
        %vm2499 = vcmp.ne.s16.totalorder %v2483, 0
        %vm2500 = vcmp.ne.s16.totalorder %v2484, 0
        %vm2501 = vcmp.ne.s16.totalorder %v2485, 0
        %vm2502 = vcmp.ne.s16.totalorder %v2486, 0
        %vm2503 = vcmp.ne.s16.totalorder %v2487, 0
        %vm2504 = vcmp.ne.s16.totalorder %v2488, 0
        %vm2505 = vcmp.ne.s16.totalorder %v2489, 0
        %v2506 = vsel %vm2490, %v1003, 0
        %v2507 = vsel %vm2491, %v1011, 0
        %v2508 = vsel %vm2492, %v1019, 0
        %v2509 = vsel %vm2493, %v1027, 0
        %v2510 = vsel %vm2494, %v1035, 0
        %v2511 = vsel %vm2495, %v1043, 0
        %v2512 = vsel %vm2496, %v1051, 0
        %v2513 = vsel %vm2497, %v1059, 0
        %v2514 = vsel %vm2498, %v1067, 0
        %v2515 = vsel %vm2499, %v1075, 0
        %v2516 = vsel %vm2500, %v1083, 0
        %v2517 = vsel %vm2501, %v1091, 0
        %v2518 = vsel %vm2502, %v1099, 0
        %v2519 = vsel %vm2503, %v1107, 0
        %v2520 = vsel %vm2504, %v1859, 0
        %v2521 = vsel %vm2505, %v2281, 0
        %v2522 = vsel %vm892, 1, 0
        %v2523 = vsel %vm893, 1, 0
        %v2524 = vsel %vm894, 1, 0
        %v2525 = vsel %vm895, 1, 0
        %v2526 = vsel %vm896, 1, 0
        %v2527 = vsel %vm897, 1, 0
        %v2528 = vsel %vm898, 1, 0
        %v2529 = vsel %vm899, 1, 0
        %v2530 = vsel %vm900, 1, 0
        %v2531 = vsel %vm901, 1, 0
        %v2532 = vsel %vm902, 1, 0
        %v2533 = vsel %vm903, 1, 0
        %v2534 = vsel %vm904, 1, 0
        %v2535 = vsel %vm905, 1, 0
        %v2536 = vsel %vm906, 1, 0
        %v2537 = vsel %vm907, 1, 0
        %v2538 = vsel %vm908, 1, 0
        %v2539 = vsel %vm909, 1, 0
        %v2540 = vsel %vm910, 1, 0
        %v2541 = vsel %vm911, 1, 0
        %v2542 = vsel %vm912, 1, 0
        %v2543 = vsel %vm913, 1, 0
        %v2544 = vsel %vm914, 1, 0
        %v2545 = vsel %vm915, 1, 0
        %v2546 = vsel %vm916, 1, 0
        %v2547 = vsel %vm917, 1, 0
        %v2548 = vsel %vm918, 1, 0
        %v2549 = vsel %vm919, 1, 0
        %v2550 = vsel %vm920, 1, 0
        %v2551 = vsel %vm921, 1, 0
        %vm2552 = vcmp.eq.s32.totalorder %v2522, 1
        %vm2553 = vcmp.eq.s32.totalorder %v2523, 1
        %vm2554 = vcmp.eq.s32.totalorder %v2524, 1
        %vm2555 = vcmp.eq.s32.totalorder %v2525, 1
        %vm2556 = vcmp.eq.s32.totalorder %v2526, 1
        %vm2557 = vcmp.eq.s32.totalorder %v2527, 1
        %vm2558 = vcmp.eq.s32.totalorder %v2528, 1
        %vm2559 = vcmp.eq.s32.totalorder %v2529, 1
        %vm2560 = vcmp.eq.s32.totalorder %v2530, 1
        %vm2561 = vcmp.eq.s32.totalorder %v2531, 1
        %vm2562 = vcmp.eq.s32.totalorder %v2532, 1
        %vm2563 = vcmp.eq.s32.totalorder %v2533, 1
        %vm2564 = vcmp.eq.s32.totalorder %v2534, 1
        %vm2565 = vcmp.eq.s32.totalorder %v2535, 1
        %vm2566 = vcmp.eq.s32.totalorder %v2536, 1
        %vm2567 = vcmp.eq.s32.totalorder %v2537, 1
        %vm2568 = vcmp.eq.s32.totalorder %v2538, 1
        %vm2569 = vcmp.eq.s32.totalorder %v2539, 1
        %vm2570 = vcmp.eq.s32.totalorder %v2540, 1
        %vm2571 = vcmp.eq.s32.totalorder %v2541, 1
        %vm2572 = vcmp.eq.s32.totalorder %v2542, 1
        %vm2573 = vcmp.eq.s32.totalorder %v2543, 1
        %vm2574 = vcmp.eq.s32.totalorder %v2544, 1
        %vm2575 = vcmp.eq.s32.totalorder %v2545, 1
        %vm2576 = vcmp.eq.s32.totalorder %v2546, 1
        %vm2577 = vcmp.eq.s32.totalorder %v2547, 1
        %vm2578 = vcmp.eq.s32.totalorder %v2548, 1
        %vm2579 = vcmp.eq.s32.totalorder %v2549, 1
        %vm2580 = vcmp.eq.s32.totalorder %v2550, 1
        %vm2581 = vcmp.eq.s32.totalorder %v2551, 1
        %vm2582 = vmpackc.low %vm2552, %vm2552
        %vm2583 = vmpackc.low %vm2553, %vm2553
        %vm2584 = vmpackc.low %vm2554, %vm2554
        %vm2585 = vmpackc.low %vm2555, %vm2555
        %vm2586 = vmpackc.low %vm2556, %vm2556
        %vm2587 = vmpackc.low %vm2557, %vm2557
        %vm2588 = vmpackc.low %vm2558, %vm2558
        %vm2589 = vmpackc.low %vm2559, %vm2559
        %vm2590 = vmpackc.low %vm2560, %vm2560
        %vm2591 = vmpackc.low %vm2561, %vm2561
        %vm2592 = vmpackc.low %vm2562, %vm2562
        %vm2593 = vmpackc.low %vm2563, %vm2563
        %vm2594 = vmpackc.low %vm2564, %vm2564
        %vm2595 = vmpackc.low %vm2565, %vm2565
        %vm2596 = vmpackc.low %vm2566, %vm2566
        %vm2597 = vmpackc.low %vm2567, %vm2567
        %vm2598 = vmpackc.low %vm2568, %vm2568
        %vm2599 = vmpackc.low %vm2569, %vm2569
        %vm2600 = vmpackc.low %vm2570, %vm2570
        %vm2601 = vmpackc.low %vm2571, %vm2571
        %vm2602 = vmpackc.low %vm2572, %vm2572
        %vm2603 = vmpackc.low %vm2573, %vm2573
        %vm2604 = vmpackc.low %vm2574, %vm2574
        %vm2605 = vmpackc.low %vm2575, %vm2575
        %vm2606 = vmpackc.low %vm2576, %vm2576
        %vm2607 = vmpackc.low %vm2577, %vm2577
        %vm2608 = vmpackc.low %vm2578, %vm2578
        %vm2609 = vmpackc.low %vm2579, %vm2579
        %vm2610 = vmpackc.low %vm2580, %vm2580
        %vm2611 = vmpackc.low %vm2581, %vm2581
        %v2612 = vsel %vm2582, 65537, 0
        %v2613 = vsel %vm2583, 65537, 0
        %v2614 = vsel %vm2584, 65537, 0
        %v2615 = vsel %vm2585, 65537, 0
        %v2616 = vsel %vm2586, 65537, 0
        %v2617 = vsel %vm2587, 65537, 0
        %v2618 = vsel %vm2588, 65537, 0
        %v2619 = vsel %vm2589, 65537, 0
        %v2620 = vsel %vm2590, 65537, 0
        %v2621 = vsel %vm2591, 65537, 0
        %v2622 = vsel %vm2592, 65537, 0
        %v2623 = vsel %vm2593, 65537, 0
        %v2624 = vsel %vm2594, 65537, 0
        %v2625 = vsel %vm2595, 65537, 0
        %v2626 = vsel %vm2596, 65537, 0
        %v2627 = vsel %vm2597, 65537, 0
        %v2628 = vsel %vm2598, 65537, 0
        %v2629 = vsel %vm2599, 65537, 0
        %v2630 = vsel %vm2600, 65537, 0
        %v2631 = vsel %vm2601, 65537, 0
        %v2632 = vsel %vm2602, 65537, 0
        %v2633 = vsel %vm2603, 65537, 0
        %v2634 = vsel %vm2604, 65537, 0
        %v2635 = vsel %vm2605, 65537, 0
        %v2636 = vsel %vm2606, 65537, 0
        %v2637 = vsel %vm2607, 65537, 0
        %v2638 = vsel %vm2608, 65537, 0
        %v2639 = vsel %vm2609, 65537, 0
        %v2640 = vsel %vm2610, 65537, 0
        %v2641 = vsel %vm2611, 65537, 0
        %v2642 = vunpack.c.l.b16 %v2612
        %v2643 = vunpack.c.l.b16 %v2613
        %v2644 = vunpack.c.l.b16 %v2614
        %v2645 = vunpack.c.l.b16 %v2615
        %v2646 = vunpack.c.l.b16 %v2616
        %v2647 = vunpack.c.l.b16 %v2617
        %v2648 = vunpack.c.l.b16 %v2618
        %v2649 = vunpack.c.l.b16 %v2619
        %v2650 = vunpack.c.l.b16 %v2620
        %v2651 = vunpack.c.l.b16 %v2621
        %v2652 = vunpack.c.l.b16 %v2622
        %v2653 = vunpack.c.l.b16 %v2623
        %v2654 = vunpack.c.l.b16 %v2624
        %v2655 = vunpack.c.l.b16 %v2625
        %v2656 = vunpack.c.l.b16 %v2626
        %v2657 = vunpack.c.l.b16 %v2627
        %v2658 = vunpack.c.l.b16 %v2628
        %v2659 = vunpack.c.l.b16 %v2629
        %v2660 = vunpack.c.l.b16 %v2630
        %v2661 = vunpack.c.l.b16 %v2631
        %v2662 = vunpack.c.l.b16 %v2632
        %v2663 = vunpack.c.l.b16 %v2633
        %v2664 = vunpack.c.l.b16 %v2634
        %v2665 = vunpack.c.l.b16 %v2635
        %v2666 = vunpack.c.l.b16 %v2636
        %v2667 = vunpack.c.l.b16 %v2637
        %v2668 = vunpack.c.l.b16 %v2638
        %v2669 = vunpack.c.l.b16 %v2639
        %v2670 = vunpack.c.l.b16 %v2640
        %v2671 = vunpack.c.l.b16 %v2641
        %v2672 = vpack.c.b16 %v2643, %v2642
        %v2673 = vpack.c.b16 %v2645, %v2644
        %v2674 = vpack.c.b16 %v2647, %v2646
        %v2675 = vpack.c.b16 %v2649, %v2648
        %v2676 = vpack.c.b16 %v2651, %v2650
        %v2677 = vpack.c.b16 %v2653, %v2652
        %v2678 = vpack.c.b16 %v2655, %v2654
        %v2679 = vpack.c.b16 %v2657, %v2656
        %v2680 = vpack.c.b16 %v2659, %v2658
        %v2681 = vpack.c.b16 %v2661, %v2660
        %v2682 = vpack.c.b16 %v2663, %v2662
        %v2683 = vpack.c.b16 %v2665, %v2664
        %v2684 = vpack.c.b16 %v2667, %v2666
        %v2685 = vpack.c.b16 %v2669, %v2668
        %v2686 = vpack.c.b16 %v2671, %v2670
        %vm2687 = vcmp.ne.s16.totalorder %v2672, 0
        %vm2688 = vcmp.ne.s16.totalorder %v2673, 0
        %vm2689 = vcmp.ne.s16.totalorder %v2674, 0
        %vm2690 = vcmp.ne.s16.totalorder %v2675, 0
        %vm2691 = vcmp.ne.s16.totalorder %v2676, 0
        %vm2692 = vcmp.ne.s16.totalorder %v2677, 0
        %vm2693 = vcmp.ne.s16.totalorder %v2678, 0
        %vm2694 = vcmp.ne.s16.totalorder %v2679, 0
        %vm2695 = vcmp.ne.s16.totalorder %v2680, 0
        %vm2696 = vcmp.ne.s16.totalorder %v2681, 0
        %vm2697 = vcmp.ne.s16.totalorder %v2682, 0
        %vm2698 = vcmp.ne.s16.totalorder %v2683, 0
        %vm2699 = vcmp.ne.s16.totalorder %v2684, 0
        %vm2700 = vcmp.ne.s16.totalorder %v2685, 0
        %vm2701 = vcmp.ne.s16.totalorder %v2686, 0
        %v2702 = vsel %vm2687, %v428, 0
        %v2703 = vsel %vm2688, %v429, 0
        %v2704 = vsel %vm2689, %v430, 0
        %v2705 = vsel %vm2690, %v431, 0
        %v2706 = vsel %vm2691, %v432, 0
        %v2707 = vsel %vm2692, %v433, 0
        %v2708 = vsel %vm2693, %v434, 0
        %v2709 = vsel %vm2694, %v435, 0
        %v2710 = vsel %vm2695, %v436, 0
        %v2711 = vsel %vm2696, %v437, 0
        %v2712 = vsel %vm2697, %v438, 0
        %v2713 = vsel %vm2698, %v439, 0
        %v2714 = vsel %vm2699, %v440, 0
        %v2715 = vsel %vm2700, %v441, 0
        %v2716 = vsel %vm2701, %v442, 0
        %vm2717 = vmand %vm892, %vm956
        %vm2718 = vmand %vm893, %vm957
        %vm2719 = vmand %vm894, %vm958
        %vm2720 = vmand %vm895, %vm959
        %vm2721 = vmand %vm896, %vm960
        %vm2722 = vmand %vm897, %vm961
        %vm2723 = vmand %vm898, %vm962
        %vm2724 = vmand %vm899, %vm963
        %vm2725 = vmand %vm900, %vm964
        %vm2726 = vmand %vm901, %vm965
        %vm2727 = vmand %vm902, %vm966
        %vm2728 = vmand %vm903, %vm967
        %vm2729 = vmand %vm904, %vm968
        %vm2730 = vmand %vm905, %vm969
        %vm2731 = vmand %vm906, %vm970
        %vm2732 = vmand %vm907, %vm971
        %vm2733 = vmand %vm908, %vm972
        %vm2734 = vmand %vm909, %vm973
        %vm2735 = vmand %vm910, %vm974
        %vm2736 = vmand %vm911, %vm975
        %vm2737 = vmand %vm912, %vm976
        %vm2738 = vmand %vm913, %vm977
        %vm2739 = vmand %vm914, %vm978
        %vm2740 = vmand %vm915, %vm979
        %vm2741 = vmand %vm916, %vm980
        %vm2742 = vmand %vm917, %vm981
        %vm2743 = vmand %vm918, %vm982
        %vm2744 = vmand %vm919, %vm983
        %vm2745 = vmand %vm920, %vm984
        %vm2746 = vmand %vm921, %vm985
        %v2747 = vsel %vm2717, 1, 0
        %v2748 = vsel %vm2718, 1, 0
        %v2749 = vsel %vm2719, 1, 0
        %v2750 = vsel %vm2720, 1, 0
        %v2751 = vsel %vm2721, 1, 0
        %v2752 = vsel %vm2722, 1, 0
        %v2753 = vsel %vm2723, 1, 0
        %v2754 = vsel %vm2724, 1, 0
        %v2755 = vsel %vm2725, 1, 0
        %v2756 = vsel %vm2726, 1, 0
        %v2757 = vsel %vm2727, 1, 0
        %v2758 = vsel %vm2728, 1, 0
        %v2759 = vsel %vm2729, 1, 0
        %v2760 = vsel %vm2730, 1, 0
        %v2761 = vsel %vm2731, 1, 0
        %v2762 = vsel %vm2732, 1, 0
        %v2763 = vsel %vm2733, 1, 0
        %v2764 = vsel %vm2734, 1, 0
        %v2765 = vsel %vm2735, 1, 0
        %v2766 = vsel %vm2736, 1, 0
        %v2767 = vsel %vm2737, 1, 0
        %v2768 = vsel %vm2738, 1, 0
        %v2769 = vsel %vm2739, 1, 0
        %v2770 = vsel %vm2740, 1, 0
        %v2771 = vsel %vm2741, 1, 0
        %v2772 = vsel %vm2742, 1, 0
        %v2773 = vsel %vm2743, 1, 0
        %v2774 = vsel %vm2744, 1, 0
        %v2775 = vsel %vm2745, 1, 0
        %v2776 = vsel %vm2746, 1, 0
        %vm2777 = vcmp.eq.s32.totalorder %v2747, 1
        %vm2778 = vcmp.eq.s32.totalorder %v2748, 1
        %vm2779 = vcmp.eq.s32.totalorder %v2749, 1
        %vm2780 = vcmp.eq.s32.totalorder %v2750, 1
        %vm2781 = vcmp.eq.s32.totalorder %v2751, 1
        %vm2782 = vcmp.eq.s32.totalorder %v2752, 1
        %vm2783 = vcmp.eq.s32.totalorder %v2753, 1
        %vm2784 = vcmp.eq.s32.totalorder %v2754, 1
        %vm2785 = vcmp.eq.s32.totalorder %v2755, 1
        %vm2786 = vcmp.eq.s32.totalorder %v2756, 1
        %vm2787 = vcmp.eq.s32.totalorder %v2757, 1
        %vm2788 = vcmp.eq.s32.totalorder %v2758, 1
        %vm2789 = vcmp.eq.s32.totalorder %v2759, 1
        %vm2790 = vcmp.eq.s32.totalorder %v2760, 1
        %vm2791 = vcmp.eq.s32.totalorder %v2761, 1
        %vm2792 = vcmp.eq.s32.totalorder %v2762, 1
        %vm2793 = vcmp.eq.s32.totalorder %v2763, 1
        %vm2794 = vcmp.eq.s32.totalorder %v2764, 1
        %vm2795 = vcmp.eq.s32.totalorder %v2765, 1
        %vm2796 = vcmp.eq.s32.totalorder %v2766, 1
        %vm2797 = vcmp.eq.s32.totalorder %v2767, 1
        %vm2798 = vcmp.eq.s32.totalorder %v2768, 1
        %vm2799 = vcmp.eq.s32.totalorder %v2769, 1
        %vm2800 = vcmp.eq.s32.totalorder %v2770, 1
        %vm2801 = vcmp.eq.s32.totalorder %v2771, 1
        %vm2802 = vcmp.eq.s32.totalorder %v2772, 1
        %vm2803 = vcmp.eq.s32.totalorder %v2773, 1
        %vm2804 = vcmp.eq.s32.totalorder %v2774, 1
        %vm2805 = vcmp.eq.s32.totalorder %v2775, 1
        %vm2806 = vcmp.eq.s32.totalorder %v2776, 1
        %vm2807 = vmpackc.low %vm2777, %vm2777
        %vm2808 = vmpackc.low %vm2778, %vm2778
        %vm2809 = vmpackc.low %vm2779, %vm2779
        %vm2810 = vmpackc.low %vm2780, %vm2780
        %vm2811 = vmpackc.low %vm2781, %vm2781
        %vm2812 = vmpackc.low %vm2782, %vm2782
        %vm2813 = vmpackc.low %vm2783, %vm2783
        %vm2814 = vmpackc.low %vm2784, %vm2784
        %vm2815 = vmpackc.low %vm2785, %vm2785
        %vm2816 = vmpackc.low %vm2786, %vm2786
        %vm2817 = vmpackc.low %vm2787, %vm2787
        %vm2818 = vmpackc.low %vm2788, %vm2788
        %vm2819 = vmpackc.low %vm2789, %vm2789
        %vm2820 = vmpackc.low %vm2790, %vm2790
        %vm2821 = vmpackc.low %vm2791, %vm2791
        %vm2822 = vmpackc.low %vm2792, %vm2792
        %vm2823 = vmpackc.low %vm2793, %vm2793
        %vm2824 = vmpackc.low %vm2794, %vm2794
        %vm2825 = vmpackc.low %vm2795, %vm2795
        %vm2826 = vmpackc.low %vm2796, %vm2796
        %vm2827 = vmpackc.low %vm2797, %vm2797
        %vm2828 = vmpackc.low %vm2798, %vm2798
        %vm2829 = vmpackc.low %vm2799, %vm2799
        %vm2830 = vmpackc.low %vm2800, %vm2800
        %vm2831 = vmpackc.low %vm2801, %vm2801
        %vm2832 = vmpackc.low %vm2802, %vm2802
        %vm2833 = vmpackc.low %vm2803, %vm2803
        %vm2834 = vmpackc.low %vm2804, %vm2804
        %vm2835 = vmpackc.low %vm2805, %vm2805
        %vm2836 = vmpackc.low %vm2806, %vm2806
        %v2837 = vsel %vm2807, 65537, 0
        %v2838 = vsel %vm2808, 65537, 0
        %v2839 = vsel %vm2809, 65537, 0
        %v2840 = vsel %vm2810, 65537, 0
        %v2841 = vsel %vm2811, 65537, 0
        %v2842 = vsel %vm2812, 65537, 0
        %v2843 = vsel %vm2813, 65537, 0
        %v2844 = vsel %vm2814, 65537, 0
        %v2845 = vsel %vm2815, 65537, 0
        %v2846 = vsel %vm2816, 65537, 0
        %v2847 = vsel %vm2817, 65537, 0
        %v2848 = vsel %vm2818, 65537, 0
        %v2849 = vsel %vm2819, 65537, 0
        %v2850 = vsel %vm2820, 65537, 0
        %v2851 = vsel %vm2821, 65537, 0
        %v2852 = vsel %vm2822, 65537, 0
        %v2853 = vsel %vm2823, 65537, 0
        %v2854 = vsel %vm2824, 65537, 0
        %v2855 = vsel %vm2825, 65537, 0
        %v2856 = vsel %vm2826, 65537, 0
        %v2857 = vsel %vm2827, 65537, 0
        %v2858 = vsel %vm2828, 65537, 0
        %v2859 = vsel %vm2829, 65537, 0
        %v2860 = vsel %vm2830, 65537, 0
        %v2861 = vsel %vm2831, 65537, 0
        %v2862 = vsel %vm2832, 65537, 0
        %v2863 = vsel %vm2833, 65537, 0
        %v2864 = vsel %vm2834, 65537, 0
        %v2865 = vsel %vm2835, 65537, 0
        %v2866 = vsel %vm2836, 65537, 0
        %v2867 = vunpack.c.l.b16 %v2837
        %v2868 = vunpack.c.l.b16 %v2838
        %v2869 = vunpack.c.l.b16 %v2839
        %v2870 = vunpack.c.l.b16 %v2840
        %v2871 = vunpack.c.l.b16 %v2841
        %v2872 = vunpack.c.l.b16 %v2842
        %v2873 = vunpack.c.l.b16 %v2843
        %v2874 = vunpack.c.l.b16 %v2844
        %v2875 = vunpack.c.l.b16 %v2845
        %v2876 = vunpack.c.l.b16 %v2846
        %v2877 = vunpack.c.l.b16 %v2847
        %v2878 = vunpack.c.l.b16 %v2848
        %v2879 = vunpack.c.l.b16 %v2849
        %v2880 = vunpack.c.l.b16 %v2850
        %v2881 = vunpack.c.l.b16 %v2851
        %v2882 = vunpack.c.l.b16 %v2852
        %v2883 = vunpack.c.l.b16 %v2853
        %v2884 = vunpack.c.l.b16 %v2854
        %v2885 = vunpack.c.l.b16 %v2855
        %v2886 = vunpack.c.l.b16 %v2856
        %v2887 = vunpack.c.l.b16 %v2857
        %v2888 = vunpack.c.l.b16 %v2858
        %v2889 = vunpack.c.l.b16 %v2859
        %v2890 = vunpack.c.l.b16 %v2860
        %v2891 = vunpack.c.l.b16 %v2861
        %v2892 = vunpack.c.l.b16 %v2862
        %v2893 = vunpack.c.l.b16 %v2863
        %v2894 = vunpack.c.l.b16 %v2864
        %v2895 = vunpack.c.l.b16 %v2865
        %v2896 = vunpack.c.l.b16 %v2866
        %v2897 = vpack.c.b16 %v2868, %v2867
        %v2898 = vpack.c.b16 %v2870, %v2869
        %v2899 = vpack.c.b16 %v2872, %v2871
        %v2900 = vpack.c.b16 %v2874, %v2873
        %v2901 = vpack.c.b16 %v2876, %v2875
        %v2902 = vpack.c.b16 %v2878, %v2877
        %v2903 = vpack.c.b16 %v2880, %v2879
        %v2904 = vpack.c.b16 %v2882, %v2881
        %v2905 = vpack.c.b16 %v2884, %v2883
        %v2906 = vpack.c.b16 %v2886, %v2885
        %v2907 = vpack.c.b16 %v2888, %v2887
        %v2908 = vpack.c.b16 %v2890, %v2889
        %v2909 = vpack.c.b16 %v2892, %v2891
        %v2910 = vpack.c.b16 %v2894, %v2893
        %v2911 = vpack.c.b16 %v2896, %v2895
        %vm2912 = vcmp.ne.s16.totalorder %v2897, 0
        %vm2913 = vcmp.ne.s16.totalorder %v2898, 0
        %vm2914 = vcmp.ne.s16.totalorder %v2899, 0
        %vm2915 = vcmp.ne.s16.totalorder %v2900, 0
        %vm2916 = vcmp.ne.s16.totalorder %v2901, 0
        %vm2917 = vcmp.ne.s16.totalorder %v2902, 0
        %vm2918 = vcmp.ne.s16.totalorder %v2903, 0
        %vm2919 = vcmp.ne.s16.totalorder %v2904, 0
        %vm2920 = vcmp.ne.s16.totalorder %v2905, 0
        %vm2921 = vcmp.ne.s16.totalorder %v2906, 0
        %vm2922 = vcmp.ne.s16.totalorder %v2907, 0
        %vm2923 = vcmp.ne.s16.totalorder %v2908, 0
        %vm2924 = vcmp.ne.s16.totalorder %v2909, 0
        %vm2925 = vcmp.ne.s16.totalorder %v2910, 0
        %vm2926 = vcmp.ne.s16.totalorder %v2911, 0
        %v2927 = vsel %vm2912, %v1553, 0
        %v2928 = vsel %vm2913, %v1556, 0
        %v2929 = vsel %vm2914, %v1559, 0
        %v2930 = vsel %vm2915, %v1562, 0
        %v2931 = vsel %vm2916, %v1565, 0
        %v2932 = vsel %vm2917, %v1568, 0
        %v2933 = vsel %vm2918, %v1571, 0
        %v2934 = vsel %vm2919, %v1574, 0
        %v2935 = vsel %vm2920, %v1577, 0
        %v2936 = vsel %vm2921, %v1580, 0
        %v2937 = vsel %vm2922, %v1583, 0
        %v2938 = vsel %vm2923, %v1586, 0
        %v2939 = vsel %vm2924, %v1589, 0
        %v2940 = vsel %vm2925, %v1595, 0
        %v2941 = vsel %vm2926, %v2071, 0
        %2958 = vrot.lane.b32.xlu0 0, 4
        %v2959 = vpop.permute.xlu0 %2958
        %2960 = vrot.lane.b32.xlu0 %v1531, 4
        %v2961 = vpop.permute.xlu0 %2960
        %2962 = vrot.lane.b32.xlu0 %v1532, 4
        %v2963 = vpop.permute.xlu0 %2962
        %2964 = vrot.lane.b32.xlu0 %v1533, 4
        %v2965 = vpop.permute.xlu0 %2964
        %2966 = vrot.lane.b32.xlu0 %v1534, 4
        %v2967 = vpop.permute.xlu0 %2966
        %2968 = vrot.lane.b32.xlu0 %v1535, 4
        %v2969 = vpop.permute.xlu0 %2968
        %2970 = vrot.lane.b32.xlu0 %v1536, 4
        %v2971 = vpop.permute.xlu0 %2970
        %2972 = vrot.lane.b32.xlu0 %v1537, 4
        %v2973 = vpop.permute.xlu0 %2972
        %2974 = vrot.lane.b32.xlu0 %v1538, 4
        %v2975 = vpop.permute.xlu0 %2974
        %2976 = vrot.lane.b32.xlu0 %v1539, 4
        %v2977 = vpop.permute.xlu0 %2976
        %2978 = vrot.lane.b32.xlu0 %v1540, 4
        %v2979 = vpop.permute.xlu0 %2978
        %2980 = vrot.lane.b32.xlu0 %v1541, 4
        %v2981 = vpop.permute.xlu0 %2980
        %2982 = vrot.lane.b32.xlu0 %v1542, 4
        %v2983 = vpop.permute.xlu0 %2982
        %2984 = vrot.lane.b32.xlu0 %v1543, 4
        %v2985 = vpop.permute.xlu0 %2984
        %2986 = vrot.lane.b32.xlu0 %v1544, 4
        %v2987 = vpop.permute.xlu0 %2986
        %2988 = vrot.lane.b32.xlu0 %v1545, 4
        %v2989 = vpop.permute.xlu0 %2988
        %3006 = vrot.lane.b32.xlu0 %v1839, 8
        %v3007 = vpop.permute.xlu0 %3006
        %3008 = vrot.lane.b32.xlu0 %v1840, 8
        %v3009 = vpop.permute.xlu0 %3008
        %3010 = vrot.lane.b32.xlu0 %v1841, 8
        %v3011 = vpop.permute.xlu0 %3010
        %3012 = vrot.lane.b32.xlu0 %v1842, 8
        %v3013 = vpop.permute.xlu0 %3012
        %3014 = vrot.lane.b32.xlu0 %v1843, 8
        %v3015 = vpop.permute.xlu0 %3014
        %3016 = vrot.lane.b32.xlu0 %v1844, 8
        %v3017 = vpop.permute.xlu0 %3016
        %3018 = vrot.lane.b32.xlu0 %v1845, 8
        %v3019 = vpop.permute.xlu0 %3018
        %3020 = vrot.lane.b32.xlu0 %v1846, 8
        %v3021 = vpop.permute.xlu0 %3020
        %3022 = vrot.lane.b32.xlu0 %v1847, 8
        %v3023 = vpop.permute.xlu0 %3022
        %3024 = vrot.lane.b32.xlu0 %v1848, 8
        %v3025 = vpop.permute.xlu0 %3024
        %3026 = vrot.lane.b32.xlu0 %v1849, 8
        %v3027 = vpop.permute.xlu0 %3026
        %3028 = vrot.lane.b32.xlu0 %v1850, 8
        %v3029 = vpop.permute.xlu0 %3028
        %3030 = vrot.lane.b32.xlu0 %v1851, 8
        %v3031 = vpop.permute.xlu0 %3030
        %3032 = vrot.lane.b32.xlu0 %v1852, 8
        %v3033 = vpop.permute.xlu0 %3032
        %3034 = vrot.lane.b32.xlu0 %v1853, 8
        %v3035 = vpop.permute.xlu0 %3034
        %3036 = vrot.lane.b32.xlu0 %v1854, 8
        %v3037 = vpop.permute.xlu0 %3036
        %3054 = vrot.lane.b32.xlu0 %v2053, 12
        %v3055 = vpop.permute.xlu0 %3054
        %3056 = vrot.lane.b32.xlu0 %v2054, 12
        %v3057 = vpop.permute.xlu0 %3056
        %3058 = vrot.lane.b32.xlu0 %v2055, 12
        %v3059 = vpop.permute.xlu0 %3058
        %3060 = vrot.lane.b32.xlu0 %v2056, 12
        %v3061 = vpop.permute.xlu0 %3060
        %3062 = vrot.lane.b32.xlu0 %v2057, 12
        %v3063 = vpop.permute.xlu0 %3062
        %3064 = vrot.lane.b32.xlu0 %v2058, 12
        %v3065 = vpop.permute.xlu0 %3064
        %3066 = vrot.lane.b32.xlu0 %v2059, 12
        %v3067 = vpop.permute.xlu0 %3066
        %3068 = vrot.lane.b32.xlu0 %v2060, 12
        %v3069 = vpop.permute.xlu0 %3068
        %3070 = vrot.lane.b32.xlu0 %v2061, 12
        %v3071 = vpop.permute.xlu0 %3070
        %3072 = vrot.lane.b32.xlu0 %v2062, 12
        %v3073 = vpop.permute.xlu0 %3072
        %3074 = vrot.lane.b32.xlu0 %v2063, 12
        %v3075 = vpop.permute.xlu0 %3074
        %3076 = vrot.lane.b32.xlu0 %v2064, 12
        %v3077 = vpop.permute.xlu0 %3076
        %3078 = vrot.lane.b32.xlu0 %v2065, 12
        %v3079 = vpop.permute.xlu0 %3078
        %3080 = vrot.lane.b32.xlu0 %v2066, 12
        %v3081 = vpop.permute.xlu0 %3080
        %3082 = vrot.lane.b32.xlu0 %v2067, 12
        %v3083 = vpop.permute.xlu0 %3082
        %3084 = vrot.lane.b32.xlu0 %v2068, 12
        %v3085 = vpop.permute.xlu0 %3084
        %3102 = vrot.lane.b32.xlu0 %v427, 16
        %v3103 = vpop.permute.xlu0 %3102
        %3104 = vrot.lane.b32.xlu0 %v428, 16
        %v3105 = vpop.permute.xlu0 %3104
        %3106 = vrot.lane.b32.xlu0 %v429, 16
        %v3107 = vpop.permute.xlu0 %3106
        %3108 = vrot.lane.b32.xlu0 %v430, 16
        %v3109 = vpop.permute.xlu0 %3108
        %3110 = vrot.lane.b32.xlu0 %v431, 16
        %v3111 = vpop.permute.xlu0 %3110
        %3112 = vrot.lane.b32.xlu0 %v432, 16
        %v3113 = vpop.permute.xlu0 %3112
        %3114 = vrot.lane.b32.xlu0 %v433, 16
        %v3115 = vpop.permute.xlu0 %3114
        %3116 = vrot.lane.b32.xlu0 %v434, 16
        %v3117 = vpop.permute.xlu0 %3116
        %3118 = vrot.lane.b32.xlu0 %v435, 16
        %v3119 = vpop.permute.xlu0 %3118
        %3120 = vrot.lane.b32.xlu0 %v436, 16
        %v3121 = vpop.permute.xlu0 %3120
        %3122 = vrot.lane.b32.xlu0 %v437, 16
        %v3123 = vpop.permute.xlu0 %3122
        %3124 = vrot.lane.b32.xlu0 %v438, 16
        %v3125 = vpop.permute.xlu0 %3124
        %3126 = vrot.lane.b32.xlu0 %v439, 16
        %v3127 = vpop.permute.xlu0 %3126
        %3128 = vrot.lane.b32.xlu0 %v440, 16
        %v3129 = vpop.permute.xlu0 %3128
        %3130 = vrot.lane.b32.xlu0 %v441, 16
        %v3131 = vpop.permute.xlu0 %3130
        %3132 = vrot.lane.b32.xlu0 %v442, 16
        %v3133 = vpop.permute.xlu0 %3132
        %3150 = vrot.lane.b32.xlu0 %v2264, 20
        %v3151 = vpop.permute.xlu0 %3150
        %3152 = vrot.lane.b32.xlu0 %v2265, 20
        %v3153 = vpop.permute.xlu0 %3152
        %3154 = vrot.lane.b32.xlu0 %v2266, 20
        %v3155 = vpop.permute.xlu0 %3154
        %3156 = vrot.lane.b32.xlu0 %v2267, 20
        %v3157 = vpop.permute.xlu0 %3156
        %3158 = vrot.lane.b32.xlu0 %v2268, 20
        %v3159 = vpop.permute.xlu0 %3158
        %3160 = vrot.lane.b32.xlu0 %v2269, 20
        %v3161 = vpop.permute.xlu0 %3160
        %3162 = vrot.lane.b32.xlu0 %v2270, 20
        %v3163 = vpop.permute.xlu0 %3162
        %3164 = vrot.lane.b32.xlu0 %v2271, 20
        %v3165 = vpop.permute.xlu0 %3164
        %3166 = vrot.lane.b32.xlu0 %v2272, 20
        %v3167 = vpop.permute.xlu0 %3166
        %3168 = vrot.lane.b32.xlu0 %v2273, 20
        %v3169 = vpop.permute.xlu0 %3168
        %3170 = vrot.lane.b32.xlu0 %v2274, 20
        %v3171 = vpop.permute.xlu0 %3170
        %3172 = vrot.lane.b32.xlu0 %v2275, 20
        %v3173 = vpop.permute.xlu0 %3172
        %3174 = vrot.lane.b32.xlu0 %v2276, 20
        %v3175 = vpop.permute.xlu0 %3174
        %3176 = vrot.lane.b32.xlu0 %v2277, 20
        %v3177 = vpop.permute.xlu0 %3176
        %3178 = vrot.lane.b32.xlu0 %v2278, 20
        %v3179 = vpop.permute.xlu0 %3178
        %3180 = vrot.lane.b32.xlu0 %v2279, 20
        %v3181 = vpop.permute.xlu0 %3180
        %3198 = vrot.lane.b32.xlu0 %v2506, 24
        %v3199 = vpop.permute.xlu0 %3198
        %3200 = vrot.lane.b32.xlu0 %v2507, 24
        %v3201 = vpop.permute.xlu0 %3200
        %3202 = vrot.lane.b32.xlu0 %v2508, 24
        %v3203 = vpop.permute.xlu0 %3202
        %3204 = vrot.lane.b32.xlu0 %v2509, 24
        %v3205 = vpop.permute.xlu0 %3204
        %3206 = vrot.lane.b32.xlu0 %v2510, 24
        %v3207 = vpop.permute.xlu0 %3206
        %3208 = vrot.lane.b32.xlu0 %v2511, 24
        %v3209 = vpop.permute.xlu0 %3208
        %3210 = vrot.lane.b32.xlu0 %v2512, 24
        %v3211 = vpop.permute.xlu0 %3210
        %3212 = vrot.lane.b32.xlu0 %v2513, 24
        %v3213 = vpop.permute.xlu0 %3212
        %3214 = vrot.lane.b32.xlu0 %v2514, 24
        %v3215 = vpop.permute.xlu0 %3214
        %3216 = vrot.lane.b32.xlu0 %v2515, 24
        %v3217 = vpop.permute.xlu0 %3216
        %3218 = vrot.lane.b32.xlu0 %v2516, 24
        %v3219 = vpop.permute.xlu0 %3218
        %3220 = vrot.lane.b32.xlu0 %v2517, 24
        %v3221 = vpop.permute.xlu0 %3220
        %3222 = vrot.lane.b32.xlu0 %v2518, 24
        %v3223 = vpop.permute.xlu0 %3222
        %3224 = vrot.lane.b32.xlu0 %v2519, 24
        %v3225 = vpop.permute.xlu0 %3224
        %3226 = vrot.lane.b32.xlu0 %v2520, 24
        %v3227 = vpop.permute.xlu0 %3226
        %3228 = vrot.lane.b32.xlu0 %v2521, 24
        %v3229 = vpop.permute.xlu0 %3228
        %3245 = vrot.lane.b32.xlu0 %v2702, 28
        %v3246 = vpop.permute.xlu0 %3245
        %3247 = vrot.lane.b32.xlu0 %v2703, 28
        %v3248 = vpop.permute.xlu0 %3247
        %3249 = vrot.lane.b32.xlu0 %v2704, 28
        %v3250 = vpop.permute.xlu0 %3249
        %3251 = vrot.lane.b32.xlu0 %v2705, 28
        %v3252 = vpop.permute.xlu0 %3251
        %3253 = vrot.lane.b32.xlu0 %v2706, 28
        %v3254 = vpop.permute.xlu0 %3253
        %3255 = vrot.lane.b32.xlu0 %v2707, 28
        %v3256 = vpop.permute.xlu0 %3255
        %3257 = vrot.lane.b32.xlu0 %v2708, 28
        %v3258 = vpop.permute.xlu0 %3257
        %3259 = vrot.lane.b32.xlu0 %v2709, 28
        %v3260 = vpop.permute.xlu0 %3259
        %3261 = vrot.lane.b32.xlu0 %v2710, 28
        %v3262 = vpop.permute.xlu0 %3261
        %3263 = vrot.lane.b32.xlu0 %v2711, 28
        %v3264 = vpop.permute.xlu0 %3263
        %3265 = vrot.lane.b32.xlu0 %v2712, 28
        %v3266 = vpop.permute.xlu0 %3265
        %3267 = vrot.lane.b32.xlu0 %v2713, 28
        %v3268 = vpop.permute.xlu0 %3267
        %3269 = vrot.lane.b32.xlu0 %v2714, 28
        %v3270 = vpop.permute.xlu0 %3269
        %3271 = vrot.lane.b32.xlu0 %v2715, 28
        %v3272 = vpop.permute.xlu0 %3271
        %3273 = vrot.lane.b32.xlu0 %v2716, 28
        %v3274 = vpop.permute.xlu0 %3273
        %3275 = vrot.lane.b32.xlu0 0, 28
        %v3276 = vpop.permute.xlu0 %3275
        %3292 = vrot.lane.b32.xlu0 %v2927, 32
        %v3293 = vpop.permute.xlu0 %3292
        %3294 = vrot.lane.b32.xlu0 %v2928, 32
        %v3295 = vpop.permute.xlu0 %3294
        %3296 = vrot.lane.b32.xlu0 %v2929, 32
        %v3297 = vpop.permute.xlu0 %3296
        %3298 = vrot.lane.b32.xlu0 %v2930, 32
        %v3299 = vpop.permute.xlu0 %3298
        %3300 = vrot.lane.b32.xlu0 %v2931, 32
        %v3301 = vpop.permute.xlu0 %3300
        %3302 = vrot.lane.b32.xlu0 %v2932, 32
        %v3303 = vpop.permute.xlu0 %3302
        %3304 = vrot.lane.b32.xlu0 %v2933, 32
        %v3305 = vpop.permute.xlu0 %3304
        %3306 = vrot.lane.b32.xlu0 %v2934, 32
        %v3307 = vpop.permute.xlu0 %3306
        %3308 = vrot.lane.b32.xlu0 %v2935, 32
        %v3309 = vpop.permute.xlu0 %3308
        %3310 = vrot.lane.b32.xlu0 %v2936, 32
        %v3311 = vpop.permute.xlu0 %3310
        %3312 = vrot.lane.b32.xlu0 %v2937, 32
        %v3313 = vpop.permute.xlu0 %3312
        %3314 = vrot.lane.b32.xlu0 %v2938, 32
        %v3315 = vpop.permute.xlu0 %3314
        %3316 = vrot.lane.b32.xlu0 %v2939, 32
        %v3317 = vpop.permute.xlu0 %3316
        %3318 = vrot.lane.b32.xlu0 %v2940, 32
        %v3319 = vpop.permute.xlu0 %3318
        %3320 = vrot.lane.b32.xlu0 %v2941, 32
        %v3321 = vpop.permute.xlu0 %3320
        %3322 = vrot.lane.b32.xlu0 0, 32
        %v3323 = vpop.permute.xlu0 %3322
        %vm3324 = vcmask 31744
        %v3327 = vsel %vm3324, 0, %v2959
        %v3330 = vsel %vm3324, %v1336, %v2961
        %v3333 = vsel %vm3324, %v1337, %v2963
        %v3336 = vsel %vm3324, %v1338, %v2965
        %v3339 = vsel %vm3324, %v1339, %v2967
        %v3342 = vsel %vm3324, %v1340, %v2969
        %v3345 = vsel %vm3324, %v1341, %v2971
        %v3348 = vsel %vm3324, %v1342, %v2973
        %v3351 = vsel %vm3324, %v1343, %v2975
        %v3354 = vsel %vm3324, %v1344, %v2977
        %v3357 = vsel %vm3324, %v1345, %v2979
        %v3360 = vsel %vm3324, %v1346, %v2981
        %v3363 = vsel %vm3324, %v1347, %v2983
        %v3366 = vsel %vm3324, %v1348, %v2985
        %v3369 = vsel %vm3324, %v1349, %v2987
        %v3372 = vsel %vm3324, %v1350, %v2989
        %vm3373 = vcmask 64512
        %v3375 = vsel %vm3373, %v3327, %v3007
        %v3377 = vsel %vm3373, %v3330, %v3009
        %v3379 = vsel %vm3373, %v3333, %v3011
        %v3381 = vsel %vm3373, %v3336, %v3013
        %v3383 = vsel %vm3373, %v3339, %v3015
        %v3385 = vsel %vm3373, %v3342, %v3017
        %v3387 = vsel %vm3373, %v3345, %v3019
        %v3389 = vsel %vm3373, %v3348, %v3021
        %v3391 = vsel %vm3373, %v3351, %v3023
        %v3393 = vsel %vm3373, %v3354, %v3025
        %v3395 = vsel %vm3373, %v3357, %v3027
        %v3397 = vsel %vm3373, %v3360, %v3029
        %v3399 = vsel %vm3373, %v3363, %v3031
        %v3401 = vsel %vm3373, %v3366, %v3033
        %v3403 = vsel %vm3373, %v3369, %v3035
        %v3405 = vsel %vm3373, %v3372, %v3037
        %vm3406 = vcmask 97280
        %v3408 = vsel %vm3406, %v3375, %v3055
        %v3410 = vsel %vm3406, %v3377, %v3057
        %v3412 = vsel %vm3406, %v3379, %v3059
        %v3414 = vsel %vm3406, %v3381, %v3061
        %v3416 = vsel %vm3406, %v3383, %v3063
        %v3418 = vsel %vm3406, %v3385, %v3065
        %v3420 = vsel %vm3406, %v3387, %v3067
        %v3422 = vsel %vm3406, %v3389, %v3069
        %v3424 = vsel %vm3406, %v3391, %v3071
        %v3426 = vsel %vm3406, %v3393, %v3073
        %v3428 = vsel %vm3406, %v3395, %v3075
        %v3430 = vsel %vm3406, %v3397, %v3077
        %v3432 = vsel %vm3406, %v3399, %v3079
        %v3434 = vsel %vm3406, %v3401, %v3081
        %v3436 = vsel %vm3406, %v3403, %v3083
        %v3438 = vsel %vm3406, %v3405, %v3085
        %vm3439 = vcmask 130048
        %v3441 = vsel %vm3439, %v3408, %v3103
        %v3443 = vsel %vm3439, %v3410, %v3105
        %v3445 = vsel %vm3439, %v3412, %v3107
        %v3447 = vsel %vm3439, %v3414, %v3109
        %v3449 = vsel %vm3439, %v3416, %v3111
        %v3451 = vsel %vm3439, %v3418, %v3113
        %v3453 = vsel %vm3439, %v3420, %v3115
        %v3455 = vsel %vm3439, %v3422, %v3117
        %v3457 = vsel %vm3439, %v3424, %v3119
        %v3459 = vsel %vm3439, %v3426, %v3121
        %v3461 = vsel %vm3439, %v3428, %v3123
        %v3463 = vsel %vm3439, %v3430, %v3125
        %v3465 = vsel %vm3439, %v3432, %v3127
        %v3467 = vsel %vm3439, %v3434, %v3129
        %v3469 = vsel %vm3439, %v3436, %v3131
        %v3471 = vsel %vm3439, %v3438, %v3133
        %vm3472 = vcmask 162816
        %v3474 = vsel %vm3472, %v3441, %v3151
        %v3476 = vsel %vm3472, %v3443, %v3153
        %v3478 = vsel %vm3472, %v3445, %v3155
        %v3480 = vsel %vm3472, %v3447, %v3157
        %v3482 = vsel %vm3472, %v3449, %v3159
        %v3484 = vsel %vm3472, %v3451, %v3161
        %v3486 = vsel %vm3472, %v3453, %v3163
        %v3488 = vsel %vm3472, %v3455, %v3165
        %v3490 = vsel %vm3472, %v3457, %v3167
        %v3492 = vsel %vm3472, %v3459, %v3169
        %v3494 = vsel %vm3472, %v3461, %v3171
        %v3496 = vsel %vm3472, %v3463, %v3173
        %v3498 = vsel %vm3472, %v3465, %v3175
        %v3500 = vsel %vm3472, %v3467, %v3177
        %v3502 = vsel %vm3472, %v3469, %v3179
        %v3504 = vsel %vm3472, %v3471, %v3181
        %vm3505 = vcmask 195584
        %v3507 = vsel %vm3505, %v3474, %v3199
        %v3509 = vsel %vm3505, %v3476, %v3201
        %v3511 = vsel %vm3505, %v3478, %v3203
        %v3513 = vsel %vm3505, %v3480, %v3205
        %v3515 = vsel %vm3505, %v3482, %v3207
        %v3517 = vsel %vm3505, %v3484, %v3209
        %v3519 = vsel %vm3505, %v3486, %v3211
        %v3521 = vsel %vm3505, %v3488, %v3213
        %v3523 = vsel %vm3505, %v3490, %v3215
        %v3525 = vsel %vm3505, %v3492, %v3217
        %v3527 = vsel %vm3505, %v3494, %v3219
        %v3529 = vsel %vm3505, %v3496, %v3221
        %v3531 = vsel %vm3505, %v3498, %v3223
        %v3533 = vsel %vm3505, %v3500, %v3225
        %v3535 = vsel %vm3505, %v3502, %v3227
        %v3537 = vsel %vm3505, %v3504, %v3229
        %vm3538 = vcmask 228352
        %v3540 = vsel %vm3538, %v3507, %v3246
        %v3542 = vsel %vm3538, %v3509, %v3248
        %v3544 = vsel %vm3538, %v3511, %v3250
        %v3546 = vsel %vm3538, %v3513, %v3252
        %v3548 = vsel %vm3538, %v3515, %v3254
        %v3550 = vsel %vm3538, %v3517, %v3256
        %v3552 = vsel %vm3538, %v3519, %v3258
        %v3554 = vsel %vm3538, %v3521, %v3260
        %v3556 = vsel %vm3538, %v3523, %v3262
        %v3558 = vsel %vm3538, %v3525, %v3264
        %v3560 = vsel %vm3538, %v3527, %v3266
        %v3562 = vsel %vm3538, %v3529, %v3268
        %v3564 = vsel %vm3538, %v3531, %v3270
        %v3566 = vsel %vm3538, %v3533, %v3272
        %v3568 = vsel %vm3538, %v3535, %v3274
        %v3570 = vsel %vm3538, %v3537, %v3276
        %vm3571 = vcmask 261120
        %v3573 = vsel %vm3571, %v3540, %v3293
        %v3575 = vsel %vm3571, %v3542, %v3295
        %v3577 = vsel %vm3571, %v3544, %v3297
        %v3579 = vsel %vm3571, %v3546, %v3299
        %v3581 = vsel %vm3571, %v3548, %v3301
        %v3583 = vsel %vm3571, %v3550, %v3303
        %v3585 = vsel %vm3571, %v3552, %v3305
        %v3587 = vsel %vm3571, %v3554, %v3307
        %v3589 = vsel %vm3571, %v3556, %v3309
        %v3591 = vsel %vm3571, %v3558, %v3311
        %v3593 = vsel %vm3571, %v3560, %v3313
        %v3595 = vsel %vm3571, %v3562, %v3315
        %v3597 = vsel %vm3571, %v3564, %v3317
        %v3599 = vsel %vm3571, %v3566, %v3319
        %v3601 = vsel %vm3571, %v3568, %v3321
        %v3603 = vsel %vm3571, %v3570, %v3323
        %v3604 = vld [vmem:[#allocation7] sm:$0xf]
        %v3605 = vld [vmem:[#allocation7 + $0x4] sm:$0xf]
        %v3606 = vld [vmem:[#allocation7 + $0x8] sm:$0xf]
        %v3607 = vld [vmem:[#allocation7 + $0xc] sm:$0xf]
        %v3608 = vld [vmem:[#allocation7 + $0x10] sm:$0x3]
        %v3614 = vunpack.c.l.b16 %v3604
        %v3615 = vunpack.c.l.b16 %v3605
        %v3616 = vunpack.c.l.b16 %v3606
        %v3617 = vunpack.c.l.b16 %v3607
        %v3618 = vunpack.c.l.b16 %v3608
        %v3619 = vpack.c.b16 %v3615, %v3614
        %v3620 = vpack.c.b16 %v3617, %v3616
        %v3621 = vpack.c.b16 %v3618, %v3618
        %vm3624 = vcmask 293888
        %v3625 = vsel %vm3624, %v3573, 0
        %v3627 = vsel %vm3624, %v3575, 0
        %v3629 = vsel %vm3624, %v3577, 0
        %v3631 = vsel %vm3624, %v3579, 0
        %v3633 = vsel %vm3624, %v3581, 0
        %v3635 = vsel %vm3624, %v3583, 0
        %v3637 = vsel %vm3624, %v3585, 0
        %v3639 = vsel %vm3624, %v3587, 0
        %v3641 = vsel %vm3624, %v3589, 0
        %v3643 = vsel %vm3624, %v3591, 0
        %v3645 = vsel %vm3624, %v3593, 0
        %v3647 = vsel %vm3624, %v3595, 0
        %v3649 = vsel %vm3624, %v3597, 0
        %v3651 = vsel %vm3624, %v3599, 0
        %v3653 = vsel %vm3624, %v3601, 0
        %v3655 = vsel %vm3624, %v3603, 0
        %vm3657 = vcmask 1041408
        %v3659 = vsel %vm3657, %v3621, 0
        %3661 = vmatprep.subr.bf16.mxu0 0
        %3662 = vmatpush1.bf16.msra.mxu0 %v3619
        %3663 = vmatprep.subr.bf16.mxu0 0
        %3664 = vmatpush1.bf16.msra.mxu0 %v3620
        %3665 = vmatprep.subr.bf16.mxu0 0
        %3666 = vmatpush1.bf16.msra.mxu0 %v3659
        %3667 = vmatprep.subr.bf16.mxu0 0
        %3668 = vmatpush1.bf16.msra.mxu0 0
        %3669 = vmatprep.subr.bf16.mxu0 0
        %3670 = vmatpush1.bf16.msra.mxu0 0
        %3671 = vmatprep.subr.bf16.mxu0 0
        %3672 = vmatpush1.bf16.msra.mxu0 0
        %3673 = vmatprep.subr.bf16.mxu0 0
        %3674 = vmatpush1.bf16.msra.mxu0 0
        %3675 = vmatprep.subr.bf16.mxu0 0
        %3676 = vmatpush1.bf16.msra.mxu0 0
        %3677 = vmatprep.subr.bf16.mxu0 0
        %3678 = vmatpush1.bf16.msra.mxu0 0
        %3679 = vmatprep.subr.bf16.mxu0 0
        %3680 = vmatpush1.bf16.msra.mxu0 0
        %3681 = vmatprep.subr.bf16.mxu0 0
        %3682 = vmatpush1.bf16.msra.mxu0 0
        %3683 = vmatprep.subr.bf16.mxu0 0
        %3684 = vmatpush1.bf16.msra.mxu0 0
        %3685 = vmatprep.subr.bf16.mxu0 0
        %3686 = vmatpush1.bf16.msra.mxu0 0
        %3687 = vmatprep.subr.bf16.mxu0 0
        %3688 = vmatpush1.bf16.msra.mxu0 0
        %3689 = vmatprep.subr.bf16.mxu0 0
        %3690 = vmatpush1.bf16.msra.mxu0 0
        %3691 = vmatprep.subr.bf16.mxu0 0
        %3692 = vmatpush1.bf16.msra.mxu0 0
        %3693 = vmatprep.mubr.bf16.mxu0 0
        %3694 = vmatmul.mubr.bf16.gmra.mrb[0].mxu0 %v3625
        %v3695 = vpop.f32.mrb[0].mxu0
        %v3696 = vadd.f32 0.0, %v3695
        %v3697 = vpop.f32.mrb[0].mxu0
        %v3698 = vpop.f32.mrb[0].mxu0
        %v3699 = vadd.f32 0.0, %v3698
        %v3700 = vpop.f32.mrb[0].mxu0
        %3701 = vmatprep.mubr.bf16.mxu0 0
        %3702 = vmatmul.mubr.bf16.gmra.mrb[0].mxu0 %v3627
        %v3703 = vpop.f32.mrb[0].mxu0
        %v3704 = vadd.f32 0.0, %v3703
        %v3705 = vpop.f32.mrb[0].mxu0
        %v3706 = vpop.f32.mrb[0].mxu0
        %v3707 = vadd.f32 0.0, %v3706
        %v3708 = vpop.f32.mrb[0].mxu0
        %3709 = vmatprep.mubr.bf16.mxu0 0
        %3710 = vmatmul.mubr.bf16.gmra.mrb[0].mxu0 %v3629
        %v3711 = vpop.f32.mrb[0].mxu0
        %v3712 = vadd.f32 0.0, %v3711
        %v3713 = vpop.f32.mrb[0].mxu0
        %v3714 = vpop.f32.mrb[0].mxu0
        %v3715 = vadd.f32 0.0, %v3714
        %v3716 = vpop.f32.mrb[0].mxu0
        %3717 = vmatprep.mubr.bf16.mxu0 0
        %3718 = vmatmul.mubr.bf16.gmra.mrb[0].mxu0 %v3631
        %v3719 = vpop.f32.mrb[0].mxu0
        %v3720 = vadd.f32 0.0, %v3719
        %v3721 = vpop.f32.mrb[0].mxu0
        %v3722 = vpop.f32.mrb[0].mxu0
        %v3723 = vadd.f32 0.0, %v3722
        %v3724 = vpop.f32.mrb[0].mxu0
        %3725 = vmatprep.mubr.bf16.mxu0 0
        %3726 = vmatmul.mubr.bf16.gmra.mrb[0].mxu0 %v3633
        %v3727 = vpop.f32.mrb[0].mxu0
        %v3728 = vadd.f32 0.0, %v3727
        %v3729 = vpop.f32.mrb[0].mxu0
        %v3730 = vpop.f32.mrb[0].mxu0
        %v3731 = vadd.f32 0.0, %v3730
        %v3732 = vpop.f32.mrb[0].mxu0
        %3733 = vmatprep.mubr.bf16.mxu0 0
        %3734 = vmatmul.mubr.bf16.gmra.mrb[0].mxu0 %v3635
        %v3735 = vpop.f32.mrb[0].mxu0
        %v3736 = vadd.f32 0.0, %v3735
        %v3737 = vpop.f32.mrb[0].mxu0
        %v3738 = vpop.f32.mrb[0].mxu0
        %v3739 = vadd.f32 0.0, %v3738
        %v3740 = vpop.f32.mrb[0].mxu0
        %3741 = vmatprep.mubr.bf16.mxu0 0
        %3742 = vmatmul.mubr.bf16.gmra.mrb[0].mxu0 %v3637
        %v3743 = vpop.f32.mrb[0].mxu0
        %v3744 = vadd.f32 0.0, %v3743
        %v3745 = vpop.f32.mrb[0].mxu0
        %v3746 = vpop.f32.mrb[0].mxu0
        %v3747 = vadd.f32 0.0, %v3746
        %v3748 = vpop.f32.mrb[0].mxu0
        %3749 = vmatprep.mubr.bf16.mxu0 0
        %3750 = vmatmul.mubr.bf16.gmra.mrb[0].mxu0 %v3639
        %v3751 = vpop.f32.mrb[0].mxu0
        %v3752 = vadd.f32 0.0, %v3751
        %v3753 = vpop.f32.mrb[0].mxu0
        %v3754 = vpop.f32.mrb[0].mxu0
        %v3755 = vadd.f32 0.0, %v3754
        %v3756 = vpop.f32.mrb[0].mxu0
        %3757 = vmatprep.mubr.bf16.mxu0 0
        %3758 = vmatmul.mubr.bf16.gmra.mrb[0].mxu0 %v3641
        %v3759 = vpop.f32.mrb[0].mxu0
        %v3760 = vadd.f32 0.0, %v3759
        %v3761 = vpop.f32.mrb[0].mxu0
        %v3762 = vpop.f32.mrb[0].mxu0
        %v3763 = vadd.f32 0.0, %v3762
        %v3764 = vpop.f32.mrb[0].mxu0
        %3765 = vmatprep.mubr.bf16.mxu0 0
        %3766 = vmatmul.mubr.bf16.gmra.mrb[0].mxu0 %v3643
        %v3767 = vpop.f32.mrb[0].mxu0
        %v3768 = vadd.f32 0.0, %v3767
        %v3769 = vpop.f32.mrb[0].mxu0
        %v3770 = vpop.f32.mrb[0].mxu0
        %v3771 = vadd.f32 0.0, %v3770
        %v3772 = vpop.f32.mrb[0].mxu0
        %3773 = vmatprep.mubr.bf16.mxu0 0
        %3774 = vmatmul.mubr.bf16.gmra.mrb[0].mxu0 %v3645
        %v3775 = vpop.f32.mrb[0].mxu0
        %v3776 = vadd.f32 0.0, %v3775
        %v3777 = vpop.f32.mrb[0].mxu0
        %v3778 = vpop.f32.mrb[0].mxu0
        %v3779 = vadd.f32 0.0, %v3778
        %v3780 = vpop.f32.mrb[0].mxu0
        %3781 = vmatprep.mubr.bf16.mxu0 0
        %3782 = vmatmul.mubr.bf16.gmra.mrb[0].mxu0 %v3647
        %v3783 = vpop.f32.mrb[0].mxu0
        %v3784 = vadd.f32 0.0, %v3783
        %v3785 = vpop.f32.mrb[0].mxu0
        %v3786 = vpop.f32.mrb[0].mxu0
        %v3787 = vadd.f32 0.0, %v3786
        %v3788 = vpop.f32.mrb[0].mxu0
        %3789 = vmatprep.mubr.bf16.mxu0 0
        %3790 = vmatmul.mubr.bf16.gmra.mrb[0].mxu0 %v3649
        %v3791 = vpop.f32.mrb[0].mxu0
        %v3792 = vadd.f32 0.0, %v3791
        %v3793 = vpop.f32.mrb[0].mxu0
        %v3794 = vpop.f32.mrb[0].mxu0
        %v3795 = vadd.f32 0.0, %v3794
        %v3796 = vpop.f32.mrb[0].mxu0
        %3797 = vmatprep.mubr.bf16.mxu0 0
        %3798 = vmatmul.mubr.bf16.gmra.mrb[0].mxu0 %v3651
        %v3799 = vpop.f32.mrb[0].mxu0
        %v3800 = vadd.f32 0.0, %v3799
        %v3801 = vpop.f32.mrb[0].mxu0
        %v3802 = vpop.f32.mrb[0].mxu0
        %v3803 = vadd.f32 0.0, %v3802
        %v3804 = vpop.f32.mrb[0].mxu0
        %3805 = vmatprep.mubr.bf16.mxu0 0
        %3806 = vmatmul.mubr.bf16.gmra.mrb[0].mxu0 %v3653
        %v3807 = vpop.f32.mrb[0].mxu0
        %v3808 = vadd.f32 0.0, %v3807
        %v3809 = vpop.f32.mrb[0].mxu0
        %v3810 = vpop.f32.mrb[0].mxu0
        %v3811 = vadd.f32 0.0, %v3810
        %v3812 = vpop.f32.mrb[0].mxu0
        %3813 = vmatprep.mubr.bf16.mxu0 0
        %3814 = vmatmul.mubr.bf16.gmra.mrb[0].mxu0 %v3655
        %v3815 = vpop.f32.mrb[0].mxu0
        %v3816 = vadd.f32 0.0, %v3815
        %v3817 = vpop.f32.mrb[0].mxu0
        %v3818 = vpop.f32.mrb[0].mxu0
        %v3819 = vadd.f32 0.0, %v3818
        %v3820 = vpop.f32.mrb[0].mxu0
        %3821 = vdwg.mxu0
        %v3822 = vpack.c.bf16 %v3699, %v3696
        %v3823 = vpack.c.bf16 %v3707, %v3704
        %v3824 = vpack.c.bf16 %v3715, %v3712
        %v3825 = vpack.c.bf16 %v3723, %v3720
        %v3826 = vpack.c.bf16 %v3731, %v3728
        %v3827 = vpack.c.bf16 %v3739, %v3736
        %v3828 = vpack.c.bf16 %v3747, %v3744
        %v3829 = vpack.c.bf16 %v3755, %v3752
        %v3830 = vpack.c.bf16 %v3763, %v3760
        %v3831 = vpack.c.bf16 %v3771, %v3768
        %v3832 = vpack.c.bf16 %v3779, %v3776
        %v3833 = vpack.c.bf16 %v3787, %v3784
        %v3834 = vpack.c.bf16 %v3795, %v3792
        %v3835 = vpack.c.bf16 %v3803, %v3800
        %v3836 = vpack.c.bf16 %v3811, %v3808
        %v3837 = vpack.c.bf16 %v3819, %v3816
        %v3854 = vunpack.c.l.b16 %v3822
        %v3855 = vunpack.c.h.b16 %v3822
        %v3856 = vunpack.c.l.b16 %v3823
        %v3857 = vunpack.c.h.b16 %v3823
        %v3858 = vunpack.c.l.b16 %v3824
        %v3859 = vunpack.c.h.b16 %v3824
        %v3860 = vunpack.c.l.b16 %v3825
        %v3861 = vunpack.c.h.b16 %v3825
        %v3862 = vunpack.c.l.b16 %v3826
        %v3863 = vunpack.c.h.b16 %v3826
        %v3864 = vunpack.c.l.b16 %v3827
        %v3865 = vunpack.c.h.b16 %v3827
        %v3866 = vunpack.c.l.b16 %v3828
        %v3867 = vunpack.c.h.b16 %v3828
        %v3868 = vunpack.c.l.b16 %v3829
        %v3869 = vunpack.c.h.b16 %v3829
        %v3870 = vunpack.c.l.b16 %v3830
        %v3871 = vunpack.c.h.b16 %v3830
        %v3872 = vunpack.c.l.b16 %v3831
        %v3873 = vunpack.c.h.b16 %v3831
        %v3874 = vunpack.c.l.b16 %v3832
        %v3875 = vunpack.c.h.b16 %v3832
        %v3876 = vunpack.c.l.b16 %v3833
        %v3877 = vunpack.c.h.b16 %v3833
        %v3878 = vunpack.c.l.b16 %v3834
        %v3879 = vunpack.c.h.b16 %v3834
        %v3880 = vunpack.c.l.b16 %v3835
        %v3881 = vunpack.c.h.b16 %v3835
        %v3882 = vunpack.c.l.b16 %v3836
        %v3883 = vunpack.c.h.b16 %v3836
        %v3884 = vunpack.c.l.b16 %v3837
        %v3885 = vunpack.c.h.b16 %v3837
        %v3886 = vpack.c.b16 %v3854, %v3854
        %v3887 = vpack.c.b16 %v3855, %v3855
        %v3888 = vpack.c.b16 %v3856, %v3856
        %v3889 = vpack.c.b16 %v3857, %v3857
        %v3890 = vpack.c.b16 %v3858, %v3858
        %v3891 = vpack.c.b16 %v3859, %v3859
        %v3892 = vpack.c.b16 %v3860, %v3860
        %v3893 = vpack.c.b16 %v3861, %v3861
        %v3894 = vpack.c.b16 %v3862, %v3862
        %v3895 = vpack.c.b16 %v3863, %v3863
        %v3896 = vpack.c.b16 %v3864, %v3864
        %v3897 = vpack.c.b16 %v3865, %v3865
        %v3898 = vpack.c.b16 %v3866, %v3866
        %v3899 = vpack.c.b16 %v3867, %v3867
        %v3900 = vpack.c.b16 %v3868, %v3868
        %v3901 = vpack.c.b16 %v3869, %v3869
        %v3902 = vpack.c.b16 %v3870, %v3870
        %v3903 = vpack.c.b16 %v3871, %v3871
        %v3904 = vpack.c.b16 %v3872, %v3872
        %v3905 = vpack.c.b16 %v3873, %v3873
        %v3906 = vpack.c.b16 %v3874, %v3874
        %v3907 = vpack.c.b16 %v3875, %v3875
        %v3908 = vpack.c.b16 %v3876, %v3876
        %v3909 = vpack.c.b16 %v3877, %v3877
        %v3910 = vpack.c.b16 %v3878, %v3878
        %v3911 = vpack.c.b16 %v3879, %v3879
        %v3912 = vpack.c.b16 %v3880, %v3880
        %v3913 = vpack.c.b16 %v3881, %v3881
        %v3914 = vpack.c.b16 %v3882, %v3882
        %v3915 = vpack.c.b16 %v3883, %v3883
        %v3916 = vpack.c.b16 %v3884, %v3884
        %v3917 = vpack.c.b16 %v3885, %v3885
        %vm3950 = vcmask 27648
        %3951 = vst.msk [vmem:[%s246] sm:$0xf] %vm3950, %v3886
        %3952 = vst.msk [vmem:[%s246 + $0x4] sm:$0xf] %vm3950, %v3887
        %3953 = vst.msk [vmem:[%s246 + $0x8] sm:$0xf] %vm3950, %v3888
        %3954 = vst.msk [vmem:[%s246 + $0xc] sm:$0xf] %vm3950, %v3889
        %3955 = vst.msk [vmem:[%s246 + $0x10] sm:$0xf] %vm3950, %v3890
        %3956 = vst.msk [vmem:[%s246 + $0x14] sm:$0xf] %vm3950, %v3891
        %3957 = vst.msk [vmem:[%s246 + $0x18] sm:$0xf] %vm3950, %v3892
        %3958 = vst.msk [vmem:[%s246 + $0x1c] sm:$0xf] %vm3950, %v3893
        %3959 = vst.msk [vmem:[%s246 + $0x20] sm:$0xf] %vm3950, %v3894
        %3960 = vst.msk [vmem:[%s246 + $0x24] sm:$0xf] %vm3950, %v3895
        %3961 = vst.msk [vmem:[%s246 + $0x28] sm:$0xf] %vm3950, %v3896
        %3962 = vst.msk [vmem:[%s246 + $0x2c] sm:$0xf] %vm3950, %v3897
        %3963 = vst.msk [vmem:[%s246 + $0x30] sm:$0xf] %vm3950, %v3898
        %3964 = vst.msk [vmem:[%s246 + $0x34] sm:$0xf] %vm3950, %v3899
        %3965 = vst.msk [vmem:[%s246 + $0x38] sm:$0xf] %vm3950, %v3900
        %3966 = vst.msk [vmem:[%s246 + $0x3c] sm:$0xf] %vm3950, %v3901
        %3967 = vst.msk [vmem:[%s246 + $0x40] sm:$0xf] %vm3950, %v3902
        %3968 = vst.msk [vmem:[%s246 + $0x44] sm:$0xf] %vm3950, %v3903
        %3969 = vst.msk [vmem:[%s246 + $0x48] sm:$0xf] %vm3950, %v3904
        %3970 = vst.msk [vmem:[%s246 + $0x4c] sm:$0xf] %vm3950, %v3905
        %3971 = vst.msk [vmem:[%s246 + $0x50] sm:$0xf] %vm3950, %v3906
        %3972 = vst.msk [vmem:[%s246 + $0x54] sm:$0xf] %vm3950, %v3907
        %3973 = vst.msk [vmem:[%s246 + $0x58] sm:$0xf] %vm3950, %v3908
        %3974 = vst.msk [vmem:[%s246 + $0x5c] sm:$0xf] %vm3950, %v3909
        %3975 = vst.msk [vmem:[%s246 + $0x60] sm:$0xf] %vm3950, %v3910
        %3976 = vst.msk [vmem:[%s246 + $0x64] sm:$0xf] %vm3950, %v3911
        %3977 = vst.msk [vmem:[%s246 + $0x68] sm:$0xf] %vm3950, %v3912
        %3978 = vst.msk [vmem:[%s246 + $0x6c] sm:$0xf] %vm3950, %v3913
        %3979 = vst.msk [vmem:[%s246 + $0x70] sm:$0xf] %vm3950, %v3914
        %3980 = vst.msk [vmem:[%s246 + $0x74] sm:$0xf] %vm3950, %v3915
        %3981 = vst.msk [vmem:[%s246 + $0x78] sm:$0xf] %vm3950, %v3916
        %3982 = vst.msk [vmem:[%s246 + $0x7c] sm:$0xf] %vm3950, %v3917
        %v3983 = vunpack.c.l.bf16 %v3822
        %v3984 = vunpack.c.h.bf16 %v3822
        %v3985 = vunpack.c.l.bf16 %v3823
        %v3986 = vunpack.c.h.bf16 %v3823
        %v3987 = vunpack.c.l.bf16 %v3824
        %v3988 = vunpack.c.h.bf16 %v3824
        %v3989 = vunpack.c.l.bf16 %v3825
        %v3990 = vunpack.c.h.bf16 %v3825
        %v3991 = vunpack.c.l.bf16 %v3826
        %v3992 = vunpack.c.h.bf16 %v3826
        %v3993 = vunpack.c.l.bf16 %v3827
        %v3994 = vunpack.c.h.bf16 %v3827
        %v3995 = vunpack.c.l.bf16 %v3828
        %v3996 = vunpack.c.h.bf16 %v3828
        %v3997 = vunpack.c.l.bf16 %v3829
        %v3998 = vunpack.c.h.bf16 %v3829
        %v3999 = vunpack.c.l.bf16 %v3830
        %v4000 = vunpack.c.h.bf16 %v3830
        %v4001 = vunpack.c.l.bf16 %v3831
        %v4002 = vunpack.c.h.bf16 %v3831
        %v4003 = vunpack.c.l.bf16 %v3832
        %v4004 = vunpack.c.h.bf16 %v3832
        %v4005 = vunpack.c.l.bf16 %v3833
        %v4006 = vunpack.c.h.bf16 %v3833
        %v4007 = vunpack.c.l.bf16 %v3834
        %v4008 = vunpack.c.h.bf16 %v3834
        %v4009 = vunpack.c.l.bf16 %v3835
        %v4010 = vunpack.c.h.bf16 %v3835
        %v4011 = vunpack.c.l.bf16 %v3836
        %v4012 = vunpack.c.h.bf16 %v3836
        %v4013 = vunpack.c.l.bf16 %v3837
        %v4014 = vunpack.c.h.bf16 %v3837
        %v4015 = vsel %vm3324, %v3983, 0.0
        %v4016 = vsel %vm3324, %v3984, 0.0
        %v4017 = vadd.f32 %v4015, %v4016
        %v4018 = vsel %vm3324, %v3985, 0.0
        %v4019 = vadd.f32 %v4017, %v4018
        %v4020 = vsel %vm3324, %v3986, 0.0
        %v4021 = vadd.f32 %v4019, %v4020
        %v4022 = vsel %vm3324, %v3987, 0.0
        %v4023 = vadd.f32 %v4021, %v4022
        %v4024 = vsel %vm3324, %v3988, 0.0
        %v4025 = vadd.f32 %v4023, %v4024
        %v4026 = vsel %vm3324, %v3989, 0.0
        %v4027 = vadd.f32 %v4025, %v4026
        %v4028 = vsel %vm3324, %v3990, 0.0
        %v4029 = vadd.f32 %v4027, %v4028
        %v4030 = vsel %vm3324, %v3991, 0.0
        %v4031 = vadd.f32 %v4029, %v4030
        %v4032 = vsel %vm3324, %v3992, 0.0
        %v4033 = vadd.f32 %v4031, %v4032
        %v4034 = vsel %vm3324, %v3993, 0.0
        %v4035 = vadd.f32 %v4033, %v4034
        %v4036 = vsel %vm3324, %v3994, 0.0
        %v4037 = vadd.f32 %v4035, %v4036
        %v4038 = vsel %vm3324, %v3995, 0.0
        %v4039 = vadd.f32 %v4037, %v4038
        %v4040 = vsel %vm3324, %v3996, 0.0
        %v4041 = vadd.f32 %v4039, %v4040
        %v4042 = vsel %vm3324, %v3997, 0.0
        %v4043 = vadd.f32 %v4041, %v4042
        %v4044 = vsel %vm3324, %v3998, 0.0
        %v4045 = vadd.f32 %v4043, %v4044
        %v4046 = vsel %vm3324, %v3999, 0.0
        %v4047 = vadd.f32 %v4045, %v4046
        %v4048 = vsel %vm3324, %v4000, 0.0
        %v4049 = vadd.f32 %v4047, %v4048
        %v4050 = vsel %vm3324, %v4001, 0.0
        %v4051 = vadd.f32 %v4049, %v4050
        %v4052 = vsel %vm3324, %v4002, 0.0
        %v4053 = vadd.f32 %v4051, %v4052
        %v4054 = vsel %vm3324, %v4003, 0.0
        %v4055 = vadd.f32 %v4053, %v4054
        %v4056 = vsel %vm3324, %v4004, 0.0
        %v4057 = vadd.f32 %v4055, %v4056
        %v4058 = vsel %vm3324, %v4005, 0.0
        %v4059 = vadd.f32 %v4057, %v4058
        %v4060 = vsel %vm3324, %v4006, 0.0
        %v4061 = vadd.f32 %v4059, %v4060
        %v4062 = vsel %vm3324, %v4007, 0.0
        %v4063 = vadd.f32 %v4061, %v4062
        %v4064 = vsel %vm3324, %v4008, 0.0
        %v4065 = vadd.f32 %v4063, %v4064
        %v4066 = vsel %vm3324, %v4009, 0.0
        %v4067 = vadd.f32 %v4065, %v4066
        %v4068 = vsel %vm3324, %v4010, 0.0
        %v4069 = vadd.f32 %v4067, %v4068
        %v4070 = vsel %vm3324, %v4011, 0.0
        %v4071 = vadd.f32 %v4069, %v4070
        %v4072 = vsel %vm3324, %v4012, 0.0
        %v4073 = vadd.f32 %v4071, %v4072
        %v4074 = vsel %vm3324, %v4013, 0.0
        %v4075 = vadd.f32 %v4073, %v4074
        %v4076 = vsel %vm3324, %v4014, 0.0
        %v4077 = vadd.f32 %v4075, %v4076
        %v4078 = vrot.slane %v4077, 4
        %v4079 = vadd.f32 %v4077, %v4078
        %v4080 = vrot.slane %v4079, 2
        %v4081 = vadd.f32 %v4079, %v4080
        %v4082 = vrot.slane %v4081, 1
        %v4083 = vadd.f32 %v4081, %v4082
        %vm4084 = vcmask 24576
        %4085 = vst.msk [vmem:[%s253] sm:$0x1] %vm4084, %v4083
        %v4086 = vmul.f32 %v3983, %v3983
        %v4087 = vmul.f32 %v3984, %v3984
        %v4088 = vmul.f32 %v3985, %v3985
        %v4089 = vmul.f32 %v3986, %v3986
        %v4090 = vmul.f32 %v3987, %v3987
        %v4091 = vmul.f32 %v3988, %v3988
        %v4092 = vmul.f32 %v3989, %v3989
        %v4093 = vmul.f32 %v3990, %v3990
        %v4094 = vmul.f32 %v3991, %v3991
        %v4095 = vmul.f32 %v3992, %v3992
        %v4096 = vmul.f32 %v3993, %v3993
        %v4097 = vmul.f32 %v3994, %v3994
        %v4098 = vmul.f32 %v3995, %v3995
        %v4099 = vmul.f32 %v3996, %v3996
        %v4100 = vmul.f32 %v3997, %v3997
        %v4101 = vmul.f32 %v3998, %v3998
        %v4102 = vmul.f32 %v3999, %v3999
        %v4103 = vmul.f32 %v4000, %v4000
        %v4104 = vmul.f32 %v4001, %v4001
        %v4105 = vmul.f32 %v4002, %v4002
        %v4106 = vmul.f32 %v4003, %v4003
        %v4107 = vmul.f32 %v4004, %v4004
        %v4108 = vmul.f32 %v4005, %v4005
        %v4109 = vmul.f32 %v4006, %v4006
        %v4110 = vmul.f32 %v4007, %v4007
        %v4111 = vmul.f32 %v4008, %v4008
        %v4112 = vmul.f32 %v4009, %v4009
        %v4113 = vmul.f32 %v4010, %v4010
        %v4114 = vmul.f32 %v4011, %v4011
        %v4115 = vmul.f32 %v4012, %v4012
        %v4116 = vmul.f32 %v4013, %v4013
        %v4117 = vmul.f32 %v4014, %v4014
        %v4118 = vsel %vm3324, %v4086, 0.0
        %v4119 = vsel %vm3324, %v4087, 0.0
        %v4120 = vadd.f32 %v4118, %v4119
        %v4121 = vsel %vm3324, %v4088, 0.0
        %v4122 = vadd.f32 %v4120, %v4121
        %v4123 = vsel %vm3324, %v4089, 0.0
        %v4124 = vadd.f32 %v4122, %v4123
        %v4125 = vsel %vm3324, %v4090, 0.0
        %v4126 = vadd.f32 %v4124, %v4125
        %v4127 = vsel %vm3324, %v4091, 0.0
        %v4128 = vadd.f32 %v4126, %v4127
        %v4129 = vsel %vm3324, %v4092, 0.0
        %v4130 = vadd.f32 %v4128, %v4129
        %v4131 = vsel %vm3324, %v4093, 0.0
        %v4132 = vadd.f32 %v4130, %v4131
        %v4133 = vsel %vm3324, %v4094, 0.0
        %v4134 = vadd.f32 %v4132, %v4133
        %v4135 = vsel %vm3324, %v4095, 0.0
        %v4136 = vadd.f32 %v4134, %v4135
        %v4137 = vsel %vm3324, %v4096, 0.0
        %v4138 = vadd.f32 %v4136, %v4137
        %v4139 = vsel %vm3324, %v4097, 0.0
        %v4140 = vadd.f32 %v4138, %v4139
        %v4141 = vsel %vm3324, %v4098, 0.0
        %v4142 = vadd.f32 %v4140, %v4141
        %v4143 = vsel %vm3324, %v4099, 0.0
        %v4144 = vadd.f32 %v4142, %v4143
        %v4145 = vsel %vm3324, %v4100, 0.0
        %v4146 = vadd.f32 %v4144, %v4145
        %v4147 = vsel %vm3324, %v4101, 0.0
        %v4148 = vadd.f32 %v4146, %v4147
        %v4149 = vsel %vm3324, %v4102, 0.0
        %v4150 = vadd.f32 %v4148, %v4149
        %v4151 = vsel %vm3324, %v4103, 0.0
        %v4152 = vadd.f32 %v4150, %v4151
        %v4153 = vsel %vm3324, %v4104, 0.0
        %v4154 = vadd.f32 %v4152, %v4153
        %v4155 = vsel %vm3324, %v4105, 0.0
        %v4156 = vadd.f32 %v4154, %v4155
        %v4157 = vsel %vm3324, %v4106, 0.0
        %v4158 = vadd.f32 %v4156, %v4157
        %v4159 = vsel %vm3324, %v4107, 0.0
        %v4160 = vadd.f32 %v4158, %v4159
        %v4161 = vsel %vm3324, %v4108, 0.0
        %v4162 = vadd.f32 %v4160, %v4161
        %v4163 = vsel %vm3324, %v4109, 0.0
        %v4164 = vadd.f32 %v4162, %v4163
        %v4165 = vsel %vm3324, %v4110, 0.0
        %v4166 = vadd.f32 %v4164, %v4165
        %v4167 = vsel %vm3324, %v4111, 0.0
        %v4168 = vadd.f32 %v4166, %v4167
        %v4169 = vsel %vm3324, %v4112, 0.0
        %v4170 = vadd.f32 %v4168, %v4169
        %v4171 = vsel %vm3324, %v4113, 0.0
        %v4172 = vadd.f32 %v4170, %v4171
        %v4173 = vsel %vm3324, %v4114, 0.0
        %v4174 = vadd.f32 %v4172, %v4173
        %v4175 = vsel %vm3324, %v4115, 0.0
        %v4176 = vadd.f32 %v4174, %v4175
        %v4177 = vsel %vm3324, %v4116, 0.0
        %v4178 = vadd.f32 %v4176, %v4177
        %v4179 = vsel %vm3324, %v4117, 0.0
        %v4180 = vadd.f32 %v4178, %v4179
        %v4181 = vrot.slane %v4180, 4
        %v4182 = vadd.f32 %v4180, %v4181
        %v4183 = vrot.slane %v4182, 2
        %v4184 = vadd.f32 %v4182, %v4183
        %v4185 = vrot.slane %v4184, 1
        %v4186 = vadd.f32 %v4184, %v4185
        %4187 = vst.msk [vmem:[%s253 + $0x1] sm:$0x1] %vm4084, %v4186
        %s4188 = sand.u32 %s102, 1
        %s4189 = scalar_lea.sflag [#allocation4], %s4188
        %s4190 = sand.u32 %s102, 1
        %s4191 = smul.addr %s4190, 128
        %s4192 = scalar_lea.vmem [#allocation8], %s4191
        %s4193 = sand.u32 %s128, 1
        %s4194 = scalar_lea.sflag [#allocation10], %s4193
        %s4195 = sand.u32 %s128, 1
        %s4196 = smul.addr %s4195, 2
        %s4197 = scalar_lea.vmem [#allocation9], %s4196
        // Predicated region
        $region45: #{bottleneck_forward.5} parent=31 // pred_check
          %p4198 = pneg %p112
        $region46: #{bottleneck_forward.5} parent=31 // pred_check_branch
          %4200 = sbr.rel (%p4198) target = $region48
        $region47: #{bottleneck_forward.5} parent=31 // pred_region
          %s4202 = ssub.s32 2048, 2048
          %4203 = vsyncadd %s4189, %s4202
          %s4204 = smul.addr %s26, 32
          %s4205 = smul.addr %s4204, 64
          %s4206 = scalar_lea.hbm %s3, %s4205
          %s4207 = sshll.u32 %s4192, 4
          %s4208 = int_to_ptr.vmem [resolvable:$true] %s4207
          %4213 = dma.vmem_to_hbm [thread:$0]  %s4208, 2048, %s4206, %s4189, 64, 64, 4
        $region48: #{bottleneck_forward.5} parent=31 // pred_fallthru
          _
        // Predicated region
        $region49: #{bottleneck_forward.5} parent=31 // pred_check
          %p4214 = pneg %p138
        $region50: #{bottleneck_forward.5} parent=31 // pred_check_branch
          %4216 = sbr.rel (%p4214) target = $region52
        $region51: #{bottleneck_forward.5} parent=31 // pred_region
          %s4218 = ssub.s32 32, 32
          %4219 = vsyncadd %s4194, %s4218
          %s4220 = smul.addr %s26, 32
          %s4221 = scalar_lea.hbm %s4, %s4220
          %s4223 = sshll.u32 %s4197, 4
          %s4224 = int_to_ptr.vmem [resolvable:$true] %s4223
          %4226 = dma.vmem_to_hbm [thread:$0]  %s4224, 32, %s4221, %s4194
        $region52: #{bottleneck_forward.5} parent=31 // pred_fallthru
          _
      $region32: #{bottleneck_forward.5} parent=5 // pred_fallthru
        _
      %p4227 = scmp.le.s32.totalorder 2, %s21
      // Predicated region
      $region53: #{bottleneck_forward.5} parent=5 // pred_check
        %p4228 = pneg %p4227
      $region54: #{bottleneck_forward.5} parent=5 // pred_check_branch
        %4230 = sbr.rel (%p4228) target = $region56
      $region55: #{bottleneck_forward.5} parent=5 // pred_region
        %s4231 = ssub.s32 %s21, 2
        // Predicated region
        $region57: #{bottleneck_forward.5} parent=55 // pred_check
          %p4232 = pneg %p118
        $region58: #{bottleneck_forward.5} parent=55 // pred_check_branch
          %4234 = sbr.rel (%p4232) target = $region60
        $region59: #{bottleneck_forward.5} parent=55 // pred_region
          %s4235 = sand.u32 %s103, 1
          %s4236 = scalar_lea.sflag [#allocation4], %s4235
          %s4237 = sand.u32 %s103, 1
          %s4238 = smul.addr %s4237, 128
          %s4239 = scalar_lea.vmem [#allocation8], %s4238
          %4240 = dma.done %s4236, 2048
        $region60: #{bottleneck_forward.5} parent=55 // pred_fallthru
          _
        // Predicated region
        $region61: #{bottleneck_forward.5} parent=55 // pred_check
          %p4241 = pneg %p144
        $region62: #{bottleneck_forward.5} parent=55 // pred_check_branch
          %4243 = sbr.rel (%p4241) target = $region64
        $region63: #{bottleneck_forward.5} parent=55 // pred_region
          %s4244 = sand.u32 %s129, 1
          %s4245 = scalar_lea.sflag [#allocation10], %s4244
          %s4246 = sand.u32 %s129, 1
          %s4247 = smul.addr %s4246, 2
          %s4248 = scalar_lea.vmem [#allocation9], %s4247
          %4249 = dma.done %s4245, 32
        $region64: #{bottleneck_forward.5} parent=55 // pred_fallthru
          _
      $region56: #{bottleneck_forward.5} parent=5 // pred_fallthru
        _
    $region6: #{bottleneck_forward.5} parent=1 // loop_footer
      %s25 = sadd.s32 1, %s21
    $region7: #{bottleneck_forward.5} parent=1 // loop_footer_branch
      %20 = sbr.rel target = $region3
    $region8: #{bottleneck_forward.5} parent=1 // loop_exit
      _
    %4250 = vsyncpa [#allocation3], 1
    %s4251 = scalar_lea.sflag [#allocation3], 1
    %4252 = vsyncpa %s4251, 1
    %4253 = vsyncpa [#allocation6], 1
    %4254 = vsyncpa [#allocation4], 1
    %s4255 = scalar_lea.sflag [#allocation4], 1
    %4256 = vsyncpa %s4255, 1
    %4257 = vsyncpa [#allocation10], 1
    %s4258 = scalar_lea.sflag [#allocation10], 1
    %4259 = vsyncpa %s4258, 1

</llo_original>
